<compile_context>
chip_gen: v7x
topology: tpu7x:2x2x1
jax: 0.10.0
libtpu: 0.0.40
codegen_flags: <defaults>
</compile_context>

<pallas_src>
import functools
import math

import jax
import jax.numpy as jnp
from jax.experimental import pallas as pl
from jax.experimental.pallas import tpu as pltpu

HIDDEN = 512

# 32 MiB is plenty (actual working set ~10 MiB) and valid on v5e/v6e (128 MiB) and v7x (64 MiB).
_COMPILER_PARAMS = pltpu.CompilerParams(
    dimension_semantics=("arbitrary",),
    vmem_limit_bytes=32 * 1024 * 1024,
)


def _full_spec(shape):
    # full-array block; index_map tolerant to however many grid axes are passed
    return pl.BlockSpec(shape, lambda *_: (0,) * len(shape))


# ---------------------------------------------------------------------------
# Conv-as-matmul kernel: (patches_bf16 @ W_bf16) in f32, + bias, ReLU, store bf16.
# ---------------------------------------------------------------------------
def _conv_matmul_kernel(p_ref, w_ref, b_ref, o_ref):
    acc = jnp.dot(p_ref[...], w_ref[...], preferred_element_type=jnp.float32)
    acc = jnp.maximum(acc + b_ref[...], 0.0)          # bias + ReLU in f32 (VPU)
    o_ref[...] = acc.astype(o_ref.dtype)              # store bf16 activation


def conv_matmul(patches, w_mat, b):
    M, K = patches.shape
    K2, N = w_mat.shape
    assert K == K2
    return pl.pallas_call(
        _conv_matmul_kernel,
        out_shape=jax.ShapeDtypeStruct((M, N), jnp.bfloat16),
        grid=(1,),
        in_specs=[_full_spec((M, K)), _full_spec((K, N)), _full_spec((1, N))],
        out_specs=_full_spec((M, N)),
        compiler_params=_COMPILER_PARAMS,
    )(patches, w_mat, b)


# ---------------------------------------------------------------------------
# im2col via static shifted strided slices (wrapper-side XLA; no gather, no 6-D transpose).
# Feature order is (dh, dw, c), matching the (kh, kw, C, O)-flattened weight matrix.
# ---------------------------------------------------------------------------
def _im2col(x_nhwc, kh, kw, stride):
    B, H, W, C = x_nhwc.shape
    oh = (H - kh) // stride + 1
    ow = (W - kw) // stride + 1
    cols = []
    for dh in range(kh):
        for dw in range(kw):
            sl = x_nhwc[:, dh:dh + (oh - 1) * stride + 1:stride,
                           dw:dw + (ow - 1) * stride + 1:stride, :]
            cols.append(sl)                            # (B, oh, ow, C)
    patches = jnp.concatenate(cols, axis=-1)           # (B, oh, ow, kh*kw*C)
    return patches.reshape(B * oh * ow, kh * kw * C), oh, ow


# ---------------------------------------------------------------------------
# Fused tail: linear1 + ReLU + GRUCell + critic head in a single kernel.
# GRU gate chunk ordering (r, z, n) and h_in = states * masks match torch.nn.GRUCell.
# MXU operands bf16, accumulation f32, all gate math f32.
# ---------------------------------------------------------------------------
def _tail_gru_kernel(x_ref, h_ref, m_ref, w1_ref, b1_ref,
                     wih_ref, whh_ref, bih_ref, bhh_ref, wc_ref, bc_ref,
                     xout_ref, val_ref):
    # linear1 + ReLU
    y = jnp.dot(x_ref[...], w1_ref[...], preferred_element_type=jnp.float32) + b1_ref[...]
    y = jnp.maximum(y, 0.0)
    # GRUCell
    h = h_ref[...] * m_ref[...]                        # states * masks (f32)
    gi = jnp.dot(y.astype(jnp.bfloat16), wih_ref[...],
                 preferred_element_type=jnp.float32) + bih_ref[...]
    gh = jnp.dot(h.astype(jnp.bfloat16), whh_ref[...],
                 preferred_element_type=jnp.float32) + bhh_ref[...]
    Hd = h_ref.shape[-1]
    r = jax.nn.sigmoid(gi[:, :Hd] + gh[:, :Hd])
    z = jax.nn.sigmoid(gi[:, Hd:2 * Hd] + gh[:, Hd:2 * Hd])
    n = jnp.tanh(gi[:, 2 * Hd:] + r * gh[:, 2 * Hd:])
    hn = (1.0 - z) * n + z * h
    xout_ref[...] = hn
    # critic head (512 -> 1) as a row reduction; fused so no separate (B,1) pallas_call
    val_ref[...] = jnp.sum(hn * wc_ref[...], axis=-1, keepdims=True) + bc_ref[...]


def tail_gru(x, states, masks, p):
    B, K = x.shape
    Hd = states.shape[1]
    return pl.pallas_call(
        _tail_gru_kernel,
        out_shape=(jax.ShapeDtypeStruct((B, Hd), jnp.float32),
                   jax.ShapeDtypeStruct((B, 1), jnp.float32)),
        grid=(1,),
        in_specs=[_full_spec((B, K)), _full_spec((B, Hd)), _full_spec((B, 1)),
                  _full_spec((K, Hd)), _full_spec((1, Hd)),
                  _full_spec((Hd, 3 * Hd)), _full_spec((Hd, 3 * Hd)),
                  _full_spec((1, 3 * Hd)), _full_spec((1, 3 * Hd)),
                  _full_spec((1, Hd)), _full_spec((1, 1))],
        out_specs=(_full_spec((B, Hd)), _full_spec((B, 1))),
        compiler_params=_COMPILER_PARAMS,
    )(x, states, masks, p["linear1_w_t"], p["linear1_b"],
      p["gru_wih_t"], p["gru_whh_t"], p["gru_bih"], p["gru_bhh"],
      p["critic_w"], p["critic_b"])


# Fused tail without GRU: linear1 + ReLU + critic.
def _tail_nogru_kernel(x_ref, w1_ref, b1_ref, wc_ref, bc_ref, xout_ref, val_ref):
    y = jnp.dot(x_ref[...], w1_ref[...], preferred_element_type=jnp.float32) + b1_ref[...]
    y = jnp.maximum(y, 0.0)
    xout_ref[...] = y
    val_ref[...] = jnp.sum(y * wc_ref[...], axis=-1, keepdims=True) + bc_ref[...]


def tail_nogru(x, p):
    B, K = x.shape
    Hd = HIDDEN
    return pl.pallas_call(
        _tail_nogru_kernel,
        out_shape=(jax.ShapeDtypeStruct((B, Hd), jnp.float32),
                   jax.ShapeDtypeStruct((B, 1), jnp.float32)),
        grid=(1,),
        in_specs=[_full_spec((B, K)), _full_spec((K, Hd)), _full_spec((1, Hd)),
                  _full_spec((1, Hd)), _full_spec((1, 1))],
        out_specs=(_full_spec((B, Hd)), _full_spec((B, 1))),
        compiler_params=_COMPILER_PARAMS,
    )(x, p["linear1_w_t"], p["linear1_b"], p["critic_w"], p["critic_b"])


# ---------------------------------------------------------------------------
# Full CNNPolicy.forward
# ---------------------------------------------------------------------------
# TODO(synk): fully fusing the conv stack into the tail kernel (single pallas_call with
#   VMEM-resident conv intermediates + async weight prefetch) needs in-kernel strided
#   patch extraction / relayout reshapes; left as follow-up.
# TODO(synk): the multi-step unrolled GRU branch (inputs T*B vs states B) is not implemented.
# TODO(synk): for realistic batch sizes add a batch grid axis with
#   dimension_semantics=("parallel", ...) to use v7x's second TensorCore.
@functools.partial(jax.jit, static_argnames=("use_gru",))
def cnn_policy_forward(params, inputs_nchw, states, masks, use_gru=True):
    # NCHW -> NHWC, bf16 (0..255 integers are exact in bf16; /255 is folded into conv1 weights)
    x = jnp.transpose(inputs_nchw, (0, 2, 3, 1)).astype(jnp.bfloat16)
    B = x.shape[0]

    p1, oh, ow = _im2col(x, 8, 8, 4)
    x = conv_matmul(p1, params["conv1_wmat"], params["conv1_b"]).reshape(B, oh, ow, 32)

    p2, oh, ow = _im2col(x, 4, 4, 2)
    x = conv_matmul(p2, params["conv2_wmat"], params["conv2_b"]).reshape(B, oh, ow, 64)

    p3, oh, ow = _im2col(x, 3, 3, 1)
    x = conv_matmul(p3, params["conv3_wmat"], params["conv3_b"])        # (B*7*7, 32), bf16

    # NHWC (h, w, c) flatten — pure row-major view, linear1 weight rows are pre-permuted to match
    feat = x.reshape(B, 32 * 7 * 7)

    if use_gru:
        x_out, value = tail_gru(feat, states, masks, params)
        states = x_out
    else:
        x_out, value = tail_nogru(feat, params)
    return value, x_out, states


# ---------------------------------------------------------------------------
# Deterministic synthetic parameter init (PyTorch-layout tensors, then one-time
# transforms to kernel-ready bf16 matmul matrices; orthogonal init approximated
# with scaled Gaussians, biases zero).
# ---------------------------------------------------------------------------
def init_params(key, num_inputs):
    ks = jax.random.split(key, 8)
    relu_gain = math.sqrt(2.0)

    def w(k, shape, scale=0.05):
        return jax.random.normal(k, shape, jnp.float32) * scale

    def conv_wmat(w_oihw, extra_scale=1.0):
        O, C, kh, kw = w_oihw.shape
        m = jnp.transpose(w_oihw, (2, 3, 1, 0)).reshape(kh * kw * C, O)   # (dh, dw, c) rows
        return (m * extra_scale).astype(jnp.bfloat16)

    p = {}
    conv1_w = w(ks[0], (32, num_inputs, 8, 8)) * relu_gain
    conv2_w = w(ks[1], (64, 32, 4, 4)) * relu_gain
    conv3_w = w(ks[2], (32, 64, 3, 3)) * relu_gain
    p["conv1_wmat"] = conv_wmat(conv1_w, 1.0 / 255.0)     # fold the /255 input scaling
    p["conv2_wmat"] = conv_wmat(conv2_w)
    p["conv3_wmat"] = conv_wmat(conv3_w)
    p["conv1_b"] = jnp.zeros((1, 32), jnp.float32)
    p["conv2_b"] = jnp.zeros((1, 64), jnp.float32)
    p["conv3_b"] = jnp.zeros((1, 32), jnp.float32)

    # linear1: PyTorch weight (512, 1568) with input index c*49 + h*7 + w.
    # Permute rows once so the kernel consumes the NHWC-flattened (h, w, c) activation directly.
    l1 = w(ks[3], (HIDDEN, 32 * 7 * 7)) * relu_gain
    l1_t = jnp.transpose(l1)                                         # rows ordered (c, h, w)
    l1_t = l1_t.reshape(32, 7, 7, HIDDEN).transpose(1, 2, 0, 3).reshape(32 * 7 * 7, HIDDEN)
    p["linear1_w_t"] = l1_t.astype(jnp.bfloat16)
    p["linear1_b"] = jnp.zeros((1, HIDDEN), jnp.float32)

    # GRUCell: weight_ih / weight_hh are (3*512, 512) with (r, z, n) chunks; store transposed bf16.
    p["gru_wih_t"] = jnp.transpose(w(ks[4], (3 * HIDDEN, HIDDEN))).astype(jnp.bfloat16)
    p["gru_whh_t"] = jnp.transpose(w(ks[5], (3 * HIDDEN, HIDDEN))).astype(jnp.bfloat16)
    p["gru_bih"] = jnp.zeros((1, 3 * HIDDEN), jnp.float32)
    p["gru_bhh"] = jnp.zeros((1, 3 * HIDDEN), jnp.float32)

    # critic_linear: (1, 512) — kept f32 (tiny; fused as a VPU row reduction).
    p["critic_w"] = w(ks[6], (1, HIDDEN))
    p["critic_b"] = jnp.zeros((1, 1), jnp.float32)
    return p


if __name__ == "__main__":
    key = jax.random.PRNGKey(0)
    k_param, k_in, k_state = jax.random.split(key, 3)

    B, num_inputs = 2, 4                      # spatial must be 84x84 (linear1 expects 32*7*7)
    params = init_params(k_param, num_inputs)

    inputs = jax.random.uniform(k_in, (B, num_inputs, 84, 84), jnp.float32) * 255.0
    states = jax.random.normal(k_state, (B, HIDDEN), jnp.float32)
    masks = jnp.ones((B, 1), jnp.float32)

    value, x_out, states_out = cnn_policy_forward(params, inputs, states, masks, use_gru=True)
    jax.block_until_ready((value, x_out, states_out))

    assert value.shape == (B, 1)
    assert x_out.shape == (B, HIDDEN)
    assert states_out.shape == (B, HIDDEN)
    assert bool(jnp.all(jnp.isfinite(value))) and bool(jnp.all(jnp.isfinite(x_out)))
    print("KERNEL_OK")
</pallas_src>

<mosaic_0001>
module attributes {stable_mosaic.version = 11 : i64} {
  func.func @_conv_matmul_kernel(%arg0: i32, %arg1: memref<800x256xbf16, #tpu.memory_space<vmem>>, %arg2: memref<256x32xbf16, #tpu.memory_space<vmem>>, %arg3: memref<1x32xf32, #tpu.memory_space<vmem>>, %arg4: memref<800x32xbf16, #tpu.memory_space<vmem>>) attributes {dimension_semantics = [#tpu.dimension_semantics<arbitrary>], iteration_bounds = array<i64: 1>, scalar_prefetch = 0 : i64, scratch_operands = 0 : i64, tpu.core_type = #tpu.core_type<tc>, window_params = [{pipeline_mode = #tpu.pipeline_mode<synchronous>, transform_indices = @transform_0, window_bounds = array<i64: 800, 256>}, {pipeline_mode = #tpu.pipeline_mode<synchronous>, transform_indices = @transform_1, window_bounds = array<i64: 256, 32>}, {pipeline_mode = #tpu.pipeline_mode<synchronous>, transform_indices = @transform_2, window_bounds = array<i64: 1, 32>}, {pipeline_mode = #tpu.pipeline_mode<synchronous>, transform_indices = @transform_3, window_bounds = array<i64: 800, 32>}]} {
    %c0 = arith.constant 0 : index
    %c0_0 = arith.constant 0 : index
    %0 = vector.load %arg1[%c0, %c0_0] : memref<800x256xbf16, #tpu.memory_space<vmem>>, vector<800x256xbf16>
    %c0_1 = arith.constant 0 : index
    %c0_2 = arith.constant 0 : index
    %1 = vector.load %arg2[%c0_1, %c0_2] : memref<256x32xbf16, #tpu.memory_space<vmem>>, vector<256x32xbf16>
    %cst = arith.constant dense<0.000000e+00> : vector<800x32xf32>
    %2 = tpu.matmul %0, %1, %cst {dimension_numbers = #tpu.dot_dimension_numbers<[1], [0], [0], [1], [0, 0, 1, 1], [], []>} : vector<800x256xbf16>, vector<256x32xbf16>, vector<800x32xf32> -> vector<800x32xf32>
    %c0_3 = arith.constant 0 : index
    %c0_4 = arith.constant 0 : index
    %3 = vector.load %arg3[%c0_3, %c0_4] : memref<1x32xf32, #tpu.memory_space<vmem>>, vector<1x32xf32>
    %4 = vector.broadcast %3 : vector<1x32xf32> to vector<800x32xf32>
    %5 = arith.addf %2, %4 : vector<800x32xf32>
    %cst_5 = arith.constant 0.000000e+00 : f32
    %6 = vector.broadcast %cst_5 : f32 to vector<800x32xf32>
    %7 = arith.maximumf %5, %6 : vector<800x32xf32>
    %8 = arith.truncf %7 : vector<800x32xf32> to vector<800x32xbf16>
    %c0_6 = arith.constant 0 : index
    %c0_7 = arith.constant 0 : index
    %9 = vector.load %arg4[%c0_6, %c0_7] : memref<800x32xbf16, #tpu.memory_space<vmem>>, vector<800x32xbf16>
    tpu.vector_store %arg4[%c0_6, %c0_7], %8 {strides = array<i32>} : memref<800x32xbf16, #tpu.memory_space<vmem>>, vector<800x32xbf16>,
    return
  }
  func.func @transform_0(%arg0: i32) -> (i32, i32) {
    %c0_i32 = arith.constant 0 : i32
    %c0_i32_0 = arith.constant 0 : i32
    %c0_i32_1 = arith.constant 0 : i32
    return %c0_i32, %c0_i32_0 : i32, i32
  }
  func.func @transform_1(%arg0: i32) -> (i32, i32) {
    %c0_i32 = arith.constant 0 : i32
    %c0_i32_0 = arith.constant 0 : i32
    %c0_i32_1 = arith.constant 0 : i32
    return %c0_i32, %c0_i32_0 : i32, i32
  }
  func.func @transform_2(%arg0: i32) -> (i32, i32) {
    %c0_i32 = arith.constant 0 : i32
    %c0_i32_0 = arith.constant 0 : i32
    %c0_i32_1 = arith.constant 0 : i32
    return %c0_i32, %c0_i32_0 : i32, i32
  }
  func.func @transform_3(%arg0: i32) -> (i32, i32) {
    %c0_i32 = arith.constant 0 : i32
    %c0_i32_0 = arith.constant 0 : i32
    %c0_i32_1 = arith.constant 0 : i32
    return %c0_i32, %c0_i32_0 : i32, i32
  }
}

module attributes {stable_mosaic.version = 11 : i64} {
  func.func @_conv_matmul_kernel(%arg0: i32, %arg1: memref<162x512xbf16, #tpu.memory_space<vmem>>, %arg2: memref<512x64xbf16, #tpu.memory_space<vmem>>, %arg3: memref<1x64xf32, #tpu.memory_space<vmem>>, %arg4: memref<162x64xbf16, #tpu.memory_space<vmem>>) attributes {dimension_semantics = [#tpu.dimension_semantics<arbitrary>], iteration_bounds = array<i64: 1>, scalar_prefetch = 0 : i64, scratch_operands = 0 : i64, tpu.core_type = #tpu.core_type<tc>, window_params = [{pipeline_mode = #tpu.pipeline_mode<synchronous>, transform_indices = @transform_0, window_bounds = array<i64: 162, 512>}, {pipeline_mode = #tpu.pipeline_mode<synchronous>, transform_indices = @transform_1, window_bounds = array<i64: 512, 64>}, {pipeline_mode = #tpu.pipeline_mode<synchronous>, transform_indices = @transform_2, window_bounds = array<i64: 1, 64>}, {pipeline_mode = #tpu.pipeline_mode<synchronous>, transform_indices = @transform_3, window_bounds = array<i64: 162, 64>}]} {
    %c0 = arith.constant 0 : index
    %c0_0 = arith.constant 0 : index
    %0 = vector.load %arg1[%c0, %c0_0] : memref<162x512xbf16, #tpu.memory_space<vmem>>, vector<162x512xbf16>
    %c0_1 = arith.constant 0 : index
    %c0_2 = arith.constant 0 : index
    %1 = vector.load %arg2[%c0_1, %c0_2] : memref<512x64xbf16, #tpu.memory_space<vmem>>, vector<512x64xbf16>
    %cst = arith.constant dense<0.000000e+00> : vector<162x64xf32>
    %2 = tpu.matmul %0, %1, %cst {dimension_numbers = #tpu.dot_dimension_numbers<[1], [0], [0], [1], [0, 0, 1, 1], [], []>} : vector<162x512xbf16>, vector<512x64xbf16>, vector<162x64xf32> -> vector<162x64xf32>
    %c0_3 = arith.constant 0 : index
    %c0_4 = arith.constant 0 : index
    %3 = vector.load %arg3[%c0_3, %c0_4] : memref<1x64xf32, #tpu.memory_space<vmem>>, vector<1x64xf32>
    %4 = vector.broadcast %3 : vector<1x64xf32> to vector<162x64xf32>
    %5 = arith.addf %2, %4 : vector<162x64xf32>
    %cst_5 = arith.constant 0.000000e+00 : f32
    %6 = vector.broadcast %cst_5 : f32 to vector<162x64xf32>
    %7 = arith.maximumf %5, %6 : vector<162x64xf32>
    %8 = arith.truncf %7 : vector<162x64xf32> to vector<162x64xbf16>
    %c0_6 = arith.constant 0 : index
    %c0_7 = arith.constant 0 : index
    %9 = vector.load %arg4[%c0_6, %c0_7] : memref<162x64xbf16, #tpu.memory_space<vmem>>, vector<162x64xbf16>
    tpu.vector_store %arg4[%c0_6, %c0_7], %8 {strides = array<i32>} : memref<162x64xbf16, #tpu.memory_space<vmem>>, vector<162x64xbf16>,
    return
  }
  func.func @transform_0(%arg0: i32) -> (i32, i32) {
    %c0_i32 = arith.constant 0 : i32
    %c0_i32_0 = arith.constant 0 : i32
    %c0_i32_1 = arith.constant 0 : i32
    return %c0_i32, %c0_i32_0 : i32, i32
  }
  func.func @transform_1(%arg0: i32) -> (i32, i32) {
    %c0_i32 = arith.constant 0 : i32
    %c0_i32_0 = arith.constant 0 : i32
    %c0_i32_1 = arith.constant 0 : i32
    return %c0_i32, %c0_i32_0 : i32, i32
  }
  func.func @transform_2(%arg0: i32) -> (i32, i32) {
    %c0_i32 = arith.constant 0 : i32
    %c0_i32_0 = arith.constant 0 : i32
    %c0_i32_1 = arith.constant 0 : i32
    return %c0_i32, %c0_i32_0 : i32, i32
  }
  func.func @transform_3(%arg0: i32) -> (i32, i32) {
    %c0_i32 = arith.constant 0 : i32
    %c0_i32_0 = arith.constant 0 : i32
    %c0_i32_1 = arith.constant 0 : i32
    return %c0_i32, %c0_i32_0 : i32, i32
  }
}

module attributes {stable_mosaic.version = 11 : i64} {
  func.func @_conv_matmul_kernel(%arg0: i32, %arg1: memref<98x576xbf16, #tpu.memory_space<vmem>>, %arg2: memref<576x32xbf16, #tpu.memory_space<vmem>>, %arg3: memref<1x32xf32, #tpu.memory_space<vmem>>, %arg4: memref<98x32xbf16, #tpu.memory_space<vmem>>) attributes {dimension_semantics = [#tpu.dimension_semantics<arbitrary>], iteration_bounds = array<i64: 1>, scalar_prefetch = 0 : i64, scratch_operands = 0 : i64, tpu.core_type = #tpu.core_type<tc>, window_params = [{pipeline_mode = #tpu.pipeline_mode<synchronous>, transform_indices = @transform_0, window_bounds = array<i64: 98, 576>}, {pipeline_mode = #tpu.pipeline_mode<synchronous>, transform_indices = @transform_1, window_bounds = array<i64: 576, 32>}, {pipeline_mode = #tpu.pipeline_mode<synchronous>, transform_indices = @transform_2, window_bounds = array<i64: 1, 32>}, {pipeline_mode = #tpu.pipeline_mode<synchronous>, transform_indices = @transform_3, window_bounds = array<i64: 98, 32>}]} {
    %c0 = arith.constant 0 : index
    %c0_0 = arith.constant 0 : index
    %0 = vector.load %arg1[%c0, %c0_0] : memref<98x576xbf16, #tpu.memory_space<vmem>>, vector<98x576xbf16>
    %c0_1 = arith.constant 0 : index
    %c0_2 = arith.constant 0 : index
    %1 = vector.load %arg2[%c0_1, %c0_2] : memref<576x32xbf16, #tpu.memory_space<vmem>>, vector<576x32xbf16>
    %cst = arith.constant dense<0.000000e+00> : vector<98x32xf32>
    %2 = tpu.matmul %0, %1, %cst {dimension_numbers = #tpu.dot_dimension_numbers<[1], [0], [0], [1], [0, 0, 1, 1], [], []>} : vector<98x576xbf16>, vector<576x32xbf16>, vector<98x32xf32> -> vector<98x32xf32>
    %c0_3 = arith.constant 0 : index
    %c0_4 = arith.constant 0 : index
    %3 = vector.load %arg3[%c0_3, %c0_4] : memref<1x32xf32, #tpu.memory_space<vmem>>, vector<1x32xf32>
    %4 = vector.broadcast %3 : vector<1x32xf32> to vector<98x32xf32>
    %5 = arith.addf %2, %4 : vector<98x32xf32>
    %cst_5 = arith.constant 0.000000e+00 : f32
    %6 = vector.broadcast %cst_5 : f32 to vector<98x32xf32>
    %7 = arith.maximumf %5, %6 : vector<98x32xf32>
    %8 = arith.truncf %7 : vector<98x32xf32> to vector<98x32xbf16>
    %c0_6 = arith.constant 0 : index
    %c0_7 = arith.constant 0 : index
    %9 = vector.load %arg4[%c0_6, %c0_7] : memref<98x32xbf16, #tpu.memory_space<vmem>>, vector<98x32xbf16>
    tpu.vector_store %arg4[%c0_6, %c0_7], %8 {strides = array<i32>} : memref<98x32xbf16, #tpu.memory_space<vmem>>, vector<98x32xbf16>,
    return
  }
  func.func @transform_0(%arg0: i32) -> (i32, i32) {
    %c0_i32 = arith.constant 0 : i32
    %c0_i32_0 = arith.constant 0 : i32
    %c0_i32_1 = arith.constant 0 : i32
    return %c0_i32, %c0_i32_0 : i32, i32
  }
  func.func @transform_1(%arg0: i32) -> (i32, i32) {
    %c0_i32 = arith.constant 0 : i32
    %c0_i32_0 = arith.constant 0 : i32
    %c0_i32_1 = arith.constant 0 : i32
    return %c0_i32, %c0_i32_0 : i32, i32
  }
  func.func @transform_2(%arg0: i32) -> (i32, i32) {
    %c0_i32 = arith.constant 0 : i32
    %c0_i32_0 = arith.constant 0 : i32
    %c0_i32_1 = arith.constant 0 : i32
    return %c0_i32, %c0_i32_0 : i32, i32
  }
  func.func @transform_3(%arg0: i32) -> (i32, i32) {
    %c0_i32 = arith.constant 0 : i32
    %c0_i32_0 = arith.constant 0 : i32
    %c0_i32_1 = arith.constant 0 : i32
    return %c0_i32, %c0_i32_0 : i32, i32
  }
}

module attributes {stable_mosaic.version = 11 : i64} {
  func.func @_tail_gru_kernel(%arg0: i32, %arg1: memref<2x1568xbf16, #tpu.memory_space<vmem>>, %arg2: memref<2x512xf32, #tpu.memory_space<vmem>>, %arg3: memref<2x1xf32, #tpu.memory_space<vmem>>, %arg4: memref<1568x512xbf16, #tpu.memory_space<vmem>>, %arg5: memref<1x512xf32, #tpu.memory_space<vmem>>, %arg6: memref<512x1536xbf16, #tpu.memory_space<vmem>>, %arg7: memref<512x1536xbf16, #tpu.memory_space<vmem>>, %arg8: memref<1x1536xf32, #tpu.memory_space<vmem>>, %arg9: memref<1x1536xf32, #tpu.memory_space<vmem>>, %arg10: memref<1x512xf32, #tpu.memory_space<vmem>>, %arg11: memref<1x1xf32, #tpu.memory_space<vmem>>, %arg12: memref<2x512xf32, #tpu.memory_space<vmem>>, %arg13: memref<2x1xf32, #tpu.memory_space<vmem>>) attributes {dimension_semantics = [#tpu.dimension_semantics<arbitrary>], iteration_bounds = array<i64: 1>, scalar_prefetch = 0 : i64, scratch_operands = 0 : i64, tpu.core_type = #tpu.core_type<tc>, window_params = [{pipeline_mode = #tpu.pipeline_mode<synchronous>, transform_indices = @transform_0, window_bounds = array<i64: 2, 1568>}, {pipeline_mode = #tpu.pipeline_mode<synchronous>, transform_indices = @transform_1, window_bounds = array<i64: 2, 512>}, {pipeline_mode = #tpu.pipeline_mode<synchronous>, transform_indices = @transform_2, window_bounds = array<i64: 2, 1>}, {pipeline_mode = #tpu.pipeline_mode<synchronous>, transform_indices = @transform_3, window_bounds = array<i64: 1568, 512>}, {pipeline_mode = #tpu.pipeline_mode<synchronous>, transform_indices = @transform_4, window_bounds = array<i64: 1, 512>}, {pipeline_mode = #tpu.pipeline_mode<synchronous>, transform_indices = @transform_5, window_bounds = array<i64: 512, 1536>}, {pipeline_mode = #tpu.pipeline_mode<synchronous>, transform_indices = @transform_6, window_bounds = array<i64: 512, 1536>}, {pipeline_mode = #tpu.pipeline_mode<synchronous>, transform_indices = @transform_7, window_bounds = array<i64: 1, 1536>}, {pipeline_mode = #tpu.pipeline_mode<synchronous>, transform_indices = @transform_8, window_bounds = array<i64: 1, 1536>}, {pipeline_mode = #tpu.pipeline_mode<synchronous>, transform_indices = @transform_9, window_bounds = array<i64: 1, 512>}, {pipeline_mode = #tpu.pipeline_mode<synchronous>, transform_indices = @transform_10, window_bounds = array<i64: 1, 1>}, {pipeline_mode = #tpu.pipeline_mode<synchronous>, transform_indices = @transform_11, window_bounds = array<i64: 2, 512>}, {pipeline_mode = #tpu.pipeline_mode<synchronous>, transform_indices = @transform_12, window_bounds = array<i64: 2, 1>}]} {
    %c0 = arith.constant 0 : index
    %c0_0 = arith.constant 0 : index
    %0 = vector.load %arg1[%c0, %c0_0] : memref<2x1568xbf16, #tpu.memory_space<vmem>>, vector<2x1568xbf16>
    %c0_1 = arith.constant 0 : index
    %c0_2 = arith.constant 0 : index
    %1 = vector.load %arg4[%c0_1, %c0_2] : memref<1568x512xbf16, #tpu.memory_space<vmem>>, vector<1568x512xbf16>
    %cst = arith.constant dense<0.000000e+00> : vector<2x512xf32>
    %2 = tpu.matmul %0, %1, %cst {dimension_numbers = #tpu.dot_dimension_numbers<[1], [0], [0], [1], [0, 0, 1, 1], [], []>} : vector<2x1568xbf16>, vector<1568x512xbf16>, vector<2x512xf32> -> vector<2x512xf32>
    %c0_3 = arith.constant 0 : index
    %c0_4 = arith.constant 0 : index
    %3 = vector.load %arg5[%c0_3, %c0_4] : memref<1x512xf32, #tpu.memory_space<vmem>>, vector<1x512xf32>
    %4 = vector.broadcast %3 : vector<1x512xf32> to vector<2x512xf32>
    %5 = arith.addf %2, %4 : vector<2x512xf32>
    %cst_5 = arith.constant 0.000000e+00 : f32
    %6 = vector.broadcast %cst_5 : f32 to vector<2x512xf32>
    %7 = arith.maximumf %5, %6 : vector<2x512xf32>
    %c0_6 = arith.constant 0 : index
    %c0_7 = arith.constant 0 : index
    %8 = vector.load %arg2[%c0_6, %c0_7] : memref<2x512xf32, #tpu.memory_space<vmem>>, vector<2x512xf32>
    %c0_8 = arith.constant 0 : index
    %c0_9 = arith.constant 0 : index
    %9 = vector.load %arg3[%c0_8, %c0_9] : memref<2x1xf32, #tpu.memory_space<vmem>>, vector<2x1xf32>
    %10 = vector.broadcast %9 : vector<2x1xf32> to vector<2x512xf32>
    %11 = arith.mulf %8, %10 : vector<2x512xf32>
    %12 = arith.truncf %7 : vector<2x512xf32> to vector<2x512xbf16>
    %c0_10 = arith.constant 0 : index
    %c0_11 = arith.constant 0 : index
    %13 = vector.load %arg6[%c0_10, %c0_11] : memref<512x1536xbf16, #tpu.memory_space<vmem>>, vector<512x1536xbf16>
    %cst_12 = arith.constant dense<0.000000e+00> : vector<2x1536xf32>
    %14 = tpu.matmul %12, %13, %cst_12 {dimension_numbers = #tpu.dot_dimension_numbers<[1], [0], [0], [1], [0, 0, 1, 1], [], []>} : vector<2x512xbf16>, vector<512x1536xbf16>, vector<2x1536xf32> -> vector<2x1536xf32>
    %c0_13 = arith.constant 0 : index
    %c0_14 = arith.constant 0 : index
    %15 = vector.load %arg8[%c0_13, %c0_14] : memref<1x1536xf32, #tpu.memory_space<vmem>>, vector<1x1536xf32>
    %16 = vector.broadcast %15 : vector<1x1536xf32> to vector<2x1536xf32>
    %17 = arith.addf %14, %16 : vector<2x1536xf32>
    %18 = arith.truncf %11 : vector<2x512xf32> to vector<2x512xbf16>
    %c0_15 = arith.constant 0 : index
    %c0_16 = arith.constant 0 : index
    %19 = vector.load %arg7[%c0_15, %c0_16] : memref<512x1536xbf16, #tpu.memory_space<vmem>>, vector<512x1536xbf16>
    %cst_17 = arith.constant dense<0.000000e+00> : vector<2x1536xf32>
    %20 = tpu.matmul %18, %19, %cst_17 {dimension_numbers = #tpu.dot_dimension_numbers<[1], [0], [0], [1], [0, 0, 1, 1], [], []>} : vector<2x512xbf16>, vector<512x1536xbf16>, vector<2x1536xf32> -> vector<2x1536xf32>
    %c0_18 = arith.constant 0 : index
    %c0_19 = arith.constant 0 : index
    %21 = vector.load %arg9[%c0_18, %c0_19] : memref<1x1536xf32, #tpu.memory_space<vmem>>, vector<1x1536xf32>
    %22 = vector.broadcast %21 : vector<1x1536xf32> to vector<2x1536xf32>
    %23 = arith.addf %20, %22 : vector<2x1536xf32>
    %24 = vector.extract_strided_slice %17 {offsets = [0, 0], sizes = [2, 512], strides = [1, 1]} : vector<2x1536xf32> to vector<2x512xf32>
    %25 = vector.extract_strided_slice %23 {offsets = [0, 0], sizes = [2, 512], strides = [1, 1]} : vector<2x1536xf32> to vector<2x512xf32>
    %26 = arith.addf %24, %25 : vector<2x512xf32>
    %27 = arith.negf %26 : vector<2x512xf32>
    %28 = math.exp %27 : vector<2x512xf32>
    %cst_20 = arith.constant 1.000000e+00 : f32
    %29 = vector.broadcast %cst_20 : f32 to vector<2x512xf32>
    %30 = arith.addf %29, %28 : vector<2x512xf32>
    %31 = arith.divf %29, %30 : vector<2x512xf32>
    %32 = vector.extract_strided_slice %17 {offsets = [0, 512], sizes = [2, 512], strides = [1, 1]} : vector<2x1536xf32> to vector<2x512xf32>
    %33 = vector.extract_strided_slice %23 {offsets = [0, 512], sizes = [2, 512], strides = [1, 1]} : vector<2x1536xf32> to vector<2x512xf32>
    %34 = arith.addf %32, %33 : vector<2x512xf32>
    %35 = arith.negf %34 : vector<2x512xf32>
    %36 = math.exp %35 : vector<2x512xf32>
    %cst_21 = arith.constant 1.000000e+00 : f32
    %37 = vector.broadcast %cst_21 : f32 to vector<2x512xf32>
    %38 = arith.addf %37, %36 : vector<2x512xf32>
    %39 = arith.divf %37, %38 : vector<2x512xf32>
    %40 = vector.extract_strided_slice %17 {offsets = [0, 1024], sizes = [2, 512], strides = [1, 1]} : vector<2x1536xf32> to vector<2x512xf32>
    %41 = vector.extract_strided_slice %23 {offsets = [0, 1024], sizes = [2, 512], strides = [1, 1]} : vector<2x1536xf32> to vector<2x512xf32>
    %42 = arith.mulf %31, %41 : vector<2x512xf32>
    %43 = arith.addf %40, %42 : vector<2x512xf32>
    %44 = math.tanh %43 : vector<2x512xf32>
    %cst_22 = arith.constant 1.000000e+00 : f32
    %45 = vector.broadcast %cst_22 : f32 to vector<2x512xf32>
    %46 = arith.subf %45, %39 : vector<2x512xf32>
    %47 = arith.mulf %46, %44 : vector<2x512xf32>
    %48 = arith.mulf %39, %11 : vector<2x512xf32>
    %49 = arith.addf %47, %48 : vector<2x512xf32>
    %c0_23 = arith.constant 0 : index
    %c0_24 = arith.constant 0 : index
    %50 = vector.load %arg12[%c0_23, %c0_24] : memref<2x512xf32, #tpu.memory_space<vmem>>, vector<2x512xf32>
    tpu.vector_store %arg12[%c0_23, %c0_24], %49 {strides = array<i32>} : memref<2x512xf32, #tpu.memory_space<vmem>>, vector<2x512xf32>,
    %c0_25 = arith.constant 0 : index
    %c0_26 = arith.constant 0 : index
    %51 = vector.load %arg10[%c0_25, %c0_26] : memref<1x512xf32, #tpu.memory_space<vmem>>, vector<1x512xf32>
    %52 = vector.broadcast %51 : vector<1x512xf32> to vector<2x512xf32>
    %53 = arith.mulf %49, %52 : vector<2x512xf32>
    %cst_27 = arith.constant dense<0.000000e+00> : vector<2xf32>
    %54 = vector.multi_reduction <add>, %53, %cst_27 [1] : vector<2x512xf32> to vector<2xf32>
    %55 = vector.shape_cast %54 : vector<2xf32> to vector<2x1xf32>
    %c0_28 = arith.constant 0 : index
    %c0_29 = arith.constant 0 : index
    %56 = vector.load %arg11[%c0_28, %c0_29] : memref<1x1xf32, #tpu.memory_space<vmem>>, vector<1x1xf32>
    %57 = vector.broadcast %56 : vector<1x1xf32> to vector<2x1xf32>
    %58 = arith.addf %55, %57 : vector<2x1xf32>
    %c0_30 = arith.constant 0 : index
    %c0_31 = arith.constant 0 : index
    %59 = vector.load %arg13[%c0_30, %c0_31] : memref<2x1xf32, #tpu.memory_space<vmem>>, vector<2x1xf32>
    tpu.vector_store %arg13[%c0_30, %c0_31], %58 {strides = array<i32>} : memref<2x1xf32, #tpu.memory_space<vmem>>, vector<2x1xf32>,
    return
  }
  func.func @transform_0(%arg0: i32) -> (i32, i32) {
    %c0_i32 = arith.constant 0 : i32
    %c0_i32_0 = arith.constant 0 : i32
    %c0_i32_1 = arith.constant 0 : i32
    return %c0_i32, %c0_i32_0 : i32, i32
  }
  func.func @transform_1(%arg0: i32) -> (i32, i32) {
    %c0_i32 = arith.constant 0 : i32
    %c0_i32_0 = arith.constant 0 : i32
    %c0_i32_1 = arith.constant 0 : i32
    return %c0_i32, %c0_i32_0 : i32, i32
  }
  func.func @transform_2(%arg0: i32) -> (i32, i32) {
    %c0_i32 = arith.constant 0 : i32
    %c0_i32_0 = arith.constant 0 : i32
    %c0_i32_1 = arith.constant 0 : i32
    return %c0_i32, %c0_i32_0 : i32, i32
  }
  func.func @transform_3(%arg0: i32) -> (i32, i32) {
    %c0_i32 = arith.constant 0 : i32
    %c0_i32_0 = arith.constant 0 : i32
    %c0_i32_1 = arith.constant 0 : i32
    return %c0_i32, %c0_i32_0 : i32, i32
  }
  func.func @transform_4(%arg0: i32) -> (i32, i32) {
    %c0_i32 = arith.constant 0 : i32
    %c0_i32_0 = arith.constant 0 : i32
    %c0_i32_1 = arith.constant 0 : i32
    return %c0_i32, %c0_i32_0 : i32, i32
  }
  func.func @transform_5(%arg0: i32) -> (i32, i32) {
    %c0_i32 = arith.constant 0 : i32
    %c0_i32_0 = arith.constant 0 : i32
    %c0_i32_1 = arith.constant 0 : i32
    return %c0_i32, %c0_i32_0 : i32, i32
  }
  func.func @transform_6(%arg0: i32) -> (i32, i32) {
    %c0_i32 = arith.constant 0 : i32
    %c0_i32_0 = arith.constant 0 : i32
    %c0_i32_1 = arith.constant 0 : i32
    return %c0_i32, %c0_i32_0 : i32, i32
  }
  func.func @transform_7(%arg0: i32) -> (i32, i32) {
    %c0_i32 = arith.constant 0 : i32
    %c0_i32_0 = arith.constant 0 : i32
    %c0_i32_1 = arith.constant 0 : i32
    return %c0_i32, %c0_i32_0 : i32, i32
  }
  func.func @transform_8(%arg0: i32) -> (i32, i32) {
    %c0_i32 = arith.constant 0 : i32
    %c0_i32_0 = arith.constant 0 : i32
    %c0_i32_1 = arith.constant 0 : i32
    return %c0_i32, %c0_i32_0 : i32, i32
  }
  func.func @transform_9(%arg0: i32) -> (i32, i32) {
    %c0_i32 = arith.constant 0 : i32
    %c0_i32_0 = arith.constant 0 : i32
    %c0_i32_1 = arith.constant 0 : i32
    return %c0_i32, %c0_i32_0 : i32, i32
  }
  func.func @transform_10(%arg0: i32) -> (i32, i32) {
    %c0_i32 = arith.constant 0 : i32
    %c0_i32_0 = arith.constant 0 : i32
    %c0_i32_1 = arith.constant 0 : i32
    return %c0_i32, %c0_i32_0 : i32, i32
  }
  func.func @transform_11(%arg0: i32) -> (i32, i32) {
    %c0_i32 = arith.constant 0 : i32
    %c0_i32_0 = arith.constant 0 : i32
    %c0_i32_1 = arith.constant 0 : i32
    return %c0_i32, %c0_i32_0 : i32, i32
  }
  func.func @transform_12(%arg0: i32) -> (i32, i32) {
    %c0_i32 = arith.constant 0 : i32
    %c0_i32_0 = arith.constant 0 : i32
    %c0_i32_1 = arith.constant 0 : i32
    return %c0_i32, %c0_i32_0 : i32, i32
  }
}

</mosaic_0001>

<llo_original>
// kernel: cnn_policy_forward.4
$region0: #{cnn_policy_forward.4}
  #allocation0 [shape = 'u32[]', space=smem, size = 0x4, offset = 0x4, fixed_abs, tag = 'smem constant byte address 0x4 - core index']
  #allocation1 [shape = 'u32[144,128]{1,0:T(1,128)}', space=vmem, size = 0x12000, scoped, tag = 'internal scratch']
  %s0 = inlined_call_operand.vmem [shape: bf16[800,256], index: 0, kind: input, shape index: {}]
  %s1 = inlined_call_operand.vmem [shape: bf16[256,32], index: 1, kind: input, shape index: {}]
  %s2 = inlined_call_operand.vmem [shape: f32[1,32], index: 2, kind: input, shape index: {}]
  %s3 = inlined_call_operand.vmem [shape: bf16[800,32], index: 3, kind: output, shape index: {}]
  %s4 = sld [smem:[#allocation0]]
  $region22: #{cnn_policy_forward.4} parent=0
    _
  %s6 = ssub.s32 1, %s4
  %s7 = scalar_select 0, %s6, %s4
  // Predicated region
  $region2: #{cnn_policy_forward.4} parent=0 // pred_check
    _
  $region3: #{cnn_policy_forward.4} parent=0 // pred_check_branch
    %9 = sbr.rel (0) target = $region5
  $region4: #{cnn_policy_forward.4} parent=0 // pred_region
    _
  $region5: #{cnn_policy_forward.4} parent=0 // pred_fallthru
    _
  // Predicated region
  $region6: #{cnn_policy_forward.4} parent=0 // pred_check
    _
  $region7: #{cnn_policy_forward.4} parent=0 // pred_check_branch
    %11 = sbr.rel (0) target = $region9
  $region8: #{cnn_policy_forward.4} parent=0 // pred_region
    _
  $region9: #{cnn_policy_forward.4} parent=0 // pred_fallthru
    _
  // Predicated region
  $region10: #{cnn_policy_forward.4} parent=0 // pred_check
    _
  $region11: #{cnn_policy_forward.4} parent=0 // pred_check_branch
    %13 = sbr.rel (0) target = $region13
  $region12: #{cnn_policy_forward.4} parent=0 // pred_region
    _
  $region13: #{cnn_policy_forward.4} parent=0 // pred_fallthru
    _
  %v15 = vld [vmem:[%s0] sm:$0xff]
  %v16 = vld [vmem:[%s0 + $0x8] sm:$0xff]
  %v17 = vld [vmem:[%s0 + $0x10] sm:$0xff]
  %v18 = vld [vmem:[%s0 + $0x18] sm:$0xff]
  %v19 = vld [vmem:[%s0 + $0x20] sm:$0xff]
  %v20 = vld [vmem:[%s0 + $0x28] sm:$0xff]
  %v21 = vld [vmem:[%s0 + $0x30] sm:$0xff]
  %v22 = vld [vmem:[%s0 + $0x38] sm:$0xff]
  %v23 = vld [vmem:[%s0 + $0x40] sm:$0xff]
  %v24 = vld [vmem:[%s0 + $0x48] sm:$0xff]
  %v25 = vld [vmem:[%s0 + $0x50] sm:$0xff]
  %v26 = vld [vmem:[%s0 + $0x58] sm:$0xff]
  %v27 = vld [vmem:[%s0 + $0x60] sm:$0xff]
  %v28 = vld [vmem:[%s0 + $0x68] sm:$0xff]
  %v29 = vld [vmem:[%s0 + $0x70] sm:$0xff]
  %v30 = vld [vmem:[%s0 + $0x78] sm:$0xff]
  %v31 = vld [vmem:[%s0 + $0x80] sm:$0xff]
  %v32 = vld [vmem:[%s0 + $0x88] sm:$0xff]
  %v33 = vld [vmem:[%s0 + $0x90] sm:$0xff]
  %v34 = vld [vmem:[%s0 + $0x98] sm:$0xff]
  %v35 = vld [vmem:[%s0 + $0xa0] sm:$0xff]
  %v36 = vld [vmem:[%s0 + $0xa8] sm:$0xff]
  %v37 = vld [vmem:[%s0 + $0xb0] sm:$0xff]
  %v38 = vld [vmem:[%s0 + $0xb8] sm:$0xff]
  %v39 = vld [vmem:[%s0 + $0xc0] sm:$0xff]
  %v40 = vld [vmem:[%s0 + $0xc8] sm:$0xff]
  %v41 = vld [vmem:[%s0 + $0xd0] sm:$0xff]
  %v42 = vld [vmem:[%s0 + $0xd8] sm:$0xff]
  %v43 = vld [vmem:[%s0 + $0xe0] sm:$0xff]
  %v44 = vld [vmem:[%s0 + $0xe8] sm:$0xff]
  %v45 = vld [vmem:[%s0 + $0xf0] sm:$0xff]
  %v46 = vld [vmem:[%s0 + $0xf8] sm:$0xff]
  %v47 = vld [vmem:[%s0 + $0x100] sm:$0xff]
  %v48 = vld [vmem:[%s0 + $0x108] sm:$0xff]
  %v49 = vld [vmem:[%s0 + $0x110] sm:$0xff]
  %v50 = vld [vmem:[%s0 + $0x118] sm:$0xff]
  %v51 = vld [vmem:[%s0 + $0x120] sm:$0xff]
  %v52 = vld [vmem:[%s0 + $0x128] sm:$0xff]
  %v53 = vld [vmem:[%s0 + $0x130] sm:$0xff]
  %v54 = vld [vmem:[%s0 + $0x138] sm:$0xff]
  %v55 = vld [vmem:[%s0 + $0x140] sm:$0xff]
  %v56 = vld [vmem:[%s0 + $0x148] sm:$0xff]
  %v57 = vld [vmem:[%s0 + $0x150] sm:$0xff]
  %v58 = vld [vmem:[%s0 + $0x158] sm:$0xff]
  %v59 = vld [vmem:[%s0 + $0x160] sm:$0xff]
  %v60 = vld [vmem:[%s0 + $0x168] sm:$0xff]
  %v61 = vld [vmem:[%s0 + $0x170] sm:$0xff]
  %v62 = vld [vmem:[%s0 + $0x178] sm:$0xff]
  %v63 = vld [vmem:[%s0 + $0x180] sm:$0xff]
  %v64 = vld [vmem:[%s0 + $0x188] sm:$0xff]
  %v65 = vld [vmem:[%s0 + $0x190] sm:$0xff]
  %v66 = vld [vmem:[%s0 + $0x198] sm:$0xff]
  %v67 = vld [vmem:[%s0 + $0x1a0] sm:$0xff]
  %v68 = vld [vmem:[%s0 + $0x1a8] sm:$0xff]
  %v69 = vld [vmem:[%s0 + $0x1b0] sm:$0xff]
  %v70 = vld [vmem:[%s0 + $0x1b8] sm:$0xff]
  %v71 = vld [vmem:[%s0 + $0x1c0] sm:$0xff]
  %v72 = vld [vmem:[%s0 + $0x1c8] sm:$0xff]
  %v73 = vld [vmem:[%s0 + $0x1d0] sm:$0xff]
  %v74 = vld [vmem:[%s0 + $0x1d8] sm:$0xff]
  %v75 = vld [vmem:[%s0 + $0x1e0] sm:$0xff]
  %v76 = vld [vmem:[%s0 + $0x1e8] sm:$0xff]
  %v77 = vld [vmem:[%s0 + $0x1f0] sm:$0xff]
  %v78 = vld [vmem:[%s0 + $0x1f8] sm:$0xff]
  %v79 = vld [vmem:[%s0 + $0x200] sm:$0xff]
  %v80 = vld [vmem:[%s0 + $0x208] sm:$0xff]
  %v81 = vld [vmem:[%s0 + $0x210] sm:$0xff]
  %v82 = vld [vmem:[%s0 + $0x218] sm:$0xff]
  %v83 = vld [vmem:[%s0 + $0x220] sm:$0xff]
  %v84 = vld [vmem:[%s0 + $0x228] sm:$0xff]
  %v85 = vld [vmem:[%s0 + $0x230] sm:$0xff]
  %v86 = vld [vmem:[%s0 + $0x238] sm:$0xff]
  %v87 = vld [vmem:[%s0 + $0x240] sm:$0xff]
  %v88 = vld [vmem:[%s0 + $0x248] sm:$0xff]
  %v89 = vld [vmem:[%s0 + $0x250] sm:$0xff]
  %v90 = vld [vmem:[%s0 + $0x258] sm:$0xff]
  %v91 = vld [vmem:[%s0 + $0x260] sm:$0xff]
  %v92 = vld [vmem:[%s0 + $0x268] sm:$0xff]
  %v93 = vld [vmem:[%s0 + $0x270] sm:$0xff]
  %v94 = vld [vmem:[%s0 + $0x278] sm:$0xff]
  %v95 = vld [vmem:[%s0 + $0x280] sm:$0xff]
  %v96 = vld [vmem:[%s0 + $0x288] sm:$0xff]
  %v97 = vld [vmem:[%s0 + $0x290] sm:$0xff]
  %v98 = vld [vmem:[%s0 + $0x298] sm:$0xff]
  %v99 = vld [vmem:[%s0 + $0x2a0] sm:$0xff]
  %v100 = vld [vmem:[%s0 + $0x2a8] sm:$0xff]
  %v101 = vld [vmem:[%s0 + $0x2b0] sm:$0xff]
  %v102 = vld [vmem:[%s0 + $0x2b8] sm:$0xff]
  %v103 = vld [vmem:[%s0 + $0x2c0] sm:$0xff]
  %v104 = vld [vmem:[%s0 + $0x2c8] sm:$0xff]
  %v105 = vld [vmem:[%s0 + $0x2d0] sm:$0xff]
  %v106 = vld [vmem:[%s0 + $0x2d8] sm:$0xff]
  %v107 = vld [vmem:[%s0 + $0x2e0] sm:$0xff]
  %v108 = vld [vmem:[%s0 + $0x2e8] sm:$0xff]
  %v109 = vld [vmem:[%s0 + $0x2f0] sm:$0xff]
  %v110 = vld [vmem:[%s0 + $0x2f8] sm:$0xff]
  %v111 = vld [vmem:[%s0 + $0x300] sm:$0xff]
  %v112 = vld [vmem:[%s0 + $0x308] sm:$0xff]
  %v113 = vld [vmem:[%s0 + $0x310] sm:$0xff]
  %v114 = vld [vmem:[%s0 + $0x318] sm:$0xff]
  %v115 = vld [vmem:[%s1] sm:$0xf]
  %v116 = vld [vmem:[%s1 + $0x4] sm:$0xf]
  %v117 = vld [vmem:[%s1 + $0x8] sm:$0xf]
  %v118 = vld [vmem:[%s1 + $0xc] sm:$0xf]
  %v119 = vld [vmem:[%s1 + $0x10] sm:$0xf]
  %v120 = vld [vmem:[%s1 + $0x14] sm:$0xf]
  %v121 = vld [vmem:[%s1 + $0x18] sm:$0xf]
  %v122 = vld [vmem:[%s1 + $0x1c] sm:$0xf]
  %v123 = vld [vmem:[%s1 + $0x20] sm:$0xf]
  %v124 = vld [vmem:[%s1 + $0x24] sm:$0xf]
  %v125 = vld [vmem:[%s1 + $0x28] sm:$0xf]
  %v126 = vld [vmem:[%s1 + $0x2c] sm:$0xf]
  %v127 = vld [vmem:[%s1 + $0x30] sm:$0xf]
  %v128 = vld [vmem:[%s1 + $0x34] sm:$0xf]
  %v129 = vld [vmem:[%s1 + $0x38] sm:$0xf]
  %v130 = vld [vmem:[%s1 + $0x3c] sm:$0xf]
  %v131 = vld [vmem:[%s1 + $0x40] sm:$0xf]
  %v132 = vld [vmem:[%s1 + $0x44] sm:$0xf]
  %v133 = vld [vmem:[%s1 + $0x48] sm:$0xf]
  %v134 = vld [vmem:[%s1 + $0x4c] sm:$0xf]
  %v135 = vld [vmem:[%s1 + $0x50] sm:$0xf]
  %v136 = vld [vmem:[%s1 + $0x54] sm:$0xf]
  %v137 = vld [vmem:[%s1 + $0x58] sm:$0xf]
  %v138 = vld [vmem:[%s1 + $0x5c] sm:$0xf]
  %v139 = vld [vmem:[%s1 + $0x60] sm:$0xf]
  %v140 = vld [vmem:[%s1 + $0x64] sm:$0xf]
  %v141 = vld [vmem:[%s1 + $0x68] sm:$0xf]
  %v142 = vld [vmem:[%s1 + $0x6c] sm:$0xf]
  %v143 = vld [vmem:[%s1 + $0x70] sm:$0xf]
  %v144 = vld [vmem:[%s1 + $0x74] sm:$0xf]
  %v145 = vld [vmem:[%s1 + $0x78] sm:$0xf]
  %v146 = vld [vmem:[%s1 + $0x7c] sm:$0xf]
  %v147 = vld [vmem:[%s2] sm:$0x1]
  %v149 = vlaneseq
  %v150 = vshrl.u32 %v149, 7
  %v151 = vsub.s32 0, %v150
  %v152 = vrot.slane %v147, %v151
  %v254 = vunpack.c.l.b16 %v15
  %v255 = vunpack.c.h.b16 %v15
  %v256 = vunpack.c.l.b16 %v16
  %v257 = vunpack.c.h.b16 %v16
  %v258 = vunpack.c.l.b16 %v17
  %v259 = vunpack.c.h.b16 %v17
  %v260 = vunpack.c.l.b16 %v18
  %v261 = vunpack.c.h.b16 %v18
  %v262 = vunpack.c.l.b16 %v19
  %v263 = vunpack.c.h.b16 %v19
  %v264 = vunpack.c.l.b16 %v20
  %v265 = vunpack.c.h.b16 %v20
  %v266 = vunpack.c.l.b16 %v21
  %v267 = vunpack.c.h.b16 %v21
  %v268 = vunpack.c.l.b16 %v22
  %v269 = vunpack.c.h.b16 %v22
  %v270 = vunpack.c.l.b16 %v23
  %v271 = vunpack.c.h.b16 %v23
  %v272 = vunpack.c.l.b16 %v24
  %v273 = vunpack.c.h.b16 %v24
  %v274 = vunpack.c.l.b16 %v25
  %v275 = vunpack.c.h.b16 %v25
  %v276 = vunpack.c.l.b16 %v26
  %v277 = vunpack.c.h.b16 %v26
  %v278 = vunpack.c.l.b16 %v27
  %v279 = vunpack.c.h.b16 %v27
  %v280 = vunpack.c.l.b16 %v28
  %v281 = vunpack.c.h.b16 %v28
  %v282 = vunpack.c.l.b16 %v29
  %v283 = vunpack.c.h.b16 %v29
  %v284 = vunpack.c.l.b16 %v30
  %v285 = vunpack.c.h.b16 %v30
  %v286 = vunpack.c.l.b16 %v31
  %v287 = vunpack.c.h.b16 %v31
  %v288 = vunpack.c.l.b16 %v32
  %v289 = vunpack.c.h.b16 %v32
  %v290 = vunpack.c.l.b16 %v33
  %v291 = vunpack.c.h.b16 %v33
  %v292 = vunpack.c.l.b16 %v34
  %v293 = vunpack.c.h.b16 %v34
  %v294 = vunpack.c.l.b16 %v35
  %v295 = vunpack.c.h.b16 %v35
  %v296 = vunpack.c.l.b16 %v36
  %v297 = vunpack.c.h.b16 %v36
  %v298 = vunpack.c.l.b16 %v37
  %v299 = vunpack.c.h.b16 %v37
  %v300 = vunpack.c.l.b16 %v38
  %v301 = vunpack.c.h.b16 %v38
  %v302 = vunpack.c.l.b16 %v39
  %v303 = vunpack.c.h.b16 %v39
  %v304 = vunpack.c.l.b16 %v40
  %v305 = vunpack.c.h.b16 %v40
  %v306 = vunpack.c.l.b16 %v41
  %v307 = vunpack.c.h.b16 %v41
  %v308 = vunpack.c.l.b16 %v42
  %v309 = vunpack.c.h.b16 %v42
  %v310 = vunpack.c.l.b16 %v43
  %v311 = vunpack.c.h.b16 %v43
  %v312 = vunpack.c.l.b16 %v44
  %v313 = vunpack.c.h.b16 %v44
  %v314 = vunpack.c.l.b16 %v45
  %v315 = vunpack.c.h.b16 %v45
  %v316 = vunpack.c.l.b16 %v46
  %v317 = vunpack.c.h.b16 %v46
  %v318 = vunpack.c.l.b16 %v47
  %v319 = vunpack.c.h.b16 %v47
  %v320 = vunpack.c.l.b16 %v48
  %v321 = vunpack.c.h.b16 %v48
  %v322 = vunpack.c.l.b16 %v49
  %v323 = vunpack.c.h.b16 %v49
  %v324 = vunpack.c.l.b16 %v50
  %v325 = vunpack.c.h.b16 %v50
  %v326 = vunpack.c.l.b16 %v51
  %v327 = vunpack.c.h.b16 %v51
  %v328 = vunpack.c.l.b16 %v52
  %v329 = vunpack.c.h.b16 %v52
  %v330 = vunpack.c.l.b16 %v53
  %v331 = vunpack.c.h.b16 %v53
  %v332 = vunpack.c.l.b16 %v54
  %v333 = vunpack.c.h.b16 %v54
  %v334 = vunpack.c.l.b16 %v55
  %v335 = vunpack.c.h.b16 %v55
  %v336 = vunpack.c.l.b16 %v56
  %v337 = vunpack.c.h.b16 %v56
  %v338 = vunpack.c.l.b16 %v57
  %v339 = vunpack.c.h.b16 %v57
  %v340 = vunpack.c.l.b16 %v58
  %v341 = vunpack.c.h.b16 %v58
  %v342 = vunpack.c.l.b16 %v59
  %v343 = vunpack.c.h.b16 %v59
  %v344 = vunpack.c.l.b16 %v60
  %v345 = vunpack.c.h.b16 %v60
  %v346 = vunpack.c.l.b16 %v61
  %v347 = vunpack.c.h.b16 %v61
  %v348 = vunpack.c.l.b16 %v62
  %v349 = vunpack.c.h.b16 %v62
  %v350 = vunpack.c.l.b16 %v63
  %v351 = vunpack.c.h.b16 %v63
  %v352 = vunpack.c.l.b16 %v64
  %v353 = vunpack.c.h.b16 %v64
  %v354 = vunpack.c.l.b16 %v65
  %v355 = vunpack.c.h.b16 %v65
  %v356 = vunpack.c.l.b16 %v66
  %v357 = vunpack.c.h.b16 %v66
  %v358 = vunpack.c.l.b16 %v67
  %v359 = vunpack.c.h.b16 %v67
  %v360 = vunpack.c.l.b16 %v68
  %v361 = vunpack.c.h.b16 %v68
  %v362 = vunpack.c.l.b16 %v69
  %v363 = vunpack.c.h.b16 %v69
  %v364 = vunpack.c.l.b16 %v70
  %v365 = vunpack.c.h.b16 %v70
  %v366 = vunpack.c.l.b16 %v71
  %v367 = vunpack.c.h.b16 %v71
  %v368 = vunpack.c.l.b16 %v72
  %v369 = vunpack.c.h.b16 %v72
  %v370 = vunpack.c.l.b16 %v73
  %v371 = vunpack.c.h.b16 %v73
  %v372 = vunpack.c.l.b16 %v74
  %v373 = vunpack.c.h.b16 %v74
  %v374 = vunpack.c.l.b16 %v75
  %v375 = vunpack.c.h.b16 %v75
  %v376 = vunpack.c.l.b16 %v76
  %v377 = vunpack.c.h.b16 %v76
  %v378 = vunpack.c.l.b16 %v77
  %v379 = vunpack.c.h.b16 %v77
  %v380 = vunpack.c.l.b16 %v78
  %v381 = vunpack.c.h.b16 %v78
  %v382 = vunpack.c.l.b16 %v79
  %v383 = vunpack.c.h.b16 %v79
  %v384 = vunpack.c.l.b16 %v80
  %v385 = vunpack.c.h.b16 %v80
  %v386 = vunpack.c.l.b16 %v81
  %v387 = vunpack.c.h.b16 %v81
  %v388 = vunpack.c.l.b16 %v82
  %v389 = vunpack.c.h.b16 %v82
  %v390 = vunpack.c.l.b16 %v83
  %v391 = vunpack.c.h.b16 %v83
  %v392 = vunpack.c.l.b16 %v84
  %v393 = vunpack.c.h.b16 %v84
  %v394 = vunpack.c.l.b16 %v85
  %v395 = vunpack.c.h.b16 %v85
  %v396 = vunpack.c.l.b16 %v86
  %v397 = vunpack.c.h.b16 %v86
  %v398 = vunpack.c.l.b16 %v87
  %v399 = vunpack.c.h.b16 %v87
  %v400 = vunpack.c.l.b16 %v88
  %v401 = vunpack.c.h.b16 %v88
  %v402 = vunpack.c.l.b16 %v89
  %v403 = vunpack.c.h.b16 %v89
  %v404 = vunpack.c.l.b16 %v90
  %v405 = vunpack.c.h.b16 %v90
  %v406 = vunpack.c.l.b16 %v91
  %v407 = vunpack.c.h.b16 %v91
  %v408 = vunpack.c.l.b16 %v92
  %v409 = vunpack.c.h.b16 %v92
  %v410 = vunpack.c.l.b16 %v93
  %v411 = vunpack.c.h.b16 %v93
  %v412 = vunpack.c.l.b16 %v94
  %v413 = vunpack.c.h.b16 %v94
  %v414 = vunpack.c.l.b16 %v95
  %v415 = vunpack.c.h.b16 %v95
  %v416 = vunpack.c.l.b16 %v96
  %v417 = vunpack.c.h.b16 %v96
  %v418 = vunpack.c.l.b16 %v97
  %v419 = vunpack.c.h.b16 %v97
  %v420 = vunpack.c.l.b16 %v98
  %v421 = vunpack.c.h.b16 %v98
  %v422 = vunpack.c.l.b16 %v99
  %v423 = vunpack.c.h.b16 %v99
  %v424 = vunpack.c.l.b16 %v100
  %v425 = vunpack.c.h.b16 %v100
  %v426 = vunpack.c.l.b16 %v101
  %v427 = vunpack.c.h.b16 %v101
  %v428 = vunpack.c.l.b16 %v102
  %v429 = vunpack.c.h.b16 %v102
  %v430 = vunpack.c.l.b16 %v103
  %v431 = vunpack.c.h.b16 %v103
  %v432 = vunpack.c.l.b16 %v104
  %v433 = vunpack.c.h.b16 %v104
  %v434 = vunpack.c.l.b16 %v105
  %v435 = vunpack.c.h.b16 %v105
  %v436 = vunpack.c.l.b16 %v106
  %v437 = vunpack.c.h.b16 %v106
  %v438 = vunpack.c.l.b16 %v107
  %v439 = vunpack.c.h.b16 %v107
  %v440 = vunpack.c.l.b16 %v108
  %v441 = vunpack.c.h.b16 %v108
  %v442 = vunpack.c.l.b16 %v109
  %v443 = vunpack.c.h.b16 %v109
  %v444 = vunpack.c.l.b16 %v110
  %v445 = vunpack.c.h.b16 %v110
  %v446 = vunpack.c.l.b16 %v111
  %v447 = vunpack.c.h.b16 %v111
  %v448 = vunpack.c.l.b16 %v112
  %v449 = vunpack.c.h.b16 %v112
  %v450 = vunpack.c.l.b16 %v113
  %v451 = vunpack.c.h.b16 %v113
  %v452 = vunpack.c.l.b16 %v114
  %v453 = vunpack.c.h.b16 %v114
  %v454 = vpack.c.b16 %v256, %v254
  %v455 = vpack.c.b16 %v257, %v255
  %v456 = vpack.c.b16 %v260, %v258
  %v457 = vpack.c.b16 %v261, %v259
  %v458 = vpack.c.b16 %v264, %v262
  %v459 = vpack.c.b16 %v265, %v263
  %v460 = vpack.c.b16 %v268, %v266
  %v461 = vpack.c.b16 %v269, %v267
  %v462 = vpack.c.b16 %v272, %v270
  %v463 = vpack.c.b16 %v273, %v271
  %v464 = vpack.c.b16 %v276, %v274
  %v465 = vpack.c.b16 %v277, %v275
  %v466 = vpack.c.b16 %v280, %v278
  %v467 = vpack.c.b16 %v281, %v279
  %v468 = vpack.c.b16 %v284, %v282
  %v469 = vpack.c.b16 %v285, %v283
  %v470 = vpack.c.b16 %v288, %v286
  %v471 = vpack.c.b16 %v289, %v287
  %v472 = vpack.c.b16 %v292, %v290
  %v473 = vpack.c.b16 %v293, %v291
  %v474 = vpack.c.b16 %v296, %v294
  %v475 = vpack.c.b16 %v297, %v295
  %v476 = vpack.c.b16 %v300, %v298
  %v477 = vpack.c.b16 %v301, %v299
  %v478 = vpack.c.b16 %v304, %v302
  %v479 = vpack.c.b16 %v305, %v303
  %v480 = vpack.c.b16 %v308, %v306
  %v481 = vpack.c.b16 %v309, %v307
  %v482 = vpack.c.b16 %v312, %v310
  %v483 = vpack.c.b16 %v313, %v311
  %v484 = vpack.c.b16 %v316, %v314
  %v485 = vpack.c.b16 %v317, %v315
  %v486 = vpack.c.b16 %v320, %v318
  %v487 = vpack.c.b16 %v321, %v319
  %v488 = vpack.c.b16 %v324, %v322
  %v489 = vpack.c.b16 %v325, %v323
  %v490 = vpack.c.b16 %v328, %v326
  %v491 = vpack.c.b16 %v329, %v327
  %v492 = vpack.c.b16 %v332, %v330
  %v493 = vpack.c.b16 %v333, %v331
  %v494 = vpack.c.b16 %v336, %v334
  %v495 = vpack.c.b16 %v337, %v335
  %v496 = vpack.c.b16 %v340, %v338
  %v497 = vpack.c.b16 %v341, %v339
  %v498 = vpack.c.b16 %v344, %v342
  %v499 = vpack.c.b16 %v345, %v343
  %v500 = vpack.c.b16 %v348, %v346
  %v501 = vpack.c.b16 %v349, %v347
  %v502 = vpack.c.b16 %v352, %v350
  %v503 = vpack.c.b16 %v353, %v351
  %v504 = vpack.c.b16 %v356, %v354
  %v505 = vpack.c.b16 %v357, %v355
  %v506 = vpack.c.b16 %v360, %v358
  %v507 = vpack.c.b16 %v361, %v359
  %v508 = vpack.c.b16 %v364, %v362
  %v509 = vpack.c.b16 %v365, %v363
  %v510 = vpack.c.b16 %v368, %v366
  %v511 = vpack.c.b16 %v369, %v367
  %v512 = vpack.c.b16 %v372, %v370
  %v513 = vpack.c.b16 %v373, %v371
  %v514 = vpack.c.b16 %v376, %v374
  %v515 = vpack.c.b16 %v377, %v375
  %v516 = vpack.c.b16 %v380, %v378
  %v517 = vpack.c.b16 %v381, %v379
  %v518 = vpack.c.b16 %v384, %v382
  %v519 = vpack.c.b16 %v385, %v383
  %v520 = vpack.c.b16 %v388, %v386
  %v521 = vpack.c.b16 %v389, %v387
  %v522 = vpack.c.b16 %v392, %v390
  %v523 = vpack.c.b16 %v393, %v391
  %v524 = vpack.c.b16 %v396, %v394
  %v525 = vpack.c.b16 %v397, %v395
  %v526 = vpack.c.b16 %v400, %v398
  %v527 = vpack.c.b16 %v401, %v399
  %v528 = vpack.c.b16 %v404, %v402
  %v529 = vpack.c.b16 %v405, %v403
  %v530 = vpack.c.b16 %v408, %v406
  %v531 = vpack.c.b16 %v409, %v407
  %v532 = vpack.c.b16 %v412, %v410
  %v533 = vpack.c.b16 %v413, %v411
  %v534 = vpack.c.b16 %v416, %v414
  %v535 = vpack.c.b16 %v417, %v415
  %v536 = vpack.c.b16 %v420, %v418
  %v537 = vpack.c.b16 %v421, %v419
  %v538 = vpack.c.b16 %v424, %v422
  %v539 = vpack.c.b16 %v425, %v423
  %v540 = vpack.c.b16 %v428, %v426
  %v541 = vpack.c.b16 %v429, %v427
  %v542 = vpack.c.b16 %v432, %v430
  %v543 = vpack.c.b16 %v433, %v431
  %v544 = vpack.c.b16 %v436, %v434
  %v545 = vpack.c.b16 %v437, %v435
  %v546 = vpack.c.b16 %v440, %v438
  %v547 = vpack.c.b16 %v441, %v439
  %v548 = vpack.c.b16 %v444, %v442
  %v549 = vpack.c.b16 %v445, %v443
  %v550 = vpack.c.b16 %v448, %v446
  %v551 = vpack.c.b16 %v449, %v447
  %v552 = vpack.c.b16 %v452, %v450
  %v553 = vpack.c.b16 %v453, %v451
  %v686 = vunpack.c.l.b16 %v115
  %v687 = vunpack.c.l.b16 %v116
  %v688 = vunpack.c.l.b16 %v117
  %v689 = vunpack.c.l.b16 %v118
  %v690 = vunpack.c.l.b16 %v119
  %v691 = vunpack.c.l.b16 %v120
  %v692 = vunpack.c.l.b16 %v121
  %v693 = vunpack.c.l.b16 %v122
  %v694 = vunpack.c.l.b16 %v123
  %v695 = vunpack.c.l.b16 %v124
  %v696 = vunpack.c.l.b16 %v125
  %v697 = vunpack.c.l.b16 %v126
  %v698 = vunpack.c.l.b16 %v127
  %v699 = vunpack.c.l.b16 %v128
  %v700 = vunpack.c.l.b16 %v129
  %v701 = vunpack.c.l.b16 %v130
  %v702 = vunpack.c.l.b16 %v131
  %v703 = vunpack.c.l.b16 %v132
  %v704 = vunpack.c.l.b16 %v133
  %v705 = vunpack.c.l.b16 %v134
  %v706 = vunpack.c.l.b16 %v135
  %v707 = vunpack.c.l.b16 %v136
  %v708 = vunpack.c.l.b16 %v137
  %v709 = vunpack.c.l.b16 %v138
  %v710 = vunpack.c.l.b16 %v139
  %v711 = vunpack.c.l.b16 %v140
  %v712 = vunpack.c.l.b16 %v141
  %v713 = vunpack.c.l.b16 %v142
  %v714 = vunpack.c.l.b16 %v143
  %v715 = vunpack.c.l.b16 %v144
  %v716 = vunpack.c.l.b16 %v145
  %v717 = vunpack.c.l.b16 %v146
  %v718 = vpack.c.b16 %v687, %v686
  %v719 = vpack.c.b16 %v689, %v688
  %v720 = vpack.c.b16 %v691, %v690
  %v721 = vpack.c.b16 %v693, %v692
  %v722 = vpack.c.b16 %v695, %v694
  %v723 = vpack.c.b16 %v697, %v696
  %v724 = vpack.c.b16 %v699, %v698
  %v725 = vpack.c.b16 %v701, %v700
  %v726 = vpack.c.b16 %v703, %v702
  %v727 = vpack.c.b16 %v705, %v704
  %v728 = vpack.c.b16 %v707, %v706
  %v729 = vpack.c.b16 %v709, %v708
  %v730 = vpack.c.b16 %v711, %v710
  %v731 = vpack.c.b16 %v713, %v712
  %v732 = vpack.c.b16 %v715, %v714
  %v733 = vpack.c.b16 %v717, %v716
  %750 = vmatprep.subr.bf16.mxu0 0
  %751 = vmatpush1.bf16.msra.mxu0 %v718
  %752 = vmatprep.subr.bf16.mxu0 0
  %753 = vmatpush1.bf16.msra.mxu0 %v719
  %754 = vmatprep.subr.bf16.mxu0 0
  %755 = vmatpush1.bf16.msra.mxu0 %v720
  %756 = vmatprep.subr.bf16.mxu0 0
  %757 = vmatpush1.bf16.msra.mxu0 %v721
  %758 = vmatprep.subr.bf16.mxu0 0
  %759 = vmatpush1.bf16.msra.mxu0 %v722
  %760 = vmatprep.subr.bf16.mxu0 0
  %761 = vmatpush1.bf16.msra.mxu0 %v723
  %762 = vmatprep.subr.bf16.mxu0 0
  %763 = vmatpush1.bf16.msra.mxu0 %v724
  %764 = vmatprep.subr.bf16.mxu0 0
  %765 = vmatpush1.bf16.msra.mxu0 %v725
  %766 = vmatprep.subr.bf16.mxu0 0
  %767 = vmatpush1.bf16.msra.mxu0 %v726
  %768 = vmatprep.subr.bf16.mxu0 0
  %769 = vmatpush1.bf16.msra.mxu0 %v727
  %770 = vmatprep.subr.bf16.mxu0 0
  %771 = vmatpush1.bf16.msra.mxu0 %v728
  %772 = vmatprep.subr.bf16.mxu0 0
  %773 = vmatpush1.bf16.msra.mxu0 %v729
  %774 = vmatprep.subr.bf16.mxu0 0
  %775 = vmatpush1.bf16.msra.mxu0 %v730
  %776 = vmatprep.subr.bf16.mxu0 0
  %777 = vmatpush1.bf16.msra.mxu0 %v731
  %778 = vmatprep.subr.bf16.mxu0 0
  %779 = vmatpush1.bf16.msra.mxu0 %v732
  %780 = vmatprep.subr.bf16.mxu0 0
  %781 = vmatpush1.bf16.msra.mxu0 %v733
  %782 = vmatprep.mubr.bf16.mxu0 %v455
  %783 = vmatmul.mubr.bf16.gmra.mrb[0].mxu0 %v454
  %v784 = vpop.f32.mrb[0].mxu0
  %v785 = vadd.f32 %v152, %v784
  %v786 = vpop.f32.mrb[0].mxu0
  %v787 = vpop.f32.mrb[0].mxu0
  %v788 = vadd.f32 %v152, %v787
  %v789 = vpop.f32.mrb[0].mxu0
  %790 = vmatprep.mubr.bf16.mxu0 %v457
  %791 = vmatmul.mubr.bf16.gmra.mrb[0].mxu0 %v456
  %v792 = vpop.f32.mrb[0].mxu0
  %v793 = vadd.f32 %v152, %v792
  %v794 = vpop.f32.mrb[0].mxu0
  %v795 = vpop.f32.mrb[0].mxu0
  %v796 = vadd.f32 %v152, %v795
  %v797 = vpop.f32.mrb[0].mxu0
  %798 = vmatprep.mubr.bf16.mxu0 %v459
  %799 = vmatmul.mubr.bf16.gmra.mrb[0].mxu0 %v458
  %v800 = vpop.f32.mrb[0].mxu0
  %v801 = vadd.f32 %v152, %v800
  %v802 = vpop.f32.mrb[0].mxu0
  %v803 = vpop.f32.mrb[0].mxu0
  %v804 = vadd.f32 %v152, %v803
  %v805 = vpop.f32.mrb[0].mxu0
  %806 = vmatprep.mubr.bf16.mxu0 %v461
  %807 = vmatmul.mubr.bf16.gmra.mrb[0].mxu0 %v460
  %v808 = vpop.f32.mrb[0].mxu0
  %v809 = vadd.f32 %v152, %v808
  %v810 = vpop.f32.mrb[0].mxu0
  %v811 = vpop.f32.mrb[0].mxu0
  %v812 = vadd.f32 %v152, %v811
  %v813 = vpop.f32.mrb[0].mxu0
  %814 = vmatprep.mubr.bf16.mxu0 %v463
  %815 = vmatmul.mubr.bf16.gmra.mrb[0].mxu0 %v462
  %v816 = vpop.f32.mrb[0].mxu0
  %v817 = vadd.f32 %v152, %v816
  %v818 = vpop.f32.mrb[0].mxu0
  %v819 = vpop.f32.mrb[0].mxu0
  %v820 = vadd.f32 %v152, %v819
  %v821 = vpop.f32.mrb[0].mxu0
  %822 = vmatprep.mubr.bf16.mxu0 %v465
  %823 = vmatmul.mubr.bf16.gmra.mrb[0].mxu0 %v464
  %v824 = vpop.f32.mrb[0].mxu0
  %v825 = vadd.f32 %v152, %v824
  %v826 = vpop.f32.mrb[0].mxu0
  %v827 = vpop.f32.mrb[0].mxu0
  %v828 = vadd.f32 %v152, %v827
  %v829 = vpop.f32.mrb[0].mxu0
  %830 = vmatprep.mubr.bf16.mxu0 %v467
  %831 = vmatmul.mubr.bf16.gmra.mrb[0].mxu0 %v466
  %v832 = vpop.f32.mrb[0].mxu0
  %v833 = vadd.f32 %v152, %v832
  %v834 = vpop.f32.mrb[0].mxu0
  %v835 = vpop.f32.mrb[0].mxu0
  %v836 = vadd.f32 %v152, %v835
  %v837 = vpop.f32.mrb[0].mxu0
  %838 = vmatprep.mubr.bf16.mxu0 %v469
  %839 = vmatmul.mubr.bf16.gmra.mrb[0].mxu0 %v468
  %v840 = vpop.f32.mrb[0].mxu0
  %v841 = vadd.f32 %v152, %v840
  %v842 = vpop.f32.mrb[0].mxu0
  %v843 = vpop.f32.mrb[0].mxu0
  %v844 = vadd.f32 %v152, %v843
  %v845 = vpop.f32.mrb[0].mxu0
  %846 = vmatprep.mubr.bf16.mxu0 %v471
  %847 = vmatmul.mubr.bf16.gmra.mrb[0].mxu0 %v470
  %v848 = vpop.f32.mrb[0].mxu0
  %v849 = vadd.f32 %v152, %v848
  %v850 = vpop.f32.mrb[0].mxu0
  %v851 = vpop.f32.mrb[0].mxu0
  %v852 = vadd.f32 %v152, %v851
  %v853 = vpop.f32.mrb[0].mxu0
  %854 = vmatprep.mubr.bf16.mxu0 %v473
  %855 = vmatmul.mubr.bf16.gmra.mrb[0].mxu0 %v472
  %v856 = vpop.f32.mrb[0].mxu0
  %v857 = vadd.f32 %v152, %v856
  %v858 = vpop.f32.mrb[0].mxu0
  %v859 = vpop.f32.mrb[0].mxu0
  %v860 = vadd.f32 %v152, %v859
  %v861 = vpop.f32.mrb[0].mxu0
  %862 = vmatprep.mubr.bf16.mxu0 %v475
  %863 = vmatmul.mubr.bf16.gmra.mrb[0].mxu0 %v474
  %v864 = vpop.f32.mrb[0].mxu0
  %v865 = vadd.f32 %v152, %v864
  %v866 = vpop.f32.mrb[0].mxu0
  %v867 = vpop.f32.mrb[0].mxu0
  %v868 = vadd.f32 %v152, %v867
  %v869 = vpop.f32.mrb[0].mxu0
  %870 = vmatprep.mubr.bf16.mxu0 %v477
  %871 = vmatmul.mubr.bf16.gmra.mrb[0].mxu0 %v476
  %v872 = vpop.f32.mrb[0].mxu0
  %v873 = vadd.f32 %v152, %v872
  %v874 = vpop.f32.mrb[0].mxu0
  %v875 = vpop.f32.mrb[0].mxu0
  %v876 = vadd.f32 %v152, %v875
  %v877 = vpop.f32.mrb[0].mxu0
  %878 = vmatprep.mubr.bf16.mxu0 %v479
  %879 = vmatmul.mubr.bf16.gmra.mrb[0].mxu0 %v478
  %v880 = vpop.f32.mrb[0].mxu0
  %v881 = vadd.f32 %v152, %v880
  %v882 = vpop.f32.mrb[0].mxu0
  %v883 = vpop.f32.mrb[0].mxu0
  %v884 = vadd.f32 %v152, %v883
  %v885 = vpop.f32.mrb[0].mxu0
  %886 = vmatprep.mubr.bf16.mxu0 %v481
  %887 = vmatmul.mubr.bf16.gmra.mrb[0].mxu0 %v480
  %v888 = vpop.f32.mrb[0].mxu0
  %v889 = vadd.f32 %v152, %v888
  %v890 = vpop.f32.mrb[0].mxu0
  %v891 = vpop.f32.mrb[0].mxu0
  %v892 = vadd.f32 %v152, %v891
  %v893 = vpop.f32.mrb[0].mxu0
  %894 = vmatprep.mubr.bf16.mxu0 %v483
  %895 = vmatmul.mubr.bf16.gmra.mrb[0].mxu0 %v482
  %v896 = vpop.f32.mrb[0].mxu0
  %v897 = vadd.f32 %v152, %v896
  %v898 = vpop.f32.mrb[0].mxu0
  %v899 = vpop.f32.mrb[0].mxu0
  %v900 = vadd.f32 %v152, %v899
  %v901 = vpop.f32.mrb[0].mxu0
  %902 = vmatprep.mubr.bf16.mxu0 %v485
  %903 = vmatmul.mubr.bf16.gmra.mrb[0].mxu0 %v484
  %v904 = vpop.f32.mrb[0].mxu0
  %v905 = vadd.f32 %v152, %v904
  %v906 = vpop.f32.mrb[0].mxu0
  %v907 = vpop.f32.mrb[0].mxu0
  %v908 = vadd.f32 %v152, %v907
  %v909 = vpop.f32.mrb[0].mxu0
  %910 = vmatprep.mubr.bf16.mxu0 %v487
  %911 = vmatmul.mubr.bf16.gmra.mrb[0].mxu0 %v486
  %v912 = vpop.f32.mrb[0].mxu0
  %v913 = vadd.f32 %v152, %v912
  %v914 = vpop.f32.mrb[0].mxu0
  %v915 = vpop.f32.mrb[0].mxu0
  %v916 = vadd.f32 %v152, %v915
  %v917 = vpop.f32.mrb[0].mxu0
  %918 = vmatprep.mubr.bf16.mxu0 %v489
  %919 = vmatmul.mubr.bf16.gmra.mrb[0].mxu0 %v488
  %v920 = vpop.f32.mrb[0].mxu0
  %v921 = vadd.f32 %v152, %v920
  %v922 = vpop.f32.mrb[0].mxu0
  %v923 = vpop.f32.mrb[0].mxu0
  %v924 = vadd.f32 %v152, %v923
  %v925 = vpop.f32.mrb[0].mxu0
  %926 = vmatprep.mubr.bf16.mxu0 %v491
  %927 = vmatmul.mubr.bf16.gmra.mrb[0].mxu0 %v490
  %v928 = vpop.f32.mrb[0].mxu0
  %v929 = vadd.f32 %v152, %v928
  %v930 = vpop.f32.mrb[0].mxu0
  %v931 = vpop.f32.mrb[0].mxu0
  %v932 = vadd.f32 %v152, %v931
  %v933 = vpop.f32.mrb[0].mxu0
  %934 = vmatprep.mubr.bf16.mxu0 %v493
  %935 = vmatmul.mubr.bf16.gmra.mrb[0].mxu0 %v492
  %v936 = vpop.f32.mrb[0].mxu0
  %v937 = vadd.f32 %v152, %v936
  %v938 = vpop.f32.mrb[0].mxu0
  %v939 = vpop.f32.mrb[0].mxu0
  %v940 = vadd.f32 %v152, %v939
  %v941 = vpop.f32.mrb[0].mxu0
  %942 = vmatprep.mubr.bf16.mxu0 %v495
  %943 = vmatmul.mubr.bf16.gmra.mrb[0].mxu0 %v494
  %v944 = vpop.f32.mrb[0].mxu0
  %v945 = vadd.f32 %v152, %v944
  %v946 = vpop.f32.mrb[0].mxu0
  %v947 = vpop.f32.mrb[0].mxu0
  %v948 = vadd.f32 %v152, %v947
  %v949 = vpop.f32.mrb[0].mxu0
  %950 = vmatprep.mubr.bf16.mxu0 %v497
  %951 = vmatmul.mubr.bf16.gmra.mrb[0].mxu0 %v496
  %v952 = vpop.f32.mrb[0].mxu0
  %v953 = vadd.f32 %v152, %v952
  %v954 = vpop.f32.mrb[0].mxu0
  %v955 = vpop.f32.mrb[0].mxu0
  %v956 = vadd.f32 %v152, %v955
  %v957 = vpop.f32.mrb[0].mxu0
  %958 = vmatprep.mubr.bf16.mxu0 %v499
  %959 = vmatmul.mubr.bf16.gmra.mrb[0].mxu0 %v498
  %v960 = vpop.f32.mrb[0].mxu0
  %v961 = vadd.f32 %v152, %v960
  %v962 = vpop.f32.mrb[0].mxu0
  %v963 = vpop.f32.mrb[0].mxu0
  %v964 = vadd.f32 %v152, %v963
  %v965 = vpop.f32.mrb[0].mxu0
  %966 = vmatprep.mubr.bf16.mxu0 %v501
  %967 = vmatmul.mubr.bf16.gmra.mrb[0].mxu0 %v500
  %v968 = vpop.f32.mrb[0].mxu0
  %v969 = vadd.f32 %v152, %v968
  %v970 = vpop.f32.mrb[0].mxu0
  %v971 = vpop.f32.mrb[0].mxu0
  %v972 = vadd.f32 %v152, %v971
  %v973 = vpop.f32.mrb[0].mxu0
  %974 = vmatprep.mubr.bf16.mxu0 %v503
  %975 = vmatmul.mubr.bf16.gmra.mrb[0].mxu0 %v502
  %v976 = vpop.f32.mrb[0].mxu0
  %v977 = vadd.f32 %v152, %v976
  %v978 = vpop.f32.mrb[0].mxu0
  %v979 = vpop.f32.mrb[0].mxu0
  %v980 = vadd.f32 %v152, %v979
  %v981 = vpop.f32.mrb[0].mxu0
  %982 = vmatprep.mubr.bf16.mxu0 %v505
  %983 = vmatmul.mubr.bf16.gmra.mrb[0].mxu0 %v504
  %v984 = vpop.f32.mrb[0].mxu0
  %v985 = vadd.f32 %v152, %v984
  %v986 = vpop.f32.mrb[0].mxu0
  %v987 = vpop.f32.mrb[0].mxu0
  %v988 = vadd.f32 %v152, %v987
  %v989 = vpop.f32.mrb[0].mxu0
  %990 = vmatprep.mubr.bf16.mxu0 %v507
  %991 = vmatmul.mubr.bf16.gmra.mrb[0].mxu0 %v506
  %v992 = vpop.f32.mrb[0].mxu0
  %v993 = vadd.f32 %v152, %v992
  %v994 = vpop.f32.mrb[0].mxu0
  %v995 = vpop.f32.mrb[0].mxu0
  %v996 = vadd.f32 %v152, %v995
  %v997 = vpop.f32.mrb[0].mxu0
  %998 = vmatprep.mubr.bf16.mxu0 %v509
  %999 = vmatmul.mubr.bf16.gmra.mrb[0].mxu0 %v508
  %v1000 = vpop.f32.mrb[0].mxu0
  %v1001 = vadd.f32 %v152, %v1000
  %v1002 = vpop.f32.mrb[0].mxu0
  %v1003 = vpop.f32.mrb[0].mxu0
  %v1004 = vadd.f32 %v152, %v1003
  %v1005 = vpop.f32.mrb[0].mxu0
  %1006 = vmatprep.mubr.bf16.mxu0 %v511
  %1007 = vmatmul.mubr.bf16.gmra.mrb[0].mxu0 %v510
  %v1008 = vpop.f32.mrb[0].mxu0
  %v1009 = vadd.f32 %v152, %v1008
  %v1010 = vpop.f32.mrb[0].mxu0
  %v1011 = vpop.f32.mrb[0].mxu0
  %v1012 = vadd.f32 %v152, %v1011
  %v1013 = vpop.f32.mrb[0].mxu0
  %1014 = vmatprep.mubr.bf16.mxu0 %v513
  %1015 = vmatmul.mubr.bf16.gmra.mrb[0].mxu0 %v512
  %v1016 = vpop.f32.mrb[0].mxu0
  %v1017 = vadd.f32 %v152, %v1016
  %v1018 = vpop.f32.mrb[0].mxu0
  %v1019 = vpop.f32.mrb[0].mxu0
  %v1020 = vadd.f32 %v152, %v1019
  %v1021 = vpop.f32.mrb[0].mxu0
  %1022 = vmatprep.mubr.bf16.mxu0 %v515
  %1023 = vmatmul.mubr.bf16.gmra.mrb[0].mxu0 %v514
  %v1024 = vpop.f32.mrb[0].mxu0
  %v1025 = vadd.f32 %v152, %v1024
  %v1026 = vpop.f32.mrb[0].mxu0
  %v1027 = vpop.f32.mrb[0].mxu0
  %v1028 = vadd.f32 %v152, %v1027
  %v1029 = vpop.f32.mrb[0].mxu0
  %1030 = vmatprep.mubr.bf16.mxu0 %v517
  %1031 = vmatmul.mubr.bf16.gmra.mrb[0].mxu0 %v516
  %v1032 = vpop.f32.mrb[0].mxu0
  %v1033 = vadd.f32 %v152, %v1032
  %v1034 = vpop.f32.mrb[0].mxu0
  %v1035 = vpop.f32.mrb[0].mxu0
  %v1036 = vadd.f32 %v152, %v1035
  %v1037 = vpop.f32.mrb[0].mxu0
  %1038 = vmatprep.mubr.bf16.mxu0 %v519
  %1039 = vmatmul.mubr.bf16.gmra.mrb[0].mxu0 %v518
  %v1040 = vpop.f32.mrb[0].mxu0
  %v1041 = vadd.f32 %v152, %v1040
  %v1042 = vpop.f32.mrb[0].mxu0
  %v1043 = vpop.f32.mrb[0].mxu0
  %v1044 = vadd.f32 %v152, %v1043
  %v1045 = vpop.f32.mrb[0].mxu0
  %1046 = vmatprep.mubr.bf16.mxu0 %v521
  %1047 = vmatmul.mubr.bf16.gmra.mrb[0].mxu0 %v520
  %v1048 = vpop.f32.mrb[0].mxu0
  %v1049 = vadd.f32 %v152, %v1048
  %v1050 = vpop.f32.mrb[0].mxu0
  %v1051 = vpop.f32.mrb[0].mxu0
  %v1052 = vadd.f32 %v152, %v1051
  %v1053 = vpop.f32.mrb[0].mxu0
  %1054 = vmatprep.mubr.bf16.mxu0 %v523
  %1055 = vmatmul.mubr.bf16.gmra.mrb[0].mxu0 %v522
  %v1056 = vpop.f32.mrb[0].mxu0
  %v1057 = vadd.f32 %v152, %v1056
  %v1058 = vpop.f32.mrb[0].mxu0
  %v1059 = vpop.f32.mrb[0].mxu0
  %v1060 = vadd.f32 %v152, %v1059
  %v1061 = vpop.f32.mrb[0].mxu0
  %1062 = vmatprep.mubr.bf16.mxu0 %v525
  %1063 = vmatmul.mubr.bf16.gmra.mrb[0].mxu0 %v524
  %v1064 = vpop.f32.mrb[0].mxu0
  %v1065 = vadd.f32 %v152, %v1064
  %v1066 = vpop.f32.mrb[0].mxu0
  %v1067 = vpop.f32.mrb[0].mxu0
  %v1068 = vadd.f32 %v152, %v1067
  %v1069 = vpop.f32.mrb[0].mxu0
  %1070 = vmatprep.mubr.bf16.mxu0 %v527
  %1071 = vmatmul.mubr.bf16.gmra.mrb[0].mxu0 %v526
  %v1072 = vpop.f32.mrb[0].mxu0
  %v1073 = vadd.f32 %v152, %v1072
  %v1074 = vpop.f32.mrb[0].mxu0
  %v1075 = vpop.f32.mrb[0].mxu0
  %v1076 = vadd.f32 %v152, %v1075
  %v1077 = vpop.f32.mrb[0].mxu0
  %1078 = vmatprep.mubr.bf16.mxu0 %v529
  %1079 = vmatmul.mubr.bf16.gmra.mrb[0].mxu0 %v528
  %v1080 = vpop.f32.mrb[0].mxu0
  %v1081 = vadd.f32 %v152, %v1080
  %v1082 = vpop.f32.mrb[0].mxu0
  %v1083 = vpop.f32.mrb[0].mxu0
  %v1084 = vadd.f32 %v152, %v1083
  %v1085 = vpop.f32.mrb[0].mxu0
  %1086 = vmatprep.mubr.bf16.mxu0 %v531
  %1087 = vmatmul.mubr.bf16.gmra.mrb[0].mxu0 %v530
  %v1088 = vpop.f32.mrb[0].mxu0
  %v1089 = vadd.f32 %v152, %v1088
  %v1090 = vpop.f32.mrb[0].mxu0
  %v1091 = vpop.f32.mrb[0].mxu0
  %v1092 = vadd.f32 %v152, %v1091
  %v1093 = vpop.f32.mrb[0].mxu0
  %1094 = vmatprep.mubr.bf16.mxu0 %v533
  %1095 = vmatmul.mubr.bf16.gmra.mrb[0].mxu0 %v532
  %v1096 = vpop.f32.mrb[0].mxu0
  %v1097 = vadd.f32 %v152, %v1096
  %v1098 = vpop.f32.mrb[0].mxu0
  %v1099 = vpop.f32.mrb[0].mxu0
  %v1100 = vadd.f32 %v152, %v1099
  %v1101 = vpop.f32.mrb[0].mxu0
  %1102 = vmatprep.mubr.bf16.mxu0 %v535
  %1103 = vmatmul.mubr.bf16.gmra.mrb[0].mxu0 %v534
  %v1104 = vpop.f32.mrb[0].mxu0
  %v1105 = vadd.f32 %v152, %v1104
  %v1106 = vpop.f32.mrb[0].mxu0
  %v1107 = vpop.f32.mrb[0].mxu0
  %v1108 = vadd.f32 %v152, %v1107
  %v1109 = vpop.f32.mrb[0].mxu0
  %1110 = vmatprep.mubr.bf16.mxu0 %v537
  %1111 = vmatmul.mubr.bf16.gmra.mrb[0].mxu0 %v536
  %v1112 = vpop.f32.mrb[0].mxu0
  %v1113 = vadd.f32 %v152, %v1112
  %v1114 = vpop.f32.mrb[0].mxu0
  %v1115 = vpop.f32.mrb[0].mxu0
  %v1116 = vadd.f32 %v152, %v1115
  %v1117 = vpop.f32.mrb[0].mxu0
  %1118 = vmatprep.mubr.bf16.mxu0 %v539
  %1119 = vmatmul.mubr.bf16.gmra.mrb[0].mxu0 %v538
  %v1120 = vpop.f32.mrb[0].mxu0
  %v1121 = vadd.f32 %v152, %v1120
  %v1122 = vpop.f32.mrb[0].mxu0
  %v1123 = vpop.f32.mrb[0].mxu0
  %v1124 = vadd.f32 %v152, %v1123
  %v1125 = vpop.f32.mrb[0].mxu0
  %1126 = vmatprep.mubr.bf16.mxu0 %v541
  %1127 = vmatmul.mubr.bf16.gmra.mrb[0].mxu0 %v540
  %v1128 = vpop.f32.mrb[0].mxu0
  %v1129 = vadd.f32 %v152, %v1128
  %v1130 = vpop.f32.mrb[0].mxu0
  %v1131 = vpop.f32.mrb[0].mxu0
  %v1132 = vadd.f32 %v152, %v1131
  %v1133 = vpop.f32.mrb[0].mxu0
  %1134 = vmatprep.mubr.bf16.mxu0 %v543
  %1135 = vmatmul.mubr.bf16.gmra.mrb[0].mxu0 %v542
  %v1136 = vpop.f32.mrb[0].mxu0
  %v1137 = vadd.f32 %v152, %v1136
  %v1138 = vpop.f32.mrb[0].mxu0
  %v1139 = vpop.f32.mrb[0].mxu0
  %v1140 = vadd.f32 %v152, %v1139
  %v1141 = vpop.f32.mrb[0].mxu0
  %1142 = vmatprep.mubr.bf16.mxu0 %v545
  %1143 = vmatmul.mubr.bf16.gmra.mrb[0].mxu0 %v544
  %v1144 = vpop.f32.mrb[0].mxu0
  %v1145 = vadd.f32 %v152, %v1144
  %v1146 = vpop.f32.mrb[0].mxu0
  %v1147 = vpop.f32.mrb[0].mxu0
  %v1148 = vadd.f32 %v152, %v1147
  %v1149 = vpop.f32.mrb[0].mxu0
  %1150 = vmatprep.mubr.bf16.mxu0 %v547
  %1151 = vmatmul.mubr.bf16.gmra.mrb[0].mxu0 %v546
  %v1152 = vpop.f32.mrb[0].mxu0
  %v1153 = vadd.f32 %v152, %v1152
  %v1154 = vpop.f32.mrb[0].mxu0
  %v1155 = vpop.f32.mrb[0].mxu0
  %v1156 = vadd.f32 %v152, %v1155
  %v1157 = vpop.f32.mrb[0].mxu0
  %1158 = vmatprep.mubr.bf16.mxu0 %v549
  %1159 = vmatmul.mubr.bf16.gmra.mrb[0].mxu0 %v548
  %v1160 = vpop.f32.mrb[0].mxu0
  %v1161 = vadd.f32 %v152, %v1160
  %v1162 = vpop.f32.mrb[0].mxu0
  %v1163 = vpop.f32.mrb[0].mxu0
  %v1164 = vadd.f32 %v152, %v1163
  %v1165 = vpop.f32.mrb[0].mxu0
  %1166 = vmatprep.mubr.bf16.mxu0 %v551
  %1167 = vmatmul.mubr.bf16.gmra.mrb[0].mxu0 %v550
  %v1168 = vpop.f32.mrb[0].mxu0
  %v1169 = vadd.f32 %v152, %v1168
  %v1170 = vpop.f32.mrb[0].mxu0
  %v1171 = vpop.f32.mrb[0].mxu0
  %v1172 = vadd.f32 %v152, %v1171
  %v1173 = vpop.f32.mrb[0].mxu0
  %1174 = vmatprep.mubr.bf16.mxu0 %v553
  %1175 = vmatmul.mubr.bf16.gmra.mrb[0].mxu0 %v552
  %v1176 = vpop.f32.mrb[0].mxu0
  %v1177 = vadd.f32 %v152, %v1176
  %v1178 = vpop.f32.mrb[0].mxu0
  %v1179 = vpop.f32.mrb[0].mxu0
  %v1180 = vadd.f32 %v152, %v1179
  %v1181 = vpop.f32.mrb[0].mxu0
  %1182 = vdwg.mxu0
  %v1183 = vmax.f32 %v785, 0.0
  %v1184 = vmax.f32 %v788, 0.0
  %v1185 = vmax.f32 %v793, 0.0
  %v1186 = vmax.f32 %v796, 0.0
  %v1187 = vmax.f32 %v801, 0.0
  %v1188 = vmax.f32 %v804, 0.0
  %v1189 = vmax.f32 %v809, 0.0
  %v1190 = vmax.f32 %v812, 0.0
  %v1191 = vmax.f32 %v817, 0.0
  %v1192 = vmax.f32 %v820, 0.0
  %v1193 = vmax.f32 %v825, 0.0
  %v1194 = vmax.f32 %v828, 0.0
  %v1195 = vmax.f32 %v833, 0.0
  %v1196 = vmax.f32 %v836, 0.0
  %v1197 = vmax.f32 %v841, 0.0
  %v1198 = vmax.f32 %v844, 0.0
  %v1199 = vmax.f32 %v849, 0.0
  %v1200 = vmax.f32 %v852, 0.0
  %v1201 = vmax.f32 %v857, 0.0
  %v1202 = vmax.f32 %v860, 0.0
  %v1203 = vmax.f32 %v865, 0.0
  %v1204 = vmax.f32 %v868, 0.0
  %v1205 = vmax.f32 %v873, 0.0
  %v1206 = vmax.f32 %v876, 0.0
  %v1207 = vmax.f32 %v881, 0.0
  %v1208 = vmax.f32 %v884, 0.0
  %v1209 = vmax.f32 %v889, 0.0
  %v1210 = vmax.f32 %v892, 0.0
  %v1211 = vmax.f32 %v897, 0.0
  %v1212 = vmax.f32 %v900, 0.0
  %v1213 = vmax.f32 %v905, 0.0
  %v1214 = vmax.f32 %v908, 0.0
  %v1215 = vmax.f32 %v913, 0.0
  %v1216 = vmax.f32 %v916, 0.0
  %v1217 = vmax.f32 %v921, 0.0
  %v1218 = vmax.f32 %v924, 0.0
  %v1219 = vmax.f32 %v929, 0.0
  %v1220 = vmax.f32 %v932, 0.0
  %v1221 = vmax.f32 %v937, 0.0
  %v1222 = vmax.f32 %v940, 0.0
  %v1223 = vmax.f32 %v945, 0.0
  %v1224 = vmax.f32 %v948, 0.0
  %v1225 = vmax.f32 %v953, 0.0
  %v1226 = vmax.f32 %v956, 0.0
  %v1227 = vmax.f32 %v961, 0.0
  %v1228 = vmax.f32 %v964, 0.0
  %v1229 = vmax.f32 %v969, 0.0
  %v1230 = vmax.f32 %v972, 0.0
  %v1231 = vmax.f32 %v977, 0.0
  %v1232 = vmax.f32 %v980, 0.0
  %v1233 = vmax.f32 %v985, 0.0
  %v1234 = vmax.f32 %v988, 0.0
  %v1235 = vmax.f32 %v993, 0.0
  %v1236 = vmax.f32 %v996, 0.0
  %v1237 = vmax.f32 %v1001, 0.0
  %v1238 = vmax.f32 %v1004, 0.0
  %v1239 = vmax.f32 %v1009, 0.0
  %v1240 = vmax.f32 %v1012, 0.0
  %v1241 = vmax.f32 %v1017, 0.0
  %v1242 = vmax.f32 %v1020, 0.0
  %v1243 = vmax.f32 %v1025, 0.0
  %v1244 = vmax.f32 %v1028, 0.0
  %v1245 = vmax.f32 %v1033, 0.0
  %v1246 = vmax.f32 %v1036, 0.0
  %v1247 = vmax.f32 %v1041, 0.0
  %v1248 = vmax.f32 %v1044, 0.0
  %v1249 = vmax.f32 %v1049, 0.0
  %v1250 = vmax.f32 %v1052, 0.0
  %v1251 = vmax.f32 %v1057, 0.0
  %v1252 = vmax.f32 %v1060, 0.0
  %v1253 = vmax.f32 %v1065, 0.0
  %v1254 = vmax.f32 %v1068, 0.0
  %v1255 = vmax.f32 %v1073, 0.0
  %v1256 = vmax.f32 %v1076, 0.0
  %v1257 = vmax.f32 %v1081, 0.0
  %v1258 = vmax.f32 %v1084, 0.0
  %v1259 = vmax.f32 %v1089, 0.0
  %v1260 = vmax.f32 %v1092, 0.0
  %v1261 = vmax.f32 %v1097, 0.0
  %v1262 = vmax.f32 %v1100, 0.0
  %v1263 = vmax.f32 %v1105, 0.0
  %v1264 = vmax.f32 %v1108, 0.0
  %v1265 = vmax.f32 %v1113, 0.0
  %v1266 = vmax.f32 %v1116, 0.0
  %v1267 = vmax.f32 %v1121, 0.0
  %v1268 = vmax.f32 %v1124, 0.0
  %v1269 = vmax.f32 %v1129, 0.0
  %v1270 = vmax.f32 %v1132, 0.0
  %v1271 = vmax.f32 %v1137, 0.0
  %v1272 = vmax.f32 %v1140, 0.0
  %v1273 = vmax.f32 %v1145, 0.0
  %v1274 = vmax.f32 %v1148, 0.0
  %v1275 = vmax.f32 %v1153, 0.0
  %v1276 = vmax.f32 %v1156, 0.0
  %v1277 = vmax.f32 %v1161, 0.0
  %v1278 = vmax.f32 %v1164, 0.0
  %v1279 = vmax.f32 %v1169, 0.0
  %v1280 = vmax.f32 %v1172, 0.0
  %v1281 = vmax.f32 %v1177, 0.0
  %v1282 = vmax.f32 %v1180, 0.0
  %v1283 = vpack.c.bf16 %v1184, %v1183
  %v1284 = vpack.c.bf16 %v1186, %v1185
  %v1285 = vpack.c.bf16 %v1188, %v1187
  %v1286 = vpack.c.bf16 %v1190, %v1189
  %v1287 = vpack.c.bf16 %v1192, %v1191
  %v1288 = vpack.c.bf16 %v1194, %v1193
  %v1289 = vpack.c.bf16 %v1196, %v1195
  %v1290 = vpack.c.bf16 %v1198, %v1197
  %v1291 = vpack.c.bf16 %v1200, %v1199
  %v1292 = vpack.c.bf16 %v1202, %v1201
  %v1293 = vpack.c.bf16 %v1204, %v1203
  %v1294 = vpack.c.bf16 %v1206, %v1205
  %v1295 = vpack.c.bf16 %v1208, %v1207
  %v1296 = vpack.c.bf16 %v1210, %v1209
  %v1297 = vpack.c.bf16 %v1212, %v1211
  %v1298 = vpack.c.bf16 %v1214, %v1213
  %v1299 = vpack.c.bf16 %v1216, %v1215
  %v1300 = vpack.c.bf16 %v1218, %v1217
  %v1301 = vpack.c.bf16 %v1220, %v1219
  %v1302 = vpack.c.bf16 %v1222, %v1221
  %v1303 = vpack.c.bf16 %v1224, %v1223
  %v1304 = vpack.c.bf16 %v1226, %v1225
  %v1305 = vpack.c.bf16 %v1228, %v1227
  %v1306 = vpack.c.bf16 %v1230, %v1229
  %v1307 = vpack.c.bf16 %v1232, %v1231
  %v1308 = vpack.c.bf16 %v1234, %v1233
  %v1309 = vpack.c.bf16 %v1236, %v1235
  %v1310 = vpack.c.bf16 %v1238, %v1237
  %v1311 = vpack.c.bf16 %v1240, %v1239
  %v1312 = vpack.c.bf16 %v1242, %v1241
  %v1313 = vpack.c.bf16 %v1244, %v1243
  %v1314 = vpack.c.bf16 %v1246, %v1245
  %v1315 = vpack.c.bf16 %v1248, %v1247
  %v1316 = vpack.c.bf16 %v1250, %v1249
  %v1317 = vpack.c.bf16 %v1252, %v1251
  %v1318 = vpack.c.bf16 %v1254, %v1253
  %v1319 = vpack.c.bf16 %v1256, %v1255
  %v1320 = vpack.c.bf16 %v1258, %v1257
  %v1321 = vpack.c.bf16 %v1260, %v1259
  %v1322 = vpack.c.bf16 %v1262, %v1261
  %v1323 = vpack.c.bf16 %v1264, %v1263
  %v1324 = vpack.c.bf16 %v1266, %v1265
  %v1325 = vpack.c.bf16 %v1268, %v1267
  %v1326 = vpack.c.bf16 %v1270, %v1269
  %v1327 = vpack.c.bf16 %v1272, %v1271
  %v1328 = vpack.c.bf16 %v1274, %v1273
  %v1329 = vpack.c.bf16 %v1276, %v1275
  %v1330 = vpack.c.bf16 %v1278, %v1277
  %v1331 = vpack.c.bf16 %v1280, %v1279
  %v1332 = vpack.c.bf16 %v1282, %v1281
  %v1383 = vunpack.c.l.b16 %v1283
  %v1384 = vunpack.c.h.b16 %v1283
  %v1385 = vunpack.c.l.b16 %v1284
  %v1386 = vunpack.c.h.b16 %v1284
  %v1387 = vunpack.c.l.b16 %v1285
  %v1388 = vunpack.c.h.b16 %v1285
  %v1389 = vunpack.c.l.b16 %v1286
  %v1390 = vunpack.c.h.b16 %v1286
  %v1391 = vunpack.c.l.b16 %v1287
  %v1392 = vunpack.c.h.b16 %v1287
  %v1393 = vunpack.c.l.b16 %v1288
  %v1394 = vunpack.c.h.b16 %v1288
  %v1395 = vunpack.c.l.b16 %v1289
  %v1396 = vunpack.c.h.b16 %v1289
  %v1397 = vunpack.c.l.b16 %v1290
  %v1398 = vunpack.c.h.b16 %v1290
  %v1399 = vunpack.c.l.b16 %v1291
  %v1400 = vunpack.c.h.b16 %v1291
  %v1401 = vunpack.c.l.b16 %v1292
  %v1402 = vunpack.c.h.b16 %v1292
  %v1403 = vunpack.c.l.b16 %v1293
  %v1404 = vunpack.c.h.b16 %v1293
  %v1405 = vunpack.c.l.b16 %v1294
  %v1406 = vunpack.c.h.b16 %v1294
  %v1407 = vunpack.c.l.b16 %v1295
  %v1408 = vunpack.c.h.b16 %v1295
  %v1409 = vunpack.c.l.b16 %v1296
  %v1410 = vunpack.c.h.b16 %v1296
  %v1411 = vunpack.c.l.b16 %v1297
  %v1412 = vunpack.c.h.b16 %v1297
  %v1413 = vunpack.c.l.b16 %v1298
  %v1414 = vunpack.c.h.b16 %v1298
  %v1415 = vunpack.c.l.b16 %v1299
  %v1416 = vunpack.c.h.b16 %v1299
  %v1417 = vunpack.c.l.b16 %v1300
  %v1418 = vunpack.c.h.b16 %v1300
  %v1419 = vunpack.c.l.b16 %v1301
  %v1420 = vunpack.c.h.b16 %v1301
  %v1421 = vunpack.c.l.b16 %v1302
  %v1422 = vunpack.c.h.b16 %v1302
  %v1423 = vunpack.c.l.b16 %v1303
  %v1424 = vunpack.c.h.b16 %v1303
  %v1425 = vunpack.c.l.b16 %v1304
  %v1426 = vunpack.c.h.b16 %v1304
  %v1427 = vunpack.c.l.b16 %v1305
  %v1428 = vunpack.c.h.b16 %v1305
  %v1429 = vunpack.c.l.b16 %v1306
  %v1430 = vunpack.c.h.b16 %v1306
  %v1431 = vunpack.c.l.b16 %v1307
  %v1432 = vunpack.c.h.b16 %v1307
  %v1433 = vunpack.c.l.b16 %v1308
  %v1434 = vunpack.c.h.b16 %v1308
  %v1435 = vunpack.c.l.b16 %v1309
  %v1436 = vunpack.c.h.b16 %v1309
  %v1437 = vunpack.c.l.b16 %v1310
  %v1438 = vunpack.c.h.b16 %v1310
  %v1439 = vunpack.c.l.b16 %v1311
  %v1440 = vunpack.c.h.b16 %v1311
  %v1441 = vunpack.c.l.b16 %v1312
  %v1442 = vunpack.c.h.b16 %v1312
  %v1443 = vunpack.c.l.b16 %v1313
  %v1444 = vunpack.c.h.b16 %v1313
  %v1445 = vunpack.c.l.b16 %v1314
  %v1446 = vunpack.c.h.b16 %v1314
  %v1447 = vunpack.c.l.b16 %v1315
  %v1448 = vunpack.c.h.b16 %v1315
  %v1449 = vunpack.c.l.b16 %v1316
  %v1450 = vunpack.c.h.b16 %v1316
  %v1451 = vunpack.c.l.b16 %v1317
  %v1452 = vunpack.c.h.b16 %v1317
  %v1453 = vunpack.c.l.b16 %v1318
  %v1454 = vunpack.c.h.b16 %v1318
  %v1455 = vunpack.c.l.b16 %v1319
  %v1456 = vunpack.c.h.b16 %v1319
  %v1457 = vunpack.c.l.b16 %v1320
  %v1458 = vunpack.c.h.b16 %v1320
  %v1459 = vunpack.c.l.b16 %v1321
  %v1460 = vunpack.c.h.b16 %v1321
  %v1461 = vunpack.c.l.b16 %v1322
  %v1462 = vunpack.c.h.b16 %v1322
  %v1463 = vunpack.c.l.b16 %v1323
  %v1464 = vunpack.c.h.b16 %v1323
  %v1465 = vunpack.c.l.b16 %v1324
  %v1466 = vunpack.c.h.b16 %v1324
  %v1467 = vunpack.c.l.b16 %v1325
  %v1468 = vunpack.c.h.b16 %v1325
  %v1469 = vunpack.c.l.b16 %v1326
  %v1470 = vunpack.c.h.b16 %v1326
  %v1471 = vunpack.c.l.b16 %v1327
  %v1472 = vunpack.c.h.b16 %v1327
  %v1473 = vunpack.c.l.b16 %v1328
  %v1474 = vunpack.c.h.b16 %v1328
  %v1475 = vunpack.c.l.b16 %v1329
  %v1476 = vunpack.c.h.b16 %v1329
  %v1477 = vunpack.c.l.b16 %v1330
  %v1478 = vunpack.c.h.b16 %v1330
  %v1479 = vunpack.c.l.b16 %v1331
  %v1480 = vunpack.c.h.b16 %v1331
  %v1481 = vunpack.c.l.b16 %v1332
  %v1482 = vunpack.c.h.b16 %v1332
  %v1483 = vpack.c.b16 %v1383, %v1383
  %v1484 = vpack.c.b16 %v1384, %v1384
  %v1485 = vpack.c.b16 %v1385, %v1385
  %v1486 = vpack.c.b16 %v1386, %v1386
  %v1487 = vpack.c.b16 %v1387, %v1387
  %v1488 = vpack.c.b16 %v1388, %v1388
  %v1489 = vpack.c.b16 %v1389, %v1389
  %v1490 = vpack.c.b16 %v1390, %v1390
  %v1491 = vpack.c.b16 %v1391, %v1391
  %v1492 = vpack.c.b16 %v1392, %v1392
  %v1493 = vpack.c.b16 %v1393, %v1393
  %v1494 = vpack.c.b16 %v1394, %v1394
  %v1495 = vpack.c.b16 %v1395, %v1395
  %v1496 = vpack.c.b16 %v1396, %v1396
  %v1497 = vpack.c.b16 %v1397, %v1397
  %v1498 = vpack.c.b16 %v1398, %v1398
  %v1499 = vpack.c.b16 %v1399, %v1399
  %v1500 = vpack.c.b16 %v1400, %v1400
  %v1501 = vpack.c.b16 %v1401, %v1401
  %v1502 = vpack.c.b16 %v1402, %v1402
  %v1503 = vpack.c.b16 %v1403, %v1403
  %v1504 = vpack.c.b16 %v1404, %v1404
  %v1505 = vpack.c.b16 %v1405, %v1405
  %v1506 = vpack.c.b16 %v1406, %v1406
  %v1507 = vpack.c.b16 %v1407, %v1407
  %v1508 = vpack.c.b16 %v1408, %v1408
  %v1509 = vpack.c.b16 %v1409, %v1409
  %v1510 = vpack.c.b16 %v1410, %v1410
  %v1511 = vpack.c.b16 %v1411, %v1411
  %v1512 = vpack.c.b16 %v1412, %v1412
  %v1513 = vpack.c.b16 %v1413, %v1413
  %v1514 = vpack.c.b16 %v1414, %v1414
  %v1515 = vpack.c.b16 %v1415, %v1415
  %v1516 = vpack.c.b16 %v1416, %v1416
  %v1517 = vpack.c.b16 %v1417, %v1417
  %v1518 = vpack.c.b16 %v1418, %v1418
  %v1519 = vpack.c.b16 %v1419, %v1419
  %v1520 = vpack.c.b16 %v1420, %v1420
  %v1521 = vpack.c.b16 %v1421, %v1421
  %v1522 = vpack.c.b16 %v1422, %v1422
  %v1523 = vpack.c.b16 %v1423, %v1423
  %v1524 = vpack.c.b16 %v1424, %v1424
  %v1525 = vpack.c.b16 %v1425, %v1425
  %v1526 = vpack.c.b16 %v1426, %v1426
  %v1527 = vpack.c.b16 %v1427, %v1427
  %v1528 = vpack.c.b16 %v1428, %v1428
  %v1529 = vpack.c.b16 %v1429, %v1429
  %v1530 = vpack.c.b16 %v1430, %v1430
  %v1531 = vpack.c.b16 %v1431, %v1431
  %v1532 = vpack.c.b16 %v1432, %v1432
  %v1533 = vpack.c.b16 %v1433, %v1433
  %v1534 = vpack.c.b16 %v1434, %v1434
  %v1535 = vpack.c.b16 %v1435, %v1435
  %v1536 = vpack.c.b16 %v1436, %v1436
  %v1537 = vpack.c.b16 %v1437, %v1437
  %v1538 = vpack.c.b16 %v1438, %v1438
  %v1539 = vpack.c.b16 %v1439, %v1439
  %v1540 = vpack.c.b16 %v1440, %v1440
  %v1541 = vpack.c.b16 %v1441, %v1441
  %v1542 = vpack.c.b16 %v1442, %v1442
  %v1543 = vpack.c.b16 %v1443, %v1443
  %v1544 = vpack.c.b16 %v1444, %v1444
  %v1545 = vpack.c.b16 %v1445, %v1445
  %v1546 = vpack.c.b16 %v1446, %v1446
  %v1547 = vpack.c.b16 %v1447, %v1447
  %v1548 = vpack.c.b16 %v1448, %v1448
  %v1549 = vpack.c.b16 %v1449, %v1449
  %v1550 = vpack.c.b16 %v1450, %v1450
  %v1551 = vpack.c.b16 %v1451, %v1451
  %v1552 = vpack.c.b16 %v1452, %v1452
  %v1553 = vpack.c.b16 %v1453, %v1453
  %v1554 = vpack.c.b16 %v1454, %v1454
  %v1555 = vpack.c.b16 %v1455, %v1455
  %v1556 = vpack.c.b16 %v1456, %v1456
  %v1557 = vpack.c.b16 %v1457, %v1457
  %v1558 = vpack.c.b16 %v1458, %v1458
  %v1559 = vpack.c.b16 %v1459, %v1459
  %v1560 = vpack.c.b16 %v1460, %v1460
  %v1561 = vpack.c.b16 %v1461, %v1461
  %v1562 = vpack.c.b16 %v1462, %v1462
  %v1563 = vpack.c.b16 %v1463, %v1463
  %v1564 = vpack.c.b16 %v1464, %v1464
  %v1565 = vpack.c.b16 %v1465, %v1465
  %v1566 = vpack.c.b16 %v1466, %v1466
  %v1567 = vpack.c.b16 %v1467, %v1467
  %v1568 = vpack.c.b16 %v1468, %v1468
  %v1569 = vpack.c.b16 %v1469, %v1469
  %v1570 = vpack.c.b16 %v1470, %v1470
  %v1571 = vpack.c.b16 %v1471, %v1471
  %v1572 = vpack.c.b16 %v1472, %v1472
  %v1573 = vpack.c.b16 %v1473, %v1473
  %v1574 = vpack.c.b16 %v1474, %v1474
  %v1575 = vpack.c.b16 %v1475, %v1475
  %v1576 = vpack.c.b16 %v1476, %v1476
  %v1577 = vpack.c.b16 %v1477, %v1477
  %v1578 = vpack.c.b16 %v1478, %v1478
  %v1579 = vpack.c.b16 %v1479, %v1479
  %v1580 = vpack.c.b16 %v1480, %v1480
  %v1581 = vpack.c.b16 %v1481, %v1481
  %v1582 = vpack.c.b16 %v1482, %v1482
  %vm1683 = vcmask 257024
  %1684 = vst.msk [vmem:[%s3] sm:$0xf] %vm1683, %v1483
  %1685 = vst.msk [vmem:[%s3 + $0x4] sm:$0xf] %vm1683, %v1484
  %1686 = vst.msk [vmem:[%s3 + $0x8] sm:$0xf] %vm1683, %v1485
  %1687 = vst.msk [vmem:[%s3 + $0xc] sm:$0xf] %vm1683, %v1486
  %1688 = vst.msk [vmem:[%s3 + $0x10] sm:$0xf] %vm1683, %v1487
  %1689 = vst.msk [vmem:[%s3 + $0x14] sm:$0xf] %vm1683, %v1488
  %1690 = vst.msk [vmem:[%s3 + $0x18] sm:$0xf] %vm1683, %v1489
  %1691 = vst.msk [vmem:[%s3 + $0x1c] sm:$0xf] %vm1683, %v1490
  %1692 = vst.msk [vmem:[%s3 + $0x20] sm:$0xf] %vm1683, %v1491
  %1693 = vst.msk [vmem:[%s3 + $0x24] sm:$0xf] %vm1683, %v1492
  %1694 = vst.msk [vmem:[%s3 + $0x28] sm:$0xf] %vm1683, %v1493
  %1695 = vst.msk [vmem:[%s3 + $0x2c] sm:$0xf] %vm1683, %v1494
  %1696 = vst.msk [vmem:[%s3 + $0x30] sm:$0xf] %vm1683, %v1495
  %1697 = vst.msk [vmem:[%s3 + $0x34] sm:$0xf] %vm1683, %v1496
  %1698 = vst.msk [vmem:[%s3 + $0x38] sm:$0xf] %vm1683, %v1497
  %1699 = vst.msk [vmem:[%s3 + $0x3c] sm:$0xf] %vm1683, %v1498
  %1700 = vst.msk [vmem:[%s3 + $0x40] sm:$0xf] %vm1683, %v1499
  %1701 = vst.msk [vmem:[%s3 + $0x44] sm:$0xf] %vm1683, %v1500
  %1702 = vst.msk [vmem:[%s3 + $0x48] sm:$0xf] %vm1683, %v1501
  %1703 = vst.msk [vmem:[%s3 + $0x4c] sm:$0xf] %vm1683, %v1502
  %1704 = vst.msk [vmem:[%s3 + $0x50] sm:$0xf] %vm1683, %v1503
  %1705 = vst.msk [vmem:[%s3 + $0x54] sm:$0xf] %vm1683, %v1504
  %1706 = vst.msk [vmem:[%s3 + $0x58] sm:$0xf] %vm1683, %v1505
  %1707 = vst.msk [vmem:[%s3 + $0x5c] sm:$0xf] %vm1683, %v1506
  %1708 = vst.msk [vmem:[%s3 + $0x60] sm:$0xf] %vm1683, %v1507
  %1709 = vst.msk [vmem:[%s3 + $0x64] sm:$0xf] %vm1683, %v1508
  %1710 = vst.msk [vmem:[%s3 + $0x68] sm:$0xf] %vm1683, %v1509
  %1711 = vst.msk [vmem:[%s3 + $0x6c] sm:$0xf] %vm1683, %v1510
  %1712 = vst.msk [vmem:[%s3 + $0x70] sm:$0xf] %vm1683, %v1511
  %1713 = vst.msk [vmem:[%s3 + $0x74] sm:$0xf] %vm1683, %v1512
  %1714 = vst.msk [vmem:[%s3 + $0x78] sm:$0xf] %vm1683, %v1513
  %1715 = vst.msk [vmem:[%s3 + $0x7c] sm:$0xf] %vm1683, %v1514
  %1716 = vst.msk [vmem:[%s3 + $0x80] sm:$0xf] %vm1683, %v1515
  %1717 = vst.msk [vmem:[%s3 + $0x84] sm:$0xf] %vm1683, %v1516
  %1718 = vst.msk [vmem:[%s3 + $0x88] sm:$0xf] %vm1683, %v1517
  %1719 = vst.msk [vmem:[%s3 + $0x8c] sm:$0xf] %vm1683, %v1518
  %1720 = vst.msk [vmem:[%s3 + $0x90] sm:$0xf] %vm1683, %v1519
  %1721 = vst.msk [vmem:[%s3 + $0x94] sm:$0xf] %vm1683, %v1520
  %1722 = vst.msk [vmem:[%s3 + $0x98] sm:$0xf] %vm1683, %v1521
  %1723 = vst.msk [vmem:[%s3 + $0x9c] sm:$0xf] %vm1683, %v1522
  %1724 = vst.msk [vmem:[%s3 + $0xa0] sm:$0xf] %vm1683, %v1523
  %1725 = vst.msk [vmem:[%s3 + $0xa4] sm:$0xf] %vm1683, %v1524
  %1726 = vst.msk [vmem:[%s3 + $0xa8] sm:$0xf] %vm1683, %v1525
  %1727 = vst.msk [vmem:[%s3 + $0xac] sm:$0xf] %vm1683, %v1526
  %1728 = vst.msk [vmem:[%s3 + $0xb0] sm:$0xf] %vm1683, %v1527
  %1729 = vst.msk [vmem:[%s3 + $0xb4] sm:$0xf] %vm1683, %v1528
  %1730 = vst.msk [vmem:[%s3 + $0xb8] sm:$0xf] %vm1683, %v1529
  %1731 = vst.msk [vmem:[%s3 + $0xbc] sm:$0xf] %vm1683, %v1530
  %1732 = vst.msk [vmem:[%s3 + $0xc0] sm:$0xf] %vm1683, %v1531
  %1733 = vst.msk [vmem:[%s3 + $0xc4] sm:$0xf] %vm1683, %v1532
  %1734 = vst.msk [vmem:[%s3 + $0xc8] sm:$0xf] %vm1683, %v1533
  %1735 = vst.msk [vmem:[%s3 + $0xcc] sm:$0xf] %vm1683, %v1534
  %1736 = vst.msk [vmem:[%s3 + $0xd0] sm:$0xf] %vm1683, %v1535
  %1737 = vst.msk [vmem:[%s3 + $0xd4] sm:$0xf] %vm1683, %v1536
  %1738 = vst.msk [vmem:[%s3 + $0xd8] sm:$0xf] %vm1683, %v1537
  %1739 = vst.msk [vmem:[%s3 + $0xdc] sm:$0xf] %vm1683, %v1538
  %1740 = vst.msk [vmem:[%s3 + $0xe0] sm:$0xf] %vm1683, %v1539
  %1741 = vst.msk [vmem:[%s3 + $0xe4] sm:$0xf] %vm1683, %v1540
  %1742 = vst.msk [vmem:[%s3 + $0xe8] sm:$0xf] %vm1683, %v1541
  %1743 = vst.msk [vmem:[%s3 + $0xec] sm:$0xf] %vm1683, %v1542
  %1744 = vst.msk [vmem:[%s3 + $0xf0] sm:$0xf] %vm1683, %v1543
  %1745 = vst.msk [vmem:[%s3 + $0xf4] sm:$0xf] %vm1683, %v1544
  %1746 = vst.msk [vmem:[%s3 + $0xf8] sm:$0xf] %vm1683, %v1545
  %1747 = vst.msk [vmem:[%s3 + $0xfc] sm:$0xf] %vm1683, %v1546
  %1748 = vst.msk [vmem:[%s3 + $0x100] sm:$0xf] %vm1683, %v1547
  %1749 = vst.msk [vmem:[%s3 + $0x104] sm:$0xf] %vm1683, %v1548
  %1750 = vst.msk [vmem:[%s3 + $0x108] sm:$0xf] %vm1683, %v1549
  %1751 = vst.msk [vmem:[%s3 + $0x10c] sm:$0xf] %vm1683, %v1550
  %1752 = vst.msk [vmem:[%s3 + $0x110] sm:$0xf] %vm1683, %v1551
  %1753 = vst.msk [vmem:[%s3 + $0x114] sm:$0xf] %vm1683, %v1552
  %1754 = vst.msk [vmem:[%s3 + $0x118] sm:$0xf] %vm1683, %v1553
  %1755 = vst.msk [vmem:[%s3 + $0x11c] sm:$0xf] %vm1683, %v1554
  %1756 = vst.msk [vmem:[%s3 + $0x120] sm:$0xf] %vm1683, %v1555
  %1757 = vst.msk [vmem:[%s3 + $0x124] sm:$0xf] %vm1683, %v1556
  %1758 = vst.msk [vmem:[%s3 + $0x128] sm:$0xf] %vm1683, %v1557
  %1759 = vst.msk [vmem:[%s3 + $0x12c] sm:$0xf] %vm1683, %v1558
  %1760 = vst.msk [vmem:[%s3 + $0x130] sm:$0xf] %vm1683, %v1559
  %1761 = vst.msk [vmem:[%s3 + $0x134] sm:$0xf] %vm1683, %v1560
  %1762 = vst.msk [vmem:[%s3 + $0x138] sm:$0xf] %vm1683, %v1561
  %1763 = vst.msk [vmem:[%s3 + $0x13c] sm:$0xf] %vm1683, %v1562
  %1764 = vst.msk [vmem:[%s3 + $0x140] sm:$0xf] %vm1683, %v1563
  %1765 = vst.msk [vmem:[%s3 + $0x144] sm:$0xf] %vm1683, %v1564
  %1766 = vst.msk [vmem:[%s3 + $0x148] sm:$0xf] %vm1683, %v1565
  %1767 = vst.msk [vmem:[%s3 + $0x14c] sm:$0xf] %vm1683, %v1566
  %1768 = vst.msk [vmem:[%s3 + $0x150] sm:$0xf] %vm1683, %v1567
  %1769 = vst.msk [vmem:[%s3 + $0x154] sm:$0xf] %vm1683, %v1568
  %1770 = vst.msk [vmem:[%s3 + $0x158] sm:$0xf] %vm1683, %v1569
  %1771 = vst.msk [vmem:[%s3 + $0x15c] sm:$0xf] %vm1683, %v1570
  %1772 = vst.msk [vmem:[%s3 + $0x160] sm:$0xf] %vm1683, %v1571
  %1773 = vst.msk [vmem:[%s3 + $0x164] sm:$0xf] %vm1683, %v1572
  %1774 = vst.msk [vmem:[%s3 + $0x168] sm:$0xf] %vm1683, %v1573
  %1775 = vst.msk [vmem:[%s3 + $0x16c] sm:$0xf] %vm1683, %v1574
  %1776 = vst.msk [vmem:[%s3 + $0x170] sm:$0xf] %vm1683, %v1575
  %1777 = vst.msk [vmem:[%s3 + $0x174] sm:$0xf] %vm1683, %v1576
  %1778 = vst.msk [vmem:[%s3 + $0x178] sm:$0xf] %vm1683, %v1577
  %1779 = vst.msk [vmem:[%s3 + $0x17c] sm:$0xf] %vm1683, %v1578
  %1780 = vst.msk [vmem:[%s3 + $0x180] sm:$0xf] %vm1683, %v1579
  %1781 = vst.msk [vmem:[%s3 + $0x184] sm:$0xf] %vm1683, %v1580
  %1782 = vst.msk [vmem:[%s3 + $0x188] sm:$0xf] %vm1683, %v1581
  %1783 = vst.msk [vmem:[%s3 + $0x18c] sm:$0xf] %vm1683, %v1582
  // Predicated region
  $region14: #{cnn_policy_forward.4} parent=0 // pred_check
    _
  $region15: #{cnn_policy_forward.4} parent=0 // pred_check_branch
    %1785 = sbr.rel (0) target = $region17
  $region16: #{cnn_policy_forward.4} parent=0 // pred_region
    _
  $region17: #{cnn_policy_forward.4} parent=0 // pred_fallthru
    _
  // Predicated region
  $region18: #{cnn_policy_forward.4} parent=0 // pred_check
    _
  $region19: #{cnn_policy_forward.4} parent=0 // pred_check_branch
    %1787 = sbr.rel (0) target = $region21
  $region20: #{cnn_policy_forward.4} parent=0 // pred_region
    _
  $region21: #{cnn_policy_forward.4} parent=0 // pred_fallthru
    _

// kernel: cnn_policy_forward.5
$region0: #{cnn_policy_forward.5}
  #allocation0 [shape = 'u32[]', space=smem, size = 0x4, offset = 0x4, fixed_abs, tag = 'smem constant byte address 0x4 - core index']
  #allocation1 [shape = 'u32[144,128]{1,0:T(1,128)}', space=vmem, size = 0x12000, scoped, tag = 'internal scratch']
  %s0 = inlined_call_operand.vmem [shape: bf16[162,512], index: 0, kind: input, shape index: {}]
  %s1 = inlined_call_operand.vmem [shape: bf16[512,64], index: 1, kind: input, shape index: {}]
  %s2 = inlined_call_operand.vmem [shape: f32[1,64], index: 2, kind: input, shape index: {}]
  %s3 = inlined_call_operand.vmem [shape: bf16[162,64], index: 3, kind: output, shape index: {}]
  %s4 = sld [smem:[#allocation0]]
  $region22: #{cnn_policy_forward.5} parent=0
    _
  %s6 = ssub.s32 1, %s4
  %s7 = scalar_select 0, %s6, %s4
  // Predicated region
  $region2: #{cnn_policy_forward.5} parent=0 // pred_check
    _
  $region3: #{cnn_policy_forward.5} parent=0 // pred_check_branch
    %9 = sbr.rel (0) target = $region5
  $region4: #{cnn_policy_forward.5} parent=0 // pred_region
    _
  $region5: #{cnn_policy_forward.5} parent=0 // pred_fallthru
    _
  // Predicated region
  $region6: #{cnn_policy_forward.5} parent=0 // pred_check
    _
  $region7: #{cnn_policy_forward.5} parent=0 // pred_check_branch
    %11 = sbr.rel (0) target = $region9
  $region8: #{cnn_policy_forward.5} parent=0 // pred_region
    _
  $region9: #{cnn_policy_forward.5} parent=0 // pred_fallthru
    _
  // Predicated region
  $region10: #{cnn_policy_forward.5} parent=0 // pred_check
    _
  $region11: #{cnn_policy_forward.5} parent=0 // pred_check_branch
    %13 = sbr.rel (0) target = $region13
  $region12: #{cnn_policy_forward.5} parent=0 // pred_region
    _
  $region13: #{cnn_policy_forward.5} parent=0 // pred_fallthru
    _
  %v15 = vld [vmem:[%s0] sm:$0xff]
  %v16 = vld [vmem:[%s0 + $0x8] sm:$0xff]
  %v17 = vld [vmem:[%s0 + $0x10] sm:$0xff]
  %v18 = vld [vmem:[%s0 + $0x18] sm:$0xff]
  %v19 = vld [vmem:[%s0 + $0x20] sm:$0xff]
  %v20 = vld [vmem:[%s0 + $0x28] sm:$0xff]
  %v21 = vld [vmem:[%s0 + $0x30] sm:$0xff]
  %v22 = vld [vmem:[%s0 + $0x38] sm:$0xff]
  %v23 = vld [vmem:[%s0 + $0x40] sm:$0xff]
  %v24 = vld [vmem:[%s0 + $0x48] sm:$0xff]
  %v25 = vld [vmem:[%s0 + $0x50] sm:$0xff]
  %v26 = vld [vmem:[%s0 + $0x58] sm:$0xff]
  %v27 = vld [vmem:[%s0 + $0x60] sm:$0xff]
  %v28 = vld [vmem:[%s0 + $0x68] sm:$0xff]
  %v29 = vld [vmem:[%s0 + $0x70] sm:$0xff]
  %v30 = vld [vmem:[%s0 + $0x78] sm:$0xff]
  %v31 = vld [vmem:[%s0 + $0x80] sm:$0xff]
  %v32 = vld [vmem:[%s0 + $0x88] sm:$0xff]
  %v33 = vld [vmem:[%s0 + $0x90] sm:$0xff]
  %v34 = vld [vmem:[%s0 + $0x98] sm:$0xff]
  %v35 = vld [vmem:[%s0 + $0xa0] sm:$0xff]
  %v36 = vld [vmem:[%s0 + $0xa8] sm:$0xff]
  %v37 = vld [vmem:[%s0 + $0xb0] sm:$0xff]
  %v38 = vld [vmem:[%s0 + $0xb8] sm:$0xff]
  %v39 = vld [vmem:[%s0 + $0xc0] sm:$0xff]
  %v40 = vld [vmem:[%s0 + $0xc8] sm:$0xff]
  %v41 = vld [vmem:[%s0 + $0xd0] sm:$0xff]
  %v42 = vld [vmem:[%s0 + $0xd8] sm:$0xff]
  %v43 = vld [vmem:[%s0 + $0xe0] sm:$0xff]
  %v44 = vld [vmem:[%s0 + $0xe8] sm:$0xff]
  %v45 = vld [vmem:[%s0 + $0xf0] sm:$0xff]
  %v46 = vld [vmem:[%s0 + $0xf8] sm:$0xff]
  %v47 = vld [vmem:[%s0 + $0x100] sm:$0xff]
  %v48 = vld [vmem:[%s0 + $0x108] sm:$0xff]
  %v49 = vld [vmem:[%s0 + $0x110] sm:$0xff]
  %v50 = vld [vmem:[%s0 + $0x118] sm:$0xff]
  %v51 = vld [vmem:[%s0 + $0x120] sm:$0xff]
  %v52 = vld [vmem:[%s0 + $0x128] sm:$0xff]
  %v53 = vld [vmem:[%s0 + $0x130] sm:$0xff]
  %v54 = vld [vmem:[%s0 + $0x138] sm:$0xff]
  %v55 = vld [vmem:[%s0 + $0x140] sm:$0x11]
  %v56 = vld [vmem:[%s0 + $0x148] sm:$0x11]
  %v57 = vld [vmem:[%s1] sm:$0xf]
  %v58 = vld [vmem:[%s1 + $0x4] sm:$0xf]
  %v59 = vld [vmem:[%s1 + $0x8] sm:$0xf]
  %v60 = vld [vmem:[%s1 + $0xc] sm:$0xf]
  %v61 = vld [vmem:[%s1 + $0x10] sm:$0xf]
  %v62 = vld [vmem:[%s1 + $0x14] sm:$0xf]
  %v63 = vld [vmem:[%s1 + $0x18] sm:$0xf]
  %v64 = vld [vmem:[%s1 + $0x1c] sm:$0xf]
  %v65 = vld [vmem:[%s1 + $0x20] sm:$0xf]
  %v66 = vld [vmem:[%s1 + $0x24] sm:$0xf]
  %v67 = vld [vmem:[%s1 + $0x28] sm:$0xf]
  %v68 = vld [vmem:[%s1 + $0x2c] sm:$0xf]
  %v69 = vld [vmem:[%s1 + $0x30] sm:$0xf]
  %v70 = vld [vmem:[%s1 + $0x34] sm:$0xf]
  %v71 = vld [vmem:[%s1 + $0x38] sm:$0xf]
  %v72 = vld [vmem:[%s1 + $0x3c] sm:$0xf]
  %v73 = vld [vmem:[%s1 + $0x40] sm:$0xf]
  %v74 = vld [vmem:[%s1 + $0x44] sm:$0xf]
  %v75 = vld [vmem:[%s1 + $0x48] sm:$0xf]
  %v76 = vld [vmem:[%s1 + $0x4c] sm:$0xf]
  %v77 = vld [vmem:[%s1 + $0x50] sm:$0xf]
  %v78 = vld [vmem:[%s1 + $0x54] sm:$0xf]
  %v79 = vld [vmem:[%s1 + $0x58] sm:$0xf]
  %v80 = vld [vmem:[%s1 + $0x5c] sm:$0xf]
  %v81 = vld [vmem:[%s1 + $0x60] sm:$0xf]
  %v82 = vld [vmem:[%s1 + $0x64] sm:$0xf]
  %v83 = vld [vmem:[%s1 + $0x68] sm:$0xf]
  %v84 = vld [vmem:[%s1 + $0x6c] sm:$0xf]
  %v85 = vld [vmem:[%s1 + $0x70] sm:$0xf]
  %v86 = vld [vmem:[%s1 + $0x74] sm:$0xf]
  %v87 = vld [vmem:[%s1 + $0x78] sm:$0xf]
  %v88 = vld [vmem:[%s1 + $0x7c] sm:$0xf]
  %v89 = vld [vmem:[%s1 + $0x80] sm:$0xf]
  %v90 = vld [vmem:[%s1 + $0x84] sm:$0xf]
  %v91 = vld [vmem:[%s1 + $0x88] sm:$0xf]
  %v92 = vld [vmem:[%s1 + $0x8c] sm:$0xf]
  %v93 = vld [vmem:[%s1 + $0x90] sm:$0xf]
  %v94 = vld [vmem:[%s1 + $0x94] sm:$0xf]
  %v95 = vld [vmem:[%s1 + $0x98] sm:$0xf]
  %v96 = vld [vmem:[%s1 + $0x9c] sm:$0xf]
  %v97 = vld [vmem:[%s1 + $0xa0] sm:$0xf]
  %v98 = vld [vmem:[%s1 + $0xa4] sm:$0xf]
  %v99 = vld [vmem:[%s1 + $0xa8] sm:$0xf]
  %v100 = vld [vmem:[%s1 + $0xac] sm:$0xf]
  %v101 = vld [vmem:[%s1 + $0xb0] sm:$0xf]
  %v102 = vld [vmem:[%s1 + $0xb4] sm:$0xf]
  %v103 = vld [vmem:[%s1 + $0xb8] sm:$0xf]
  %v104 = vld [vmem:[%s1 + $0xbc] sm:$0xf]
  %v105 = vld [vmem:[%s1 + $0xc0] sm:$0xf]
  %v106 = vld [vmem:[%s1 + $0xc4] sm:$0xf]
  %v107 = vld [vmem:[%s1 + $0xc8] sm:$0xf]
  %v108 = vld [vmem:[%s1 + $0xcc] sm:$0xf]
  %v109 = vld [vmem:[%s1 + $0xd0] sm:$0xf]
  %v110 = vld [vmem:[%s1 + $0xd4] sm:$0xf]
  %v111 = vld [vmem:[%s1 + $0xd8] sm:$0xf]
  %v112 = vld [vmem:[%s1 + $0xdc] sm:$0xf]
  %v113 = vld [vmem:[%s1 + $0xe0] sm:$0xf]
  %v114 = vld [vmem:[%s1 + $0xe4] sm:$0xf]
  %v115 = vld [vmem:[%s1 + $0xe8] sm:$0xf]
  %v116 = vld [vmem:[%s1 + $0xec] sm:$0xf]
  %v117 = vld [vmem:[%s1 + $0xf0] sm:$0xf]
  %v118 = vld [vmem:[%s1 + $0xf4] sm:$0xf]
  %v119 = vld [vmem:[%s1 + $0xf8] sm:$0xf]
  %v120 = vld [vmem:[%s1 + $0xfc] sm:$0xf]
  %v121 = vld [vmem:[%s2] sm:$0x1]
  %v123 = vlaneseq
  %v124 = vshrl.u32 %v123, 7
  %v125 = vsub.s32 0, %v124
  %v126 = vrot.slane %v121, %v125
  %v170 = vunpack.c.l.b16 %v15
  %v171 = vunpack.c.h.b16 %v15
  %v172 = vunpack.c.l.b16 %v16
  %v173 = vunpack.c.h.b16 %v16
  %v174 = vunpack.c.l.b16 %v17
  %v175 = vunpack.c.h.b16 %v17
  %v176 = vunpack.c.l.b16 %v18
  %v177 = vunpack.c.h.b16 %v18
  %v178 = vunpack.c.l.b16 %v19
  %v179 = vunpack.c.h.b16 %v19
  %v180 = vunpack.c.l.b16 %v20
  %v181 = vunpack.c.h.b16 %v20
  %v182 = vunpack.c.l.b16 %v21
  %v183 = vunpack.c.h.b16 %v21
  %v184 = vunpack.c.l.b16 %v22
  %v185 = vunpack.c.h.b16 %v22
  %v186 = vunpack.c.l.b16 %v23
  %v187 = vunpack.c.h.b16 %v23
  %v188 = vunpack.c.l.b16 %v24
  %v189 = vunpack.c.h.b16 %v24
  %v190 = vunpack.c.l.b16 %v25
  %v191 = vunpack.c.h.b16 %v25
  %v192 = vunpack.c.l.b16 %v26
  %v193 = vunpack.c.h.b16 %v26
  %v194 = vunpack.c.l.b16 %v27
  %v195 = vunpack.c.h.b16 %v27
  %v196 = vunpack.c.l.b16 %v28
  %v197 = vunpack.c.h.b16 %v28
  %v198 = vunpack.c.l.b16 %v29
  %v199 = vunpack.c.h.b16 %v29
  %v200 = vunpack.c.l.b16 %v30
  %v201 = vunpack.c.h.b16 %v30
  %v202 = vunpack.c.l.b16 %v31
  %v203 = vunpack.c.h.b16 %v31
  %v204 = vunpack.c.l.b16 %v32
  %v205 = vunpack.c.h.b16 %v32
  %v206 = vunpack.c.l.b16 %v33
  %v207 = vunpack.c.h.b16 %v33
  %v208 = vunpack.c.l.b16 %v34
  %v209 = vunpack.c.h.b16 %v34
  %v210 = vunpack.c.l.b16 %v35
  %v211 = vunpack.c.h.b16 %v35
  %v212 = vunpack.c.l.b16 %v36
  %v213 = vunpack.c.h.b16 %v36
  %v214 = vunpack.c.l.b16 %v37
  %v215 = vunpack.c.h.b16 %v37
  %v216 = vunpack.c.l.b16 %v38
  %v217 = vunpack.c.h.b16 %v38
  %v218 = vunpack.c.l.b16 %v39
  %v219 = vunpack.c.h.b16 %v39
  %v220 = vunpack.c.l.b16 %v40
  %v221 = vunpack.c.h.b16 %v40
  %v222 = vunpack.c.l.b16 %v41
  %v223 = vunpack.c.h.b16 %v41
  %v224 = vunpack.c.l.b16 %v42
  %v225 = vunpack.c.h.b16 %v42
  %v226 = vunpack.c.l.b16 %v43
  %v227 = vunpack.c.h.b16 %v43
  %v228 = vunpack.c.l.b16 %v44
  %v229 = vunpack.c.h.b16 %v44
  %v230 = vunpack.c.l.b16 %v45
  %v231 = vunpack.c.h.b16 %v45
  %v232 = vunpack.c.l.b16 %v46
  %v233 = vunpack.c.h.b16 %v46
  %v234 = vunpack.c.l.b16 %v47
  %v235 = vunpack.c.h.b16 %v47
  %v236 = vunpack.c.l.b16 %v48
  %v237 = vunpack.c.h.b16 %v48
  %v238 = vunpack.c.l.b16 %v49
  %v239 = vunpack.c.h.b16 %v49
  %v240 = vunpack.c.l.b16 %v50
  %v241 = vunpack.c.h.b16 %v50
  %v242 = vunpack.c.l.b16 %v51
  %v243 = vunpack.c.h.b16 %v51
  %v244 = vunpack.c.l.b16 %v52
  %v245 = vunpack.c.h.b16 %v52
  %v246 = vunpack.c.l.b16 %v53
  %v247 = vunpack.c.h.b16 %v53
  %v248 = vunpack.c.l.b16 %v54
  %v249 = vunpack.c.h.b16 %v54
  %v250 = vunpack.c.l.b16 %v55
  %v251 = vunpack.c.h.b16 %v55
  %v252 = vunpack.c.l.b16 %v56
  %v253 = vunpack.c.h.b16 %v56
  %v254 = vpack.c.b16 %v174, %v170
  %v255 = vpack.c.b16 %v175, %v171
  %v256 = vpack.c.b16 %v176, %v172
  %v257 = vpack.c.b16 %v177, %v173
  %v258 = vpack.c.b16 %v182, %v178
  %v259 = vpack.c.b16 %v183, %v179
  %v260 = vpack.c.b16 %v184, %v180
  %v261 = vpack.c.b16 %v185, %v181
  %v262 = vpack.c.b16 %v190, %v186
  %v263 = vpack.c.b16 %v191, %v187
  %v264 = vpack.c.b16 %v192, %v188
  %v265 = vpack.c.b16 %v193, %v189
  %v266 = vpack.c.b16 %v198, %v194
  %v267 = vpack.c.b16 %v199, %v195
  %v268 = vpack.c.b16 %v200, %v196
  %v269 = vpack.c.b16 %v201, %v197
  %v270 = vpack.c.b16 %v206, %v202
  %v271 = vpack.c.b16 %v207, %v203
  %v272 = vpack.c.b16 %v208, %v204
  %v273 = vpack.c.b16 %v209, %v205
  %v274 = vpack.c.b16 %v214, %v210
  %v275 = vpack.c.b16 %v215, %v211
  %v276 = vpack.c.b16 %v216, %v212
  %v277 = vpack.c.b16 %v217, %v213
  %v278 = vpack.c.b16 %v222, %v218
  %v279 = vpack.c.b16 %v223, %v219
  %v280 = vpack.c.b16 %v224, %v220
  %v281 = vpack.c.b16 %v225, %v221
  %v282 = vpack.c.b16 %v230, %v226
  %v283 = vpack.c.b16 %v231, %v227
  %v284 = vpack.c.b16 %v232, %v228
  %v285 = vpack.c.b16 %v233, %v229
  %v286 = vpack.c.b16 %v238, %v234
  %v287 = vpack.c.b16 %v239, %v235
  %v288 = vpack.c.b16 %v240, %v236
  %v289 = vpack.c.b16 %v241, %v237
  %v290 = vpack.c.b16 %v246, %v242
  %v291 = vpack.c.b16 %v247, %v243
  %v292 = vpack.c.b16 %v248, %v244
  %v293 = vpack.c.b16 %v249, %v245
  %v294 = vpack.c.b16 %v250, %v250
  %v295 = vpack.c.b16 %v251, %v251
  %v296 = vpack.c.b16 %v252, %v252
  %v297 = vpack.c.b16 %v253, %v253
  %v406 = vunpack.c.l.b16 %v57
  %v407 = vunpack.c.l.b16 %v58
  %v408 = vunpack.c.l.b16 %v59
  %v409 = vunpack.c.l.b16 %v60
  %v410 = vunpack.c.l.b16 %v61
  %v411 = vunpack.c.l.b16 %v62
  %v412 = vunpack.c.l.b16 %v63
  %v413 = vunpack.c.l.b16 %v64
  %v414 = vunpack.c.l.b16 %v65
  %v415 = vunpack.c.l.b16 %v66
  %v416 = vunpack.c.l.b16 %v67
  %v417 = vunpack.c.l.b16 %v68
  %v418 = vunpack.c.l.b16 %v69
  %v419 = vunpack.c.l.b16 %v70
  %v420 = vunpack.c.l.b16 %v71
  %v421 = vunpack.c.l.b16 %v72
  %v422 = vunpack.c.l.b16 %v73
  %v423 = vunpack.c.l.b16 %v74
  %v424 = vunpack.c.l.b16 %v75
  %v425 = vunpack.c.l.b16 %v76
  %v426 = vunpack.c.l.b16 %v77
  %v427 = vunpack.c.l.b16 %v78
  %v428 = vunpack.c.l.b16 %v79
  %v429 = vunpack.c.l.b16 %v80
  %v430 = vunpack.c.l.b16 %v81
  %v431 = vunpack.c.l.b16 %v82
  %v432 = vunpack.c.l.b16 %v83
  %v433 = vunpack.c.l.b16 %v84
  %v434 = vunpack.c.l.b16 %v85
  %v435 = vunpack.c.l.b16 %v86
  %v436 = vunpack.c.l.b16 %v87
  %v437 = vunpack.c.l.b16 %v88
  %v438 = vunpack.c.l.b16 %v89
  %v439 = vunpack.c.l.b16 %v90
  %v440 = vunpack.c.l.b16 %v91
  %v441 = vunpack.c.l.b16 %v92
  %v442 = vunpack.c.l.b16 %v93
  %v443 = vunpack.c.l.b16 %v94
  %v444 = vunpack.c.l.b16 %v95
  %v445 = vunpack.c.l.b16 %v96
  %v446 = vunpack.c.l.b16 %v97
  %v447 = vunpack.c.l.b16 %v98
  %v448 = vunpack.c.l.b16 %v99
  %v449 = vunpack.c.l.b16 %v100
  %v450 = vunpack.c.l.b16 %v101
  %v451 = vunpack.c.l.b16 %v102
  %v452 = vunpack.c.l.b16 %v103
  %v453 = vunpack.c.l.b16 %v104
  %v454 = vunpack.c.l.b16 %v105
  %v455 = vunpack.c.l.b16 %v106
  %v456 = vunpack.c.l.b16 %v107
  %v457 = vunpack.c.l.b16 %v108
  %v458 = vunpack.c.l.b16 %v109
  %v459 = vunpack.c.l.b16 %v110
  %v460 = vunpack.c.l.b16 %v111
  %v461 = vunpack.c.l.b16 %v112
  %v462 = vunpack.c.l.b16 %v113
  %v463 = vunpack.c.l.b16 %v114
  %v464 = vunpack.c.l.b16 %v115
  %v465 = vunpack.c.l.b16 %v116
  %v466 = vunpack.c.l.b16 %v117
  %v467 = vunpack.c.l.b16 %v118
  %v468 = vunpack.c.l.b16 %v119
  %v469 = vunpack.c.l.b16 %v120
  %v470 = vpack.c.b16 %v407, %v406
  %v471 = vpack.c.b16 %v409, %v408
  %v472 = vpack.c.b16 %v411, %v410
  %v473 = vpack.c.b16 %v413, %v412
  %v474 = vpack.c.b16 %v415, %v414
  %v475 = vpack.c.b16 %v417, %v416
  %v476 = vpack.c.b16 %v419, %v418
  %v477 = vpack.c.b16 %v421, %v420
  %v478 = vpack.c.b16 %v423, %v422
  %v479 = vpack.c.b16 %v425, %v424
  %v480 = vpack.c.b16 %v427, %v426
  %v481 = vpack.c.b16 %v429, %v428
  %v482 = vpack.c.b16 %v431, %v430
  %v483 = vpack.c.b16 %v433, %v432
  %v484 = vpack.c.b16 %v435, %v434
  %v485 = vpack.c.b16 %v437, %v436
  %v486 = vpack.c.b16 %v439, %v438
  %v487 = vpack.c.b16 %v441, %v440
  %v488 = vpack.c.b16 %v443, %v442
  %v489 = vpack.c.b16 %v445, %v444
  %v490 = vpack.c.b16 %v447, %v446
  %v491 = vpack.c.b16 %v449, %v448
  %v492 = vpack.c.b16 %v451, %v450
  %v493 = vpack.c.b16 %v453, %v452
  %v494 = vpack.c.b16 %v455, %v454
  %v495 = vpack.c.b16 %v457, %v456
  %v496 = vpack.c.b16 %v459, %v458
  %v497 = vpack.c.b16 %v461, %v460
  %v498 = vpack.c.b16 %v463, %v462
  %v499 = vpack.c.b16 %v465, %v464
  %v500 = vpack.c.b16 %v467, %v466
  %v501 = vpack.c.b16 %v469, %v468
  %534 = vmatprep.subr.bf16.mxu0 0
  %535 = vmatpush1.bf16.msra.mxu0 %v470
  %536 = vmatprep.subr.bf16.mxu0 0
  %537 = vmatpush1.bf16.msra.mxu0 %v471
  %538 = vmatprep.subr.bf16.mxu0 0
  %539 = vmatpush1.bf16.msra.mxu0 %v472
  %540 = vmatprep.subr.bf16.mxu0 0
  %541 = vmatpush1.bf16.msra.mxu0 %v473
  %542 = vmatprep.subr.bf16.mxu0 0
  %543 = vmatpush1.bf16.msra.mxu0 %v474
  %544 = vmatprep.subr.bf16.mxu0 0
  %545 = vmatpush1.bf16.msra.mxu0 %v475
  %546 = vmatprep.subr.bf16.mxu0 0
  %547 = vmatpush1.bf16.msra.mxu0 %v476
  %548 = vmatprep.subr.bf16.mxu0 0
  %549 = vmatpush1.bf16.msra.mxu0 %v477
  %550 = vmatprep.subr.bf16.mxu0 0
  %551 = vmatpush1.bf16.msra.mxu0 %v478
  %552 = vmatprep.subr.bf16.mxu0 0
  %553 = vmatpush1.bf16.msra.mxu0 %v479
  %554 = vmatprep.subr.bf16.mxu0 0
  %555 = vmatpush1.bf16.msra.mxu0 %v480
  %556 = vmatprep.subr.bf16.mxu0 0
  %557 = vmatpush1.bf16.msra.mxu0 %v481
  %558 = vmatprep.subr.bf16.mxu0 0
  %559 = vmatpush1.bf16.msra.mxu0 %v482
  %560 = vmatprep.subr.bf16.mxu0 0
  %561 = vmatpush1.bf16.msra.mxu0 %v483
  %562 = vmatprep.subr.bf16.mxu0 0
  %563 = vmatpush1.bf16.msra.mxu0 %v484
  %564 = vmatprep.subr.bf16.mxu0 0
  %565 = vmatpush1.bf16.msra.mxu0 %v485
  %566 = vmatprep.mubr.bf16.mxu0 %v255
  %567 = vmatmul.mubr.bf16.gmra.mrb[0].mxu0 %v254
  %v568 = vpop.f32.mrb[0].mxu0
  %v569 = vadd.f32 %v126, %v568
  %v570 = vpop.f32.mrb[0].mxu0
  %v571 = vpop.f32.mrb[0].mxu0
  %v572 = vadd.f32 %v126, %v571
  %v573 = vpop.f32.mrb[0].mxu0
  %574 = vmatprep.mubr.bf16.mxu0 %v259
  %575 = vmatmul.mubr.bf16.gmra.mrb[0].mxu0 %v258
  %v576 = vpop.f32.mrb[0].mxu0
  %v577 = vadd.f32 %v126, %v576
  %v578 = vpop.f32.mrb[0].mxu0
  %v579 = vpop.f32.mrb[0].mxu0
  %v580 = vadd.f32 %v126, %v579
  %v581 = vpop.f32.mrb[0].mxu0
  %582 = vmatprep.mubr.bf16.mxu0 %v263
  %583 = vmatmul.mubr.bf16.gmra.mrb[0].mxu0 %v262
  %v584 = vpop.f32.mrb[0].mxu0
  %v585 = vadd.f32 %v126, %v584
  %v586 = vpop.f32.mrb[0].mxu0
  %v587 = vpop.f32.mrb[0].mxu0
  %v588 = vadd.f32 %v126, %v587
  %v589 = vpop.f32.mrb[0].mxu0
  %590 = vmatprep.mubr.bf16.mxu0 %v267
  %591 = vmatmul.mubr.bf16.gmra.mrb[0].mxu0 %v266
  %v592 = vpop.f32.mrb[0].mxu0
  %v593 = vadd.f32 %v126, %v592
  %v594 = vpop.f32.mrb[0].mxu0
  %v595 = vpop.f32.mrb[0].mxu0
  %v596 = vadd.f32 %v126, %v595
  %v597 = vpop.f32.mrb[0].mxu0
  %598 = vmatprep.mubr.bf16.mxu0 %v271
  %599 = vmatmul.mubr.bf16.gmra.mrb[0].mxu0 %v270
  %v600 = vpop.f32.mrb[0].mxu0
  %v601 = vadd.f32 %v126, %v600
  %v602 = vpop.f32.mrb[0].mxu0
  %v603 = vpop.f32.mrb[0].mxu0
  %v604 = vadd.f32 %v126, %v603
  %v605 = vpop.f32.mrb[0].mxu0
  %606 = vmatprep.mubr.bf16.mxu0 %v275
  %607 = vmatmul.mubr.bf16.gmra.mrb[0].mxu0 %v274
  %v608 = vpop.f32.mrb[0].mxu0
  %v609 = vadd.f32 %v126, %v608
  %v610 = vpop.f32.mrb[0].mxu0
  %v611 = vpop.f32.mrb[0].mxu0
  %v612 = vadd.f32 %v126, %v611
  %v613 = vpop.f32.mrb[0].mxu0
  %614 = vmatprep.mubr.bf16.mxu0 %v279
  %615 = vmatmul.mubr.bf16.gmra.mrb[0].mxu0 %v278
  %v616 = vpop.f32.mrb[0].mxu0
  %v617 = vadd.f32 %v126, %v616
  %v618 = vpop.f32.mrb[0].mxu0
  %v619 = vpop.f32.mrb[0].mxu0
  %v620 = vadd.f32 %v126, %v619
  %v621 = vpop.f32.mrb[0].mxu0
  %622 = vmatprep.mubr.bf16.mxu0 %v283
  %623 = vmatmul.mubr.bf16.gmra.mrb[0].mxu0 %v282
  %v624 = vpop.f32.mrb[0].mxu0
  %v625 = vadd.f32 %v126, %v624
  %v626 = vpop.f32.mrb[0].mxu0
  %v627 = vpop.f32.mrb[0].mxu0
  %v628 = vadd.f32 %v126, %v627
  %v629 = vpop.f32.mrb[0].mxu0
  %630 = vmatprep.mubr.bf16.mxu0 %v287
  %631 = vmatmul.mubr.bf16.gmra.mrb[0].mxu0 %v286
  %v632 = vpop.f32.mrb[0].mxu0
  %v633 = vadd.f32 %v126, %v632
  %v634 = vpop.f32.mrb[0].mxu0
  %v635 = vpop.f32.mrb[0].mxu0
  %v636 = vadd.f32 %v126, %v635
  %v637 = vpop.f32.mrb[0].mxu0
  %638 = vmatprep.mubr.bf16.mxu0 %v291
  %639 = vmatmul.mubr.bf16.gmra.mrb[0].mxu0 %v290
  %v640 = vpop.f32.mrb[0].mxu0
  %v641 = vadd.f32 %v126, %v640
  %v642 = vpop.f32.mrb[0].mxu0
  %v643 = vpop.f32.mrb[0].mxu0
  %v644 = vadd.f32 %v126, %v643
  %v645 = vpop.f32.mrb[0].mxu0
  %646 = vmatprep.mubr.bf16.mxu0 %v295
  %647 = vmatmul.mubr.bf16.gmra.mrb[0].mxu0 %v294
  %v648 = vpop.f32.mrb[0].mxu0
  %v649 = vadd.f32 %v126, %v648
  %v650 = vpop.f32.mrb[0].mxu0
  %v651 = vpop.f32.mrb[0].mxu0
  %v652 = vpop.f32.mrb[0].mxu0
  %653 = vdwg.mxu0
  %654 = vmatprep.subr.bf16.mxu0 0
  %655 = vmatpush1.bf16.msra.mxu0 %v486
  %656 = vmatprep.subr.bf16.mxu0 0
  %657 = vmatpush1.bf16.msra.mxu0 %v487
  %658 = vmatprep.subr.bf16.mxu0 0
  %659 = vmatpush1.bf16.msra.mxu0 %v488
  %660 = vmatprep.subr.bf16.mxu0 0
  %661 = vmatpush1.bf16.msra.mxu0 %v489
  %662 = vmatprep.subr.bf16.mxu0 0
  %663 = vmatpush1.bf16.msra.mxu0 %v490
  %664 = vmatprep.subr.bf16.mxu0 0
  %665 = vmatpush1.bf16.msra.mxu0 %v491
  %666 = vmatprep.subr.bf16.mxu0 0
  %667 = vmatpush1.bf16.msra.mxu0 %v492
  %668 = vmatprep.subr.bf16.mxu0 0
  %669 = vmatpush1.bf16.msra.mxu0 %v493
  %670 = vmatprep.subr.bf16.mxu0 0
  %671 = vmatpush1.bf16.msra.mxu0 %v494
  %672 = vmatprep.subr.bf16.mxu0 0
  %673 = vmatpush1.bf16.msra.mxu0 %v495
  %674 = vmatprep.subr.bf16.mxu0 0
  %675 = vmatpush1.bf16.msra.mxu0 %v496
  %676 = vmatprep.subr.bf16.mxu0 0
  %677 = vmatpush1.bf16.msra.mxu0 %v497
  %678 = vmatprep.subr.bf16.mxu0 0
  %679 = vmatpush1.bf16.msra.mxu0 %v498
  %680 = vmatprep.subr.bf16.mxu0 0
  %681 = vmatpush1.bf16.msra.mxu0 %v499
  %682 = vmatprep.subr.bf16.mxu0 0
  %683 = vmatpush1.bf16.msra.mxu0 %v500
  %684 = vmatprep.subr.bf16.mxu0 0
  %685 = vmatpush1.bf16.msra.mxu0 %v501
  %686 = vmatprep.mubr.bf16.mxu0 %v257
  %687 = vmatmul.mubr.bf16.gmra.mrb[0].mxu0 %v256
  %v688 = vpop.f32.mrb[0].mxu0
  %v689 = vadd.f32 %v569, %v688
  %v690 = vpop.f32.mrb[0].mxu0
  %v691 = vpop.f32.mrb[0].mxu0
  %v692 = vadd.f32 %v572, %v691
  %v693 = vpop.f32.mrb[0].mxu0
  %694 = vmatprep.mubr.bf16.mxu0 %v261
  %695 = vmatmul.mubr.bf16.gmra.mrb[0].mxu0 %v260
  %v696 = vpop.f32.mrb[0].mxu0
  %v697 = vadd.f32 %v577, %v696
  %v698 = vpop.f32.mrb[0].mxu0
  %v699 = vpop.f32.mrb[0].mxu0
  %v700 = vadd.f32 %v580, %v699
  %v701 = vpop.f32.mrb[0].mxu0
  %702 = vmatprep.mubr.bf16.mxu0 %v265
  %703 = vmatmul.mubr.bf16.gmra.mrb[0].mxu0 %v264
  %v704 = vpop.f32.mrb[0].mxu0
  %v705 = vadd.f32 %v585, %v704
  %v706 = vpop.f32.mrb[0].mxu0
  %v707 = vpop.f32.mrb[0].mxu0
  %v708 = vadd.f32 %v588, %v707
  %v709 = vpop.f32.mrb[0].mxu0
  %710 = vmatprep.mubr.bf16.mxu0 %v269
  %711 = vmatmul.mubr.bf16.gmra.mrb[0].mxu0 %v268
  %v712 = vpop.f32.mrb[0].mxu0
  %v713 = vadd.f32 %v593, %v712
  %v714 = vpop.f32.mrb[0].mxu0
  %v715 = vpop.f32.mrb[0].mxu0
  %v716 = vadd.f32 %v596, %v715
  %v717 = vpop.f32.mrb[0].mxu0
  %718 = vmatprep.mubr.bf16.mxu0 %v273
  %719 = vmatmul.mubr.bf16.gmra.mrb[0].mxu0 %v272
  %v720 = vpop.f32.mrb[0].mxu0
  %v721 = vadd.f32 %v601, %v720
  %v722 = vpop.f32.mrb[0].mxu0
  %v723 = vpop.f32.mrb[0].mxu0
  %v724 = vadd.f32 %v604, %v723
  %v725 = vpop.f32.mrb[0].mxu0
  %726 = vmatprep.mubr.bf16.mxu0 %v277
  %727 = vmatmul.mubr.bf16.gmra.mrb[0].mxu0 %v276
  %v728 = vpop.f32.mrb[0].mxu0
  %v729 = vadd.f32 %v609, %v728
  %v730 = vpop.f32.mrb[0].mxu0
  %v731 = vpop.f32.mrb[0].mxu0
  %v732 = vadd.f32 %v612, %v731
  %v733 = vpop.f32.mrb[0].mxu0
  %734 = vmatprep.mubr.bf16.mxu0 %v281
  %735 = vmatmul.mubr.bf16.gmra.mrb[0].mxu0 %v280
  %v736 = vpop.f32.mrb[0].mxu0
  %v737 = vadd.f32 %v617, %v736
  %v738 = vpop.f32.mrb[0].mxu0
  %v739 = vpop.f32.mrb[0].mxu0
  %v740 = vadd.f32 %v620, %v739
  %v741 = vpop.f32.mrb[0].mxu0
  %742 = vmatprep.mubr.bf16.mxu0 %v285
  %743 = vmatmul.mubr.bf16.gmra.mrb[0].mxu0 %v284
  %v744 = vpop.f32.mrb[0].mxu0
  %v745 = vadd.f32 %v625, %v744
  %v746 = vpop.f32.mrb[0].mxu0
  %v747 = vpop.f32.mrb[0].mxu0
  %v748 = vadd.f32 %v628, %v747
  %v749 = vpop.f32.mrb[0].mxu0
  %750 = vmatprep.mubr.bf16.mxu0 %v289
  %751 = vmatmul.mubr.bf16.gmra.mrb[0].mxu0 %v288
  %v752 = vpop.f32.mrb[0].mxu0
  %v753 = vadd.f32 %v633, %v752
  %v754 = vpop.f32.mrb[0].mxu0
  %v755 = vpop.f32.mrb[0].mxu0
  %v756 = vadd.f32 %v636, %v755
  %v757 = vpop.f32.mrb[0].mxu0
  %758 = vmatprep.mubr.bf16.mxu0 %v293
  %759 = vmatmul.mubr.bf16.gmra.mrb[0].mxu0 %v292
  %v760 = vpop.f32.mrb[0].mxu0
  %v761 = vadd.f32 %v641, %v760
  %v762 = vpop.f32.mrb[0].mxu0
  %v763 = vpop.f32.mrb[0].mxu0
  %v764 = vadd.f32 %v644, %v763
  %v765 = vpop.f32.mrb[0].mxu0
  %766 = vmatprep.mubr.bf16.mxu0 %v297
  %767 = vmatmul.mubr.bf16.gmra.mrb[0].mxu0 %v296
  %v768 = vpop.f32.mrb[0].mxu0
  %v769 = vadd.f32 %v649, %v768
  %v770 = vpop.f32.mrb[0].mxu0
  %v771 = vpop.f32.mrb[0].mxu0
  %v772 = vpop.f32.mrb[0].mxu0
  %773 = vdwg.mxu0
  %v774 = vmax.f32 %v689, 0.0
  %v775 = vmax.f32 %v692, 0.0
  %v776 = vmax.f32 %v697, 0.0
  %v777 = vmax.f32 %v700, 0.0
  %v778 = vmax.f32 %v705, 0.0
  %v779 = vmax.f32 %v708, 0.0
  %v780 = vmax.f32 %v713, 0.0
  %v781 = vmax.f32 %v716, 0.0
  %v782 = vmax.f32 %v721, 0.0
  %v783 = vmax.f32 %v724, 0.0
  %v784 = vmax.f32 %v729, 0.0
  %v785 = vmax.f32 %v732, 0.0
  %v786 = vmax.f32 %v737, 0.0
  %v787 = vmax.f32 %v740, 0.0
  %v788 = vmax.f32 %v745, 0.0
  %v789 = vmax.f32 %v748, 0.0
  %v790 = vmax.f32 %v753, 0.0
  %v791 = vmax.f32 %v756, 0.0
  %v792 = vmax.f32 %v761, 0.0
  %v793 = vmax.f32 %v764, 0.0
  %v794 = vmax.f32 %v769, 0.0
  %v795 = vpack.c.bf16 %v775, %v774
  %v796 = vpack.c.bf16 %v777, %v776
  %v797 = vpack.c.bf16 %v779, %v778
  %v798 = vpack.c.bf16 %v781, %v780
  %v799 = vpack.c.bf16 %v783, %v782
  %v800 = vpack.c.bf16 %v785, %v784
  %v801 = vpack.c.bf16 %v787, %v786
  %v802 = vpack.c.bf16 %v789, %v788
  %v803 = vpack.c.bf16 %v791, %v790
  %v804 = vpack.c.bf16 %v793, %v792
  %v805 = vpack.c.bf16 %v794, %v794
  %v817 = vunpack.c.l.b16 %v795
  %v818 = vunpack.c.h.b16 %v795
  %v819 = vunpack.c.l.b16 %v796
  %v820 = vunpack.c.h.b16 %v796
  %v821 = vunpack.c.l.b16 %v797
  %v822 = vunpack.c.h.b16 %v797
  %v823 = vunpack.c.l.b16 %v798
  %v824 = vunpack.c.h.b16 %v798
  %v825 = vunpack.c.l.b16 %v799
  %v826 = vunpack.c.h.b16 %v799
  %v827 = vunpack.c.l.b16 %v800
  %v828 = vunpack.c.h.b16 %v800
  %v829 = vunpack.c.l.b16 %v801
  %v830 = vunpack.c.h.b16 %v801
  %v831 = vunpack.c.l.b16 %v802
  %v832 = vunpack.c.h.b16 %v802
  %v833 = vunpack.c.l.b16 %v803
  %v834 = vunpack.c.h.b16 %v803
  %v835 = vunpack.c.l.b16 %v804
  %v836 = vunpack.c.h.b16 %v804
  %v837 = vunpack.c.l.b16 %v805
  %v838 = vpack.c.b16 %v817, %v817
  %v839 = vpack.c.b16 %v818, %v818
  %v840 = vpack.c.b16 %v819, %v819
  %v841 = vpack.c.b16 %v820, %v820
  %v842 = vpack.c.b16 %v821, %v821
  %v843 = vpack.c.b16 %v822, %v822
  %v844 = vpack.c.b16 %v823, %v823
  %v845 = vpack.c.b16 %v824, %v824
  %v846 = vpack.c.b16 %v825, %v825
  %v847 = vpack.c.b16 %v826, %v826
  %v848 = vpack.c.b16 %v827, %v827
  %v849 = vpack.c.b16 %v828, %v828
  %v850 = vpack.c.b16 %v829, %v829
  %v851 = vpack.c.b16 %v830, %v830
  %v852 = vpack.c.b16 %v831, %v831
  %v853 = vpack.c.b16 %v832, %v832
  %v854 = vpack.c.b16 %v833, %v833
  %v855 = vpack.c.b16 %v834, %v834
  %v856 = vpack.c.b16 %v835, %v835
  %v857 = vpack.c.b16 %v836, %v836
  %v858 = vpack.c.b16 %v837, %v837
  %vm880 = vcmask 519168
  %881 = vst.msk [vmem:[%s3] sm:$0xf] %vm880, %v838
  %882 = vst.msk [vmem:[%s3 + $0x4] sm:$0xf] %vm880, %v839
  %883 = vst.msk [vmem:[%s3 + $0x8] sm:$0xf] %vm880, %v840
  %884 = vst.msk [vmem:[%s3 + $0xc] sm:$0xf] %vm880, %v841
  %885 = vst.msk [vmem:[%s3 + $0x10] sm:$0xf] %vm880, %v842
  %886 = vst.msk [vmem:[%s3 + $0x14] sm:$0xf] %vm880, %v843
  %887 = vst.msk [vmem:[%s3 + $0x18] sm:$0xf] %vm880, %v844
  %888 = vst.msk [vmem:[%s3 + $0x1c] sm:$0xf] %vm880, %v845
  %889 = vst.msk [vmem:[%s3 + $0x20] sm:$0xf] %vm880, %v846
  %890 = vst.msk [vmem:[%s3 + $0x24] sm:$0xf] %vm880, %v847
  %891 = vst.msk [vmem:[%s3 + $0x28] sm:$0xf] %vm880, %v848
  %892 = vst.msk [vmem:[%s3 + $0x2c] sm:$0xf] %vm880, %v849
  %893 = vst.msk [vmem:[%s3 + $0x30] sm:$0xf] %vm880, %v850
  %894 = vst.msk [vmem:[%s3 + $0x34] sm:$0xf] %vm880, %v851
  %895 = vst.msk [vmem:[%s3 + $0x38] sm:$0xf] %vm880, %v852
  %896 = vst.msk [vmem:[%s3 + $0x3c] sm:$0xf] %vm880, %v853
  %897 = vst.msk [vmem:[%s3 + $0x40] sm:$0xf] %vm880, %v854
  %898 = vst.msk [vmem:[%s3 + $0x44] sm:$0xf] %vm880, %v855
  %899 = vst.msk [vmem:[%s3 + $0x48] sm:$0xf] %vm880, %v856
  %900 = vst.msk [vmem:[%s3 + $0x4c] sm:$0xf] %vm880, %v857
  %vm901 = vcmask 516096
  %902 = vst.msk [vmem:[%s3 + $0x50] sm:$0x1] %vm901, %v858
  // Predicated region
  $region14: #{cnn_policy_forward.5} parent=0 // pred_check
    _
  $region15: #{cnn_policy_forward.5} parent=0 // pred_check_branch
    %904 = sbr.rel (0) target = $region17
  $region16: #{cnn_policy_forward.5} parent=0 // pred_region
    _
  $region17: #{cnn_policy_forward.5} parent=0 // pred_fallthru
    _
  // Predicated region
  $region18: #{cnn_policy_forward.5} parent=0 // pred_check
    _
  $region19: #{cnn_policy_forward.5} parent=0 // pred_check_branch
    %906 = sbr.rel (0) target = $region21
  $region20: #{cnn_policy_forward.5} parent=0 // pred_region
    _
  $region21: #{cnn_policy_forward.5} parent=0 // pred_fallthru
    _

// kernel: cnn_policy_forward.6
$region0: #{cnn_policy_forward.6}
  #allocation0 [shape = 'u32[]', space=smem, size = 0x4, offset = 0x4, fixed_abs, tag = 'smem constant byte address 0x4 - core index']
  #allocation1 [shape = 'u32[144,128]{1,0:T(1,128)}', space=vmem, size = 0x12000, scoped, tag = 'internal scratch']
  %s0 = inlined_call_operand.vmem [shape: bf16[98,576], index: 0, kind: input, shape index: {}]
  %s1 = inlined_call_operand.vmem [shape: bf16[576,32], index: 1, kind: input, shape index: {}]
  %s2 = inlined_call_operand.vmem [shape: f32[1,32], index: 2, kind: input, shape index: {}]
  %s3 = inlined_call_operand.vmem [shape: bf16[98,32], index: 3, kind: output, shape index: {}]
  %s4 = sld [smem:[#allocation0]]
  $region22: #{cnn_policy_forward.6} parent=0
    _
  %s6 = ssub.s32 1, %s4
  %s7 = scalar_select 0, %s6, %s4
  // Predicated region
  $region2: #{cnn_policy_forward.6} parent=0 // pred_check
    _
  $region3: #{cnn_policy_forward.6} parent=0 // pred_check_branch
    %9 = sbr.rel (0) target = $region5
  $region4: #{cnn_policy_forward.6} parent=0 // pred_region
    _
  $region5: #{cnn_policy_forward.6} parent=0 // pred_fallthru
    _
  // Predicated region
  $region6: #{cnn_policy_forward.6} parent=0 // pred_check
    _
  $region7: #{cnn_policy_forward.6} parent=0 // pred_check_branch
    %11 = sbr.rel (0) target = $region9
  $region8: #{cnn_policy_forward.6} parent=0 // pred_region
    _
  $region9: #{cnn_policy_forward.6} parent=0 // pred_fallthru
    _
  // Predicated region
  $region10: #{cnn_policy_forward.6} parent=0 // pred_check
    _
  $region11: #{cnn_policy_forward.6} parent=0 // pred_check_branch
    %13 = sbr.rel (0) target = $region13
  $region12: #{cnn_policy_forward.6} parent=0 // pred_region
    _
  $region13: #{cnn_policy_forward.6} parent=0 // pred_fallthru
    _
  %v15 = vld [vmem:[%s0] sm:$0xff]
  %v16 = vld [vmem:[%s0 + $0x8] sm:$0xff]
  %v17 = vld [vmem:[%s0 + $0x10] sm:$0xf]
  %v18 = vld [vmem:[%s0 + $0x14] sm:$0xff]
  %v19 = vld [vmem:[%s0 + $0x1c] sm:$0xff]
  %v20 = vld [vmem:[%s0 + $0x24] sm:$0xf]
  %v21 = vld [vmem:[%s0 + $0x28] sm:$0xff]
  %v22 = vld [vmem:[%s0 + $0x30] sm:$0xff]
  %v23 = vld [vmem:[%s0 + $0x38] sm:$0xf]
  %v24 = vld [vmem:[%s0 + $0x3c] sm:$0xff]
  %v25 = vld [vmem:[%s0 + $0x44] sm:$0xff]
  %v26 = vld [vmem:[%s0 + $0x4c] sm:$0xf]
  %v27 = vld [vmem:[%s0 + $0x50] sm:$0xff]
  %v28 = vld [vmem:[%s0 + $0x58] sm:$0xff]
  %v29 = vld [vmem:[%s0 + $0x60] sm:$0xf]
  %v30 = vld [vmem:[%s0 + $0x64] sm:$0xff]
  %v31 = vld [vmem:[%s0 + $0x6c] sm:$0xff]
  %v32 = vld [vmem:[%s0 + $0x74] sm:$0xf]
  %v33 = vld [vmem:[%s0 + $0x78] sm:$0xff]
  %v34 = vld [vmem:[%s0 + $0x80] sm:$0xff]
  %v35 = vld [vmem:[%s0 + $0x88] sm:$0xf]
  %v36 = vld [vmem:[%s0 + $0x8c] sm:$0xff]
  %v37 = vld [vmem:[%s0 + $0x94] sm:$0xff]
  %v38 = vld [vmem:[%s0 + $0x9c] sm:$0xf]
  %v39 = vld [vmem:[%s0 + $0xa0] sm:$0xff]
  %v40 = vld [vmem:[%s0 + $0xa8] sm:$0xff]
  %v41 = vld [vmem:[%s0 + $0xb0] sm:$0xf]
  %v42 = vld [vmem:[%s0 + $0xb4] sm:$0xff]
  %v43 = vld [vmem:[%s0 + $0xbc] sm:$0xff]
  %v44 = vld [vmem:[%s0 + $0xc4] sm:$0xf]
  %v45 = vld [vmem:[%s0 + $0xc8] sm:$0xff]
  %v46 = vld [vmem:[%s0 + $0xd0] sm:$0xff]
  %v47 = vld [vmem:[%s0 + $0xd8] sm:$0xf]
  %v48 = vld [vmem:[%s0 + $0xdc] sm:$0xff]
  %v49 = vld [vmem:[%s0 + $0xe4] sm:$0xff]
  %v50 = vld [vmem:[%s0 + $0xec] sm:$0xf]
  %v51 = vld [vmem:[%s0 + $0xf0] sm:$0x11]
  %v52 = vld [vmem:[%s0 + $0xf8] sm:$0x11]
  %v53 = vld [vmem:[%s0 + $0x100] sm:$0x1]
  %v54 = vld [vmem:[%s1] sm:$0xf]
  %v55 = vld [vmem:[%s1 + $0x4] sm:$0xf]
  %v56 = vld [vmem:[%s1 + $0x8] sm:$0xf]
  %v57 = vld [vmem:[%s1 + $0xc] sm:$0xf]
  %v58 = vld [vmem:[%s1 + $0x10] sm:$0xf]
  %v59 = vld [vmem:[%s1 + $0x14] sm:$0xf]
  %v60 = vld [vmem:[%s1 + $0x18] sm:$0xf]
  %v61 = vld [vmem:[%s1 + $0x1c] sm:$0xf]
  %v62 = vld [vmem:[%s1 + $0x20] sm:$0xf]
  %v63 = vld [vmem:[%s1 + $0x24] sm:$0xf]
  %v64 = vld [vmem:[%s1 + $0x28] sm:$0xf]
  %v65 = vld [vmem:[%s1 + $0x2c] sm:$0xf]
  %v66 = vld [vmem:[%s1 + $0x30] sm:$0xf]
  %v67 = vld [vmem:[%s1 + $0x34] sm:$0xf]
  %v68 = vld [vmem:[%s1 + $0x38] sm:$0xf]
  %v69 = vld [vmem:[%s1 + $0x3c] sm:$0xf]
  %v70 = vld [vmem:[%s1 + $0x40] sm:$0xf]
  %v71 = vld [vmem:[%s1 + $0x44] sm:$0xf]
  %v72 = vld [vmem:[%s1 + $0x48] sm:$0xf]
  %v73 = vld [vmem:[%s1 + $0x4c] sm:$0xf]
  %v74 = vld [vmem:[%s1 + $0x50] sm:$0xf]
  %v75 = vld [vmem:[%s1 + $0x54] sm:$0xf]
  %v76 = vld [vmem:[%s1 + $0x58] sm:$0xf]
  %v77 = vld [vmem:[%s1 + $0x5c] sm:$0xf]
  %v78 = vld [vmem:[%s1 + $0x60] sm:$0xf]
  %v79 = vld [vmem:[%s1 + $0x64] sm:$0xf]
  %v80 = vld [vmem:[%s1 + $0x68] sm:$0xf]
  %v81 = vld [vmem:[%s1 + $0x6c] sm:$0xf]
  %v82 = vld [vmem:[%s1 + $0x70] sm:$0xf]
  %v83 = vld [vmem:[%s1 + $0x74] sm:$0xf]
  %v84 = vld [vmem:[%s1 + $0x78] sm:$0xf]
  %v85 = vld [vmem:[%s1 + $0x7c] sm:$0xf]
  %v86 = vld [vmem:[%s1 + $0x80] sm:$0xf]
  %v87 = vld [vmem:[%s1 + $0x84] sm:$0xf]
  %v88 = vld [vmem:[%s1 + $0x88] sm:$0xf]
  %v89 = vld [vmem:[%s1 + $0x8c] sm:$0xf]
  %v90 = vld [vmem:[%s1 + $0x90] sm:$0xf]
  %v91 = vld [vmem:[%s1 + $0x94] sm:$0xf]
  %v92 = vld [vmem:[%s1 + $0x98] sm:$0xf]
  %v93 = vld [vmem:[%s1 + $0x9c] sm:$0xf]
  %v94 = vld [vmem:[%s1 + $0xa0] sm:$0xf]
  %v95 = vld [vmem:[%s1 + $0xa4] sm:$0xf]
  %v96 = vld [vmem:[%s1 + $0xa8] sm:$0xf]
  %v97 = vld [vmem:[%s1 + $0xac] sm:$0xf]
  %v98 = vld [vmem:[%s1 + $0xb0] sm:$0xf]
  %v99 = vld [vmem:[%s1 + $0xb4] sm:$0xf]
  %v100 = vld [vmem:[%s1 + $0xb8] sm:$0xf]
  %v101 = vld [vmem:[%s1 + $0xbc] sm:$0xf]
  %v102 = vld [vmem:[%s1 + $0xc0] sm:$0xf]
  %v103 = vld [vmem:[%s1 + $0xc4] sm:$0xf]
  %v104 = vld [vmem:[%s1 + $0xc8] sm:$0xf]
  %v105 = vld [vmem:[%s1 + $0xcc] sm:$0xf]
  %v106 = vld [vmem:[%s1 + $0xd0] sm:$0xf]
  %v107 = vld [vmem:[%s1 + $0xd4] sm:$0xf]
  %v108 = vld [vmem:[%s1 + $0xd8] sm:$0xf]
  %v109 = vld [vmem:[%s1 + $0xdc] sm:$0xf]
  %v110 = vld [vmem:[%s1 + $0xe0] sm:$0xf]
  %v111 = vld [vmem:[%s1 + $0xe4] sm:$0xf]
  %v112 = vld [vmem:[%s1 + $0xe8] sm:$0xf]
  %v113 = vld [vmem:[%s1 + $0xec] sm:$0xf]
  %v114 = vld [vmem:[%s1 + $0xf0] sm:$0xf]
  %v115 = vld [vmem:[%s1 + $0xf4] sm:$0xf]
  %v116 = vld [vmem:[%s1 + $0xf8] sm:$0xf]
  %v117 = vld [vmem:[%s1 + $0xfc] sm:$0xf]
  %v118 = vld [vmem:[%s1 + $0x100] sm:$0xf]
  %v119 = vld [vmem:[%s1 + $0x104] sm:$0xf]
  %v120 = vld [vmem:[%s1 + $0x108] sm:$0xf]
  %v121 = vld [vmem:[%s1 + $0x10c] sm:$0xf]
  %v122 = vld [vmem:[%s1 + $0x110] sm:$0xf]
  %v123 = vld [vmem:[%s1 + $0x114] sm:$0xf]
  %v124 = vld [vmem:[%s1 + $0x118] sm:$0xf]
  %v125 = vld [vmem:[%s1 + $0x11c] sm:$0xf]
  %v126 = vld [vmem:[%s2] sm:$0x1]
  %v128 = vlaneseq
  %v129 = vshrl.u32 %v128, 7
  %v130 = vsub.s32 0, %v129
  %v131 = vrot.slane %v126, %v130
  %v172 = vunpack.c.l.b16 %v15
  %v173 = vunpack.c.h.b16 %v15
  %v174 = vunpack.c.l.b16 %v16
  %v175 = vunpack.c.h.b16 %v16
  %v176 = vunpack.c.l.b16 %v17
  %v177 = vunpack.c.l.b16 %v18
  %v178 = vunpack.c.h.b16 %v18
  %v179 = vunpack.c.l.b16 %v19
  %v180 = vunpack.c.h.b16 %v19
  %v181 = vunpack.c.l.b16 %v20
  %v182 = vunpack.c.l.b16 %v21
  %v183 = vunpack.c.h.b16 %v21
  %v184 = vunpack.c.l.b16 %v22
  %v185 = vunpack.c.h.b16 %v22
  %v186 = vunpack.c.l.b16 %v23
  %v187 = vunpack.c.l.b16 %v24
  %v188 = vunpack.c.h.b16 %v24
  %v189 = vunpack.c.l.b16 %v25
  %v190 = vunpack.c.h.b16 %v25
  %v191 = vunpack.c.l.b16 %v26
  %v192 = vunpack.c.l.b16 %v27
  %v193 = vunpack.c.h.b16 %v27
  %v194 = vunpack.c.l.b16 %v28
  %v195 = vunpack.c.h.b16 %v28
  %v196 = vunpack.c.l.b16 %v29
  %v197 = vunpack.c.l.b16 %v30
  %v198 = vunpack.c.h.b16 %v30
  %v199 = vunpack.c.l.b16 %v31
  %v200 = vunpack.c.h.b16 %v31
  %v201 = vunpack.c.l.b16 %v32
  %v202 = vunpack.c.l.b16 %v33
  %v203 = vunpack.c.h.b16 %v33
  %v204 = vunpack.c.l.b16 %v34
  %v205 = vunpack.c.h.b16 %v34
  %v206 = vunpack.c.l.b16 %v35
  %v207 = vunpack.c.l.b16 %v36
  %v208 = vunpack.c.h.b16 %v36
  %v209 = vunpack.c.l.b16 %v37
  %v210 = vunpack.c.h.b16 %v37
  %v211 = vunpack.c.l.b16 %v38
  %v212 = vunpack.c.l.b16 %v39
  %v213 = vunpack.c.h.b16 %v39
  %v214 = vunpack.c.l.b16 %v40
  %v215 = vunpack.c.h.b16 %v40
  %v216 = vunpack.c.l.b16 %v41
  %v217 = vunpack.c.l.b16 %v42
  %v218 = vunpack.c.h.b16 %v42
  %v219 = vunpack.c.l.b16 %v43
  %v220 = vunpack.c.h.b16 %v43
  %v221 = vunpack.c.l.b16 %v44
  %v222 = vunpack.c.l.b16 %v45
  %v223 = vunpack.c.h.b16 %v45
  %v224 = vunpack.c.l.b16 %v46
  %v225 = vunpack.c.h.b16 %v46
  %v226 = vunpack.c.l.b16 %v47
  %v227 = vunpack.c.l.b16 %v48
  %v228 = vunpack.c.h.b16 %v48
  %v229 = vunpack.c.l.b16 %v49
  %v230 = vunpack.c.h.b16 %v49
  %v231 = vunpack.c.l.b16 %v50
  %v232 = vunpack.c.l.b16 %v51
  %v233 = vunpack.c.h.b16 %v51
  %v234 = vunpack.c.l.b16 %v52
  %v235 = vunpack.c.h.b16 %v52
  %v236 = vunpack.c.l.b16 %v53
  %v237 = vpack.c.b16 %v177, %v172
  %v238 = vpack.c.b16 %v178, %v173
  %v239 = vpack.c.b16 %v179, %v174
  %v240 = vpack.c.b16 %v180, %v175
  %v241 = vpack.c.b16 %v181, %v176
  %v242 = vpack.c.b16 %v187, %v182
  %v243 = vpack.c.b16 %v188, %v183
  %v244 = vpack.c.b16 %v189, %v184
  %v245 = vpack.c.b16 %v190, %v185
  %v246 = vpack.c.b16 %v191, %v186
  %v247 = vpack.c.b16 %v197, %v192
  %v248 = vpack.c.b16 %v198, %v193
  %v249 = vpack.c.b16 %v199, %v194
  %v250 = vpack.c.b16 %v200, %v195
  %v251 = vpack.c.b16 %v201, %v196
  %v252 = vpack.c.b16 %v207, %v202
  %v253 = vpack.c.b16 %v208, %v203
  %v254 = vpack.c.b16 %v209, %v204
  %v255 = vpack.c.b16 %v210, %v205
  %v256 = vpack.c.b16 %v211, %v206
  %v257 = vpack.c.b16 %v217, %v212
  %v258 = vpack.c.b16 %v218, %v213
  %v259 = vpack.c.b16 %v219, %v214
  %v260 = vpack.c.b16 %v220, %v215
  %v261 = vpack.c.b16 %v221, %v216
  %v262 = vpack.c.b16 %v227, %v222
  %v263 = vpack.c.b16 %v228, %v223
  %v264 = vpack.c.b16 %v229, %v224
  %v265 = vpack.c.b16 %v230, %v225
  %v266 = vpack.c.b16 %v231, %v226
  %v267 = vpack.c.b16 %v232, %v232
  %v268 = vpack.c.b16 %v233, %v233
  %v269 = vpack.c.b16 %v234, %v234
  %v270 = vpack.c.b16 %v235, %v235
  %v271 = vpack.c.b16 %v236, %v236
  %v372 = vunpack.c.l.b16 %v54
  %v373 = vunpack.c.l.b16 %v55
  %v374 = vunpack.c.l.b16 %v56
  %v375 = vunpack.c.l.b16 %v57
  %v376 = vunpack.c.l.b16 %v58
  %v377 = vunpack.c.l.b16 %v59
  %v378 = vunpack.c.l.b16 %v60
  %v379 = vunpack.c.l.b16 %v61
  %v380 = vunpack.c.l.b16 %v62
  %v381 = vunpack.c.l.b16 %v63
  %v382 = vunpack.c.l.b16 %v64
  %v383 = vunpack.c.l.b16 %v65
  %v384 = vunpack.c.l.b16 %v66
  %v385 = vunpack.c.l.b16 %v67
  %v386 = vunpack.c.l.b16 %v68
  %v387 = vunpack.c.l.b16 %v69
  %v388 = vunpack.c.l.b16 %v70
  %v389 = vunpack.c.l.b16 %v71
  %v390 = vunpack.c.l.b16 %v72
  %v391 = vunpack.c.l.b16 %v73
  %v392 = vunpack.c.l.b16 %v74
  %v393 = vunpack.c.l.b16 %v75
  %v394 = vunpack.c.l.b16 %v76
  %v395 = vunpack.c.l.b16 %v77
  %v396 = vunpack.c.l.b16 %v78
  %v397 = vunpack.c.l.b16 %v79
  %v398 = vunpack.c.l.b16 %v80
  %v399 = vunpack.c.l.b16 %v81
  %v400 = vunpack.c.l.b16 %v82
  %v401 = vunpack.c.l.b16 %v83
  %v402 = vunpack.c.l.b16 %v84
  %v403 = vunpack.c.l.b16 %v85
  %v404 = vunpack.c.l.b16 %v86
  %v405 = vunpack.c.l.b16 %v87
  %v406 = vunpack.c.l.b16 %v88
  %v407 = vunpack.c.l.b16 %v89
  %v408 = vunpack.c.l.b16 %v90
  %v409 = vunpack.c.l.b16 %v91
  %v410 = vunpack.c.l.b16 %v92
  %v411 = vunpack.c.l.b16 %v93
  %v412 = vunpack.c.l.b16 %v94
  %v413 = vunpack.c.l.b16 %v95
  %v414 = vunpack.c.l.b16 %v96
  %v415 = vunpack.c.l.b16 %v97
  %v416 = vunpack.c.l.b16 %v98
  %v417 = vunpack.c.l.b16 %v99
  %v418 = vunpack.c.l.b16 %v100
  %v419 = vunpack.c.l.b16 %v101
  %v420 = vunpack.c.l.b16 %v102
  %v421 = vunpack.c.l.b16 %v103
  %v422 = vunpack.c.l.b16 %v104
  %v423 = vunpack.c.l.b16 %v105
  %v424 = vunpack.c.l.b16 %v106
  %v425 = vunpack.c.l.b16 %v107
  %v426 = vunpack.c.l.b16 %v108
  %v427 = vunpack.c.l.b16 %v109
  %v428 = vunpack.c.l.b16 %v110
  %v429 = vunpack.c.l.b16 %v111
  %v430 = vunpack.c.l.b16 %v112
  %v431 = vunpack.c.l.b16 %v113
  %v432 = vunpack.c.l.b16 %v114
  %v433 = vunpack.c.l.b16 %v115
  %v434 = vunpack.c.l.b16 %v116
  %v435 = vunpack.c.l.b16 %v117
  %v436 = vunpack.c.l.b16 %v118
  %v437 = vunpack.c.l.b16 %v119
  %v438 = vunpack.c.l.b16 %v120
  %v439 = vunpack.c.l.b16 %v121
  %v440 = vunpack.c.l.b16 %v122
  %v441 = vunpack.c.l.b16 %v123
  %v442 = vunpack.c.l.b16 %v124
  %v443 = vunpack.c.l.b16 %v125
  %v444 = vpack.c.b16 %v373, %v372
  %v445 = vpack.c.b16 %v375, %v374
  %v446 = vpack.c.b16 %v377, %v376
  %v447 = vpack.c.b16 %v379, %v378
  %v448 = vpack.c.b16 %v381, %v380
  %v449 = vpack.c.b16 %v383, %v382
  %v450 = vpack.c.b16 %v385, %v384
  %v451 = vpack.c.b16 %v387, %v386
  %v452 = vpack.c.b16 %v389, %v388
  %v453 = vpack.c.b16 %v391, %v390
  %v454 = vpack.c.b16 %v393, %v392
  %v455 = vpack.c.b16 %v395, %v394
  %v456 = vpack.c.b16 %v397, %v396
  %v457 = vpack.c.b16 %v399, %v398
  %v458 = vpack.c.b16 %v401, %v400
  %v459 = vpack.c.b16 %v403, %v402
  %v460 = vpack.c.b16 %v405, %v404
  %v461 = vpack.c.b16 %v407, %v406
  %v462 = vpack.c.b16 %v409, %v408
  %v463 = vpack.c.b16 %v411, %v410
  %v464 = vpack.c.b16 %v413, %v412
  %v465 = vpack.c.b16 %v415, %v414
  %v466 = vpack.c.b16 %v417, %v416
  %v467 = vpack.c.b16 %v419, %v418
  %v468 = vpack.c.b16 %v421, %v420
  %v469 = vpack.c.b16 %v423, %v422
  %v470 = vpack.c.b16 %v425, %v424
  %v471 = vpack.c.b16 %v427, %v426
  %v472 = vpack.c.b16 %v429, %v428
  %v473 = vpack.c.b16 %v431, %v430
  %v474 = vpack.c.b16 %v433, %v432
  %v475 = vpack.c.b16 %v435, %v434
  %v476 = vpack.c.b16 %v437, %v436
  %v477 = vpack.c.b16 %v439, %v438
  %v478 = vpack.c.b16 %v441, %v440
  %v479 = vpack.c.b16 %v443, %v442
  %vm516 = vcmask 523264
  %v518 = vsel %vm516, %v241, 0
  %v521 = vsel %vm516, %v246, 0
  %v524 = vsel %vm516, %v251, 0
  %v527 = vsel %vm516, %v256, 0
  %v530 = vsel %vm516, %v261, 0
  %v533 = vsel %vm516, %v266, 0
  %v536 = vsel %vm516, %v271, 0
  %538 = vmatprep.subr.bf16.mxu0 0
  %539 = vmatpush1.bf16.msra.mxu0 %v444
  %540 = vmatprep.subr.bf16.mxu0 0
  %541 = vmatpush1.bf16.msra.mxu0 %v445
  %542 = vmatprep.subr.bf16.mxu0 0
  %543 = vmatpush1.bf16.msra.mxu0 %v446
  %544 = vmatprep.subr.bf16.mxu0 0
  %545 = vmatpush1.bf16.msra.mxu0 %v447
  %546 = vmatprep.subr.bf16.mxu0 0
  %547 = vmatpush1.bf16.msra.mxu0 %v448
  %548 = vmatprep.subr.bf16.mxu0 0
  %549 = vmatpush1.bf16.msra.mxu0 %v449
  %550 = vmatprep.subr.bf16.mxu0 0
  %551 = vmatpush1.bf16.msra.mxu0 %v450
  %552 = vmatprep.subr.bf16.mxu0 0
  %553 = vmatpush1.bf16.msra.mxu0 %v451
  %554 = vmatprep.subr.bf16.mxu0 0
  %555 = vmatpush1.bf16.msra.mxu0 %v452
  %556 = vmatprep.subr.bf16.mxu0 0
  %557 = vmatpush1.bf16.msra.mxu0 %v453
  %558 = vmatprep.subr.bf16.mxu0 0
  %559 = vmatpush1.bf16.msra.mxu0 %v454
  %560 = vmatprep.subr.bf16.mxu0 0
  %561 = vmatpush1.bf16.msra.mxu0 %v455
  %562 = vmatprep.subr.bf16.mxu0 0
  %563 = vmatpush1.bf16.msra.mxu0 %v456
  %564 = vmatprep.subr.bf16.mxu0 0
  %565 = vmatpush1.bf16.msra.mxu0 %v457
  %566 = vmatprep.subr.bf16.mxu0 0
  %567 = vmatpush1.bf16.msra.mxu0 %v458
  %568 = vmatprep.subr.bf16.mxu0 0
  %569 = vmatpush1.bf16.msra.mxu0 %v459
  %570 = vmatprep.mubr.bf16.mxu0 %v238
  %571 = vmatmul.mubr.bf16.gmra.mrb[0].mxu0 %v237
  %v572 = vpop.f32.mrb[0].mxu0
  %v573 = vadd.f32 %v131, %v572
  %v574 = vpop.f32.mrb[0].mxu0
  %v575 = vpop.f32.mrb[0].mxu0
  %v576 = vadd.f32 %v131, %v575
  %v577 = vpop.f32.mrb[0].mxu0
  %578 = vmatprep.mubr.bf16.mxu0 %v243
  %579 = vmatmul.mubr.bf16.gmra.mrb[0].mxu0 %v242
  %v580 = vpop.f32.mrb[0].mxu0
  %v581 = vadd.f32 %v131, %v580
  %v582 = vpop.f32.mrb[0].mxu0
  %v583 = vpop.f32.mrb[0].mxu0
  %v584 = vadd.f32 %v131, %v583
  %v585 = vpop.f32.mrb[0].mxu0
  %586 = vmatprep.mubr.bf16.mxu0 %v248
  %587 = vmatmul.mubr.bf16.gmra.mrb[0].mxu0 %v247
  %v588 = vpop.f32.mrb[0].mxu0
  %v589 = vadd.f32 %v131, %v588
  %v590 = vpop.f32.mrb[0].mxu0
  %v591 = vpop.f32.mrb[0].mxu0
  %v592 = vadd.f32 %v131, %v591
  %v593 = vpop.f32.mrb[0].mxu0
  %594 = vmatprep.mubr.bf16.mxu0 %v253
  %595 = vmatmul.mubr.bf16.gmra.mrb[0].mxu0 %v252
  %v596 = vpop.f32.mrb[0].mxu0
  %v597 = vadd.f32 %v131, %v596
  %v598 = vpop.f32.mrb[0].mxu0
  %v599 = vpop.f32.mrb[0].mxu0
  %v600 = vadd.f32 %v131, %v599
  %v601 = vpop.f32.mrb[0].mxu0
  %602 = vmatprep.mubr.bf16.mxu0 %v258
  %603 = vmatmul.mubr.bf16.gmra.mrb[0].mxu0 %v257
  %v604 = vpop.f32.mrb[0].mxu0
  %v605 = vadd.f32 %v131, %v604
  %v606 = vpop.f32.mrb[0].mxu0
  %v607 = vpop.f32.mrb[0].mxu0
  %v608 = vadd.f32 %v131, %v607
  %v609 = vpop.f32.mrb[0].mxu0
  %610 = vmatprep.mubr.bf16.mxu0 %v263
  %611 = vmatmul.mubr.bf16.gmra.mrb[0].mxu0 %v262
  %v612 = vpop.f32.mrb[0].mxu0
  %v613 = vadd.f32 %v131, %v612
  %v614 = vpop.f32.mrb[0].mxu0
  %v615 = vpop.f32.mrb[0].mxu0
  %v616 = vadd.f32 %v131, %v615
  %v617 = vpop.f32.mrb[0].mxu0
  %618 = vmatprep.mubr.bf16.mxu0 %v268
  %619 = vmatmul.mubr.bf16.gmra.mrb[0].mxu0 %v267
  %v620 = vpop.f32.mrb[0].mxu0
  %v621 = vadd.f32 %v131, %v620
  %v622 = vpop.f32.mrb[0].mxu0
  %v623 = vpop.f32.mrb[0].mxu0
  %v624 = vpop.f32.mrb[0].mxu0
  %625 = vdwg.mxu0
  %626 = vmatprep.subr.bf16.mxu0 0
  %627 = vmatpush1.bf16.msra.mxu0 %v460
  %628 = vmatprep.subr.bf16.mxu0 0
  %629 = vmatpush1.bf16.msra.mxu0 %v461
  %630 = vmatprep.subr.bf16.mxu0 0
  %631 = vmatpush1.bf16.msra.mxu0 %v462
  %632 = vmatprep.subr.bf16.mxu0 0
  %633 = vmatpush1.bf16.msra.mxu0 %v463
  %634 = vmatprep.subr.bf16.mxu0 0
  %635 = vmatpush1.bf16.msra.mxu0 %v464
  %636 = vmatprep.subr.bf16.mxu0 0
  %637 = vmatpush1.bf16.msra.mxu0 %v465
  %638 = vmatprep.subr.bf16.mxu0 0
  %639 = vmatpush1.bf16.msra.mxu0 %v466
  %640 = vmatprep.subr.bf16.mxu0 0
  %641 = vmatpush1.bf16.msra.mxu0 %v467
  %642 = vmatprep.subr.bf16.mxu0 0
  %643 = vmatpush1.bf16.msra.mxu0 %v468
  %644 = vmatprep.subr.bf16.mxu0 0
  %645 = vmatpush1.bf16.msra.mxu0 %v469
  %646 = vmatprep.subr.bf16.mxu0 0
  %647 = vmatpush1.bf16.msra.mxu0 %v470
  %648 = vmatprep.subr.bf16.mxu0 0
  %649 = vmatpush1.bf16.msra.mxu0 %v471
  %650 = vmatprep.subr.bf16.mxu0 0
  %651 = vmatpush1.bf16.msra.mxu0 %v472
  %652 = vmatprep.subr.bf16.mxu0 0
  %653 = vmatpush1.bf16.msra.mxu0 %v473
  %654 = vmatprep.subr.bf16.mxu0 0
  %655 = vmatpush1.bf16.msra.mxu0 %v474
  %656 = vmatprep.subr.bf16.mxu0 0
  %657 = vmatpush1.bf16.msra.mxu0 %v475
  %658 = vmatprep.mubr.bf16.mxu0 %v240
  %659 = vmatmul.mubr.bf16.gmra.mrb[0].mxu0 %v239
  %v660 = vpop.f32.mrb[0].mxu0
  %v661 = vadd.f32 %v573, %v660
  %v662 = vpop.f32.mrb[0].mxu0
  %v663 = vpop.f32.mrb[0].mxu0
  %v664 = vadd.f32 %v576, %v663
  %v665 = vpop.f32.mrb[0].mxu0
  %666 = vmatprep.mubr.bf16.mxu0 %v245
  %667 = vmatmul.mubr.bf16.gmra.mrb[0].mxu0 %v244
  %v668 = vpop.f32.mrb[0].mxu0
  %v669 = vadd.f32 %v581, %v668
  %v670 = vpop.f32.mrb[0].mxu0
  %v671 = vpop.f32.mrb[0].mxu0
  %v672 = vadd.f32 %v584, %v671
  %v673 = vpop.f32.mrb[0].mxu0
  %674 = vmatprep.mubr.bf16.mxu0 %v250
  %675 = vmatmul.mubr.bf16.gmra.mrb[0].mxu0 %v249
  %v676 = vpop.f32.mrb[0].mxu0
  %v677 = vadd.f32 %v589, %v676
  %v678 = vpop.f32.mrb[0].mxu0
  %v679 = vpop.f32.mrb[0].mxu0
  %v680 = vadd.f32 %v592, %v679
  %v681 = vpop.f32.mrb[0].mxu0
  %682 = vmatprep.mubr.bf16.mxu0 %v255
  %683 = vmatmul.mubr.bf16.gmra.mrb[0].mxu0 %v254
  %v684 = vpop.f32.mrb[0].mxu0
  %v685 = vadd.f32 %v597, %v684
  %v686 = vpop.f32.mrb[0].mxu0
  %v687 = vpop.f32.mrb[0].mxu0
  %v688 = vadd.f32 %v600, %v687
  %v689 = vpop.f32.mrb[0].mxu0
  %690 = vmatprep.mubr.bf16.mxu0 %v260
  %691 = vmatmul.mubr.bf16.gmra.mrb[0].mxu0 %v259
  %v692 = vpop.f32.mrb[0].mxu0
  %v693 = vadd.f32 %v605, %v692
  %v694 = vpop.f32.mrb[0].mxu0
  %v695 = vpop.f32.mrb[0].mxu0
  %v696 = vadd.f32 %v608, %v695
  %v697 = vpop.f32.mrb[0].mxu0
  %698 = vmatprep.mubr.bf16.mxu0 %v265
  %699 = vmatmul.mubr.bf16.gmra.mrb[0].mxu0 %v264
  %v700 = vpop.f32.mrb[0].mxu0
  %v701 = vadd.f32 %v613, %v700
  %v702 = vpop.f32.mrb[0].mxu0
  %v703 = vpop.f32.mrb[0].mxu0
  %v704 = vadd.f32 %v616, %v703
  %v705 = vpop.f32.mrb[0].mxu0
  %706 = vmatprep.mubr.bf16.mxu0 %v270
  %707 = vmatmul.mubr.bf16.gmra.mrb[0].mxu0 %v269
  %v708 = vpop.f32.mrb[0].mxu0
  %v709 = vadd.f32 %v621, %v708
  %v710 = vpop.f32.mrb[0].mxu0
  %v711 = vpop.f32.mrb[0].mxu0
  %v712 = vpop.f32.mrb[0].mxu0
  %713 = vdwg.mxu0
  %714 = vmatprep.subr.bf16.mxu0 0
  %715 = vmatpush1.bf16.msra.mxu0 %v476
  %716 = vmatprep.subr.bf16.mxu0 0
  %717 = vmatpush1.bf16.msra.mxu0 %v477
  %718 = vmatprep.subr.bf16.mxu0 0
  %719 = vmatpush1.bf16.msra.mxu0 %v478
  %720 = vmatprep.subr.bf16.mxu0 0
  %721 = vmatpush1.bf16.msra.mxu0 %v479
  %722 = vmatprep.subr.bf16.mxu0 0
  %723 = vmatpush1.bf16.msra.mxu0 0
  %724 = vmatprep.subr.bf16.mxu0 0
  %725 = vmatpush1.bf16.msra.mxu0 0
  %726 = vmatprep.subr.bf16.mxu0 0
  %727 = vmatpush1.bf16.msra.mxu0 0
  %728 = vmatprep.subr.bf16.mxu0 0
  %729 = vmatpush1.bf16.msra.mxu0 0
  %730 = vmatprep.subr.bf16.mxu0 0
  %731 = vmatpush1.bf16.msra.mxu0 0
  %732 = vmatprep.subr.bf16.mxu0 0
  %733 = vmatpush1.bf16.msra.mxu0 0
  %734 = vmatprep.subr.bf16.mxu0 0
  %735 = vmatpush1.bf16.msra.mxu0 0
  %736 = vmatprep.subr.bf16.mxu0 0
  %737 = vmatpush1.bf16.msra.mxu0 0
  %738 = vmatprep.subr.bf16.mxu0 0
  %739 = vmatpush1.bf16.msra.mxu0 0
  %740 = vmatprep.subr.bf16.mxu0 0
  %741 = vmatpush1.bf16.msra.mxu0 0
  %742 = vmatprep.subr.bf16.mxu0 0
  %743 = vmatpush1.bf16.msra.mxu0 0
  %744 = vmatprep.subr.bf16.mxu0 0
  %745 = vmatpush1.bf16.msra.mxu0 0
  %746 = vmatprep.mubr.bf16.mxu0 0
  %747 = vmatmul.mubr.bf16.gmra.mrb[0].mxu0 %v518
  %v748 = vpop.f32.mrb[0].mxu0
  %v749 = vadd.f32 %v661, %v748
  %v750 = vpop.f32.mrb[0].mxu0
  %v751 = vpop.f32.mrb[0].mxu0
  %v752 = vadd.f32 %v664, %v751
  %v753 = vpop.f32.mrb[0].mxu0
  %754 = vmatprep.mubr.bf16.mxu0 0
  %755 = vmatmul.mubr.bf16.gmra.mrb[0].mxu0 %v521
  %v756 = vpop.f32.mrb[0].mxu0
  %v757 = vadd.f32 %v669, %v756
  %v758 = vpop.f32.mrb[0].mxu0
  %v759 = vpop.f32.mrb[0].mxu0
  %v760 = vadd.f32 %v672, %v759
  %v761 = vpop.f32.mrb[0].mxu0
  %762 = vmatprep.mubr.bf16.mxu0 0
  %763 = vmatmul.mubr.bf16.gmra.mrb[0].mxu0 %v524
  %v764 = vpop.f32.mrb[0].mxu0
  %v765 = vadd.f32 %v677, %v764
  %v766 = vpop.f32.mrb[0].mxu0
  %v767 = vpop.f32.mrb[0].mxu0
  %v768 = vadd.f32 %v680, %v767
  %v769 = vpop.f32.mrb[0].mxu0
  %770 = vmatprep.mubr.bf16.mxu0 0
  %771 = vmatmul.mubr.bf16.gmra.mrb[0].mxu0 %v527
  %v772 = vpop.f32.mrb[0].mxu0
  %v773 = vadd.f32 %v685, %v772
  %v774 = vpop.f32.mrb[0].mxu0
  %v775 = vpop.f32.mrb[0].mxu0
  %v776 = vadd.f32 %v688, %v775
  %v777 = vpop.f32.mrb[0].mxu0
  %778 = vmatprep.mubr.bf16.mxu0 0
  %779 = vmatmul.mubr.bf16.gmra.mrb[0].mxu0 %v530
  %v780 = vpop.f32.mrb[0].mxu0
  %v781 = vadd.f32 %v693, %v780
  %v782 = vpop.f32.mrb[0].mxu0
  %v783 = vpop.f32.mrb[0].mxu0
  %v784 = vadd.f32 %v696, %v783
  %v785 = vpop.f32.mrb[0].mxu0
  %786 = vmatprep.mubr.bf16.mxu0 0
  %787 = vmatmul.mubr.bf16.gmra.mrb[0].mxu0 %v533
  %v788 = vpop.f32.mrb[0].mxu0
  %v789 = vadd.f32 %v701, %v788
  %v790 = vpop.f32.mrb[0].mxu0
  %v791 = vpop.f32.mrb[0].mxu0
  %v792 = vadd.f32 %v704, %v791
  %v793 = vpop.f32.mrb[0].mxu0
  %794 = vmatprep.mubr.bf16.mxu0 0
  %795 = vmatmul.mubr.bf16.gmra.mrb[0].mxu0 %v536
  %v796 = vpop.f32.mrb[0].mxu0
  %v797 = vadd.f32 %v709, %v796
  %v798 = vpop.f32.mrb[0].mxu0
  %v799 = vpop.f32.mrb[0].mxu0
  %v800 = vpop.f32.mrb[0].mxu0
  %801 = vdwg.mxu0
  %v802 = vmax.f32 %v749, 0.0
  %v803 = vmax.f32 %v752, 0.0
  %v804 = vmax.f32 %v757, 0.0
  %v805 = vmax.f32 %v760, 0.0
  %v806 = vmax.f32 %v765, 0.0
  %v807 = vmax.f32 %v768, 0.0
  %v808 = vmax.f32 %v773, 0.0
  %v809 = vmax.f32 %v776, 0.0
  %v810 = vmax.f32 %v781, 0.0
  %v811 = vmax.f32 %v784, 0.0
  %v812 = vmax.f32 %v789, 0.0
  %v813 = vmax.f32 %v792, 0.0
  %v814 = vmax.f32 %v797, 0.0
  %v815 = vpack.c.bf16 %v803, %v802
  %v816 = vpack.c.bf16 %v805, %v804
  %v817 = vpack.c.bf16 %v807, %v806
  %v818 = vpack.c.bf16 %v809, %v808
  %v819 = vpack.c.bf16 %v811, %v810
  %v820 = vpack.c.bf16 %v813, %v812
  %v821 = vpack.c.bf16 %v814, %v814
  %v829 = vunpack.c.l.b16 %v815
  %v830 = vunpack.c.h.b16 %v815
  %v831 = vunpack.c.l.b16 %v816
  %v832 = vunpack.c.h.b16 %v816
  %v833 = vunpack.c.l.b16 %v817
  %v834 = vunpack.c.h.b16 %v817
  %v835 = vunpack.c.l.b16 %v818
  %v836 = vunpack.c.h.b16 %v818
  %v837 = vunpack.c.l.b16 %v819
  %v838 = vunpack.c.h.b16 %v819
  %v839 = vunpack.c.l.b16 %v820
  %v840 = vunpack.c.h.b16 %v820
  %v841 = vunpack.c.l.b16 %v821
  %v842 = vpack.c.b16 %v829, %v829
  %v843 = vpack.c.b16 %v830, %v830
  %v844 = vpack.c.b16 %v831, %v831
  %v845 = vpack.c.b16 %v832, %v832
  %v846 = vpack.c.b16 %v833, %v833
  %v847 = vpack.c.b16 %v834, %v834
  %v848 = vpack.c.b16 %v835, %v835
  %v849 = vpack.c.b16 %v836, %v836
  %v850 = vpack.c.b16 %v837, %v837
  %v851 = vpack.c.b16 %v838, %v838
  %v852 = vpack.c.b16 %v839, %v839
  %v853 = vpack.c.b16 %v840, %v840
  %v854 = vpack.c.b16 %v841, %v841
  %vm868 = vcmask 257024
  %869 = vst.msk [vmem:[%s3] sm:$0xf] %vm868, %v842
  %870 = vst.msk [vmem:[%s3 + $0x4] sm:$0xf] %vm868, %v843
  %871 = vst.msk [vmem:[%s3 + $0x8] sm:$0xf] %vm868, %v844
  %872 = vst.msk [vmem:[%s3 + $0xc] sm:$0xf] %vm868, %v845
  %873 = vst.msk [vmem:[%s3 + $0x10] sm:$0xf] %vm868, %v846
  %874 = vst.msk [vmem:[%s3 + $0x14] sm:$0xf] %vm868, %v847
  %875 = vst.msk [vmem:[%s3 + $0x18] sm:$0xf] %vm868, %v848
  %876 = vst.msk [vmem:[%s3 + $0x1c] sm:$0xf] %vm868, %v849
  %877 = vst.msk [vmem:[%s3 + $0x20] sm:$0xf] %vm868, %v850
  %878 = vst.msk [vmem:[%s3 + $0x24] sm:$0xf] %vm868, %v851
  %879 = vst.msk [vmem:[%s3 + $0x28] sm:$0xf] %vm868, %v852
  %880 = vst.msk [vmem:[%s3 + $0x2c] sm:$0xf] %vm868, %v853
  %vm881 = vcmask 253952
  %882 = vst.msk [vmem:[%s3 + $0x30] sm:$0x1] %vm881, %v854
  // Predicated region
  $region14: #{cnn_policy_forward.6} parent=0 // pred_check
    _
  $region15: #{cnn_policy_forward.6} parent=0 // pred_check_branch
    %884 = sbr.rel (0) target = $region17
  $region16: #{cnn_policy_forward.6} parent=0 // pred_region
    _
  $region17: #{cnn_policy_forward.6} parent=0 // pred_fallthru
    _
  // Predicated region
  $region18: #{cnn_policy_forward.6} parent=0 // pred_check
    _
  $region19: #{cnn_policy_forward.6} parent=0 // pred_check_branch
    %886 = sbr.rel (0) target = $region21
  $region20: #{cnn_policy_forward.6} parent=0 // pred_region
    _
  $region21: #{cnn_policy_forward.6} parent=0 // pred_fallthru
    _

// kernel: cnn_policy_forward.7
$region0: #{cnn_policy_forward.7}
  #allocation0 [shape = 'u32[]', space=smem, size = 0x4, offset = 0x4, fixed_abs, tag = 'smem constant byte address 0x4 - core index']
  #allocation1 [shape = 'u32[144,128]{1,0:T(1,128)}', space=vmem, size = 0x12000, scoped, tag = 'internal scratch']
  #allocation2 [shape = 'f32[1,1]{1,0:T(1,128)S(1)}', space=vmem, size = 0x200, scoped, tag = 'scoped memory for cnn_policy_forward.7']
  %s0 = inlined_call_operand.vmem [shape: bf16[2,1568], index: 0, kind: input, shape index: {}]
  %s1 = inlined_call_operand.vmem [shape: f32[2,512], index: 1, kind: input, shape index: {}]
  %s2 = inlined_call_operand.vmem [shape: f32[2,1], index: 2, kind: input, shape index: {}]
  %s3 = inlined_call_operand.vmem [shape: bf16[1568,512], index: 3, kind: input, shape index: {}]
  %s4 = inlined_call_operand.vmem [shape: f32[1,512], index: 4, kind: input, shape index: {}]
  %s5 = inlined_call_operand.vmem [shape: bf16[512,1536], index: 5, kind: input, shape index: {}]
  %s6 = inlined_call_operand.vmem [shape: bf16[512,1536], index: 6, kind: input, shape index: {}]
  %s7 = inlined_call_operand.vmem [shape: f32[1,1536], index: 7, kind: input, shape index: {}]
  %s8 = inlined_call_operand.vmem [shape: f32[1,1536], index: 8, kind: input, shape index: {}]
  %s9 = inlined_call_operand.vmem [shape: f32[1,512], index: 9, kind: input, shape index: {}]
  %s10 = inlined_call_operand.<no memory space> [shape: f32[1,1], index: 10, kind: input, shape index: {}]
  %s11 = inlined_call_operand.vmem [shape: f32[2,512], index: 11, kind: output, shape index: {0}]
  %s12 = inlined_call_operand.vmem [shape: f32[2,1], index: 12, kind: output, shape index: {1}]
  %13 = xla_tuple %s11, %s12
  %s14 = sld [smem:[#allocation0]]
  $region62: #{cnn_policy_forward.7} parent=0
    _
  %s16 = ssub.s32 1, %s14
  %s17 = scalar_select 0, %s16, %s14
  %v18 = vstv %s10
  %19 = vst [vmem:[#allocation2] sm:$0x1] %v18
  // Predicated region
  $region2: #{cnn_policy_forward.7} parent=0 // pred_check
    _
  $region3: #{cnn_policy_forward.7} parent=0 // pred_check_branch
    %21 = sbr.rel (0) target = $region5
  $region4: #{cnn_policy_forward.7} parent=0 // pred_region
    _
  $region5: #{cnn_policy_forward.7} parent=0 // pred_fallthru
    _
  // Predicated region
  $region6: #{cnn_policy_forward.7} parent=0 // pred_check
    _
  $region7: #{cnn_policy_forward.7} parent=0 // pred_check_branch
    %23 = sbr.rel (0) target = $region9
  $region8: #{cnn_policy_forward.7} parent=0 // pred_region
    _
  $region9: #{cnn_policy_forward.7} parent=0 // pred_fallthru
    _
  // Predicated region
  $region10: #{cnn_policy_forward.7} parent=0 // pred_check
    _
  $region11: #{cnn_policy_forward.7} parent=0 // pred_check_branch
    %25 = sbr.rel (0) target = $region13
  $region12: #{cnn_policy_forward.7} parent=0 // pred_region
    _
  $region13: #{cnn_policy_forward.7} parent=0 // pred_fallthru
    _
  // Predicated region
  $region14: #{cnn_policy_forward.7} parent=0 // pred_check
    _
  $region15: #{cnn_policy_forward.7} parent=0 // pred_check_branch
    %27 = sbr.rel (0) target = $region17
  $region16: #{cnn_policy_forward.7} parent=0 // pred_region
    _
  $region17: #{cnn_policy_forward.7} parent=0 // pred_fallthru
    _
  // Predicated region
  $region18: #{cnn_policy_forward.7} parent=0 // pred_check
    _
  $region19: #{cnn_policy_forward.7} parent=0 // pred_check_branch
    %29 = sbr.rel (0) target = $region21
  $region20: #{cnn_policy_forward.7} parent=0 // pred_region
    _
  $region21: #{cnn_policy_forward.7} parent=0 // pred_fallthru
    _
  // Predicated region
  $region22: #{cnn_policy_forward.7} parent=0 // pred_check
    _
  $region23: #{cnn_policy_forward.7} parent=0 // pred_check_branch
    %31 = sbr.rel (0) target = $region25
  $region24: #{cnn_policy_forward.7} parent=0 // pred_region
    _
  $region25: #{cnn_policy_forward.7} parent=0 // pred_fallthru
    _
  // Predicated region
  $region26: #{cnn_policy_forward.7} parent=0 // pred_check
    _
  $region27: #{cnn_policy_forward.7} parent=0 // pred_check_branch
    %33 = sbr.rel (0) target = $region29
  $region28: #{cnn_policy_forward.7} parent=0 // pred_region
    _
  $region29: #{cnn_policy_forward.7} parent=0 // pred_fallthru
    _
  // Predicated region
  $region30: #{cnn_policy_forward.7} parent=0 // pred_check
    _
  $region31: #{cnn_policy_forward.7} parent=0 // pred_check_branch
    %35 = sbr.rel (0) target = $region33
  $region32: #{cnn_policy_forward.7} parent=0 // pred_region
    _
  $region33: #{cnn_policy_forward.7} parent=0 // pred_fallthru
    _
  // Predicated region
  $region34: #{cnn_policy_forward.7} parent=0 // pred_check
    _
  $region35: #{cnn_policy_forward.7} parent=0 // pred_check_branch
    %37 = sbr.rel (0) target = $region37
  $region36: #{cnn_policy_forward.7} parent=0 // pred_region
    _
  $region37: #{cnn_policy_forward.7} parent=0 // pred_fallthru
    _
  // Predicated region
  $region38: #{cnn_policy_forward.7} parent=0 // pred_check
    _
  $region39: #{cnn_policy_forward.7} parent=0 // pred_check_branch
    %39 = sbr.rel (0) target = $region41
  $region40: #{cnn_policy_forward.7} parent=0 // pred_region
    _
  $region41: #{cnn_policy_forward.7} parent=0 // pred_fallthru
    _
  // Predicated region
  $region42: #{cnn_policy_forward.7} parent=0 // pred_check
    _
  $region43: #{cnn_policy_forward.7} parent=0 // pred_check_branch
    %41 = sbr.rel (0) target = $region45
  $region44: #{cnn_policy_forward.7} parent=0 // pred_region
    _
  $region45: #{cnn_policy_forward.7} parent=0 // pred_fallthru
    _
  %v43 = vld [vmem:[%s0] sm:$0xff]
  %v44 = vld [vmem:[%s0 + $0x8] sm:$0x1f]
  %v45 = vld [vmem:[%s3] sm:$0xff]
  %v46 = vld [vmem:[%s3 + $0x8] sm:$0xff]
  %v47 = vld [vmem:[%s3 + $0x10] sm:$0xff]
  %v48 = vld [vmem:[%s3 + $0x18] sm:$0xff]
  %v49 = vld [vmem:[%s3 + $0x20] sm:$0xff]
  %v50 = vld [vmem:[%s3 + $0x28] sm:$0xff]
  %v51 = vld [vmem:[%s3 + $0x30] sm:$0xff]
  %v52 = vld [vmem:[%s3 + $0x38] sm:$0xff]
  %v53 = vld [vmem:[%s3 + $0x40] sm:$0xff]
  %v54 = vld [vmem:[%s3 + $0x48] sm:$0xff]
  %v55 = vld [vmem:[%s3 + $0x50] sm:$0xff]
  %v56 = vld [vmem:[%s3 + $0x58] sm:$0xff]
  %v57 = vld [vmem:[%s3 + $0x60] sm:$0xff]
  %v58 = vld [vmem:[%s3 + $0x68] sm:$0xff]
  %v59 = vld [vmem:[%s3 + $0x70] sm:$0xff]
  %v60 = vld [vmem:[%s3 + $0x78] sm:$0xff]
  %v61 = vld [vmem:[%s3 + $0x80] sm:$0xff]
  %v62 = vld [vmem:[%s3 + $0x88] sm:$0xff]
  %v63 = vld [vmem:[%s3 + $0x90] sm:$0xff]
  %v64 = vld [vmem:[%s3 + $0x98] sm:$0xff]
  %v65 = vld [vmem:[%s3 + $0xa0] sm:$0xff]
  %v66 = vld [vmem:[%s3 + $0xa8] sm:$0xff]
  %v67 = vld [vmem:[%s3 + $0xb0] sm:$0xff]
  %v68 = vld [vmem:[%s3 + $0xb8] sm:$0xff]
  %v69 = vld [vmem:[%s3 + $0xc0] sm:$0xff]
  %v70 = vld [vmem:[%s3 + $0xc8] sm:$0xff]
  %v71 = vld [vmem:[%s3 + $0xd0] sm:$0xff]
  %v72 = vld [vmem:[%s3 + $0xd8] sm:$0xff]
  %v73 = vld [vmem:[%s3 + $0xe0] sm:$0xff]
  %v74 = vld [vmem:[%s3 + $0xe8] sm:$0xff]
  %v75 = vld [vmem:[%s3 + $0xf0] sm:$0xff]
  %v76 = vld [vmem:[%s3 + $0xf8] sm:$0xff]
  %v77 = vld [vmem:[%s3 + $0x100] sm:$0xff]
  %v78 = vld [vmem:[%s3 + $0x108] sm:$0xff]
  %v79 = vld [vmem:[%s3 + $0x110] sm:$0xff]
  %v80 = vld [vmem:[%s3 + $0x118] sm:$0xff]
  %v81 = vld [vmem:[%s3 + $0x120] sm:$0xff]
  %v82 = vld [vmem:[%s3 + $0x128] sm:$0xff]
  %v83 = vld [vmem:[%s3 + $0x130] sm:$0xff]
  %v84 = vld [vmem:[%s3 + $0x138] sm:$0xff]
  %v85 = vld [vmem:[%s3 + $0x140] sm:$0xff]
  %v86 = vld [vmem:[%s3 + $0x148] sm:$0xff]
  %v87 = vld [vmem:[%s3 + $0x150] sm:$0xff]
  %v88 = vld [vmem:[%s3 + $0x158] sm:$0xff]
  %v89 = vld [vmem:[%s3 + $0x160] sm:$0xff]
  %v90 = vld [vmem:[%s3 + $0x168] sm:$0xff]
  %v91 = vld [vmem:[%s3 + $0x170] sm:$0xff]
  %v92 = vld [vmem:[%s3 + $0x178] sm:$0xff]
  %v93 = vld [vmem:[%s3 + $0x180] sm:$0xff]
  %v94 = vld [vmem:[%s3 + $0x188] sm:$0xff]
  %v95 = vld [vmem:[%s3 + $0x190] sm:$0xff]
  %v96 = vld [vmem:[%s3 + $0x198] sm:$0xff]
  %v97 = vld [vmem:[%s3 + $0x1a0] sm:$0xff]
  %v98 = vld [vmem:[%s3 + $0x1a8] sm:$0xff]
  %v99 = vld [vmem:[%s3 + $0x1b0] sm:$0xff]
  %v100 = vld [vmem:[%s3 + $0x1b8] sm:$0xff]
  %v101 = vld [vmem:[%s3 + $0x1c0] sm:$0xff]
  %v102 = vld [vmem:[%s3 + $0x1c8] sm:$0xff]
  %v103 = vld [vmem:[%s3 + $0x1d0] sm:$0xff]
  %v104 = vld [vmem:[%s3 + $0x1d8] sm:$0xff]
  %v105 = vld [vmem:[%s3 + $0x1e0] sm:$0xff]
  %v106 = vld [vmem:[%s3 + $0x1e8] sm:$0xff]
  %v107 = vld [vmem:[%s3 + $0x1f0] sm:$0xff]
  %v108 = vld [vmem:[%s3 + $0x1f8] sm:$0xff]
  %v109 = vld [vmem:[%s3 + $0x200] sm:$0xff]
  %v110 = vld [vmem:[%s3 + $0x208] sm:$0xff]
  %v111 = vld [vmem:[%s3 + $0x210] sm:$0xff]
  %v112 = vld [vmem:[%s3 + $0x218] sm:$0xff]
  %v113 = vld [vmem:[%s3 + $0x220] sm:$0xff]
  %v114 = vld [vmem:[%s3 + $0x228] sm:$0xff]
  %v115 = vld [vmem:[%s3 + $0x230] sm:$0xff]
  %v116 = vld [vmem:[%s3 + $0x238] sm:$0xff]
  %v117 = vld [vmem:[%s3 + $0x240] sm:$0xff]
  %v118 = vld [vmem:[%s3 + $0x248] sm:$0xff]
  %v119 = vld [vmem:[%s3 + $0x250] sm:$0xff]
  %v120 = vld [vmem:[%s3 + $0x258] sm:$0xff]
  %v121 = vld [vmem:[%s3 + $0x260] sm:$0xff]
  %v122 = vld [vmem:[%s3 + $0x268] sm:$0xff]
  %v123 = vld [vmem:[%s3 + $0x270] sm:$0xff]
  %v124 = vld [vmem:[%s3 + $0x278] sm:$0xff]
  %v125 = vld [vmem:[%s3 + $0x280] sm:$0xff]
  %v126 = vld [vmem:[%s3 + $0x288] sm:$0xff]
  %v127 = vld [vmem:[%s3 + $0x290] sm:$0xff]
  %v128 = vld [vmem:[%s3 + $0x298] sm:$0xff]
  %v129 = vld [vmem:[%s3 + $0x2a0] sm:$0xff]
  %v130 = vld [vmem:[%s3 + $0x2a8] sm:$0xff]
  %v131 = vld [vmem:[%s3 + $0x2b0] sm:$0xff]
  %v132 = vld [vmem:[%s3 + $0x2b8] sm:$0xff]
  %v133 = vld [vmem:[%s3 + $0x2c0] sm:$0xff]
  %v134 = vld [vmem:[%s3 + $0x2c8] sm:$0xff]
  %v135 = vld [vmem:[%s3 + $0x2d0] sm:$0xff]
  %v136 = vld [vmem:[%s3 + $0x2d8] sm:$0xff]
  %v137 = vld [vmem:[%s3 + $0x2e0] sm:$0xff]
  %v138 = vld [vmem:[%s3 + $0x2e8] sm:$0xff]
  %v139 = vld [vmem:[%s3 + $0x2f0] sm:$0xff]
  %v140 = vld [vmem:[%s3 + $0x2f8] sm:$0xff]
  %v141 = vld [vmem:[%s3 + $0x300] sm:$0xff]
  %v142 = vld [vmem:[%s3 + $0x308] sm:$0xff]
  %v143 = vld [vmem:[%s3 + $0x310] sm:$0xff]
  %v144 = vld [vmem:[%s3 + $0x318] sm:$0xff]
  %v145 = vld [vmem:[%s3 + $0x320] sm:$0xff]
  %v146 = vld [vmem:[%s3 + $0x328] sm:$0xff]
  %v147 = vld [vmem:[%s3 + $0x330] sm:$0xff]
  %v148 = vld [vmem:[%s3 + $0x338] sm:$0xff]
  %v149 = vld [vmem:[%s3 + $0x340] sm:$0xff]
  %v150 = vld [vmem:[%s3 + $0x348] sm:$0xff]
  %v151 = vld [vmem:[%s3 + $0x350] sm:$0xff]
  %v152 = vld [vmem:[%s3 + $0x358] sm:$0xff]
  %v153 = vld [vmem:[%s3 + $0x360] sm:$0xff]
  %v154 = vld [vmem:[%s3 + $0x368] sm:$0xff]
  %v155 = vld [vmem:[%s3 + $0x370] sm:$0xff]
  %v156 = vld [vmem:[%s3 + $0x378] sm:$0xff]
  %v157 = vld [vmem:[%s3 + $0x380] sm:$0xff]
  %v158 = vld [vmem:[%s3 + $0x388] sm:$0xff]
  %v159 = vld [vmem:[%s3 + $0x390] sm:$0xff]
  %v160 = vld [vmem:[%s3 + $0x398] sm:$0xff]
  %v161 = vld [vmem:[%s3 + $0x3a0] sm:$0xff]
  %v162 = vld [vmem:[%s3 + $0x3a8] sm:$0xff]
  %v163 = vld [vmem:[%s3 + $0x3b0] sm:$0xff]
  %v164 = vld [vmem:[%s3 + $0x3b8] sm:$0xff]
  %v165 = vld [vmem:[%s3 + $0x3c0] sm:$0xff]
  %v166 = vld [vmem:[%s3 + $0x3c8] sm:$0xff]
  %v167 = vld [vmem:[%s3 + $0x3d0] sm:$0xff]
  %v168 = vld [vmem:[%s3 + $0x3d8] sm:$0xff]
  %v169 = vld [vmem:[%s3 + $0x3e0] sm:$0xff]
  %v170 = vld [vmem:[%s3 + $0x3e8] sm:$0xff]
  %v171 = vld [vmem:[%s3 + $0x3f0] sm:$0xff]
  %v172 = vld [vmem:[%s3 + $0x3f8] sm:$0xff]
  %v173 = vld [vmem:[%s3 + $0x400] sm:$0xff]
  %v174 = vld [vmem:[%s3 + $0x408] sm:$0xff]
  %v175 = vld [vmem:[%s3 + $0x410] sm:$0xff]
  %v176 = vld [vmem:[%s3 + $0x418] sm:$0xff]
  %v177 = vld [vmem:[%s3 + $0x420] sm:$0xff]
  %v178 = vld [vmem:[%s3 + $0x428] sm:$0xff]
  %v179 = vld [vmem:[%s3 + $0x430] sm:$0xff]
  %v180 = vld [vmem:[%s3 + $0x438] sm:$0xff]
  %v181 = vld [vmem:[%s3 + $0x440] sm:$0xff]
  %v182 = vld [vmem:[%s3 + $0x448] sm:$0xff]
  %v183 = vld [vmem:[%s3 + $0x450] sm:$0xff]
  %v184 = vld [vmem:[%s3 + $0x458] sm:$0xff]
  %v185 = vld [vmem:[%s3 + $0x460] sm:$0xff]
  %v186 = vld [vmem:[%s3 + $0x468] sm:$0xff]
  %v187 = vld [vmem:[%s3 + $0x470] sm:$0xff]
  %v188 = vld [vmem:[%s3 + $0x478] sm:$0xff]
  %v189 = vld [vmem:[%s3 + $0x480] sm:$0xff]
  %v190 = vld [vmem:[%s3 + $0x488] sm:$0xff]
  %v191 = vld [vmem:[%s3 + $0x490] sm:$0xff]
  %v192 = vld [vmem:[%s3 + $0x498] sm:$0xff]
  %v193 = vld [vmem:[%s3 + $0x4a0] sm:$0xff]
  %v194 = vld [vmem:[%s3 + $0x4a8] sm:$0xff]
  %v195 = vld [vmem:[%s3 + $0x4b0] sm:$0xff]
  %v196 = vld [vmem:[%s3 + $0x4b8] sm:$0xff]
  %v197 = vld [vmem:[%s3 + $0x4c0] sm:$0xff]
  %v198 = vld [vmem:[%s3 + $0x4c8] sm:$0xff]
  %v199 = vld [vmem:[%s3 + $0x4d0] sm:$0xff]
  %v200 = vld [vmem:[%s3 + $0x4d8] sm:$0xff]
  %v201 = vld [vmem:[%s3 + $0x4e0] sm:$0xff]
  %v202 = vld [vmem:[%s3 + $0x4e8] sm:$0xff]
  %v203 = vld [vmem:[%s3 + $0x4f0] sm:$0xff]
  %v204 = vld [vmem:[%s3 + $0x4f8] sm:$0xff]
  %v205 = vld [vmem:[%s3 + $0x500] sm:$0xff]
  %v206 = vld [vmem:[%s3 + $0x508] sm:$0xff]
  %v207 = vld [vmem:[%s3 + $0x510] sm:$0xff]
  %v208 = vld [vmem:[%s3 + $0x518] sm:$0xff]
  %v209 = vld [vmem:[%s3 + $0x520] sm:$0xff]
  %v210 = vld [vmem:[%s3 + $0x528] sm:$0xff]
  %v211 = vld [vmem:[%s3 + $0x530] sm:$0xff]
  %v212 = vld [vmem:[%s3 + $0x538] sm:$0xff]
  %v213 = vld [vmem:[%s3 + $0x540] sm:$0xff]
  %v214 = vld [vmem:[%s3 + $0x548] sm:$0xff]
  %v215 = vld [vmem:[%s3 + $0x550] sm:$0xff]
  %v216 = vld [vmem:[%s3 + $0x558] sm:$0xff]
  %v217 = vld [vmem:[%s3 + $0x560] sm:$0xff]
  %v218 = vld [vmem:[%s3 + $0x568] sm:$0xff]
  %v219 = vld [vmem:[%s3 + $0x570] sm:$0xff]
  %v220 = vld [vmem:[%s3 + $0x578] sm:$0xff]
  %v221 = vld [vmem:[%s3 + $0x580] sm:$0xff]
  %v222 = vld [vmem:[%s3 + $0x588] sm:$0xff]
  %v223 = vld [vmem:[%s3 + $0x590] sm:$0xff]
  %v224 = vld [vmem:[%s3 + $0x598] sm:$0xff]
  %v225 = vld [vmem:[%s3 + $0x5a0] sm:$0xff]
  %v226 = vld [vmem:[%s3 + $0x5a8] sm:$0xff]
  %v227 = vld [vmem:[%s3 + $0x5b0] sm:$0xff]
  %v228 = vld [vmem:[%s3 + $0x5b8] sm:$0xff]
  %v229 = vld [vmem:[%s3 + $0x5c0] sm:$0xff]
  %v230 = vld [vmem:[%s3 + $0x5c8] sm:$0xff]
  %v231 = vld [vmem:[%s3 + $0x5d0] sm:$0xff]
  %v232 = vld [vmem:[%s3 + $0x5d8] sm:$0xff]
  %v233 = vld [vmem:[%s3 + $0x5e0] sm:$0xff]
  %v234 = vld [vmem:[%s3 + $0x5e8] sm:$0xff]
  %v235 = vld [vmem:[%s3 + $0x5f0] sm:$0xff]
  %v236 = vld [vmem:[%s3 + $0x5f8] sm:$0xff]
  %v237 = vld [vmem:[%s3 + $0x600] sm:$0xff]
  %v238 = vld [vmem:[%s3 + $0x608] sm:$0xff]
  %v239 = vld [vmem:[%s3 + $0x610] sm:$0xff]
  %v240 = vld [vmem:[%s3 + $0x618] sm:$0xff]
  %v241 = vld [vmem:[%s3 + $0x620] sm:$0xff]
  %v242 = vld [vmem:[%s3 + $0x628] sm:$0xff]
  %v243 = vld [vmem:[%s3 + $0x630] sm:$0xff]
  %v244 = vld [vmem:[%s3 + $0x638] sm:$0xff]
  %v245 = vld [vmem:[%s3 + $0x640] sm:$0xff]
  %v246 = vld [vmem:[%s3 + $0x648] sm:$0xff]
  %v247 = vld [vmem:[%s3 + $0x650] sm:$0xff]
  %v248 = vld [vmem:[%s3 + $0x658] sm:$0xff]
  %v249 = vld [vmem:[%s3 + $0x660] sm:$0xff]
  %v250 = vld [vmem:[%s3 + $0x668] sm:$0xff]
  %v251 = vld [vmem:[%s3 + $0x670] sm:$0xff]
  %v252 = vld [vmem:[%s3 + $0x678] sm:$0xff]
  %v253 = vld [vmem:[%s3 + $0x680] sm:$0xff]
  %v254 = vld [vmem:[%s3 + $0x688] sm:$0xff]
  %v255 = vld [vmem:[%s3 + $0x690] sm:$0xff]
  %v256 = vld [vmem:[%s3 + $0x698] sm:$0xff]
  %v257 = vld [vmem:[%s3 + $0x6a0] sm:$0xff]
  %v258 = vld [vmem:[%s3 + $0x6a8] sm:$0xff]
  %v259 = vld [vmem:[%s3 + $0x6b0] sm:$0xff]
  %v260 = vld [vmem:[%s3 + $0x6b8] sm:$0xff]
  %v261 = vld [vmem:[%s3 + $0x6c0] sm:$0xff]
  %v262 = vld [vmem:[%s3 + $0x6c8] sm:$0xff]
  %v263 = vld [vmem:[%s3 + $0x6d0] sm:$0xff]
  %v264 = vld [vmem:[%s3 + $0x6d8] sm:$0xff]
  %v265 = vld [vmem:[%s3 + $0x6e0] sm:$0xff]
  %v266 = vld [vmem:[%s3 + $0x6e8] sm:$0xff]
  %v267 = vld [vmem:[%s3 + $0x6f0] sm:$0xff]
  %v268 = vld [vmem:[%s3 + $0x6f8] sm:$0xff]
  %v269 = vld [vmem:[%s3 + $0x700] sm:$0xff]
  %v270 = vld [vmem:[%s3 + $0x708] sm:$0xff]
  %v271 = vld [vmem:[%s3 + $0x710] sm:$0xff]
  %v272 = vld [vmem:[%s3 + $0x718] sm:$0xff]
  %v273 = vld [vmem:[%s3 + $0x720] sm:$0xff]
  %v274 = vld [vmem:[%s3 + $0x728] sm:$0xff]
  %v275 = vld [vmem:[%s3 + $0x730] sm:$0xff]
  %v276 = vld [vmem:[%s3 + $0x738] sm:$0xff]
  %v277 = vld [vmem:[%s3 + $0x740] sm:$0xff]
  %v278 = vld [vmem:[%s3 + $0x748] sm:$0xff]
  %v279 = vld [vmem:[%s3 + $0x750] sm:$0xff]
  %v280 = vld [vmem:[%s3 + $0x758] sm:$0xff]
  %v281 = vld [vmem:[%s3 + $0x760] sm:$0xff]
  %v282 = vld [vmem:[%s3 + $0x768] sm:$0xff]
  %v283 = vld [vmem:[%s3 + $0x770] sm:$0xff]
  %v284 = vld [vmem:[%s3 + $0x778] sm:$0xff]
  %v285 = vld [vmem:[%s3 + $0x780] sm:$0xff]
  %v286 = vld [vmem:[%s3 + $0x788] sm:$0xff]
  %v287 = vld [vmem:[%s3 + $0x790] sm:$0xff]
  %v288 = vld [vmem:[%s3 + $0x798] sm:$0xff]
  %v289 = vld [vmem:[%s3 + $0x7a0] sm:$0xff]
  %v290 = vld [vmem:[%s3 + $0x7a8] sm:$0xff]
  %v291 = vld [vmem:[%s3 + $0x7b0] sm:$0xff]
  %v292 = vld [vmem:[%s3 + $0x7b8] sm:$0xff]
  %v293 = vld [vmem:[%s3 + $0x7c0] sm:$0xff]
  %v294 = vld [vmem:[%s3 + $0x7c8] sm:$0xff]
  %v295 = vld [vmem:[%s3 + $0x7d0] sm:$0xff]
  %v296 = vld [vmem:[%s3 + $0x7d8] sm:$0xff]
  %v297 = vld [vmem:[%s3 + $0x7e0] sm:$0xff]
  %v298 = vld [vmem:[%s3 + $0x7e8] sm:$0xff]
  %v299 = vld [vmem:[%s3 + $0x7f0] sm:$0xff]
  %v300 = vld [vmem:[%s3 + $0x7f8] sm:$0xff]
  %v301 = vld [vmem:[%s3 + $0x800] sm:$0xff]
  %v302 = vld [vmem:[%s3 + $0x808] sm:$0xff]
  %v303 = vld [vmem:[%s3 + $0x810] sm:$0xff]
  %v304 = vld [vmem:[%s3 + $0x818] sm:$0xff]
  %v305 = vld [vmem:[%s3 + $0x820] sm:$0xff]
  %v306 = vld [vmem:[%s3 + $0x828] sm:$0xff]
  %v307 = vld [vmem:[%s3 + $0x830] sm:$0xff]
  %v308 = vld [vmem:[%s3 + $0x838] sm:$0xff]
  %v309 = vld [vmem:[%s3 + $0x840] sm:$0xff]
  %v310 = vld [vmem:[%s3 + $0x848] sm:$0xff]
  %v311 = vld [vmem:[%s3 + $0x850] sm:$0xff]
  %v312 = vld [vmem:[%s3 + $0x858] sm:$0xff]
  %v313 = vld [vmem:[%s3 + $0x860] sm:$0xff]
  %v314 = vld [vmem:[%s3 + $0x868] sm:$0xff]
  %v315 = vld [vmem:[%s3 + $0x870] sm:$0xff]
  %v316 = vld [vmem:[%s3 + $0x878] sm:$0xff]
  %v317 = vld [vmem:[%s3 + $0x880] sm:$0xff]
  %v318 = vld [vmem:[%s3 + $0x888] sm:$0xff]
  %v319 = vld [vmem:[%s3 + $0x890] sm:$0xff]
  %v320 = vld [vmem:[%s3 + $0x898] sm:$0xff]
  %v321 = vld [vmem:[%s3 + $0x8a0] sm:$0xff]
  %v322 = vld [vmem:[%s3 + $0x8a8] sm:$0xff]
  %v323 = vld [vmem:[%s3 + $0x8b0] sm:$0xff]
  %v324 = vld [vmem:[%s3 + $0x8b8] sm:$0xff]
  %v325 = vld [vmem:[%s3 + $0x8c0] sm:$0xff]
  %v326 = vld [vmem:[%s3 + $0x8c8] sm:$0xff]
  %v327 = vld [vmem:[%s3 + $0x8d0] sm:$0xff]
  %v328 = vld [vmem:[%s3 + $0x8d8] sm:$0xff]
  %v329 = vld [vmem:[%s3 + $0x8e0] sm:$0xff]
  %v330 = vld [vmem:[%s3 + $0x8e8] sm:$0xff]
  %v331 = vld [vmem:[%s3 + $0x8f0] sm:$0xff]
  %v332 = vld [vmem:[%s3 + $0x8f8] sm:$0xff]
  %v333 = vld [vmem:[%s3 + $0x900] sm:$0xff]
  %v334 = vld [vmem:[%s3 + $0x908] sm:$0xff]
  %v335 = vld [vmem:[%s3 + $0x910] sm:$0xff]
  %v336 = vld [vmem:[%s3 + $0x918] sm:$0xff]
  %v337 = vld [vmem:[%s3 + $0x920] sm:$0xff]
  %v338 = vld [vmem:[%s3 + $0x928] sm:$0xff]
  %v339 = vld [vmem:[%s3 + $0x930] sm:$0xff]
  %v340 = vld [vmem:[%s3 + $0x938] sm:$0xff]
  %v341 = vld [vmem:[%s3 + $0x940] sm:$0xff]
  %v342 = vld [vmem:[%s3 + $0x948] sm:$0xff]
  %v343 = vld [vmem:[%s3 + $0x950] sm:$0xff]
  %v344 = vld [vmem:[%s3 + $0x958] sm:$0xff]
  %v345 = vld [vmem:[%s3 + $0x960] sm:$0xff]
  %v346 = vld [vmem:[%s3 + $0x968] sm:$0xff]
  %v347 = vld [vmem:[%s3 + $0x970] sm:$0xff]
  %v348 = vld [vmem:[%s3 + $0x978] sm:$0xff]
  %v349 = vld [vmem:[%s3 + $0x980] sm:$0xff]
  %v350 = vld [vmem:[%s3 + $0x988] sm:$0xff]
  %v351 = vld [vmem:[%s3 + $0x990] sm:$0xff]
  %v352 = vld [vmem:[%s3 + $0x998] sm:$0xff]
  %v353 = vld [vmem:[%s3 + $0x9a0] sm:$0xff]
  %v354 = vld [vmem:[%s3 + $0x9a8] sm:$0xff]
  %v355 = vld [vmem:[%s3 + $0x9b0] sm:$0xff]
  %v356 = vld [vmem:[%s3 + $0x9b8] sm:$0xff]
  %v357 = vld [vmem:[%s3 + $0x9c0] sm:$0xff]
  %v358 = vld [vmem:[%s3 + $0x9c8] sm:$0xff]
  %v359 = vld [vmem:[%s3 + $0x9d0] sm:$0xff]
  %v360 = vld [vmem:[%s3 + $0x9d8] sm:$0xff]
  %v361 = vld [vmem:[%s3 + $0x9e0] sm:$0xff]
  %v362 = vld [vmem:[%s3 + $0x9e8] sm:$0xff]
  %v363 = vld [vmem:[%s3 + $0x9f0] sm:$0xff]
  %v364 = vld [vmem:[%s3 + $0x9f8] sm:$0xff]
  %v365 = vld [vmem:[%s3 + $0xa00] sm:$0xff]
  %v366 = vld [vmem:[%s3 + $0xa08] sm:$0xff]
  %v367 = vld [vmem:[%s3 + $0xa10] sm:$0xff]
  %v368 = vld [vmem:[%s3 + $0xa18] sm:$0xff]
  %v369 = vld [vmem:[%s3 + $0xa20] sm:$0xff]
  %v370 = vld [vmem:[%s3 + $0xa28] sm:$0xff]
  %v371 = vld [vmem:[%s3 + $0xa30] sm:$0xff]
  %v372 = vld [vmem:[%s3 + $0xa38] sm:$0xff]
  %v373 = vld [vmem:[%s3 + $0xa40] sm:$0xff]
  %v374 = vld [vmem:[%s3 + $0xa48] sm:$0xff]
  %v375 = vld [vmem:[%s3 + $0xa50] sm:$0xff]
  %v376 = vld [vmem:[%s3 + $0xa58] sm:$0xff]
  %v377 = vld [vmem:[%s3 + $0xa60] sm:$0xff]
  %v378 = vld [vmem:[%s3 + $0xa68] sm:$0xff]
  %v379 = vld [vmem:[%s3 + $0xa70] sm:$0xff]
  %v380 = vld [vmem:[%s3 + $0xa78] sm:$0xff]
  %v381 = vld [vmem:[%s3 + $0xa80] sm:$0xff]
  %v382 = vld [vmem:[%s3 + $0xa88] sm:$0xff]
  %v383 = vld [vmem:[%s3 + $0xa90] sm:$0xff]
  %v384 = vld [vmem:[%s3 + $0xa98] sm:$0xff]
  %v385 = vld [vmem:[%s3 + $0xaa0] sm:$0xff]
  %v386 = vld [vmem:[%s3 + $0xaa8] sm:$0xff]
  %v387 = vld [vmem:[%s3 + $0xab0] sm:$0xff]
  %v388 = vld [vmem:[%s3 + $0xab8] sm:$0xff]
  %v389 = vld [vmem:[%s3 + $0xac0] sm:$0xff]
  %v390 = vld [vmem:[%s3 + $0xac8] sm:$0xff]
  %v391 = vld [vmem:[%s3 + $0xad0] sm:$0xff]
  %v392 = vld [vmem:[%s3 + $0xad8] sm:$0xff]
  %v393 = vld [vmem:[%s3 + $0xae0] sm:$0xff]
  %v394 = vld [vmem:[%s3 + $0xae8] sm:$0xff]
  %v395 = vld [vmem:[%s3 + $0xaf0] sm:$0xff]
  %v396 = vld [vmem:[%s3 + $0xaf8] sm:$0xff]
  %v397 = vld [vmem:[%s3 + $0xb00] sm:$0xff]
  %v398 = vld [vmem:[%s3 + $0xb08] sm:$0xff]
  %v399 = vld [vmem:[%s3 + $0xb10] sm:$0xff]
  %v400 = vld [vmem:[%s3 + $0xb18] sm:$0xff]
  %v401 = vld [vmem:[%s3 + $0xb20] sm:$0xff]
  %v402 = vld [vmem:[%s3 + $0xb28] sm:$0xff]
  %v403 = vld [vmem:[%s3 + $0xb30] sm:$0xff]
  %v404 = vld [vmem:[%s3 + $0xb38] sm:$0xff]
  %v405 = vld [vmem:[%s3 + $0xb40] sm:$0xff]
  %v406 = vld [vmem:[%s3 + $0xb48] sm:$0xff]
  %v407 = vld [vmem:[%s3 + $0xb50] sm:$0xff]
  %v408 = vld [vmem:[%s3 + $0xb58] sm:$0xff]
  %v409 = vld [vmem:[%s3 + $0xb60] sm:$0xff]
  %v410 = vld [vmem:[%s3 + $0xb68] sm:$0xff]
  %v411 = vld [vmem:[%s3 + $0xb70] sm:$0xff]
  %v412 = vld [vmem:[%s3 + $0xb78] sm:$0xff]
  %v413 = vld [vmem:[%s3 + $0xb80] sm:$0xff]
  %v414 = vld [vmem:[%s3 + $0xb88] sm:$0xff]
  %v415 = vld [vmem:[%s3 + $0xb90] sm:$0xff]
  %v416 = vld [vmem:[%s3 + $0xb98] sm:$0xff]
  %v417 = vld [vmem:[%s3 + $0xba0] sm:$0xff]
  %v418 = vld [vmem:[%s3 + $0xba8] sm:$0xff]
  %v419 = vld [vmem:[%s3 + $0xbb0] sm:$0xff]
  %v420 = vld [vmem:[%s3 + $0xbb8] sm:$0xff]
  %v421 = vld [vmem:[%s3 + $0xbc0] sm:$0xff]
  %v422 = vld [vmem:[%s3 + $0xbc8] sm:$0xff]
  %v423 = vld [vmem:[%s3 + $0xbd0] sm:$0xff]
  %v424 = vld [vmem:[%s3 + $0xbd8] sm:$0xff]
  %v425 = vld [vmem:[%s3 + $0xbe0] sm:$0xff]
  %v426 = vld [vmem:[%s3 + $0xbe8] sm:$0xff]
  %v427 = vld [vmem:[%s3 + $0xbf0] sm:$0xff]
  %v428 = vld [vmem:[%s3 + $0xbf8] sm:$0xff]
  %v429 = vld [vmem:[%s3 + $0xc00] sm:$0xff]
  %v430 = vld [vmem:[%s3 + $0xc08] sm:$0xff]
  %v431 = vld [vmem:[%s3 + $0xc10] sm:$0xff]
  %v432 = vld [vmem:[%s3 + $0xc18] sm:$0xff]
  %v433 = vld [vmem:[%s3 + $0xc20] sm:$0xff]
  %v434 = vld [vmem:[%s3 + $0xc28] sm:$0xff]
  %v435 = vld [vmem:[%s3 + $0xc30] sm:$0xff]
  %v436 = vld [vmem:[%s3 + $0xc38] sm:$0xff]
  %v437 = vld [vmem:[%s4] sm:$0xf]
  %v439 = vlaneseq
  %v440 = vshrl.u32 %v439, 7
  %v441 = vsub.s32 0, %v440
  %v442 = vrot.slane %v437, %v441
  %v443 = vlaneseq
  %v444 = vshrl.u32 %v443, 7
  %v445 = vsub.s32 1, %v444
  %v446 = vrot.slane %v437, %v445
  %v447 = vlaneseq
  %v448 = vshrl.u32 %v447, 7
  %v449 = vsub.s32 2, %v448
  %v450 = vrot.slane %v437, %v449
  %v451 = vlaneseq
  %v452 = vshrl.u32 %v451, 7
  %v453 = vsub.s32 3, %v452
  %v454 = vrot.slane %v437, %v453
  %v461 = vcombine.high %v43, %v43
  %v463 = vunpack.c.l.s4 1966171168
  %v464 = vunpack.c.0.s8 %v463
  %v465 = vlaneseq
  %v466 = vshrl.u32 %v465, 7
  %v467 = vsub.s32 %v464, %v466
  %v468 = vrot.slane %v43, %v467
  %v470 = vunpack.c.l.s4 1966171168
  %v471 = vunpack.c.0.s8 %v470
  %v472 = vlaneseq
  %v473 = vshrl.u32 %v472, 7
  %v474 = vsub.s32 %v471, %v473
  %v475 = vrot.slane %v461, %v474
  %v476 = vcombine.high %v468, %v468
  %v477 = vcombine.high %v475, %v475
  %v479 = vunpack.c.l.s4 1966171168
  %v480 = vunpack.c.0.s8 %v479
  %v481 = vlaneseq
  %v482 = vshrl.u32 %v481, 7
  %v483 = vsub.s32 %v480, %v482
  %v484 = vrot.slane %v468, %v483
  %v486 = vunpack.c.l.s4 1966171168
  %v487 = vunpack.c.0.s8 %v486
  %v488 = vlaneseq
  %v489 = vshrl.u32 %v488, 7
  %v490 = vsub.s32 %v487, %v489
  %v491 = vrot.slane %v475, %v490
  %v493 = vunpack.c.l.s4 1966171168
  %v494 = vunpack.c.0.s8 %v493
  %v495 = vlaneseq
  %v496 = vshrl.u32 %v495, 7
  %v497 = vsub.s32 %v494, %v496
  %v498 = vrot.slane %v476, %v497
  %v500 = vunpack.c.l.s4 1966171168
  %v501 = vunpack.c.0.s8 %v500
  %v502 = vlaneseq
  %v503 = vshrl.u32 %v502, 7
  %v504 = vsub.s32 %v501, %v503
  %v505 = vrot.slane %v477, %v504
  %v506 = vcombine.high %v484, %v484
  %v507 = vcombine.high %v491, %v491
  %v508 = vcombine.high %v498, %v498
  %v509 = vcombine.high %v505, %v505
  %v510 = vcombine.high %v44, %v44
  %v512 = vunpack.c.l.s4 1966171168
  %v513 = vunpack.c.0.s8 %v512
  %v514 = vlaneseq
  %v515 = vshrl.u32 %v514, 7
  %v516 = vsub.s32 %v513, %v515
  %v517 = vrot.slane %v44, %v516
  %v519 = vunpack.c.l.s4 1966171168
  %v520 = vunpack.c.0.s8 %v519
  %v521 = vlaneseq
  %v522 = vshrl.u32 %v521, 7
  %v523 = vsub.s32 %v520, %v522
  %v524 = vrot.slane %v510, %v523
  %v525 = vcombine.high %v517, %v517
  %v527 = vunpack.c.l.s4 1966171168
  %v528 = vunpack.c.0.s8 %v527
  %v529 = vlaneseq
  %v530 = vshrl.u32 %v529, 7
  %v531 = vsub.s32 %v528, %v530
  %v532 = vrot.slane %v517, %v531
  %v534 = vunpack.c.l.s4 1966171168
  %v535 = vunpack.c.0.s8 %v534
  %v536 = vlaneseq
  %v537 = vshrl.u32 %v536, 7
  %v538 = vsub.s32 %v535, %v537
  %v539 = vrot.slane %v524, %v538
  %v541 = vunpack.c.l.s4 1966171168
  %v542 = vunpack.c.0.s8 %v541
  %v543 = vlaneseq
  %v544 = vshrl.u32 %v543, 7
  %v545 = vsub.s32 %v542, %v544
  %v546 = vrot.slane %v525, %v545
  %v547 = vcombine.high %v532, %v532
  %v548 = vcombine.high %v546, %v546
  %v953 = vunpack.c.l.b16 %v45
  %v954 = vunpack.c.h.b16 %v45
  %v955 = vunpack.c.l.b16 %v46
  %v956 = vunpack.c.h.b16 %v46
  %v957 = vunpack.c.l.b16 %v47
  %v958 = vunpack.c.h.b16 %v47
  %v959 = vunpack.c.l.b16 %v48
  %v960 = vunpack.c.h.b16 %v48
  %v961 = vunpack.c.l.b16 %v49
  %v962 = vunpack.c.h.b16 %v49
  %v963 = vunpack.c.l.b16 %v50
  %v964 = vunpack.c.h.b16 %v50
  %v965 = vunpack.c.l.b16 %v51
  %v966 = vunpack.c.h.b16 %v51
  %v967 = vunpack.c.l.b16 %v52
  %v968 = vunpack.c.h.b16 %v52
  %v969 = vunpack.c.l.b16 %v53
  %v970 = vunpack.c.h.b16 %v53
  %v971 = vunpack.c.l.b16 %v54
  %v972 = vunpack.c.h.b16 %v54
  %v973 = vunpack.c.l.b16 %v55
  %v974 = vunpack.c.h.b16 %v55
  %v975 = vunpack.c.l.b16 %v56
  %v976 = vunpack.c.h.b16 %v56
  %v977 = vunpack.c.l.b16 %v57
  %v978 = vunpack.c.h.b16 %v57
  %v979 = vunpack.c.l.b16 %v58
  %v980 = vunpack.c.h.b16 %v58
  %v981 = vunpack.c.l.b16 %v59
  %v982 = vunpack.c.h.b16 %v59
  %v983 = vunpack.c.l.b16 %v60
  %v984 = vunpack.c.h.b16 %v60
  %v985 = vunpack.c.l.b16 %v61
  %v986 = vunpack.c.h.b16 %v61
  %v987 = vunpack.c.l.b16 %v62
  %v988 = vunpack.c.h.b16 %v62
  %v989 = vunpack.c.l.b16 %v63
  %v990 = vunpack.c.h.b16 %v63
  %v991 = vunpack.c.l.b16 %v64
  %v992 = vunpack.c.h.b16 %v64
  %v993 = vunpack.c.l.b16 %v65
  %v994 = vunpack.c.h.b16 %v65
  %v995 = vunpack.c.l.b16 %v66
  %v996 = vunpack.c.h.b16 %v66
  %v997 = vunpack.c.l.b16 %v67
  %v998 = vunpack.c.h.b16 %v67
  %v999 = vunpack.c.l.b16 %v68
  %v1000 = vunpack.c.h.b16 %v68
  %v1001 = vunpack.c.l.b16 %v69
  %v1002 = vunpack.c.h.b16 %v69
  %v1003 = vunpack.c.l.b16 %v70
  %v1004 = vunpack.c.h.b16 %v70
  %v1005 = vunpack.c.l.b16 %v71
  %v1006 = vunpack.c.h.b16 %v71
  %v1007 = vunpack.c.l.b16 %v72
  %v1008 = vunpack.c.h.b16 %v72
  %v1009 = vunpack.c.l.b16 %v73
  %v1010 = vunpack.c.h.b16 %v73
  %v1011 = vunpack.c.l.b16 %v74
  %v1012 = vunpack.c.h.b16 %v74
  %v1013 = vunpack.c.l.b16 %v75
  %v1014 = vunpack.c.h.b16 %v75
  %v1015 = vunpack.c.l.b16 %v76
  %v1016 = vunpack.c.h.b16 %v76
  %v1017 = vunpack.c.l.b16 %v77
  %v1018 = vunpack.c.h.b16 %v77
  %v1019 = vunpack.c.l.b16 %v78
  %v1020 = vunpack.c.h.b16 %v78
  %v1021 = vunpack.c.l.b16 %v79
  %v1022 = vunpack.c.h.b16 %v79
  %v1023 = vunpack.c.l.b16 %v80
  %v1024 = vunpack.c.h.b16 %v80
  %v1025 = vunpack.c.l.b16 %v81
  %v1026 = vunpack.c.h.b16 %v81
  %v1027 = vunpack.c.l.b16 %v82
  %v1028 = vunpack.c.h.b16 %v82
  %v1029 = vunpack.c.l.b16 %v83
  %v1030 = vunpack.c.h.b16 %v83
  %v1031 = vunpack.c.l.b16 %v84
  %v1032 = vunpack.c.h.b16 %v84
  %v1033 = vunpack.c.l.b16 %v85
  %v1034 = vunpack.c.h.b16 %v85
  %v1035 = vunpack.c.l.b16 %v86
  %v1036 = vunpack.c.h.b16 %v86
  %v1037 = vunpack.c.l.b16 %v87
  %v1038 = vunpack.c.h.b16 %v87
  %v1039 = vunpack.c.l.b16 %v88
  %v1040 = vunpack.c.h.b16 %v88
  %v1041 = vunpack.c.l.b16 %v89
  %v1042 = vunpack.c.h.b16 %v89
  %v1043 = vunpack.c.l.b16 %v90
  %v1044 = vunpack.c.h.b16 %v90
  %v1045 = vunpack.c.l.b16 %v91
  %v1046 = vunpack.c.h.b16 %v91
  %v1047 = vunpack.c.l.b16 %v92
  %v1048 = vunpack.c.h.b16 %v92
  %v1049 = vunpack.c.l.b16 %v93
  %v1050 = vunpack.c.h.b16 %v93
  %v1051 = vunpack.c.l.b16 %v94
  %v1052 = vunpack.c.h.b16 %v94
  %v1053 = vunpack.c.l.b16 %v95
  %v1054 = vunpack.c.h.b16 %v95
  %v1055 = vunpack.c.l.b16 %v96
  %v1056 = vunpack.c.h.b16 %v96
  %v1057 = vunpack.c.l.b16 %v97
  %v1058 = vunpack.c.h.b16 %v97
  %v1059 = vunpack.c.l.b16 %v98
  %v1060 = vunpack.c.h.b16 %v98
  %v1061 = vunpack.c.l.b16 %v99
  %v1062 = vunpack.c.h.b16 %v99
  %v1063 = vunpack.c.l.b16 %v100
  %v1064 = vunpack.c.h.b16 %v100
  %v1065 = vunpack.c.l.b16 %v101
  %v1066 = vunpack.c.h.b16 %v101
  %v1067 = vunpack.c.l.b16 %v102
  %v1068 = vunpack.c.h.b16 %v102
  %v1069 = vunpack.c.l.b16 %v103
  %v1070 = vunpack.c.h.b16 %v103
  %v1071 = vunpack.c.l.b16 %v104
  %v1072 = vunpack.c.h.b16 %v104
  %v1073 = vunpack.c.l.b16 %v105
  %v1074 = vunpack.c.h.b16 %v105
  %v1075 = vunpack.c.l.b16 %v106
  %v1076 = vunpack.c.h.b16 %v106
  %v1077 = vunpack.c.l.b16 %v107
  %v1078 = vunpack.c.h.b16 %v107
  %v1079 = vunpack.c.l.b16 %v108
  %v1080 = vunpack.c.h.b16 %v108
  %v1081 = vunpack.c.l.b16 %v109
  %v1082 = vunpack.c.h.b16 %v109
  %v1083 = vunpack.c.l.b16 %v110
  %v1084 = vunpack.c.h.b16 %v110
  %v1085 = vunpack.c.l.b16 %v111
  %v1086 = vunpack.c.h.b16 %v111
  %v1087 = vunpack.c.l.b16 %v112
  %v1088 = vunpack.c.h.b16 %v112
  %v1089 = vunpack.c.l.b16 %v113
  %v1090 = vunpack.c.h.b16 %v113
  %v1091 = vunpack.c.l.b16 %v114
  %v1092 = vunpack.c.h.b16 %v114
  %v1093 = vunpack.c.l.b16 %v115
  %v1094 = vunpack.c.h.b16 %v115
  %v1095 = vunpack.c.l.b16 %v116
  %v1096 = vunpack.c.h.b16 %v116
  %v1097 = vunpack.c.l.b16 %v117
  %v1098 = vunpack.c.h.b16 %v117
  %v1099 = vunpack.c.l.b16 %v118
  %v1100 = vunpack.c.h.b16 %v118
  %v1101 = vunpack.c.l.b16 %v119
  %v1102 = vunpack.c.h.b16 %v119
  %v1103 = vunpack.c.l.b16 %v120
  %v1104 = vunpack.c.h.b16 %v120
  %v1105 = vunpack.c.l.b16 %v121
  %v1106 = vunpack.c.h.b16 %v121
  %v1107 = vunpack.c.l.b16 %v122
  %v1108 = vunpack.c.h.b16 %v122
  %v1109 = vunpack.c.l.b16 %v123
  %v1110 = vunpack.c.h.b16 %v123
  %v1111 = vunpack.c.l.b16 %v124
  %v1112 = vunpack.c.h.b16 %v124
  %v1113 = vunpack.c.l.b16 %v125
  %v1114 = vunpack.c.h.b16 %v125
  %v1115 = vunpack.c.l.b16 %v126
  %v1116 = vunpack.c.h.b16 %v126
  %v1117 = vunpack.c.l.b16 %v127
  %v1118 = vunpack.c.h.b16 %v127
  %v1119 = vunpack.c.l.b16 %v128
  %v1120 = vunpack.c.h.b16 %v128
  %v1121 = vunpack.c.l.b16 %v129
  %v1122 = vunpack.c.h.b16 %v129
  %v1123 = vunpack.c.l.b16 %v130
  %v1124 = vunpack.c.h.b16 %v130
  %v1125 = vunpack.c.l.b16 %v131
  %v1126 = vunpack.c.h.b16 %v131
  %v1127 = vunpack.c.l.b16 %v132
  %v1128 = vunpack.c.h.b16 %v132
  %v1129 = vunpack.c.l.b16 %v133
  %v1130 = vunpack.c.h.b16 %v133
  %v1131 = vunpack.c.l.b16 %v134
  %v1132 = vunpack.c.h.b16 %v134
  %v1133 = vunpack.c.l.b16 %v135
  %v1134 = vunpack.c.h.b16 %v135
  %v1135 = vunpack.c.l.b16 %v136
  %v1136 = vunpack.c.h.b16 %v136
  %v1137 = vunpack.c.l.b16 %v137
  %v1138 = vunpack.c.h.b16 %v137
  %v1139 = vunpack.c.l.b16 %v138
  %v1140 = vunpack.c.h.b16 %v138
  %v1141 = vunpack.c.l.b16 %v139
  %v1142 = vunpack.c.h.b16 %v139
  %v1143 = vunpack.c.l.b16 %v140
  %v1144 = vunpack.c.h.b16 %v140
  %v1145 = vunpack.c.l.b16 %v141
  %v1146 = vunpack.c.h.b16 %v141
  %v1147 = vunpack.c.l.b16 %v142
  %v1148 = vunpack.c.h.b16 %v142
  %v1149 = vunpack.c.l.b16 %v143
  %v1150 = vunpack.c.h.b16 %v143
  %v1151 = vunpack.c.l.b16 %v144
  %v1152 = vunpack.c.h.b16 %v144
  %v1153 = vunpack.c.l.b16 %v145
  %v1154 = vunpack.c.h.b16 %v145
  %v1155 = vunpack.c.l.b16 %v146
  %v1156 = vunpack.c.h.b16 %v146
  %v1157 = vunpack.c.l.b16 %v147
  %v1158 = vunpack.c.h.b16 %v147
  %v1159 = vunpack.c.l.b16 %v148
  %v1160 = vunpack.c.h.b16 %v148
  %v1161 = vunpack.c.l.b16 %v149
  %v1162 = vunpack.c.h.b16 %v149
  %v1163 = vunpack.c.l.b16 %v150
  %v1164 = vunpack.c.h.b16 %v150
  %v1165 = vunpack.c.l.b16 %v151
  %v1166 = vunpack.c.h.b16 %v151
  %v1167 = vunpack.c.l.b16 %v152
  %v1168 = vunpack.c.h.b16 %v152
  %v1169 = vunpack.c.l.b16 %v153
  %v1170 = vunpack.c.h.b16 %v153
  %v1171 = vunpack.c.l.b16 %v154
  %v1172 = vunpack.c.h.b16 %v154
  %v1173 = vunpack.c.l.b16 %v155
  %v1174 = vunpack.c.h.b16 %v155
  %v1175 = vunpack.c.l.b16 %v156
  %v1176 = vunpack.c.h.b16 %v156
  %v1177 = vunpack.c.l.b16 %v157
  %v1178 = vunpack.c.h.b16 %v157
  %v1179 = vunpack.c.l.b16 %v158
  %v1180 = vunpack.c.h.b16 %v158
  %v1181 = vunpack.c.l.b16 %v159
  %v1182 = vunpack.c.h.b16 %v159
  %v1183 = vunpack.c.l.b16 %v160
  %v1184 = vunpack.c.h.b16 %v160
  %v1185 = vunpack.c.l.b16 %v161
  %v1186 = vunpack.c.h.b16 %v161
  %v1187 = vunpack.c.l.b16 %v162
  %v1188 = vunpack.c.h.b16 %v162
  %v1189 = vunpack.c.l.b16 %v163
  %v1190 = vunpack.c.h.b16 %v163
  %v1191 = vunpack.c.l.b16 %v164
  %v1192 = vunpack.c.h.b16 %v164
  %v1193 = vunpack.c.l.b16 %v165
  %v1194 = vunpack.c.h.b16 %v165
  %v1195 = vunpack.c.l.b16 %v166
  %v1196 = vunpack.c.h.b16 %v166
  %v1197 = vunpack.c.l.b16 %v167
  %v1198 = vunpack.c.h.b16 %v167
  %v1199 = vunpack.c.l.b16 %v168
  %v1200 = vunpack.c.h.b16 %v168
  %v1201 = vunpack.c.l.b16 %v169
  %v1202 = vunpack.c.h.b16 %v169
  %v1203 = vunpack.c.l.b16 %v170
  %v1204 = vunpack.c.h.b16 %v170
  %v1205 = vunpack.c.l.b16 %v171
  %v1206 = vunpack.c.h.b16 %v171
  %v1207 = vunpack.c.l.b16 %v172
  %v1208 = vunpack.c.h.b16 %v172
  %v1209 = vunpack.c.l.b16 %v173
  %v1210 = vunpack.c.h.b16 %v173
  %v1211 = vunpack.c.l.b16 %v174
  %v1212 = vunpack.c.h.b16 %v174
  %v1213 = vunpack.c.l.b16 %v175
  %v1214 = vunpack.c.h.b16 %v175
  %v1215 = vunpack.c.l.b16 %v176
  %v1216 = vunpack.c.h.b16 %v176
  %v1217 = vunpack.c.l.b16 %v177
  %v1218 = vunpack.c.h.b16 %v177
  %v1219 = vunpack.c.l.b16 %v178
  %v1220 = vunpack.c.h.b16 %v178
  %v1221 = vunpack.c.l.b16 %v179
  %v1222 = vunpack.c.h.b16 %v179
  %v1223 = vunpack.c.l.b16 %v180
  %v1224 = vunpack.c.h.b16 %v180
  %v1225 = vunpack.c.l.b16 %v181
  %v1226 = vunpack.c.h.b16 %v181
  %v1227 = vunpack.c.l.b16 %v182
  %v1228 = vunpack.c.h.b16 %v182
  %v1229 = vunpack.c.l.b16 %v183
  %v1230 = vunpack.c.h.b16 %v183
  %v1231 = vunpack.c.l.b16 %v184
  %v1232 = vunpack.c.h.b16 %v184
  %v1233 = vunpack.c.l.b16 %v185
  %v1234 = vunpack.c.h.b16 %v185
  %v1235 = vunpack.c.l.b16 %v186
  %v1236 = vunpack.c.h.b16 %v186
  %v1237 = vunpack.c.l.b16 %v187
  %v1238 = vunpack.c.h.b16 %v187
  %v1239 = vunpack.c.l.b16 %v188
  %v1240 = vunpack.c.h.b16 %v188
  %v1241 = vunpack.c.l.b16 %v189
  %v1242 = vunpack.c.h.b16 %v189
  %v1243 = vunpack.c.l.b16 %v190
  %v1244 = vunpack.c.h.b16 %v190
  %v1245 = vunpack.c.l.b16 %v191
  %v1246 = vunpack.c.h.b16 %v191
  %v1247 = vunpack.c.l.b16 %v192
  %v1248 = vunpack.c.h.b16 %v192
  %v1249 = vunpack.c.l.b16 %v193
  %v1250 = vunpack.c.h.b16 %v193
  %v1251 = vunpack.c.l.b16 %v194
  %v1252 = vunpack.c.h.b16 %v194
  %v1253 = vunpack.c.l.b16 %v195
  %v1254 = vunpack.c.h.b16 %v195
  %v1255 = vunpack.c.l.b16 %v196
  %v1256 = vunpack.c.h.b16 %v196
  %v1257 = vunpack.c.l.b16 %v197
  %v1258 = vunpack.c.h.b16 %v197
  %v1259 = vunpack.c.l.b16 %v198
  %v1260 = vunpack.c.h.b16 %v198
  %v1261 = vunpack.c.l.b16 %v199
  %v1262 = vunpack.c.h.b16 %v199
  %v1263 = vunpack.c.l.b16 %v200
  %v1264 = vunpack.c.h.b16 %v200
  %v1265 = vunpack.c.l.b16 %v201
  %v1266 = vunpack.c.h.b16 %v201
  %v1267 = vunpack.c.l.b16 %v202
  %v1268 = vunpack.c.h.b16 %v202
  %v1269 = vunpack.c.l.b16 %v203
  %v1270 = vunpack.c.h.b16 %v203
  %v1271 = vunpack.c.l.b16 %v204
  %v1272 = vunpack.c.h.b16 %v204
  %v1273 = vunpack.c.l.b16 %v205
  %v1274 = vunpack.c.h.b16 %v205
  %v1275 = vunpack.c.l.b16 %v206
  %v1276 = vunpack.c.h.b16 %v206
  %v1277 = vunpack.c.l.b16 %v207
  %v1278 = vunpack.c.h.b16 %v207
  %v1279 = vunpack.c.l.b16 %v208
  %v1280 = vunpack.c.h.b16 %v208
  %v1281 = vunpack.c.l.b16 %v209
  %v1282 = vunpack.c.h.b16 %v209
  %v1283 = vunpack.c.l.b16 %v210
  %v1284 = vunpack.c.h.b16 %v210
  %v1285 = vunpack.c.l.b16 %v211
  %v1286 = vunpack.c.h.b16 %v211
  %v1287 = vunpack.c.l.b16 %v212
  %v1288 = vunpack.c.h.b16 %v212
  %v1289 = vunpack.c.l.b16 %v213
  %v1290 = vunpack.c.h.b16 %v213
  %v1291 = vunpack.c.l.b16 %v214
  %v1292 = vunpack.c.h.b16 %v214
  %v1293 = vunpack.c.l.b16 %v215
  %v1294 = vunpack.c.h.b16 %v215
  %v1295 = vunpack.c.l.b16 %v216
  %v1296 = vunpack.c.h.b16 %v216
  %v1297 = vunpack.c.l.b16 %v217
  %v1298 = vunpack.c.h.b16 %v217
  %v1299 = vunpack.c.l.b16 %v218
  %v1300 = vunpack.c.h.b16 %v218
  %v1301 = vunpack.c.l.b16 %v219
  %v1302 = vunpack.c.h.b16 %v219
  %v1303 = vunpack.c.l.b16 %v220
  %v1304 = vunpack.c.h.b16 %v220
  %v1305 = vunpack.c.l.b16 %v221
  %v1306 = vunpack.c.h.b16 %v221
  %v1307 = vunpack.c.l.b16 %v222
  %v1308 = vunpack.c.h.b16 %v222
  %v1309 = vunpack.c.l.b16 %v223
  %v1310 = vunpack.c.h.b16 %v223
  %v1311 = vunpack.c.l.b16 %v224
  %v1312 = vunpack.c.h.b16 %v224
  %v1313 = vunpack.c.l.b16 %v225
  %v1314 = vunpack.c.h.b16 %v225
  %v1315 = vunpack.c.l.b16 %v226
  %v1316 = vunpack.c.h.b16 %v226
  %v1317 = vunpack.c.l.b16 %v227
  %v1318 = vunpack.c.h.b16 %v227
  %v1319 = vunpack.c.l.b16 %v228
  %v1320 = vunpack.c.h.b16 %v228
  %v1321 = vunpack.c.l.b16 %v229
  %v1322 = vunpack.c.h.b16 %v229
  %v1323 = vunpack.c.l.b16 %v230
  %v1324 = vunpack.c.h.b16 %v230
  %v1325 = vunpack.c.l.b16 %v231
  %v1326 = vunpack.c.h.b16 %v231
  %v1327 = vunpack.c.l.b16 %v232
  %v1328 = vunpack.c.h.b16 %v232
  %v1329 = vunpack.c.l.b16 %v233
  %v1330 = vunpack.c.h.b16 %v233
  %v1331 = vunpack.c.l.b16 %v234
  %v1332 = vunpack.c.h.b16 %v234
  %v1333 = vunpack.c.l.b16 %v235
  %v1334 = vunpack.c.h.b16 %v235
  %v1335 = vunpack.c.l.b16 %v236
  %v1336 = vunpack.c.h.b16 %v236
  %v1337 = vunpack.c.l.b16 %v237
  %v1338 = vunpack.c.h.b16 %v237
  %v1339 = vunpack.c.l.b16 %v238
  %v1340 = vunpack.c.h.b16 %v238
  %v1341 = vunpack.c.l.b16 %v239
  %v1342 = vunpack.c.h.b16 %v239
  %v1343 = vunpack.c.l.b16 %v240
  %v1344 = vunpack.c.h.b16 %v240
  %v1345 = vunpack.c.l.b16 %v241
  %v1346 = vunpack.c.h.b16 %v241
  %v1347 = vunpack.c.l.b16 %v242
  %v1348 = vunpack.c.h.b16 %v242
  %v1349 = vunpack.c.l.b16 %v243
  %v1350 = vunpack.c.h.b16 %v243
  %v1351 = vunpack.c.l.b16 %v244
  %v1352 = vunpack.c.h.b16 %v244
  %v1353 = vunpack.c.l.b16 %v245
  %v1354 = vunpack.c.h.b16 %v245
  %v1355 = vunpack.c.l.b16 %v246
  %v1356 = vunpack.c.h.b16 %v246
  %v1357 = vunpack.c.l.b16 %v247
  %v1358 = vunpack.c.h.b16 %v247
  %v1359 = vunpack.c.l.b16 %v248
  %v1360 = vunpack.c.h.b16 %v248
  %v1361 = vunpack.c.l.b16 %v249
  %v1362 = vunpack.c.h.b16 %v249
  %v1363 = vunpack.c.l.b16 %v250
  %v1364 = vunpack.c.h.b16 %v250
  %v1365 = vunpack.c.l.b16 %v251
  %v1366 = vunpack.c.h.b16 %v251
  %v1367 = vunpack.c.l.b16 %v252
  %v1368 = vunpack.c.h.b16 %v252
  %v1369 = vunpack.c.l.b16 %v253
  %v1370 = vunpack.c.h.b16 %v253
  %v1371 = vunpack.c.l.b16 %v254
  %v1372 = vunpack.c.h.b16 %v254
  %v1373 = vunpack.c.l.b16 %v255
  %v1374 = vunpack.c.h.b16 %v255
  %v1375 = vunpack.c.l.b16 %v256
  %v1376 = vunpack.c.h.b16 %v256
  %v1377 = vunpack.c.l.b16 %v257
  %v1378 = vunpack.c.h.b16 %v257
  %v1379 = vunpack.c.l.b16 %v258
  %v1380 = vunpack.c.h.b16 %v258
  %v1381 = vunpack.c.l.b16 %v259
  %v1382 = vunpack.c.h.b16 %v259
  %v1383 = vunpack.c.l.b16 %v260
  %v1384 = vunpack.c.h.b16 %v260
  %v1385 = vunpack.c.l.b16 %v261
  %v1386 = vunpack.c.h.b16 %v261
  %v1387 = vunpack.c.l.b16 %v262
  %v1388 = vunpack.c.h.b16 %v262
  %v1389 = vunpack.c.l.b16 %v263
  %v1390 = vunpack.c.h.b16 %v263
  %v1391 = vunpack.c.l.b16 %v264
  %v1392 = vunpack.c.h.b16 %v264
  %v1393 = vunpack.c.l.b16 %v265
  %v1394 = vunpack.c.h.b16 %v265
  %v1395 = vunpack.c.l.b16 %v266
  %v1396 = vunpack.c.h.b16 %v266
  %v1397 = vunpack.c.l.b16 %v267
  %v1398 = vunpack.c.h.b16 %v267
  %v1399 = vunpack.c.l.b16 %v268
  %v1400 = vunpack.c.h.b16 %v268
  %v1401 = vunpack.c.l.b16 %v269
  %v1402 = vunpack.c.h.b16 %v269
  %v1403 = vunpack.c.l.b16 %v270
  %v1404 = vunpack.c.h.b16 %v270
  %v1405 = vunpack.c.l.b16 %v271
  %v1406 = vunpack.c.h.b16 %v271
  %v1407 = vunpack.c.l.b16 %v272
  %v1408 = vunpack.c.h.b16 %v272
  %v1409 = vunpack.c.l.b16 %v273
  %v1410 = vunpack.c.h.b16 %v273
  %v1411 = vunpack.c.l.b16 %v274
  %v1412 = vunpack.c.h.b16 %v274
  %v1413 = vunpack.c.l.b16 %v275
  %v1414 = vunpack.c.h.b16 %v275
  %v1415 = vunpack.c.l.b16 %v276
  %v1416 = vunpack.c.h.b16 %v276
  %v1417 = vunpack.c.l.b16 %v277
  %v1418 = vunpack.c.h.b16 %v277
  %v1419 = vunpack.c.l.b16 %v278
  %v1420 = vunpack.c.h.b16 %v278
  %v1421 = vunpack.c.l.b16 %v279
  %v1422 = vunpack.c.h.b16 %v279
  %v1423 = vunpack.c.l.b16 %v280
  %v1424 = vunpack.c.h.b16 %v280
  %v1425 = vunpack.c.l.b16 %v281
  %v1426 = vunpack.c.h.b16 %v281
  %v1427 = vunpack.c.l.b16 %v282
  %v1428 = vunpack.c.h.b16 %v282
  %v1429 = vunpack.c.l.b16 %v283
  %v1430 = vunpack.c.h.b16 %v283
  %v1431 = vunpack.c.l.b16 %v284
  %v1432 = vunpack.c.h.b16 %v284
  %v1433 = vunpack.c.l.b16 %v285
  %v1434 = vunpack.c.h.b16 %v285
  %v1435 = vunpack.c.l.b16 %v286
  %v1436 = vunpack.c.h.b16 %v286
  %v1437 = vunpack.c.l.b16 %v287
  %v1438 = vunpack.c.h.b16 %v287
  %v1439 = vunpack.c.l.b16 %v288
  %v1440 = vunpack.c.h.b16 %v288
  %v1441 = vunpack.c.l.b16 %v289
  %v1442 = vunpack.c.h.b16 %v289
  %v1443 = vunpack.c.l.b16 %v290
  %v1444 = vunpack.c.h.b16 %v290
  %v1445 = vunpack.c.l.b16 %v291
  %v1446 = vunpack.c.h.b16 %v291
  %v1447 = vunpack.c.l.b16 %v292
  %v1448 = vunpack.c.h.b16 %v292
  %v1449 = vunpack.c.l.b16 %v293
  %v1450 = vunpack.c.h.b16 %v293
  %v1451 = vunpack.c.l.b16 %v294
  %v1452 = vunpack.c.h.b16 %v294
  %v1453 = vunpack.c.l.b16 %v295
  %v1454 = vunpack.c.h.b16 %v295
  %v1455 = vunpack.c.l.b16 %v296
  %v1456 = vunpack.c.h.b16 %v296
  %v1457 = vunpack.c.l.b16 %v297
  %v1458 = vunpack.c.h.b16 %v297
  %v1459 = vunpack.c.l.b16 %v298
  %v1460 = vunpack.c.h.b16 %v298
  %v1461 = vunpack.c.l.b16 %v299
  %v1462 = vunpack.c.h.b16 %v299
  %v1463 = vunpack.c.l.b16 %v300
  %v1464 = vunpack.c.h.b16 %v300
  %v1465 = vunpack.c.l.b16 %v301
  %v1466 = vunpack.c.h.b16 %v301
  %v1467 = vunpack.c.l.b16 %v302
  %v1468 = vunpack.c.h.b16 %v302
  %v1469 = vunpack.c.l.b16 %v303
  %v1470 = vunpack.c.h.b16 %v303
  %v1471 = vunpack.c.l.b16 %v304
  %v1472 = vunpack.c.h.b16 %v304
  %v1473 = vunpack.c.l.b16 %v305
  %v1474 = vunpack.c.h.b16 %v305
  %v1475 = vunpack.c.l.b16 %v306
  %v1476 = vunpack.c.h.b16 %v306
  %v1477 = vunpack.c.l.b16 %v307
  %v1478 = vunpack.c.h.b16 %v307
  %v1479 = vunpack.c.l.b16 %v308
  %v1480 = vunpack.c.h.b16 %v308
  %v1481 = vunpack.c.l.b16 %v309
  %v1482 = vunpack.c.h.b16 %v309
  %v1483 = vunpack.c.l.b16 %v310
  %v1484 = vunpack.c.h.b16 %v310
  %v1485 = vunpack.c.l.b16 %v311
  %v1486 = vunpack.c.h.b16 %v311
  %v1487 = vunpack.c.l.b16 %v312
  %v1488 = vunpack.c.h.b16 %v312
  %v1489 = vunpack.c.l.b16 %v313
  %v1490 = vunpack.c.h.b16 %v313
  %v1491 = vunpack.c.l.b16 %v314
  %v1492 = vunpack.c.h.b16 %v314
  %v1493 = vunpack.c.l.b16 %v315
  %v1494 = vunpack.c.h.b16 %v315
  %v1495 = vunpack.c.l.b16 %v316
  %v1496 = vunpack.c.h.b16 %v316
  %v1497 = vunpack.c.l.b16 %v317
  %v1498 = vunpack.c.h.b16 %v317
  %v1499 = vunpack.c.l.b16 %v318
  %v1500 = vunpack.c.h.b16 %v318
  %v1501 = vunpack.c.l.b16 %v319
  %v1502 = vunpack.c.h.b16 %v319
  %v1503 = vunpack.c.l.b16 %v320
  %v1504 = vunpack.c.h.b16 %v320
  %v1505 = vunpack.c.l.b16 %v321
  %v1506 = vunpack.c.h.b16 %v321
  %v1507 = vunpack.c.l.b16 %v322
  %v1508 = vunpack.c.h.b16 %v322
  %v1509 = vunpack.c.l.b16 %v323
  %v1510 = vunpack.c.h.b16 %v323
  %v1511 = vunpack.c.l.b16 %v324
  %v1512 = vunpack.c.h.b16 %v324
  %v1513 = vunpack.c.l.b16 %v325
  %v1514 = vunpack.c.h.b16 %v325
  %v1515 = vunpack.c.l.b16 %v326
  %v1516 = vunpack.c.h.b16 %v326
  %v1517 = vunpack.c.l.b16 %v327
  %v1518 = vunpack.c.h.b16 %v327
  %v1519 = vunpack.c.l.b16 %v328
  %v1520 = vunpack.c.h.b16 %v328
  %v1521 = vunpack.c.l.b16 %v329
  %v1522 = vunpack.c.h.b16 %v329
  %v1523 = vunpack.c.l.b16 %v330
  %v1524 = vunpack.c.h.b16 %v330
  %v1525 = vunpack.c.l.b16 %v331
  %v1526 = vunpack.c.h.b16 %v331
  %v1527 = vunpack.c.l.b16 %v332
  %v1528 = vunpack.c.h.b16 %v332
  %v1529 = vunpack.c.l.b16 %v333
  %v1530 = vunpack.c.h.b16 %v333
  %v1531 = vunpack.c.l.b16 %v334
  %v1532 = vunpack.c.h.b16 %v334
  %v1533 = vunpack.c.l.b16 %v335
  %v1534 = vunpack.c.h.b16 %v335
  %v1535 = vunpack.c.l.b16 %v336
  %v1536 = vunpack.c.h.b16 %v336
  %v1537 = vunpack.c.l.b16 %v337
  %v1538 = vunpack.c.h.b16 %v337
  %v1539 = vunpack.c.l.b16 %v338
  %v1540 = vunpack.c.h.b16 %v338
  %v1541 = vunpack.c.l.b16 %v339
  %v1542 = vunpack.c.h.b16 %v339
  %v1543 = vunpack.c.l.b16 %v340
  %v1544 = vunpack.c.h.b16 %v340
  %v1545 = vunpack.c.l.b16 %v341
  %v1546 = vunpack.c.h.b16 %v341
  %v1547 = vunpack.c.l.b16 %v342
  %v1548 = vunpack.c.h.b16 %v342
  %v1549 = vunpack.c.l.b16 %v343
  %v1550 = vunpack.c.h.b16 %v343
  %v1551 = vunpack.c.l.b16 %v344
  %v1552 = vunpack.c.h.b16 %v344
  %v1553 = vunpack.c.l.b16 %v345
  %v1554 = vunpack.c.h.b16 %v345
  %v1555 = vunpack.c.l.b16 %v346
  %v1556 = vunpack.c.h.b16 %v346
  %v1557 = vunpack.c.l.b16 %v347
  %v1558 = vunpack.c.h.b16 %v347
  %v1559 = vunpack.c.l.b16 %v348
  %v1560 = vunpack.c.h.b16 %v348
  %v1561 = vunpack.c.l.b16 %v349
  %v1562 = vunpack.c.h.b16 %v349
  %v1563 = vunpack.c.l.b16 %v350
  %v1564 = vunpack.c.h.b16 %v350
  %v1565 = vunpack.c.l.b16 %v351
  %v1566 = vunpack.c.h.b16 %v351
  %v1567 = vunpack.c.l.b16 %v352
  %v1568 = vunpack.c.h.b16 %v352
  %v1569 = vunpack.c.l.b16 %v353
  %v1570 = vunpack.c.h.b16 %v353
  %v1571 = vunpack.c.l.b16 %v354
  %v1572 = vunpack.c.h.b16 %v354
  %v1573 = vunpack.c.l.b16 %v355
  %v1574 = vunpack.c.h.b16 %v355
  %v1575 = vunpack.c.l.b16 %v356
  %v1576 = vunpack.c.h.b16 %v356
  %v1577 = vunpack.c.l.b16 %v357
  %v1578 = vunpack.c.h.b16 %v357
  %v1579 = vunpack.c.l.b16 %v358
  %v1580 = vunpack.c.h.b16 %v358
  %v1581 = vunpack.c.l.b16 %v359
  %v1582 = vunpack.c.h.b16 %v359
  %v1583 = vunpack.c.l.b16 %v360
  %v1584 = vunpack.c.h.b16 %v360
  %v1585 = vunpack.c.l.b16 %v361
  %v1586 = vunpack.c.h.b16 %v361
  %v1587 = vunpack.c.l.b16 %v362
  %v1588 = vunpack.c.h.b16 %v362
  %v1589 = vunpack.c.l.b16 %v363
  %v1590 = vunpack.c.h.b16 %v363
  %v1591 = vunpack.c.l.b16 %v364
  %v1592 = vunpack.c.h.b16 %v364
  %v1593 = vunpack.c.l.b16 %v365
  %v1594 = vunpack.c.h.b16 %v365
  %v1595 = vunpack.c.l.b16 %v366
  %v1596 = vunpack.c.h.b16 %v366
  %v1597 = vunpack.c.l.b16 %v367
  %v1598 = vunpack.c.h.b16 %v367
  %v1599 = vunpack.c.l.b16 %v368
  %v1600 = vunpack.c.h.b16 %v368
  %v1601 = vunpack.c.l.b16 %v369
  %v1602 = vunpack.c.h.b16 %v369
  %v1603 = vunpack.c.l.b16 %v370
  %v1604 = vunpack.c.h.b16 %v370
  %v1605 = vunpack.c.l.b16 %v371
  %v1606 = vunpack.c.h.b16 %v371
  %v1607 = vunpack.c.l.b16 %v372
  %v1608 = vunpack.c.h.b16 %v372
  %v1609 = vunpack.c.l.b16 %v373
  %v1610 = vunpack.c.h.b16 %v373
  %v1611 = vunpack.c.l.b16 %v374
  %v1612 = vunpack.c.h.b16 %v374
  %v1613 = vunpack.c.l.b16 %v375
  %v1614 = vunpack.c.h.b16 %v375
  %v1615 = vunpack.c.l.b16 %v376
  %v1616 = vunpack.c.h.b16 %v376
  %v1617 = vunpack.c.l.b16 %v377
  %v1618 = vunpack.c.h.b16 %v377
  %v1619 = vunpack.c.l.b16 %v378
  %v1620 = vunpack.c.h.b16 %v378
  %v1621 = vunpack.c.l.b16 %v379
  %v1622 = vunpack.c.h.b16 %v379
  %v1623 = vunpack.c.l.b16 %v380
  %v1624 = vunpack.c.h.b16 %v380
  %v1625 = vunpack.c.l.b16 %v381
  %v1626 = vunpack.c.h.b16 %v381
  %v1627 = vunpack.c.l.b16 %v382
  %v1628 = vunpack.c.h.b16 %v382
  %v1629 = vunpack.c.l.b16 %v383
  %v1630 = vunpack.c.h.b16 %v383
  %v1631 = vunpack.c.l.b16 %v384
  %v1632 = vunpack.c.h.b16 %v384
  %v1633 = vunpack.c.l.b16 %v385
  %v1634 = vunpack.c.h.b16 %v385
  %v1635 = vunpack.c.l.b16 %v386
  %v1636 = vunpack.c.h.b16 %v386
  %v1637 = vunpack.c.l.b16 %v387
  %v1638 = vunpack.c.h.b16 %v387
  %v1639 = vunpack.c.l.b16 %v388
  %v1640 = vunpack.c.h.b16 %v388
  %v1641 = vunpack.c.l.b16 %v389
  %v1642 = vunpack.c.h.b16 %v389
  %v1643 = vunpack.c.l.b16 %v390
  %v1644 = vunpack.c.h.b16 %v390
  %v1645 = vunpack.c.l.b16 %v391
  %v1646 = vunpack.c.h.b16 %v391
  %v1647 = vunpack.c.l.b16 %v392
  %v1648 = vunpack.c.h.b16 %v392
  %v1649 = vunpack.c.l.b16 %v393
  %v1650 = vunpack.c.h.b16 %v393
  %v1651 = vunpack.c.l.b16 %v394
  %v1652 = vunpack.c.h.b16 %v394
  %v1653 = vunpack.c.l.b16 %v395
  %v1654 = vunpack.c.h.b16 %v395
  %v1655 = vunpack.c.l.b16 %v396
  %v1656 = vunpack.c.h.b16 %v396
  %v1657 = vunpack.c.l.b16 %v397
  %v1658 = vunpack.c.h.b16 %v397
  %v1659 = vunpack.c.l.b16 %v398
  %v1660 = vunpack.c.h.b16 %v398
  %v1661 = vunpack.c.l.b16 %v399
  %v1662 = vunpack.c.h.b16 %v399
  %v1663 = vunpack.c.l.b16 %v400
  %v1664 = vunpack.c.h.b16 %v400
  %v1665 = vunpack.c.l.b16 %v401
  %v1666 = vunpack.c.h.b16 %v401
  %v1667 = vunpack.c.l.b16 %v402
  %v1668 = vunpack.c.h.b16 %v402
  %v1669 = vunpack.c.l.b16 %v403
  %v1670 = vunpack.c.h.b16 %v403
  %v1671 = vunpack.c.l.b16 %v404
  %v1672 = vunpack.c.h.b16 %v404
  %v1673 = vunpack.c.l.b16 %v405
  %v1674 = vunpack.c.h.b16 %v405
  %v1675 = vunpack.c.l.b16 %v406
  %v1676 = vunpack.c.h.b16 %v406
  %v1677 = vunpack.c.l.b16 %v407
  %v1678 = vunpack.c.h.b16 %v407
  %v1679 = vunpack.c.l.b16 %v408
  %v1680 = vunpack.c.h.b16 %v408
  %v1681 = vunpack.c.l.b16 %v409
  %v1682 = vunpack.c.h.b16 %v409
  %v1683 = vunpack.c.l.b16 %v410
  %v1684 = vunpack.c.h.b16 %v410
  %v1685 = vunpack.c.l.b16 %v411
  %v1686 = vunpack.c.h.b16 %v411
  %v1687 = vunpack.c.l.b16 %v412
  %v1688 = vunpack.c.h.b16 %v412
  %v1689 = vunpack.c.l.b16 %v413
  %v1690 = vunpack.c.h.b16 %v413
  %v1691 = vunpack.c.l.b16 %v414
  %v1692 = vunpack.c.h.b16 %v414
  %v1693 = vunpack.c.l.b16 %v415
  %v1694 = vunpack.c.h.b16 %v415
  %v1695 = vunpack.c.l.b16 %v416
  %v1696 = vunpack.c.h.b16 %v416
  %v1697 = vunpack.c.l.b16 %v417
  %v1698 = vunpack.c.h.b16 %v417
  %v1699 = vunpack.c.l.b16 %v418
  %v1700 = vunpack.c.h.b16 %v418
  %v1701 = vunpack.c.l.b16 %v419
  %v1702 = vunpack.c.h.b16 %v419
  %v1703 = vunpack.c.l.b16 %v420
  %v1704 = vunpack.c.h.b16 %v420
  %v1705 = vunpack.c.l.b16 %v421
  %v1706 = vunpack.c.h.b16 %v421
  %v1707 = vunpack.c.l.b16 %v422
  %v1708 = vunpack.c.h.b16 %v422
  %v1709 = vunpack.c.l.b16 %v423
  %v1710 = vunpack.c.h.b16 %v423
  %v1711 = vunpack.c.l.b16 %v424
  %v1712 = vunpack.c.h.b16 %v424
  %v1713 = vunpack.c.l.b16 %v425
  %v1714 = vunpack.c.h.b16 %v425
  %v1715 = vunpack.c.l.b16 %v426
  %v1716 = vunpack.c.h.b16 %v426
  %v1717 = vunpack.c.l.b16 %v427
  %v1718 = vunpack.c.h.b16 %v427
  %v1719 = vunpack.c.l.b16 %v428
  %v1720 = vunpack.c.h.b16 %v428
  %v1721 = vunpack.c.l.b16 %v429
  %v1722 = vunpack.c.h.b16 %v429
  %v1723 = vunpack.c.l.b16 %v430
  %v1724 = vunpack.c.h.b16 %v430
  %v1725 = vunpack.c.l.b16 %v431
  %v1726 = vunpack.c.h.b16 %v431
  %v1727 = vunpack.c.l.b16 %v432
  %v1728 = vunpack.c.h.b16 %v432
  %v1729 = vunpack.c.l.b16 %v433
  %v1730 = vunpack.c.h.b16 %v433
  %v1731 = vunpack.c.l.b16 %v434
  %v1732 = vunpack.c.h.b16 %v434
  %v1733 = vunpack.c.l.b16 %v435
  %v1734 = vunpack.c.h.b16 %v435
  %v1735 = vunpack.c.l.b16 %v436
  %v1736 = vunpack.c.h.b16 %v436
  %v1737 = vpack.c.b16 %v957, %v953
  %v1738 = vpack.c.b16 %v958, %v954
  %v1739 = vpack.c.b16 %v959, %v955
  %v1740 = vpack.c.b16 %v960, %v956
  %v1741 = vpack.c.b16 %v965, %v961
  %v1742 = vpack.c.b16 %v966, %v962
  %v1743 = vpack.c.b16 %v967, %v963
  %v1744 = vpack.c.b16 %v968, %v964
  %v1745 = vpack.c.b16 %v973, %v969
  %v1746 = vpack.c.b16 %v974, %v970
  %v1747 = vpack.c.b16 %v975, %v971
  %v1748 = vpack.c.b16 %v976, %v972
  %v1749 = vpack.c.b16 %v981, %v977
  %v1750 = vpack.c.b16 %v982, %v978
  %v1751 = vpack.c.b16 %v983, %v979
  %v1752 = vpack.c.b16 %v984, %v980
  %v1753 = vpack.c.b16 %v989, %v985
  %v1754 = vpack.c.b16 %v990, %v986
  %v1755 = vpack.c.b16 %v991, %v987
  %v1756 = vpack.c.b16 %v992, %v988
  %v1757 = vpack.c.b16 %v997, %v993
  %v1758 = vpack.c.b16 %v998, %v994
  %v1759 = vpack.c.b16 %v999, %v995
  %v1760 = vpack.c.b16 %v1000, %v996
  %v1761 = vpack.c.b16 %v1005, %v1001
  %v1762 = vpack.c.b16 %v1006, %v1002
  %v1763 = vpack.c.b16 %v1007, %v1003
  %v1764 = vpack.c.b16 %v1008, %v1004
  %v1765 = vpack.c.b16 %v1013, %v1009
  %v1766 = vpack.c.b16 %v1014, %v1010
  %v1767 = vpack.c.b16 %v1015, %v1011
  %v1768 = vpack.c.b16 %v1016, %v1012
  %v1769 = vpack.c.b16 %v1021, %v1017
  %v1770 = vpack.c.b16 %v1022, %v1018
  %v1771 = vpack.c.b16 %v1023, %v1019
  %v1772 = vpack.c.b16 %v1024, %v1020
  %v1773 = vpack.c.b16 %v1029, %v1025
  %v1774 = vpack.c.b16 %v1030, %v1026
  %v1775 = vpack.c.b16 %v1031, %v1027
  %v1776 = vpack.c.b16 %v1032, %v1028
  %v1777 = vpack.c.b16 %v1037, %v1033
  %v1778 = vpack.c.b16 %v1038, %v1034
  %v1779 = vpack.c.b16 %v1039, %v1035
  %v1780 = vpack.c.b16 %v1040, %v1036
  %v1781 = vpack.c.b16 %v1045, %v1041
  %v1782 = vpack.c.b16 %v1046, %v1042
  %v1783 = vpack.c.b16 %v1047, %v1043
  %v1784 = vpack.c.b16 %v1048, %v1044
  %v1785 = vpack.c.b16 %v1053, %v1049
  %v1786 = vpack.c.b16 %v1054, %v1050
  %v1787 = vpack.c.b16 %v1055, %v1051
  %v1788 = vpack.c.b16 %v1056, %v1052
  %v1789 = vpack.c.b16 %v1061, %v1057
  %v1790 = vpack.c.b16 %v1062, %v1058
  %v1791 = vpack.c.b16 %v1063, %v1059
  %v1792 = vpack.c.b16 %v1064, %v1060
  %v1793 = vpack.c.b16 %v1069, %v1065
  %v1794 = vpack.c.b16 %v1070, %v1066
  %v1795 = vpack.c.b16 %v1071, %v1067
  %v1796 = vpack.c.b16 %v1072, %v1068
  %v1797 = vpack.c.b16 %v1077, %v1073
  %v1798 = vpack.c.b16 %v1078, %v1074
  %v1799 = vpack.c.b16 %v1079, %v1075
  %v1800 = vpack.c.b16 %v1080, %v1076
  %v1801 = vpack.c.b16 %v1085, %v1081
  %v1802 = vpack.c.b16 %v1086, %v1082
  %v1803 = vpack.c.b16 %v1087, %v1083
  %v1804 = vpack.c.b16 %v1088, %v1084
  %v1805 = vpack.c.b16 %v1093, %v1089
  %v1806 = vpack.c.b16 %v1094, %v1090
  %v1807 = vpack.c.b16 %v1095, %v1091
  %v1808 = vpack.c.b16 %v1096, %v1092
  %v1809 = vpack.c.b16 %v1101, %v1097
  %v1810 = vpack.c.b16 %v1102, %v1098
  %v1811 = vpack.c.b16 %v1103, %v1099
  %v1812 = vpack.c.b16 %v1104, %v1100
  %v1813 = vpack.c.b16 %v1109, %v1105
  %v1814 = vpack.c.b16 %v1110, %v1106
  %v1815 = vpack.c.b16 %v1111, %v1107
  %v1816 = vpack.c.b16 %v1112, %v1108
  %v1817 = vpack.c.b16 %v1117, %v1113
  %v1818 = vpack.c.b16 %v1118, %v1114
  %v1819 = vpack.c.b16 %v1119, %v1115
  %v1820 = vpack.c.b16 %v1120, %v1116
  %v1821 = vpack.c.b16 %v1125, %v1121
  %v1822 = vpack.c.b16 %v1126, %v1122
  %v1823 = vpack.c.b16 %v1127, %v1123
  %v1824 = vpack.c.b16 %v1128, %v1124
  %v1825 = vpack.c.b16 %v1133, %v1129
  %v1826 = vpack.c.b16 %v1134, %v1130
  %v1827 = vpack.c.b16 %v1135, %v1131
  %v1828 = vpack.c.b16 %v1136, %v1132
  %v1829 = vpack.c.b16 %v1141, %v1137
  %v1830 = vpack.c.b16 %v1142, %v1138
  %v1831 = vpack.c.b16 %v1143, %v1139
  %v1832 = vpack.c.b16 %v1144, %v1140
  %v1833 = vpack.c.b16 %v1149, %v1145
  %v1834 = vpack.c.b16 %v1150, %v1146
  %v1835 = vpack.c.b16 %v1151, %v1147
  %v1836 = vpack.c.b16 %v1152, %v1148
  %v1837 = vpack.c.b16 %v1157, %v1153
  %v1838 = vpack.c.b16 %v1158, %v1154
  %v1839 = vpack.c.b16 %v1159, %v1155
  %v1840 = vpack.c.b16 %v1160, %v1156
  %v1841 = vpack.c.b16 %v1165, %v1161
  %v1842 = vpack.c.b16 %v1166, %v1162
  %v1843 = vpack.c.b16 %v1167, %v1163
  %v1844 = vpack.c.b16 %v1168, %v1164
  %v1845 = vpack.c.b16 %v1173, %v1169
  %v1846 = vpack.c.b16 %v1174, %v1170
  %v1847 = vpack.c.b16 %v1175, %v1171
  %v1848 = vpack.c.b16 %v1176, %v1172
  %v1849 = vpack.c.b16 %v1181, %v1177
  %v1850 = vpack.c.b16 %v1182, %v1178
  %v1851 = vpack.c.b16 %v1183, %v1179
  %v1852 = vpack.c.b16 %v1184, %v1180
  %v1853 = vpack.c.b16 %v1189, %v1185
  %v1854 = vpack.c.b16 %v1190, %v1186
  %v1855 = vpack.c.b16 %v1191, %v1187
  %v1856 = vpack.c.b16 %v1192, %v1188
  %v1857 = vpack.c.b16 %v1197, %v1193
  %v1858 = vpack.c.b16 %v1198, %v1194
  %v1859 = vpack.c.b16 %v1199, %v1195
  %v1860 = vpack.c.b16 %v1200, %v1196
  %v1861 = vpack.c.b16 %v1205, %v1201
  %v1862 = vpack.c.b16 %v1206, %v1202
  %v1863 = vpack.c.b16 %v1207, %v1203
  %v1864 = vpack.c.b16 %v1208, %v1204
  %v1865 = vpack.c.b16 %v1213, %v1209
  %v1866 = vpack.c.b16 %v1214, %v1210
  %v1867 = vpack.c.b16 %v1215, %v1211
  %v1868 = vpack.c.b16 %v1216, %v1212
  %v1869 = vpack.c.b16 %v1221, %v1217
  %v1870 = vpack.c.b16 %v1222, %v1218
  %v1871 = vpack.c.b16 %v1223, %v1219
  %v1872 = vpack.c.b16 %v1224, %v1220
  %v1873 = vpack.c.b16 %v1229, %v1225
  %v1874 = vpack.c.b16 %v1230, %v1226
  %v1875 = vpack.c.b16 %v1231, %v1227
  %v1876 = vpack.c.b16 %v1232, %v1228
  %v1877 = vpack.c.b16 %v1237, %v1233
  %v1878 = vpack.c.b16 %v1238, %v1234
  %v1879 = vpack.c.b16 %v1239, %v1235
  %v1880 = vpack.c.b16 %v1240, %v1236
  %v1881 = vpack.c.b16 %v1245, %v1241
  %v1882 = vpack.c.b16 %v1246, %v1242
  %v1883 = vpack.c.b16 %v1247, %v1243
  %v1884 = vpack.c.b16 %v1248, %v1244
  %v1885 = vpack.c.b16 %v1253, %v1249
  %v1886 = vpack.c.b16 %v1254, %v1250
  %v1887 = vpack.c.b16 %v1255, %v1251
  %v1888 = vpack.c.b16 %v1256, %v1252
  %v1889 = vpack.c.b16 %v1261, %v1257
  %v1890 = vpack.c.b16 %v1262, %v1258
  %v1891 = vpack.c.b16 %v1263, %v1259
  %v1892 = vpack.c.b16 %v1264, %v1260
  %v1893 = vpack.c.b16 %v1269, %v1265
  %v1894 = vpack.c.b16 %v1270, %v1266
  %v1895 = vpack.c.b16 %v1271, %v1267
  %v1896 = vpack.c.b16 %v1272, %v1268
  %v1897 = vpack.c.b16 %v1277, %v1273
  %v1898 = vpack.c.b16 %v1278, %v1274
  %v1899 = vpack.c.b16 %v1279, %v1275
  %v1900 = vpack.c.b16 %v1280, %v1276
  %v1901 = vpack.c.b16 %v1285, %v1281
  %v1902 = vpack.c.b16 %v1286, %v1282
  %v1903 = vpack.c.b16 %v1287, %v1283
  %v1904 = vpack.c.b16 %v1288, %v1284
  %v1905 = vpack.c.b16 %v1293, %v1289
  %v1906 = vpack.c.b16 %v1294, %v1290
  %v1907 = vpack.c.b16 %v1295, %v1291
  %v1908 = vpack.c.b16 %v1296, %v1292
  %v1909 = vpack.c.b16 %v1301, %v1297
  %v1910 = vpack.c.b16 %v1302, %v1298
  %v1911 = vpack.c.b16 %v1303, %v1299
  %v1912 = vpack.c.b16 %v1304, %v1300
  %v1913 = vpack.c.b16 %v1309, %v1305
  %v1914 = vpack.c.b16 %v1310, %v1306
  %v1915 = vpack.c.b16 %v1311, %v1307
  %v1916 = vpack.c.b16 %v1312, %v1308
  %v1917 = vpack.c.b16 %v1317, %v1313
  %v1918 = vpack.c.b16 %v1318, %v1314
  %v1919 = vpack.c.b16 %v1319, %v1315
  %v1920 = vpack.c.b16 %v1320, %v1316
  %v1921 = vpack.c.b16 %v1325, %v1321
  %v1922 = vpack.c.b16 %v1326, %v1322
  %v1923 = vpack.c.b16 %v1327, %v1323
  %v1924 = vpack.c.b16 %v1328, %v1324
  %v1925 = vpack.c.b16 %v1333, %v1329
  %v1926 = vpack.c.b16 %v1334, %v1330
  %v1927 = vpack.c.b16 %v1335, %v1331
  %v1928 = vpack.c.b16 %v1336, %v1332
  %v1929 = vpack.c.b16 %v1341, %v1337
  %v1930 = vpack.c.b16 %v1342, %v1338
  %v1931 = vpack.c.b16 %v1343, %v1339
  %v1932 = vpack.c.b16 %v1344, %v1340
  %v1933 = vpack.c.b16 %v1349, %v1345
  %v1934 = vpack.c.b16 %v1350, %v1346
  %v1935 = vpack.c.b16 %v1351, %v1347
  %v1936 = vpack.c.b16 %v1352, %v1348
  %v1937 = vpack.c.b16 %v1357, %v1353
  %v1938 = vpack.c.b16 %v1358, %v1354
  %v1939 = vpack.c.b16 %v1359, %v1355
  %v1940 = vpack.c.b16 %v1360, %v1356
  %v1941 = vpack.c.b16 %v1365, %v1361
  %v1942 = vpack.c.b16 %v1366, %v1362
  %v1943 = vpack.c.b16 %v1367, %v1363
  %v1944 = vpack.c.b16 %v1368, %v1364
  %v1945 = vpack.c.b16 %v1373, %v1369
  %v1946 = vpack.c.b16 %v1374, %v1370
  %v1947 = vpack.c.b16 %v1375, %v1371
  %v1948 = vpack.c.b16 %v1376, %v1372
  %v1949 = vpack.c.b16 %v1381, %v1377
  %v1950 = vpack.c.b16 %v1382, %v1378
  %v1951 = vpack.c.b16 %v1383, %v1379
  %v1952 = vpack.c.b16 %v1384, %v1380
  %v1953 = vpack.c.b16 %v1389, %v1385
  %v1954 = vpack.c.b16 %v1390, %v1386
  %v1955 = vpack.c.b16 %v1391, %v1387
  %v1956 = vpack.c.b16 %v1392, %v1388
  %v1957 = vpack.c.b16 %v1397, %v1393
  %v1958 = vpack.c.b16 %v1398, %v1394
  %v1959 = vpack.c.b16 %v1399, %v1395
  %v1960 = vpack.c.b16 %v1400, %v1396
  %v1961 = vpack.c.b16 %v1405, %v1401
  %v1962 = vpack.c.b16 %v1406, %v1402
  %v1963 = vpack.c.b16 %v1407, %v1403
  %v1964 = vpack.c.b16 %v1408, %v1404
  %v1965 = vpack.c.b16 %v1413, %v1409
  %v1966 = vpack.c.b16 %v1414, %v1410
  %v1967 = vpack.c.b16 %v1415, %v1411
  %v1968 = vpack.c.b16 %v1416, %v1412
  %v1969 = vpack.c.b16 %v1421, %v1417
  %v1970 = vpack.c.b16 %v1422, %v1418
  %v1971 = vpack.c.b16 %v1423, %v1419
  %v1972 = vpack.c.b16 %v1424, %v1420
  %v1973 = vpack.c.b16 %v1429, %v1425
  %v1974 = vpack.c.b16 %v1430, %v1426
  %v1975 = vpack.c.b16 %v1431, %v1427
  %v1976 = vpack.c.b16 %v1432, %v1428
  %v1977 = vpack.c.b16 %v1437, %v1433
  %v1978 = vpack.c.b16 %v1438, %v1434
  %v1979 = vpack.c.b16 %v1439, %v1435
  %v1980 = vpack.c.b16 %v1440, %v1436
  %v1981 = vpack.c.b16 %v1445, %v1441
  %v1982 = vpack.c.b16 %v1446, %v1442
  %v1983 = vpack.c.b16 %v1447, %v1443
  %v1984 = vpack.c.b16 %v1448, %v1444
  %v1985 = vpack.c.b16 %v1453, %v1449
  %v1986 = vpack.c.b16 %v1454, %v1450
  %v1987 = vpack.c.b16 %v1455, %v1451
  %v1988 = vpack.c.b16 %v1456, %v1452
  %v1989 = vpack.c.b16 %v1461, %v1457
  %v1990 = vpack.c.b16 %v1462, %v1458
  %v1991 = vpack.c.b16 %v1463, %v1459
  %v1992 = vpack.c.b16 %v1464, %v1460
  %v1993 = vpack.c.b16 %v1469, %v1465
  %v1994 = vpack.c.b16 %v1470, %v1466
  %v1995 = vpack.c.b16 %v1471, %v1467
  %v1996 = vpack.c.b16 %v1472, %v1468
  %v1997 = vpack.c.b16 %v1477, %v1473
  %v1998 = vpack.c.b16 %v1478, %v1474
  %v1999 = vpack.c.b16 %v1479, %v1475
  %v2000 = vpack.c.b16 %v1480, %v1476
  %v2001 = vpack.c.b16 %v1485, %v1481
  %v2002 = vpack.c.b16 %v1486, %v1482
  %v2003 = vpack.c.b16 %v1487, %v1483
  %v2004 = vpack.c.b16 %v1488, %v1484
  %v2005 = vpack.c.b16 %v1493, %v1489
  %v2006 = vpack.c.b16 %v1494, %v1490
  %v2007 = vpack.c.b16 %v1495, %v1491
  %v2008 = vpack.c.b16 %v1496, %v1492
  %v2009 = vpack.c.b16 %v1501, %v1497
  %v2010 = vpack.c.b16 %v1502, %v1498
  %v2011 = vpack.c.b16 %v1503, %v1499
  %v2012 = vpack.c.b16 %v1504, %v1500
  %v2013 = vpack.c.b16 %v1509, %v1505
  %v2014 = vpack.c.b16 %v1510, %v1506
  %v2015 = vpack.c.b16 %v1511, %v1507
  %v2016 = vpack.c.b16 %v1512, %v1508
  %v2017 = vpack.c.b16 %v1517, %v1513
  %v2018 = vpack.c.b16 %v1518, %v1514
  %v2019 = vpack.c.b16 %v1519, %v1515
  %v2020 = vpack.c.b16 %v1520, %v1516
  %v2021 = vpack.c.b16 %v1525, %v1521
  %v2022 = vpack.c.b16 %v1526, %v1522
  %v2023 = vpack.c.b16 %v1527, %v1523
  %v2024 = vpack.c.b16 %v1528, %v1524
  %v2025 = vpack.c.b16 %v1533, %v1529
  %v2026 = vpack.c.b16 %v1534, %v1530
  %v2027 = vpack.c.b16 %v1535, %v1531
  %v2028 = vpack.c.b16 %v1536, %v1532
  %v2029 = vpack.c.b16 %v1541, %v1537
  %v2030 = vpack.c.b16 %v1542, %v1538
  %v2031 = vpack.c.b16 %v1543, %v1539
  %v2032 = vpack.c.b16 %v1544, %v1540
  %v2033 = vpack.c.b16 %v1549, %v1545
  %v2034 = vpack.c.b16 %v1550, %v1546
  %v2035 = vpack.c.b16 %v1551, %v1547
  %v2036 = vpack.c.b16 %v1552, %v1548
  %v2037 = vpack.c.b16 %v1557, %v1553
  %v2038 = vpack.c.b16 %v1558, %v1554
  %v2039 = vpack.c.b16 %v1559, %v1555
  %v2040 = vpack.c.b16 %v1560, %v1556
  %v2041 = vpack.c.b16 %v1565, %v1561
  %v2042 = vpack.c.b16 %v1566, %v1562
  %v2043 = vpack.c.b16 %v1567, %v1563
  %v2044 = vpack.c.b16 %v1568, %v1564
  %v2045 = vpack.c.b16 %v1573, %v1569
  %v2046 = vpack.c.b16 %v1574, %v1570
  %v2047 = vpack.c.b16 %v1575, %v1571
  %v2048 = vpack.c.b16 %v1576, %v1572
  %v2049 = vpack.c.b16 %v1581, %v1577
  %v2050 = vpack.c.b16 %v1582, %v1578
  %v2051 = vpack.c.b16 %v1583, %v1579
  %v2052 = vpack.c.b16 %v1584, %v1580
  %v2053 = vpack.c.b16 %v1589, %v1585
  %v2054 = vpack.c.b16 %v1590, %v1586
  %v2055 = vpack.c.b16 %v1591, %v1587
  %v2056 = vpack.c.b16 %v1592, %v1588
  %v2057 = vpack.c.b16 %v1597, %v1593
  %v2058 = vpack.c.b16 %v1598, %v1594
  %v2059 = vpack.c.b16 %v1599, %v1595
  %v2060 = vpack.c.b16 %v1600, %v1596
  %v2061 = vpack.c.b16 %v1605, %v1601
  %v2062 = vpack.c.b16 %v1606, %v1602
  %v2063 = vpack.c.b16 %v1607, %v1603
  %v2064 = vpack.c.b16 %v1608, %v1604
  %v2065 = vpack.c.b16 %v1613, %v1609
  %v2066 = vpack.c.b16 %v1614, %v1610
  %v2067 = vpack.c.b16 %v1615, %v1611
  %v2068 = vpack.c.b16 %v1616, %v1612
  %v2069 = vpack.c.b16 %v1621, %v1617
  %v2070 = vpack.c.b16 %v1622, %v1618
  %v2071 = vpack.c.b16 %v1623, %v1619
  %v2072 = vpack.c.b16 %v1624, %v1620
  %v2073 = vpack.c.b16 %v1629, %v1625
  %v2074 = vpack.c.b16 %v1630, %v1626
  %v2075 = vpack.c.b16 %v1631, %v1627
  %v2076 = vpack.c.b16 %v1632, %v1628
  %v2077 = vpack.c.b16 %v1637, %v1633
  %v2078 = vpack.c.b16 %v1638, %v1634
  %v2079 = vpack.c.b16 %v1639, %v1635
  %v2080 = vpack.c.b16 %v1640, %v1636
  %v2081 = vpack.c.b16 %v1645, %v1641
  %v2082 = vpack.c.b16 %v1646, %v1642
  %v2083 = vpack.c.b16 %v1647, %v1643
  %v2084 = vpack.c.b16 %v1648, %v1644
  %v2085 = vpack.c.b16 %v1653, %v1649
  %v2086 = vpack.c.b16 %v1654, %v1650
  %v2087 = vpack.c.b16 %v1655, %v1651
  %v2088 = vpack.c.b16 %v1656, %v1652
  %v2089 = vpack.c.b16 %v1661, %v1657
  %v2090 = vpack.c.b16 %v1662, %v1658
  %v2091 = vpack.c.b16 %v1663, %v1659
  %v2092 = vpack.c.b16 %v1664, %v1660
  %v2093 = vpack.c.b16 %v1669, %v1665
  %v2094 = vpack.c.b16 %v1670, %v1666
  %v2095 = vpack.c.b16 %v1671, %v1667
  %v2096 = vpack.c.b16 %v1672, %v1668
  %v2097 = vpack.c.b16 %v1677, %v1673
  %v2098 = vpack.c.b16 %v1678, %v1674
  %v2099 = vpack.c.b16 %v1679, %v1675
  %v2100 = vpack.c.b16 %v1680, %v1676
  %v2101 = vpack.c.b16 %v1685, %v1681
  %v2102 = vpack.c.b16 %v1686, %v1682
  %v2103 = vpack.c.b16 %v1687, %v1683
  %v2104 = vpack.c.b16 %v1688, %v1684
  %v2105 = vpack.c.b16 %v1693, %v1689
  %v2106 = vpack.c.b16 %v1694, %v1690
  %v2107 = vpack.c.b16 %v1695, %v1691
  %v2108 = vpack.c.b16 %v1696, %v1692
  %v2109 = vpack.c.b16 %v1701, %v1697
  %v2110 = vpack.c.b16 %v1702, %v1698
  %v2111 = vpack.c.b16 %v1703, %v1699
  %v2112 = vpack.c.b16 %v1704, %v1700
  %v2113 = vpack.c.b16 %v1709, %v1705
  %v2114 = vpack.c.b16 %v1710, %v1706
  %v2115 = vpack.c.b16 %v1711, %v1707
  %v2116 = vpack.c.b16 %v1712, %v1708
  %v2117 = vpack.c.b16 %v1717, %v1713
  %v2118 = vpack.c.b16 %v1718, %v1714
  %v2119 = vpack.c.b16 %v1719, %v1715
  %v2120 = vpack.c.b16 %v1720, %v1716
  %v2121 = vpack.c.b16 %v1725, %v1721
  %v2122 = vpack.c.b16 %v1726, %v1722
  %v2123 = vpack.c.b16 %v1727, %v1723
  %v2124 = vpack.c.b16 %v1728, %v1724
  %v2125 = vpack.c.b16 %v1733, %v1729
  %v2126 = vpack.c.b16 %v1734, %v1730
  %v2127 = vpack.c.b16 %v1735, %v1731
  %v2128 = vpack.c.b16 %v1736, %v1732
  %vm2521 = vcmask 261120
  %v2523 = vsel %vm2521, %v539, 0
  %2525 = vmatprep.subr.bf16.mxu0 %v1738
  %2526 = vmatpush1.bf16.msra.mxu0 %v1737
  %2527 = vmatprep.subr.bf16.mxu0 %v1742
  %2528 = vmatpush1.bf16.msra.mxu0 %v1741
  %2529 = vmatprep.subr.bf16.mxu0 %v1746
  %2530 = vmatpush1.bf16.msra.mxu0 %v1745
  %2531 = vmatprep.subr.bf16.mxu0 %v1750
  %2532 = vmatpush1.bf16.msra.mxu0 %v1749
  %2533 = vmatprep.subr.bf16.mxu0 %v1754
  %2534 = vmatpush1.bf16.msra.mxu0 %v1753
  %2535 = vmatprep.subr.bf16.mxu0 %v1758
  %2536 = vmatpush1.bf16.msra.mxu0 %v1757
  %2537 = vmatprep.subr.bf16.mxu0 %v1762
  %2538 = vmatpush1.bf16.msra.mxu0 %v1761
  %2539 = vmatprep.subr.bf16.mxu0 %v1766
  %2540 = vmatpush1.bf16.msra.mxu0 %v1765
  %2541 = vmatprep.subr.bf16.mxu0 %v1770
  %2542 = vmatpush1.bf16.msra.mxu0 %v1769
  %2543 = vmatprep.subr.bf16.mxu0 %v1774
  %2544 = vmatpush1.bf16.msra.mxu0 %v1773
  %2545 = vmatprep.subr.bf16.mxu0 %v1778
  %2546 = vmatpush1.bf16.msra.mxu0 %v1777
  %2547 = vmatprep.subr.bf16.mxu0 %v1782
  %2548 = vmatpush1.bf16.msra.mxu0 %v1781
  %2549 = vmatprep.subr.bf16.mxu0 %v1786
  %2550 = vmatpush1.bf16.msra.mxu0 %v1785
  %2551 = vmatprep.subr.bf16.mxu0 %v1790
  %2552 = vmatpush1.bf16.msra.mxu0 %v1789
  %2553 = vmatprep.subr.bf16.mxu0 %v1794
  %2554 = vmatpush1.bf16.msra.mxu0 %v1793
  %2555 = vmatprep.subr.bf16.mxu0 %v1798
  %2556 = vmatpush1.bf16.msra.mxu0 %v1797
  %2557 = vmatprep.mubr.bf16.mxu0 %v498
  %2558 = vmatmul.mubr.bf16.gmra.mrb[0].mxu0 %v484
  %v2559 = vpop.f32.mrb[0].mxu0
  %v2560 = vadd.f32 %v442, %v2559
  %v2561 = vpop.f32.mrb[0].mxu0
  %v2562 = vadd.f32 %v446, %v2561
  %v2563 = vpop.f32.mrb[0].mxu0
  %v2564 = vpop.f32.mrb[0].mxu0
  %2565 = vdwg.mxu0
  %2566 = vmatprep.subr.bf16.mxu0 %v1802
  %2567 = vmatpush1.bf16.msra.mxu0 %v1801
  %2568 = vmatprep.subr.bf16.mxu0 %v1806
  %2569 = vmatpush1.bf16.msra.mxu0 %v1805
  %2570 = vmatprep.subr.bf16.mxu0 %v1810
  %2571 = vmatpush1.bf16.msra.mxu0 %v1809
  %2572 = vmatprep.subr.bf16.mxu0 %v1814
  %2573 = vmatpush1.bf16.msra.mxu0 %v1813
  %2574 = vmatprep.subr.bf16.mxu0 %v1818
  %2575 = vmatpush1.bf16.msra.mxu0 %v1817
  %2576 = vmatprep.subr.bf16.mxu0 %v1822
  %2577 = vmatpush1.bf16.msra.mxu0 %v1821
  %2578 = vmatprep.subr.bf16.mxu0 %v1826
  %2579 = vmatpush1.bf16.msra.mxu0 %v1825
  %2580 = vmatprep.subr.bf16.mxu0 %v1830
  %2581 = vmatpush1.bf16.msra.mxu0 %v1829
  %2582 = vmatprep.subr.bf16.mxu0 %v1834
  %2583 = vmatpush1.bf16.msra.mxu0 %v1833
  %2584 = vmatprep.subr.bf16.mxu0 %v1838
  %2585 = vmatpush1.bf16.msra.mxu0 %v1837
  %2586 = vmatprep.subr.bf16.mxu0 %v1842
  %2587 = vmatpush1.bf16.msra.mxu0 %v1841
  %2588 = vmatprep.subr.bf16.mxu0 %v1846
  %2589 = vmatpush1.bf16.msra.mxu0 %v1845
  %2590 = vmatprep.subr.bf16.mxu0 %v1850
  %2591 = vmatpush1.bf16.msra.mxu0 %v1849
  %2592 = vmatprep.subr.bf16.mxu0 %v1854
  %2593 = vmatpush1.bf16.msra.mxu0 %v1853
  %2594 = vmatprep.subr.bf16.mxu0 %v1858
  %2595 = vmatpush1.bf16.msra.mxu0 %v1857
  %2596 = vmatprep.subr.bf16.mxu0 %v1862
  %2597 = vmatpush1.bf16.msra.mxu0 %v1861
  %2598 = vmatprep.mubr.bf16.mxu0 %v508
  %2599 = vmatmul.mubr.bf16.gmra.mrb[0].mxu0 %v506
  %v2600 = vpop.f32.mrb[0].mxu0
  %v2601 = vadd.f32 %v2560, %v2600
  %v2602 = vpop.f32.mrb[0].mxu0
  %v2603 = vadd.f32 %v2562, %v2602
  %v2604 = vpop.f32.mrb[0].mxu0
  %v2605 = vpop.f32.mrb[0].mxu0
  %2606 = vdwg.mxu0
  %2607 = vmatprep.subr.bf16.mxu0 %v1866
  %2608 = vmatpush1.bf16.msra.mxu0 %v1865
  %2609 = vmatprep.subr.bf16.mxu0 %v1870
  %2610 = vmatpush1.bf16.msra.mxu0 %v1869
  %2611 = vmatprep.subr.bf16.mxu0 %v1874
  %2612 = vmatpush1.bf16.msra.mxu0 %v1873
  %2613 = vmatprep.subr.bf16.mxu0 %v1878
  %2614 = vmatpush1.bf16.msra.mxu0 %v1877
  %2615 = vmatprep.subr.bf16.mxu0 %v1882
  %2616 = vmatpush1.bf16.msra.mxu0 %v1881
  %2617 = vmatprep.subr.bf16.mxu0 %v1886
  %2618 = vmatpush1.bf16.msra.mxu0 %v1885
  %2619 = vmatprep.subr.bf16.mxu0 %v1890
  %2620 = vmatpush1.bf16.msra.mxu0 %v1889
  %2621 = vmatprep.subr.bf16.mxu0 %v1894
  %2622 = vmatpush1.bf16.msra.mxu0 %v1893
  %2623 = vmatprep.subr.bf16.mxu0 %v1898
  %2624 = vmatpush1.bf16.msra.mxu0 %v1897
  %2625 = vmatprep.subr.bf16.mxu0 %v1902
  %2626 = vmatpush1.bf16.msra.mxu0 %v1901
  %2627 = vmatprep.subr.bf16.mxu0 %v1906
  %2628 = vmatpush1.bf16.msra.mxu0 %v1905
  %2629 = vmatprep.subr.bf16.mxu0 %v1910
  %2630 = vmatpush1.bf16.msra.mxu0 %v1909
  %2631 = vmatprep.subr.bf16.mxu0 %v1914
  %2632 = vmatpush1.bf16.msra.mxu0 %v1913
  %2633 = vmatprep.subr.bf16.mxu0 %v1918
  %2634 = vmatpush1.bf16.msra.mxu0 %v1917
  %2635 = vmatprep.subr.bf16.mxu0 %v1922
  %2636 = vmatpush1.bf16.msra.mxu0 %v1921
  %2637 = vmatprep.subr.bf16.mxu0 %v1926
  %2638 = vmatpush1.bf16.msra.mxu0 %v1925
  %2639 = vmatprep.mubr.bf16.mxu0 %v505
  %2640 = vmatmul.mubr.bf16.gmra.mrb[0].mxu0 %v491
  %v2641 = vpop.f32.mrb[0].mxu0
  %v2642 = vadd.f32 %v2601, %v2641
  %v2643 = vpop.f32.mrb[0].mxu0
  %v2644 = vadd.f32 %v2603, %v2643
  %v2645 = vpop.f32.mrb[0].mxu0
  %v2646 = vpop.f32.mrb[0].mxu0
  %2647 = vdwg.mxu0
  %2648 = vmatprep.subr.bf16.mxu0 %v1930
  %2649 = vmatpush1.bf16.msra.mxu0 %v1929
  %2650 = vmatprep.subr.bf16.mxu0 %v1934
  %2651 = vmatpush1.bf16.msra.mxu0 %v1933
  %2652 = vmatprep.subr.bf16.mxu0 %v1938
  %2653 = vmatpush1.bf16.msra.mxu0 %v1937
  %2654 = vmatprep.subr.bf16.mxu0 %v1942
  %2655 = vmatpush1.bf16.msra.mxu0 %v1941
  %2656 = vmatprep.subr.bf16.mxu0 %v1946
  %2657 = vmatpush1.bf16.msra.mxu0 %v1945
  %2658 = vmatprep.subr.bf16.mxu0 %v1950
  %2659 = vmatpush1.bf16.msra.mxu0 %v1949
  %2660 = vmatprep.subr.bf16.mxu0 %v1954
  %2661 = vmatpush1.bf16.msra.mxu0 %v1953
  %2662 = vmatprep.subr.bf16.mxu0 %v1958
  %2663 = vmatpush1.bf16.msra.mxu0 %v1957
  %2664 = vmatprep.subr.bf16.mxu0 %v1962
  %2665 = vmatpush1.bf16.msra.mxu0 %v1961
  %2666 = vmatprep.subr.bf16.mxu0 %v1966
  %2667 = vmatpush1.bf16.msra.mxu0 %v1965
  %2668 = vmatprep.subr.bf16.mxu0 %v1970
  %2669 = vmatpush1.bf16.msra.mxu0 %v1969
  %2670 = vmatprep.subr.bf16.mxu0 %v1974
  %2671 = vmatpush1.bf16.msra.mxu0 %v1973
  %2672 = vmatprep.subr.bf16.mxu0 %v1978
  %2673 = vmatpush1.bf16.msra.mxu0 %v1977
  %2674 = vmatprep.subr.bf16.mxu0 %v1982
  %2675 = vmatpush1.bf16.msra.mxu0 %v1981
  %2676 = vmatprep.subr.bf16.mxu0 %v1986
  %2677 = vmatpush1.bf16.msra.mxu0 %v1985
  %2678 = vmatprep.subr.bf16.mxu0 %v1990
  %2679 = vmatpush1.bf16.msra.mxu0 %v1989
  %2680 = vmatprep.mubr.bf16.mxu0 %v509
  %2681 = vmatmul.mubr.bf16.gmra.mrb[0].mxu0 %v507
  %v2682 = vpop.f32.mrb[0].mxu0
  %v2683 = vadd.f32 %v2642, %v2682
  %v2684 = vpop.f32.mrb[0].mxu0
  %v2685 = vadd.f32 %v2644, %v2684
  %v2686 = vpop.f32.mrb[0].mxu0
  %v2687 = vpop.f32.mrb[0].mxu0
  %2688 = vdwg.mxu0
  %2689 = vmatprep.subr.bf16.mxu0 %v1994
  %2690 = vmatpush1.bf16.msra.mxu0 %v1993
  %2691 = vmatprep.subr.bf16.mxu0 %v1998
  %2692 = vmatpush1.bf16.msra.mxu0 %v1997
  %2693 = vmatprep.subr.bf16.mxu0 %v2002
  %2694 = vmatpush1.bf16.msra.mxu0 %v2001
  %2695 = vmatprep.subr.bf16.mxu0 %v2006
  %2696 = vmatpush1.bf16.msra.mxu0 %v2005
  %2697 = vmatprep.subr.bf16.mxu0 %v2010
  %2698 = vmatpush1.bf16.msra.mxu0 %v2009
  %2699 = vmatprep.subr.bf16.mxu0 %v2014
  %2700 = vmatpush1.bf16.msra.mxu0 %v2013
  %2701 = vmatprep.subr.bf16.mxu0 %v2018
  %2702 = vmatpush1.bf16.msra.mxu0 %v2017
  %2703 = vmatprep.subr.bf16.mxu0 %v2022
  %2704 = vmatpush1.bf16.msra.mxu0 %v2021
  %2705 = vmatprep.subr.bf16.mxu0 %v2026
  %2706 = vmatpush1.bf16.msra.mxu0 %v2025
  %2707 = vmatprep.subr.bf16.mxu0 %v2030
  %2708 = vmatpush1.bf16.msra.mxu0 %v2029
  %2709 = vmatprep.subr.bf16.mxu0 %v2034
  %2710 = vmatpush1.bf16.msra.mxu0 %v2033
  %2711 = vmatprep.subr.bf16.mxu0 %v2038
  %2712 = vmatpush1.bf16.msra.mxu0 %v2037
  %2713 = vmatprep.subr.bf16.mxu0 %v2042
  %2714 = vmatpush1.bf16.msra.mxu0 %v2041
  %2715 = vmatprep.subr.bf16.mxu0 %v2046
  %2716 = vmatpush1.bf16.msra.mxu0 %v2045
  %2717 = vmatprep.subr.bf16.mxu0 %v2050
  %2718 = vmatpush1.bf16.msra.mxu0 %v2049
  %2719 = vmatprep.subr.bf16.mxu0 %v2054
  %2720 = vmatpush1.bf16.msra.mxu0 %v2053
  %2721 = vmatprep.mubr.bf16.mxu0 %v546
  %2722 = vmatmul.mubr.bf16.gmra.mrb[0].mxu0 %v532
  %v2723 = vpop.f32.mrb[0].mxu0
  %v2724 = vadd.f32 %v2683, %v2723
  %v2725 = vpop.f32.mrb[0].mxu0
  %v2726 = vadd.f32 %v2685, %v2725
  %v2727 = vpop.f32.mrb[0].mxu0
  %v2728 = vpop.f32.mrb[0].mxu0
  %2729 = vdwg.mxu0
  %2730 = vmatprep.subr.bf16.mxu0 %v2058
  %2731 = vmatpush1.bf16.msra.mxu0 %v2057
  %2732 = vmatprep.subr.bf16.mxu0 %v2062
  %2733 = vmatpush1.bf16.msra.mxu0 %v2061
  %2734 = vmatprep.subr.bf16.mxu0 %v2066
  %2735 = vmatpush1.bf16.msra.mxu0 %v2065
  %2736 = vmatprep.subr.bf16.mxu0 %v2070
  %2737 = vmatpush1.bf16.msra.mxu0 %v2069
  %2738 = vmatprep.subr.bf16.mxu0 %v2074
  %2739 = vmatpush1.bf16.msra.mxu0 %v2073
  %2740 = vmatprep.subr.bf16.mxu0 %v2078
  %2741 = vmatpush1.bf16.msra.mxu0 %v2077
  %2742 = vmatprep.subr.bf16.mxu0 %v2082
  %2743 = vmatpush1.bf16.msra.mxu0 %v2081
  %2744 = vmatprep.subr.bf16.mxu0 %v2086
  %2745 = vmatpush1.bf16.msra.mxu0 %v2085
  %2746 = vmatprep.subr.bf16.mxu0 %v2090
  %2747 = vmatpush1.bf16.msra.mxu0 %v2089
  %2748 = vmatprep.subr.bf16.mxu0 %v2094
  %2749 = vmatpush1.bf16.msra.mxu0 %v2093
  %2750 = vmatprep.subr.bf16.mxu0 %v2098
  %2751 = vmatpush1.bf16.msra.mxu0 %v2097
  %2752 = vmatprep.subr.bf16.mxu0 %v2102
  %2753 = vmatpush1.bf16.msra.mxu0 %v2101
  %2754 = vmatprep.subr.bf16.mxu0 %v2106
  %2755 = vmatpush1.bf16.msra.mxu0 %v2105
  %2756 = vmatprep.subr.bf16.mxu0 %v2110
  %2757 = vmatpush1.bf16.msra.mxu0 %v2109
  %2758 = vmatprep.subr.bf16.mxu0 %v2114
  %2759 = vmatpush1.bf16.msra.mxu0 %v2113
  %2760 = vmatprep.subr.bf16.mxu0 %v2118
  %2761 = vmatpush1.bf16.msra.mxu0 %v2117
  %2762 = vmatprep.mubr.bf16.mxu0 %v548
  %2763 = vmatmul.mubr.bf16.gmra.mrb[0].mxu0 %v547
  %v2764 = vpop.f32.mrb[0].mxu0
  %v2765 = vadd.f32 %v2724, %v2764
  %v2766 = vpop.f32.mrb[0].mxu0
  %v2767 = vadd.f32 %v2726, %v2766
  %v2768 = vpop.f32.mrb[0].mxu0
  %v2769 = vpop.f32.mrb[0].mxu0
  %2770 = vdwg.mxu0
  %2771 = vmatprep.subr.bf16.mxu0 %v2122
  %2772 = vmatpush1.bf16.msra.mxu0 %v2121
  %2773 = vmatprep.subr.bf16.mxu0 %v2126
  %2774 = vmatpush1.bf16.msra.mxu0 %v2125
  %2775 = vmatprep.subr.bf16.mxu0 0
  %2776 = vmatpush1.bf16.msra.mxu0 0
  %2777 = vmatprep.subr.bf16.mxu0 0
  %2778 = vmatpush1.bf16.msra.mxu0 0
  %2779 = vmatprep.subr.bf16.mxu0 0
  %2780 = vmatpush1.bf16.msra.mxu0 0
  %2781 = vmatprep.subr.bf16.mxu0 0
  %2782 = vmatpush1.bf16.msra.mxu0 0
  %2783 = vmatprep.subr.bf16.mxu0 0
  %2784 = vmatpush1.bf16.msra.mxu0 0
  %2785 = vmatprep.subr.bf16.mxu0 0
  %2786 = vmatpush1.bf16.msra.mxu0 0
  %2787 = vmatprep.subr.bf16.mxu0 0
  %2788 = vmatpush1.bf16.msra.mxu0 0
  %2789 = vmatprep.subr.bf16.mxu0 0
  %2790 = vmatpush1.bf16.msra.mxu0 0
  %2791 = vmatprep.subr.bf16.mxu0 0
  %2792 = vmatpush1.bf16.msra.mxu0 0
  %2793 = vmatprep.subr.bf16.mxu0 0
  %2794 = vmatpush1.bf16.msra.mxu0 0
  %2795 = vmatprep.subr.bf16.mxu0 0
  %2796 = vmatpush1.bf16.msra.mxu0 0
  %2797 = vmatprep.subr.bf16.mxu0 0
  %2798 = vmatpush1.bf16.msra.mxu0 0
  %2799 = vmatprep.subr.bf16.mxu0 0
  %2800 = vmatpush1.bf16.msra.mxu0 0
  %2801 = vmatprep.subr.bf16.mxu0 0
  %2802 = vmatpush1.bf16.msra.mxu0 0
  %2803 = vmatprep.mubr.bf16.mxu0 0
  %2804 = vmatmul.mubr.bf16.gmra.mrb[0].mxu0 %v2523
  %v2805 = vpop.f32.mrb[0].mxu0
  %v2806 = vadd.f32 %v2765, %v2805
  %v2807 = vpop.f32.mrb[0].mxu0
  %v2808 = vadd.f32 %v2767, %v2807
  %v2809 = vpop.f32.mrb[0].mxu0
  %v2810 = vpop.f32.mrb[0].mxu0
  %2811 = vdwg.mxu0
  %2812 = vmatprep.subr.bf16.mxu0 %v1740
  %2813 = vmatpush1.bf16.msra.mxu0 %v1739
  %2814 = vmatprep.subr.bf16.mxu0 %v1744
  %2815 = vmatpush1.bf16.msra.mxu0 %v1743
  %2816 = vmatprep.subr.bf16.mxu0 %v1748
  %2817 = vmatpush1.bf16.msra.mxu0 %v1747
  %2818 = vmatprep.subr.bf16.mxu0 %v1752
  %2819 = vmatpush1.bf16.msra.mxu0 %v1751
  %2820 = vmatprep.subr.bf16.mxu0 %v1756
  %2821 = vmatpush1.bf16.msra.mxu0 %v1755
  %2822 = vmatprep.subr.bf16.mxu0 %v1760
  %2823 = vmatpush1.bf16.msra.mxu0 %v1759
  %2824 = vmatprep.subr.bf16.mxu0 %v1764
  %2825 = vmatpush1.bf16.msra.mxu0 %v1763
  %2826 = vmatprep.subr.bf16.mxu0 %v1768
  %2827 = vmatpush1.bf16.msra.mxu0 %v1767
  %2828 = vmatprep.subr.bf16.mxu0 %v1772
  %2829 = vmatpush1.bf16.msra.mxu0 %v1771
  %2830 = vmatprep.subr.bf16.mxu0 %v1776
  %2831 = vmatpush1.bf16.msra.mxu0 %v1775
  %2832 = vmatprep.subr.bf16.mxu0 %v1780
  %2833 = vmatpush1.bf16.msra.mxu0 %v1779
  %2834 = vmatprep.subr.bf16.mxu0 %v1784
  %2835 = vmatpush1.bf16.msra.mxu0 %v1783
  %2836 = vmatprep.subr.bf16.mxu0 %v1788
  %2837 = vmatpush1.bf16.msra.mxu0 %v1787
  %2838 = vmatprep.subr.bf16.mxu0 %v1792
  %2839 = vmatpush1.bf16.msra.mxu0 %v1791
  %2840 = vmatprep.subr.bf16.mxu0 %v1796
  %2841 = vmatpush1.bf16.msra.mxu0 %v1795
  %2842 = vmatprep.subr.bf16.mxu0 %v1800
  %2843 = vmatpush1.bf16.msra.mxu0 %v1799
  %2844 = vmatprep.mubr.bf16.mxu0 %v498
  %2845 = vmatmul.mubr.bf16.gmra.mrb[0].mxu0 %v484
  %v2846 = vpop.f32.mrb[0].mxu0
  %v2847 = vadd.f32 %v450, %v2846
  %v2848 = vpop.f32.mrb[0].mxu0
  %v2849 = vadd.f32 %v454, %v2848
  %v2850 = vpop.f32.mrb[0].mxu0
  %v2851 = vpop.f32.mrb[0].mxu0
  %2852 = vdwg.mxu0
  %2853 = vmatprep.subr.bf16.mxu0 %v1804
  %2854 = vmatpush1.bf16.msra.mxu0 %v1803
  %2855 = vmatprep.subr.bf16.mxu0 %v1808
  %2856 = vmatpush1.bf16.msra.mxu0 %v1807
  %2857 = vmatprep.subr.bf16.mxu0 %v1812
  %2858 = vmatpush1.bf16.msra.mxu0 %v1811
  %2859 = vmatprep.subr.bf16.mxu0 %v1816
  %2860 = vmatpush1.bf16.msra.mxu0 %v1815
  %2861 = vmatprep.subr.bf16.mxu0 %v1820
  %2862 = vmatpush1.bf16.msra.mxu0 %v1819
  %2863 = vmatprep.subr.bf16.mxu0 %v1824
  %2864 = vmatpush1.bf16.msra.mxu0 %v1823
  %2865 = vmatprep.subr.bf16.mxu0 %v1828
  %2866 = vmatpush1.bf16.msra.mxu0 %v1827
  %2867 = vmatprep.subr.bf16.mxu0 %v1832
  %2868 = vmatpush1.bf16.msra.mxu0 %v1831
  %2869 = vmatprep.subr.bf16.mxu0 %v1836
  %2870 = vmatpush1.bf16.msra.mxu0 %v1835
  %2871 = vmatprep.subr.bf16.mxu0 %v1840
  %2872 = vmatpush1.bf16.msra.mxu0 %v1839
  %2873 = vmatprep.subr.bf16.mxu0 %v1844
  %2874 = vmatpush1.bf16.msra.mxu0 %v1843
  %2875 = vmatprep.subr.bf16.mxu0 %v1848
  %2876 = vmatpush1.bf16.msra.mxu0 %v1847
  %2877 = vmatprep.subr.bf16.mxu0 %v1852
  %2878 = vmatpush1.bf16.msra.mxu0 %v1851
  %2879 = vmatprep.subr.bf16.mxu0 %v1856
  %2880 = vmatpush1.bf16.msra.mxu0 %v1855
  %2881 = vmatprep.subr.bf16.mxu0 %v1860
  %2882 = vmatpush1.bf16.msra.mxu0 %v1859
  %2883 = vmatprep.subr.bf16.mxu0 %v1864
  %2884 = vmatpush1.bf16.msra.mxu0 %v1863
  %2885 = vmatprep.mubr.bf16.mxu0 %v508
  %2886 = vmatmul.mubr.bf16.gmra.mrb[0].mxu0 %v506
  %v2887 = vpop.f32.mrb[0].mxu0
  %v2888 = vadd.f32 %v2847, %v2887
  %v2889 = vpop.f32.mrb[0].mxu0
  %v2890 = vadd.f32 %v2849, %v2889
  %v2891 = vpop.f32.mrb[0].mxu0
  %v2892 = vpop.f32.mrb[0].mxu0
  %2893 = vdwg.mxu0
  %2894 = vmatprep.subr.bf16.mxu0 %v1868
  %2895 = vmatpush1.bf16.msra.mxu0 %v1867
  %2896 = vmatprep.subr.bf16.mxu0 %v1872
  %2897 = vmatpush1.bf16.msra.mxu0 %v1871
  %2898 = vmatprep.subr.bf16.mxu0 %v1876
  %2899 = vmatpush1.bf16.msra.mxu0 %v1875
  %2900 = vmatprep.subr.bf16.mxu0 %v1880
  %2901 = vmatpush1.bf16.msra.mxu0 %v1879
  %2902 = vmatprep.subr.bf16.mxu0 %v1884
  %2903 = vmatpush1.bf16.msra.mxu0 %v1883
  %2904 = vmatprep.subr.bf16.mxu0 %v1888
  %2905 = vmatpush1.bf16.msra.mxu0 %v1887
  %2906 = vmatprep.subr.bf16.mxu0 %v1892
  %2907 = vmatpush1.bf16.msra.mxu0 %v1891
  %2908 = vmatprep.subr.bf16.mxu0 %v1896
  %2909 = vmatpush1.bf16.msra.mxu0 %v1895
  %2910 = vmatprep.subr.bf16.mxu0 %v1900
  %2911 = vmatpush1.bf16.msra.mxu0 %v1899
  %2912 = vmatprep.subr.bf16.mxu0 %v1904
  %2913 = vmatpush1.bf16.msra.mxu0 %v1903
  %2914 = vmatprep.subr.bf16.mxu0 %v1908
  %2915 = vmatpush1.bf16.msra.mxu0 %v1907
  %2916 = vmatprep.subr.bf16.mxu0 %v1912
  %2917 = vmatpush1.bf16.msra.mxu0 %v1911
  %2918 = vmatprep.subr.bf16.mxu0 %v1916
  %2919 = vmatpush1.bf16.msra.mxu0 %v1915
  %2920 = vmatprep.subr.bf16.mxu0 %v1920
  %2921 = vmatpush1.bf16.msra.mxu0 %v1919
  %2922 = vmatprep.subr.bf16.mxu0 %v1924
  %2923 = vmatpush1.bf16.msra.mxu0 %v1923
  %2924 = vmatprep.subr.bf16.mxu0 %v1928
  %2925 = vmatpush1.bf16.msra.mxu0 %v1927
  %2926 = vmatprep.mubr.bf16.mxu0 %v505
  %2927 = vmatmul.mubr.bf16.gmra.mrb[0].mxu0 %v491
  %v2928 = vpop.f32.mrb[0].mxu0
  %v2929 = vadd.f32 %v2888, %v2928
  %v2930 = vpop.f32.mrb[0].mxu0
  %v2931 = vadd.f32 %v2890, %v2930
  %v2932 = vpop.f32.mrb[0].mxu0
  %v2933 = vpop.f32.mrb[0].mxu0
  %2934 = vdwg.mxu0
  %2935 = vmatprep.subr.bf16.mxu0 %v1932
  %2936 = vmatpush1.bf16.msra.mxu0 %v1931
  %2937 = vmatprep.subr.bf16.mxu0 %v1936
  %2938 = vmatpush1.bf16.msra.mxu0 %v1935
  %2939 = vmatprep.subr.bf16.mxu0 %v1940
  %2940 = vmatpush1.bf16.msra.mxu0 %v1939
  %2941 = vmatprep.subr.bf16.mxu0 %v1944
  %2942 = vmatpush1.bf16.msra.mxu0 %v1943
  %2943 = vmatprep.subr.bf16.mxu0 %v1948
  %2944 = vmatpush1.bf16.msra.mxu0 %v1947
  %2945 = vmatprep.subr.bf16.mxu0 %v1952
  %2946 = vmatpush1.bf16.msra.mxu0 %v1951
  %2947 = vmatprep.subr.bf16.mxu0 %v1956
  %2948 = vmatpush1.bf16.msra.mxu0 %v1955
  %2949 = vmatprep.subr.bf16.mxu0 %v1960
  %2950 = vmatpush1.bf16.msra.mxu0 %v1959
  %2951 = vmatprep.subr.bf16.mxu0 %v1964
  %2952 = vmatpush1.bf16.msra.mxu0 %v1963
  %2953 = vmatprep.subr.bf16.mxu0 %v1968
  %2954 = vmatpush1.bf16.msra.mxu0 %v1967
  %2955 = vmatprep.subr.bf16.mxu0 %v1972
  %2956 = vmatpush1.bf16.msra.mxu0 %v1971
  %2957 = vmatprep.subr.bf16.mxu0 %v1976
  %2958 = vmatpush1.bf16.msra.mxu0 %v1975
  %2959 = vmatprep.subr.bf16.mxu0 %v1980
  %2960 = vmatpush1.bf16.msra.mxu0 %v1979
  %2961 = vmatprep.subr.bf16.mxu0 %v1984
  %2962 = vmatpush1.bf16.msra.mxu0 %v1983
  %2963 = vmatprep.subr.bf16.mxu0 %v1988
  %2964 = vmatpush1.bf16.msra.mxu0 %v1987
  %2965 = vmatprep.subr.bf16.mxu0 %v1992
  %2966 = vmatpush1.bf16.msra.mxu0 %v1991
  %2967 = vmatprep.mubr.bf16.mxu0 %v509
  %2968 = vmatmul.mubr.bf16.gmra.mrb[0].mxu0 %v507
  %v2969 = vpop.f32.mrb[0].mxu0
  %v2970 = vadd.f32 %v2929, %v2969
  %v2971 = vpop.f32.mrb[0].mxu0
  %v2972 = vadd.f32 %v2931, %v2971
  %v2973 = vpop.f32.mrb[0].mxu0
  %v2974 = vpop.f32.mrb[0].mxu0
  %2975 = vdwg.mxu0
  %2976 = vmatprep.subr.bf16.mxu0 %v1996
  %2977 = vmatpush1.bf16.msra.mxu0 %v1995
  %2978 = vmatprep.subr.bf16.mxu0 %v2000
  %2979 = vmatpush1.bf16.msra.mxu0 %v1999
  %2980 = vmatprep.subr.bf16.mxu0 %v2004
  %2981 = vmatpush1.bf16.msra.mxu0 %v2003
  %2982 = vmatprep.subr.bf16.mxu0 %v2008
  %2983 = vmatpush1.bf16.msra.mxu0 %v2007
  %2984 = vmatprep.subr.bf16.mxu0 %v2012
  %2985 = vmatpush1.bf16.msra.mxu0 %v2011
  %2986 = vmatprep.subr.bf16.mxu0 %v2016
  %2987 = vmatpush1.bf16.msra.mxu0 %v2015
  %2988 = vmatprep.subr.bf16.mxu0 %v2020
  %2989 = vmatpush1.bf16.msra.mxu0 %v2019
  %2990 = vmatprep.subr.bf16.mxu0 %v2024
  %2991 = vmatpush1.bf16.msra.mxu0 %v2023
  %2992 = vmatprep.subr.bf16.mxu0 %v2028
  %2993 = vmatpush1.bf16.msra.mxu0 %v2027
  %2994 = vmatprep.subr.bf16.mxu0 %v2032
  %2995 = vmatpush1.bf16.msra.mxu0 %v2031
  %2996 = vmatprep.subr.bf16.mxu0 %v2036
  %2997 = vmatpush1.bf16.msra.mxu0 %v2035
  %2998 = vmatprep.subr.bf16.mxu0 %v2040
  %2999 = vmatpush1.bf16.msra.mxu0 %v2039
  %3000 = vmatprep.subr.bf16.mxu0 %v2044
  %3001 = vmatpush1.bf16.msra.mxu0 %v2043
  %3002 = vmatprep.subr.bf16.mxu0 %v2048
  %3003 = vmatpush1.bf16.msra.mxu0 %v2047
  %3004 = vmatprep.subr.bf16.mxu0 %v2052
  %3005 = vmatpush1.bf16.msra.mxu0 %v2051
  %3006 = vmatprep.subr.bf16.mxu0 %v2056
  %3007 = vmatpush1.bf16.msra.mxu0 %v2055
  %3008 = vmatprep.mubr.bf16.mxu0 %v546
  %3009 = vmatmul.mubr.bf16.gmra.mrb[0].mxu0 %v532
  %v3010 = vpop.f32.mrb[0].mxu0
  %v3011 = vadd.f32 %v2970, %v3010
  %v3012 = vpop.f32.mrb[0].mxu0
  %v3013 = vadd.f32 %v2972, %v3012
  %v3014 = vpop.f32.mrb[0].mxu0
  %v3015 = vpop.f32.mrb[0].mxu0
  %3016 = vdwg.mxu0
  %3017 = vmatprep.subr.bf16.mxu0 %v2060
  %3018 = vmatpush1.bf16.msra.mxu0 %v2059
  %3019 = vmatprep.subr.bf16.mxu0 %v2064
  %3020 = vmatpush1.bf16.msra.mxu0 %v2063
  %3021 = vmatprep.subr.bf16.mxu0 %v2068
  %3022 = vmatpush1.bf16.msra.mxu0 %v2067
  %3023 = vmatprep.subr.bf16.mxu0 %v2072
  %3024 = vmatpush1.bf16.msra.mxu0 %v2071
  %3025 = vmatprep.subr.bf16.mxu0 %v2076
  %3026 = vmatpush1.bf16.msra.mxu0 %v2075
  %3027 = vmatprep.subr.bf16.mxu0 %v2080
  %3028 = vmatpush1.bf16.msra.mxu0 %v2079
  %3029 = vmatprep.subr.bf16.mxu0 %v2084
  %3030 = vmatpush1.bf16.msra.mxu0 %v2083
  %3031 = vmatprep.subr.bf16.mxu0 %v2088
  %3032 = vmatpush1.bf16.msra.mxu0 %v2087
  %3033 = vmatprep.subr.bf16.mxu0 %v2092
  %3034 = vmatpush1.bf16.msra.mxu0 %v2091
  %3035 = vmatprep.subr.bf16.mxu0 %v2096
  %3036 = vmatpush1.bf16.msra.mxu0 %v2095
  %3037 = vmatprep.subr.bf16.mxu0 %v2100
  %3038 = vmatpush1.bf16.msra.mxu0 %v2099
  %3039 = vmatprep.subr.bf16.mxu0 %v2104
  %3040 = vmatpush1.bf16.msra.mxu0 %v2103
  %3041 = vmatprep.subr.bf16.mxu0 %v2108
  %3042 = vmatpush1.bf16.msra.mxu0 %v2107
  %3043 = vmatprep.subr.bf16.mxu0 %v2112
  %3044 = vmatpush1.bf16.msra.mxu0 %v2111
  %3045 = vmatprep.subr.bf16.mxu0 %v2116
  %3046 = vmatpush1.bf16.msra.mxu0 %v2115
  %3047 = vmatprep.subr.bf16.mxu0 %v2120
  %3048 = vmatpush1.bf16.msra.mxu0 %v2119
  %3049 = vmatprep.mubr.bf16.mxu0 %v548
  %3050 = vmatmul.mubr.bf16.gmra.mrb[0].mxu0 %v547
  %v3051 = vpop.f32.mrb[0].mxu0
  %v3052 = vadd.f32 %v3011, %v3051
  %v3053 = vpop.f32.mrb[0].mxu0
  %v3054 = vadd.f32 %v3013, %v3053
  %v3055 = vpop.f32.mrb[0].mxu0
  %v3056 = vpop.f32.mrb[0].mxu0
  %3057 = vdwg.mxu0
  %3058 = vmatprep.subr.bf16.mxu0 %v2124
  %3059 = vmatpush1.bf16.msra.mxu0 %v2123
  %3060 = vmatprep.subr.bf16.mxu0 %v2128
  %3061 = vmatpush1.bf16.msra.mxu0 %v2127
  %3062 = vmatprep.subr.bf16.mxu0 0
  %3063 = vmatpush1.bf16.msra.mxu0 0
  %3064 = vmatprep.subr.bf16.mxu0 0
  %3065 = vmatpush1.bf16.msra.mxu0 0
  %3066 = vmatprep.subr.bf16.mxu0 0
  %3067 = vmatpush1.bf16.msra.mxu0 0
  %3068 = vmatprep.subr.bf16.mxu0 0
  %3069 = vmatpush1.bf16.msra.mxu0 0
  %3070 = vmatprep.subr.bf16.mxu0 0
  %3071 = vmatpush1.bf16.msra.mxu0 0
  %3072 = vmatprep.subr.bf16.mxu0 0
  %3073 = vmatpush1.bf16.msra.mxu0 0
  %3074 = vmatprep.subr.bf16.mxu0 0
  %3075 = vmatpush1.bf16.msra.mxu0 0
  %3076 = vmatprep.subr.bf16.mxu0 0
  %3077 = vmatpush1.bf16.msra.mxu0 0
  %3078 = vmatprep.subr.bf16.mxu0 0
  %3079 = vmatpush1.bf16.msra.mxu0 0
  %3080 = vmatprep.subr.bf16.mxu0 0
  %3081 = vmatpush1.bf16.msra.mxu0 0
  %3082 = vmatprep.subr.bf16.mxu0 0
  %3083 = vmatpush1.bf16.msra.mxu0 0
  %3084 = vmatprep.subr.bf16.mxu0 0
  %3085 = vmatpush1.bf16.msra.mxu0 0
  %3086 = vmatprep.subr.bf16.mxu0 0
  %3087 = vmatpush1.bf16.msra.mxu0 0
  %3088 = vmatprep.subr.bf16.mxu0 0
  %3089 = vmatpush1.bf16.msra.mxu0 0
  %3090 = vmatprep.mubr.bf16.mxu0 0
  %3091 = vmatmul.mubr.bf16.gmra.mrb[0].mxu0 %v2523
  %v3092 = vpop.f32.mrb[0].mxu0
  %v3093 = vadd.f32 %v3052, %v3092
  %v3094 = vpop.f32.mrb[0].mxu0
  %v3095 = vadd.f32 %v3054, %v3094
  %v3096 = vpop.f32.mrb[0].mxu0
  %v3097 = vpop.f32.mrb[0].mxu0
  %3098 = vdwg.mxu0
  %v3099 = vmax.f32 %v2806, 0.0
  %v3100 = vmax.f32 %v2808, 0.0
  %v3101 = vmax.f32 %v3093, 0.0
  %v3102 = vmax.f32 %v3095, 0.0
  %v3103 = vld [vmem:[%s1] sm:$0xff]
  %v3104 = vld [vmem:[%s2] sm:$0x3]
  %3106 = vset.pattern.permute.xlu0 0
  %3107 = vperm.xlu0 %3106, %v3104
  %v3108 = vpop.permute.xlu0 %3107
  %v3110 = vunpack.c.l.s4 269488144
  %v3111 = vunpack.c.0.s8 %v3110
  %v3112 = vlaneseq
  %v3113 = vshrl.u32 %v3112, 7
  %v3114 = vsub.s32 %v3111, %v3113
  %v3115 = vrot.slane %v3108, %v3114
  %v3117 = vmul.f32 %v3103, %v3115
  %v3118 = vpack.c.bf16 %v3099, %v3099
  %v3119 = vpack.c.bf16 %v3100, %v3100
  %v3120 = vpack.c.bf16 %v3101, %v3101
  %v3121 = vpack.c.bf16 %v3102, %v3102
  %v3122 = vld [vmem:[%s5] sm:$0xff]
  %v3123 = vld [vmem:[%s5 + $0x8] sm:$0xff]
  %v3124 = vld [vmem:[%s5 + $0x10] sm:$0xff]
  %v3125 = vld [vmem:[%s5 + $0x18] sm:$0xff]
  %v3126 = vld [vmem:[%s5 + $0x20] sm:$0xff]
  %v3127 = vld [vmem:[%s5 + $0x28] sm:$0xff]
  %v3128 = vld [vmem:[%s5 + $0x30] sm:$0xff]
  %v3129 = vld [vmem:[%s5 + $0x38] sm:$0xff]
  %v3130 = vld [vmem:[%s5 + $0x40] sm:$0xff]
  %v3131 = vld [vmem:[%s5 + $0x48] sm:$0xff]
  %v3132 = vld [vmem:[%s5 + $0x50] sm:$0xff]
  %v3133 = vld [vmem:[%s5 + $0x58] sm:$0xff]
  %v3134 = vld [vmem:[%s5 + $0x60] sm:$0xff]
  %v3135 = vld [vmem:[%s5 + $0x68] sm:$0xff]
  %v3136 = vld [vmem:[%s5 + $0x70] sm:$0xff]
  %v3137 = vld [vmem:[%s5 + $0x78] sm:$0xff]
  %v3138 = vld [vmem:[%s5 + $0x80] sm:$0xff]
  %v3139 = vld [vmem:[%s5 + $0x88] sm:$0xff]
  %v3140 = vld [vmem:[%s5 + $0x90] sm:$0xff]
  %v3141 = vld [vmem:[%s5 + $0x98] sm:$0xff]
  %v3142 = vld [vmem:[%s5 + $0xa0] sm:$0xff]
  %v3143 = vld [vmem:[%s5 + $0xa8] sm:$0xff]
  %v3144 = vld [vmem:[%s5 + $0xb0] sm:$0xff]
  %v3145 = vld [vmem:[%s5 + $0xb8] sm:$0xff]
  %v3146 = vld [vmem:[%s5 + $0xc0] sm:$0xff]
  %v3147 = vld [vmem:[%s5 + $0xc8] sm:$0xff]
  %v3148 = vld [vmem:[%s5 + $0xd0] sm:$0xff]
  %v3149 = vld [vmem:[%s5 + $0xd8] sm:$0xff]
  %v3150 = vld [vmem:[%s5 + $0xe0] sm:$0xff]
  %v3151 = vld [vmem:[%s5 + $0xe8] sm:$0xff]
  %v3152 = vld [vmem:[%s5 + $0xf0] sm:$0xff]
  %v3153 = vld [vmem:[%s5 + $0xf8] sm:$0xff]
  %v3154 = vld [vmem:[%s5 + $0x100] sm:$0xff]
  %v3155 = vld [vmem:[%s5 + $0x108] sm:$0xff]
  %v3156 = vld [vmem:[%s5 + $0x110] sm:$0xff]
  %v3157 = vld [vmem:[%s5 + $0x118] sm:$0xff]
  %v3158 = vld [vmem:[%s5 + $0x120] sm:$0xff]
  %v3159 = vld [vmem:[%s5 + $0x128] sm:$0xff]
  %v3160 = vld [vmem:[%s5 + $0x130] sm:$0xff]
  %v3161 = vld [vmem:[%s5 + $0x138] sm:$0xff]
  %v3162 = vld [vmem:[%s5 + $0x140] sm:$0xff]
  %v3163 = vld [vmem:[%s5 + $0x148] sm:$0xff]
  %v3164 = vld [vmem:[%s5 + $0x150] sm:$0xff]
  %v3165 = vld [vmem:[%s5 + $0x158] sm:$0xff]
  %v3166 = vld [vmem:[%s5 + $0x160] sm:$0xff]
  %v3167 = vld [vmem:[%s5 + $0x168] sm:$0xff]
  %v3168 = vld [vmem:[%s5 + $0x170] sm:$0xff]
  %v3169 = vld [vmem:[%s5 + $0x178] sm:$0xff]
  %v3170 = vld [vmem:[%s5 + $0x180] sm:$0xff]
  %v3171 = vld [vmem:[%s5 + $0x188] sm:$0xff]
  %v3172 = vld [vmem:[%s5 + $0x190] sm:$0xff]
  %v3173 = vld [vmem:[%s5 + $0x198] sm:$0xff]
  %v3174 = vld [vmem:[%s5 + $0x1a0] sm:$0xff]
  %v3175 = vld [vmem:[%s5 + $0x1a8] sm:$0xff]
  %v3176 = vld [vmem:[%s5 + $0x1b0] sm:$0xff]
  %v3177 = vld [vmem:[%s5 + $0x1b8] sm:$0xff]
  %v3178 = vld [vmem:[%s5 + $0x1c0] sm:$0xff]
  %v3179 = vld [vmem:[%s5 + $0x1c8] sm:$0xff]
  %v3180 = vld [vmem:[%s5 + $0x1d0] sm:$0xff]
  %v3181 = vld [vmem:[%s5 + $0x1d8] sm:$0xff]
  %v3182 = vld [vmem:[%s5 + $0x1e0] sm:$0xff]
  %v3183 = vld [vmem:[%s5 + $0x1e8] sm:$0xff]
  %v3184 = vld [vmem:[%s5 + $0x1f0] sm:$0xff]
  %v3185 = vld [vmem:[%s5 + $0x1f8] sm:$0xff]
  %v3186 = vld [vmem:[%s5 + $0x200] sm:$0xff]
  %v3187 = vld [vmem:[%s5 + $0x208] sm:$0xff]
  %v3188 = vld [vmem:[%s5 + $0x210] sm:$0xff]
  %v3189 = vld [vmem:[%s5 + $0x218] sm:$0xff]
  %v3190 = vld [vmem:[%s5 + $0x220] sm:$0xff]
  %v3191 = vld [vmem:[%s5 + $0x228] sm:$0xff]
  %v3192 = vld [vmem:[%s5 + $0x230] sm:$0xff]
  %v3193 = vld [vmem:[%s5 + $0x238] sm:$0xff]
  %v3194 = vld [vmem:[%s5 + $0x240] sm:$0xff]
  %v3195 = vld [vmem:[%s5 + $0x248] sm:$0xff]
  %v3196 = vld [vmem:[%s5 + $0x250] sm:$0xff]
  %v3197 = vld [vmem:[%s5 + $0x258] sm:$0xff]
  %v3198 = vld [vmem:[%s5 + $0x260] sm:$0xff]
  %v3199 = vld [vmem:[%s5 + $0x268] sm:$0xff]
  %v3200 = vld [vmem:[%s5 + $0x270] sm:$0xff]
  %v3201 = vld [vmem:[%s5 + $0x278] sm:$0xff]
  %v3202 = vld [vmem:[%s5 + $0x280] sm:$0xff]
  %v3203 = vld [vmem:[%s5 + $0x288] sm:$0xff]
  %v3204 = vld [vmem:[%s5 + $0x290] sm:$0xff]
  %v3205 = vld [vmem:[%s5 + $0x298] sm:$0xff]
  %v3206 = vld [vmem:[%s5 + $0x2a0] sm:$0xff]
  %v3207 = vld [vmem:[%s5 + $0x2a8] sm:$0xff]
  %v3208 = vld [vmem:[%s5 + $0x2b0] sm:$0xff]
  %v3209 = vld [vmem:[%s5 + $0x2b8] sm:$0xff]
  %v3210 = vld [vmem:[%s5 + $0x2c0] sm:$0xff]
  %v3211 = vld [vmem:[%s5 + $0x2c8] sm:$0xff]
  %v3212 = vld [vmem:[%s5 + $0x2d0] sm:$0xff]
  %v3213 = vld [vmem:[%s5 + $0x2d8] sm:$0xff]
  %v3214 = vld [vmem:[%s5 + $0x2e0] sm:$0xff]
  %v3215 = vld [vmem:[%s5 + $0x2e8] sm:$0xff]
  %v3216 = vld [vmem:[%s5 + $0x2f0] sm:$0xff]
  %v3217 = vld [vmem:[%s5 + $0x2f8] sm:$0xff]
  %v3218 = vld [vmem:[%s5 + $0x300] sm:$0xff]
  %v3219 = vld [vmem:[%s5 + $0x308] sm:$0xff]
  %v3220 = vld [vmem:[%s5 + $0x310] sm:$0xff]
  %v3221 = vld [vmem:[%s5 + $0x318] sm:$0xff]
  %v3222 = vld [vmem:[%s5 + $0x320] sm:$0xff]
  %v3223 = vld [vmem:[%s5 + $0x328] sm:$0xff]
  %v3224 = vld [vmem:[%s5 + $0x330] sm:$0xff]
  %v3225 = vld [vmem:[%s5 + $0x338] sm:$0xff]
  %v3226 = vld [vmem:[%s5 + $0x340] sm:$0xff]
  %v3227 = vld [vmem:[%s5 + $0x348] sm:$0xff]
  %v3228 = vld [vmem:[%s5 + $0x350] sm:$0xff]
  %v3229 = vld [vmem:[%s5 + $0x358] sm:$0xff]
  %v3230 = vld [vmem:[%s5 + $0x360] sm:$0xff]
  %v3231 = vld [vmem:[%s5 + $0x368] sm:$0xff]
  %v3232 = vld [vmem:[%s5 + $0x370] sm:$0xff]
  %v3233 = vld [vmem:[%s5 + $0x378] sm:$0xff]
  %v3234 = vld [vmem:[%s5 + $0x380] sm:$0xff]
  %v3235 = vld [vmem:[%s5 + $0x388] sm:$0xff]
  %v3236 = vld [vmem:[%s5 + $0x390] sm:$0xff]
  %v3237 = vld [vmem:[%s5 + $0x398] sm:$0xff]
  %v3238 = vld [vmem:[%s5 + $0x3a0] sm:$0xff]
  %v3239 = vld [vmem:[%s5 + $0x3a8] sm:$0xff]
  %v3240 = vld [vmem:[%s5 + $0x3b0] sm:$0xff]
  %v3241 = vld [vmem:[%s5 + $0x3b8] sm:$0xff]
  %v3242 = vld [vmem:[%s5 + $0x3c0] sm:$0xff]
  %v3243 = vld [vmem:[%s5 + $0x3c8] sm:$0xff]
  %v3244 = vld [vmem:[%s5 + $0x3d0] sm:$0xff]
  %v3245 = vld [vmem:[%s5 + $0x3d8] sm:$0xff]
  %v3246 = vld [vmem:[%s5 + $0x3e0] sm:$0xff]
  %v3247 = vld [vmem:[%s5 + $0x3e8] sm:$0xff]
  %v3248 = vld [vmem:[%s5 + $0x3f0] sm:$0xff]
  %v3249 = vld [vmem:[%s5 + $0x3f8] sm:$0xff]
  %v3250 = vld [vmem:[%s5 + $0x400] sm:$0xff]
  %v3251 = vld [vmem:[%s5 + $0x408] sm:$0xff]
  %v3252 = vld [vmem:[%s5 + $0x410] sm:$0xff]
  %v3253 = vld [vmem:[%s5 + $0x418] sm:$0xff]
  %v3254 = vld [vmem:[%s5 + $0x420] sm:$0xff]
  %v3255 = vld [vmem:[%s5 + $0x428] sm:$0xff]
  %v3256 = vld [vmem:[%s5 + $0x430] sm:$0xff]
  %v3257 = vld [vmem:[%s5 + $0x438] sm:$0xff]
  %v3258 = vld [vmem:[%s5 + $0x440] sm:$0xff]
  %v3259 = vld [vmem:[%s5 + $0x448] sm:$0xff]
  %v3260 = vld [vmem:[%s5 + $0x450] sm:$0xff]
  %v3261 = vld [vmem:[%s5 + $0x458] sm:$0xff]
  %v3262 = vld [vmem:[%s5 + $0x460] sm:$0xff]
  %v3263 = vld [vmem:[%s5 + $0x468] sm:$0xff]
  %v3264 = vld [vmem:[%s5 + $0x470] sm:$0xff]
  %v3265 = vld [vmem:[%s5 + $0x478] sm:$0xff]
  %v3266 = vld [vmem:[%s5 + $0x480] sm:$0xff]
  %v3267 = vld [vmem:[%s5 + $0x488] sm:$0xff]
  %v3268 = vld [vmem:[%s5 + $0x490] sm:$0xff]
  %v3269 = vld [vmem:[%s5 + $0x498] sm:$0xff]
  %v3270 = vld [vmem:[%s5 + $0x4a0] sm:$0xff]
  %v3271 = vld [vmem:[%s5 + $0x4a8] sm:$0xff]
  %v3272 = vld [vmem:[%s5 + $0x4b0] sm:$0xff]
  %v3273 = vld [vmem:[%s5 + $0x4b8] sm:$0xff]
  %v3274 = vld [vmem:[%s5 + $0x4c0] sm:$0xff]
  %v3275 = vld [vmem:[%s5 + $0x4c8] sm:$0xff]
  %v3276 = vld [vmem:[%s5 + $0x4d0] sm:$0xff]
  %v3277 = vld [vmem:[%s5 + $0x4d8] sm:$0xff]
  %v3278 = vld [vmem:[%s5 + $0x4e0] sm:$0xff]
  %v3279 = vld [vmem:[%s5 + $0x4e8] sm:$0xff]
  %v3280 = vld [vmem:[%s5 + $0x4f0] sm:$0xff]
  %v3281 = vld [vmem:[%s5 + $0x4f8] sm:$0xff]
  %v3282 = vld [vmem:[%s5 + $0x500] sm:$0xff]
  %v3283 = vld [vmem:[%s5 + $0x508] sm:$0xff]
  %v3284 = vld [vmem:[%s5 + $0x510] sm:$0xff]
  %v3285 = vld [vmem:[%s5 + $0x518] sm:$0xff]
  %v3286 = vld [vmem:[%s5 + $0x520] sm:$0xff]
  %v3287 = vld [vmem:[%s5 + $0x528] sm:$0xff]
  %v3288 = vld [vmem:[%s5 + $0x530] sm:$0xff]
  %v3289 = vld [vmem:[%s5 + $0x538] sm:$0xff]
  %v3290 = vld [vmem:[%s5 + $0x540] sm:$0xff]
  %v3291 = vld [vmem:[%s5 + $0x548] sm:$0xff]
  %v3292 = vld [vmem:[%s5 + $0x550] sm:$0xff]
  %v3293 = vld [vmem:[%s5 + $0x558] sm:$0xff]
  %v3294 = vld [vmem:[%s5 + $0x560] sm:$0xff]
  %v3295 = vld [vmem:[%s5 + $0x568] sm:$0xff]
  %v3296 = vld [vmem:[%s5 + $0x570] sm:$0xff]
  %v3297 = vld [vmem:[%s5 + $0x578] sm:$0xff]
  %v3298 = vld [vmem:[%s5 + $0x580] sm:$0xff]
  %v3299 = vld [vmem:[%s5 + $0x588] sm:$0xff]
  %v3300 = vld [vmem:[%s5 + $0x590] sm:$0xff]
  %v3301 = vld [vmem:[%s5 + $0x598] sm:$0xff]
  %v3302 = vld [vmem:[%s5 + $0x5a0] sm:$0xff]
  %v3303 = vld [vmem:[%s5 + $0x5a8] sm:$0xff]
  %v3304 = vld [vmem:[%s5 + $0x5b0] sm:$0xff]
  %v3305 = vld [vmem:[%s5 + $0x5b8] sm:$0xff]
  %v3306 = vld [vmem:[%s5 + $0x5c0] sm:$0xff]
  %v3307 = vld [vmem:[%s5 + $0x5c8] sm:$0xff]
  %v3308 = vld [vmem:[%s5 + $0x5d0] sm:$0xff]
  %v3309 = vld [vmem:[%s5 + $0x5d8] sm:$0xff]
  %v3310 = vld [vmem:[%s5 + $0x5e0] sm:$0xff]
  %v3311 = vld [vmem:[%s5 + $0x5e8] sm:$0xff]
  %v3312 = vld [vmem:[%s5 + $0x5f0] sm:$0xff]
  %v3313 = vld [vmem:[%s5 + $0x5f8] sm:$0xff]
  %v3314 = vld [vmem:[%s5 + $0x600] sm:$0xff]
  %v3315 = vld [vmem:[%s5 + $0x608] sm:$0xff]
  %v3316 = vld [vmem:[%s5 + $0x610] sm:$0xff]
  %v3317 = vld [vmem:[%s5 + $0x618] sm:$0xff]
  %v3318 = vld [vmem:[%s5 + $0x620] sm:$0xff]
  %v3319 = vld [vmem:[%s5 + $0x628] sm:$0xff]
  %v3320 = vld [vmem:[%s5 + $0x630] sm:$0xff]
  %v3321 = vld [vmem:[%s5 + $0x638] sm:$0xff]
  %v3322 = vld [vmem:[%s5 + $0x640] sm:$0xff]
  %v3323 = vld [vmem:[%s5 + $0x648] sm:$0xff]
  %v3324 = vld [vmem:[%s5 + $0x650] sm:$0xff]
  %v3325 = vld [vmem:[%s5 + $0x658] sm:$0xff]
  %v3326 = vld [vmem:[%s5 + $0x660] sm:$0xff]
  %v3327 = vld [vmem:[%s5 + $0x668] sm:$0xff]
  %v3328 = vld [vmem:[%s5 + $0x670] sm:$0xff]
  %v3329 = vld [vmem:[%s5 + $0x678] sm:$0xff]
  %v3330 = vld [vmem:[%s5 + $0x680] sm:$0xff]
  %v3331 = vld [vmem:[%s5 + $0x688] sm:$0xff]
  %v3332 = vld [vmem:[%s5 + $0x690] sm:$0xff]
  %v3333 = vld [vmem:[%s5 + $0x698] sm:$0xff]
  %v3334 = vld [vmem:[%s5 + $0x6a0] sm:$0xff]
  %v3335 = vld [vmem:[%s5 + $0x6a8] sm:$0xff]
  %v3336 = vld [vmem:[%s5 + $0x6b0] sm:$0xff]
  %v3337 = vld [vmem:[%s5 + $0x6b8] sm:$0xff]
  %v3338 = vld [vmem:[%s5 + $0x6c0] sm:$0xff]
  %v3339 = vld [vmem:[%s5 + $0x6c8] sm:$0xff]
  %v3340 = vld [vmem:[%s5 + $0x6d0] sm:$0xff]
  %v3341 = vld [vmem:[%s5 + $0x6d8] sm:$0xff]
  %v3342 = vld [vmem:[%s5 + $0x6e0] sm:$0xff]
  %v3343 = vld [vmem:[%s5 + $0x6e8] sm:$0xff]
  %v3344 = vld [vmem:[%s5 + $0x6f0] sm:$0xff]
  %v3345 = vld [vmem:[%s5 + $0x6f8] sm:$0xff]
  %v3346 = vld [vmem:[%s5 + $0x700] sm:$0xff]
  %v3347 = vld [vmem:[%s5 + $0x708] sm:$0xff]
  %v3348 = vld [vmem:[%s5 + $0x710] sm:$0xff]
  %v3349 = vld [vmem:[%s5 + $0x718] sm:$0xff]
  %v3350 = vld [vmem:[%s5 + $0x720] sm:$0xff]
  %v3351 = vld [vmem:[%s5 + $0x728] sm:$0xff]
  %v3352 = vld [vmem:[%s5 + $0x730] sm:$0xff]
  %v3353 = vld [vmem:[%s5 + $0x738] sm:$0xff]
  %v3354 = vld [vmem:[%s5 + $0x740] sm:$0xff]
  %v3355 = vld [vmem:[%s5 + $0x748] sm:$0xff]
  %v3356 = vld [vmem:[%s5 + $0x750] sm:$0xff]
  %v3357 = vld [vmem:[%s5 + $0x758] sm:$0xff]
  %v3358 = vld [vmem:[%s5 + $0x760] sm:$0xff]
  %v3359 = vld [vmem:[%s5 + $0x768] sm:$0xff]
  %v3360 = vld [vmem:[%s5 + $0x770] sm:$0xff]
  %v3361 = vld [vmem:[%s5 + $0x778] sm:$0xff]
  %v3362 = vld [vmem:[%s5 + $0x780] sm:$0xff]
  %v3363 = vld [vmem:[%s5 + $0x788] sm:$0xff]
  %v3364 = vld [vmem:[%s5 + $0x790] sm:$0xff]
  %v3365 = vld [vmem:[%s5 + $0x798] sm:$0xff]
  %v3366 = vld [vmem:[%s5 + $0x7a0] sm:$0xff]
  %v3367 = vld [vmem:[%s5 + $0x7a8] sm:$0xff]
  %v3368 = vld [vmem:[%s5 + $0x7b0] sm:$0xff]
  %v3369 = vld [vmem:[%s5 + $0x7b8] sm:$0xff]
  %v3370 = vld [vmem:[%s5 + $0x7c0] sm:$0xff]
  %v3371 = vld [vmem:[%s5 + $0x7c8] sm:$0xff]
  %v3372 = vld [vmem:[%s5 + $0x7d0] sm:$0xff]
  %v3373 = vld [vmem:[%s5 + $0x7d8] sm:$0xff]
  %v3374 = vld [vmem:[%s5 + $0x7e0] sm:$0xff]
  %v3375 = vld [vmem:[%s5 + $0x7e8] sm:$0xff]
  %v3376 = vld [vmem:[%s5 + $0x7f0] sm:$0xff]
  %v3377 = vld [vmem:[%s5 + $0x7f8] sm:$0xff]
  %v3378 = vld [vmem:[%s5 + $0x800] sm:$0xff]
  %v3379 = vld [vmem:[%s5 + $0x808] sm:$0xff]
  %v3380 = vld [vmem:[%s5 + $0x810] sm:$0xff]
  %v3381 = vld [vmem:[%s5 + $0x818] sm:$0xff]
  %v3382 = vld [vmem:[%s5 + $0x820] sm:$0xff]
  %v3383 = vld [vmem:[%s5 + $0x828] sm:$0xff]
  %v3384 = vld [vmem:[%s5 + $0x830] sm:$0xff]
  %v3385 = vld [vmem:[%s5 + $0x838] sm:$0xff]
  %v3386 = vld [vmem:[%s5 + $0x840] sm:$0xff]
  %v3387 = vld [vmem:[%s5 + $0x848] sm:$0xff]
  %v3388 = vld [vmem:[%s5 + $0x850] sm:$0xff]
  %v3389 = vld [vmem:[%s5 + $0x858] sm:$0xff]
  %v3390 = vld [vmem:[%s5 + $0x860] sm:$0xff]
  %v3391 = vld [vmem:[%s5 + $0x868] sm:$0xff]
  %v3392 = vld [vmem:[%s5 + $0x870] sm:$0xff]
  %v3393 = vld [vmem:[%s5 + $0x878] sm:$0xff]
  %v3394 = vld [vmem:[%s5 + $0x880] sm:$0xff]
  %v3395 = vld [vmem:[%s5 + $0x888] sm:$0xff]
  %v3396 = vld [vmem:[%s5 + $0x890] sm:$0xff]
  %v3397 = vld [vmem:[%s5 + $0x898] sm:$0xff]
  %v3398 = vld [vmem:[%s5 + $0x8a0] sm:$0xff]
  %v3399 = vld [vmem:[%s5 + $0x8a8] sm:$0xff]
  %v3400 = vld [vmem:[%s5 + $0x8b0] sm:$0xff]
  %v3401 = vld [vmem:[%s5 + $0x8b8] sm:$0xff]
  %v3402 = vld [vmem:[%s5 + $0x8c0] sm:$0xff]
  %v3403 = vld [vmem:[%s5 + $0x8c8] sm:$0xff]
  %v3404 = vld [vmem:[%s5 + $0x8d0] sm:$0xff]
  %v3405 = vld [vmem:[%s5 + $0x8d8] sm:$0xff]
  %v3406 = vld [vmem:[%s5 + $0x8e0] sm:$0xff]
  %v3407 = vld [vmem:[%s5 + $0x8e8] sm:$0xff]
  %v3408 = vld [vmem:[%s5 + $0x8f0] sm:$0xff]
  %v3409 = vld [vmem:[%s5 + $0x8f8] sm:$0xff]
  %v3410 = vld [vmem:[%s5 + $0x900] sm:$0xff]
  %v3411 = vld [vmem:[%s5 + $0x908] sm:$0xff]
  %v3412 = vld [vmem:[%s5 + $0x910] sm:$0xff]
  %v3413 = vld [vmem:[%s5 + $0x918] sm:$0xff]
  %v3414 = vld [vmem:[%s5 + $0x920] sm:$0xff]
  %v3415 = vld [vmem:[%s5 + $0x928] sm:$0xff]
  %v3416 = vld [vmem:[%s5 + $0x930] sm:$0xff]
  %v3417 = vld [vmem:[%s5 + $0x938] sm:$0xff]
  %v3418 = vld [vmem:[%s5 + $0x940] sm:$0xff]
  %v3419 = vld [vmem:[%s5 + $0x948] sm:$0xff]
  %v3420 = vld [vmem:[%s5 + $0x950] sm:$0xff]
  %v3421 = vld [vmem:[%s5 + $0x958] sm:$0xff]
  %v3422 = vld [vmem:[%s5 + $0x960] sm:$0xff]
  %v3423 = vld [vmem:[%s5 + $0x968] sm:$0xff]
  %v3424 = vld [vmem:[%s5 + $0x970] sm:$0xff]
  %v3425 = vld [vmem:[%s5 + $0x978] sm:$0xff]
  %v3426 = vld [vmem:[%s5 + $0x980] sm:$0xff]
  %v3427 = vld [vmem:[%s5 + $0x988] sm:$0xff]
  %v3428 = vld [vmem:[%s5 + $0x990] sm:$0xff]
  %v3429 = vld [vmem:[%s5 + $0x998] sm:$0xff]
  %v3430 = vld [vmem:[%s5 + $0x9a0] sm:$0xff]
  %v3431 = vld [vmem:[%s5 + $0x9a8] sm:$0xff]
  %v3432 = vld [vmem:[%s5 + $0x9b0] sm:$0xff]
  %v3433 = vld [vmem:[%s5 + $0x9b8] sm:$0xff]
  %v3434 = vld [vmem:[%s5 + $0x9c0] sm:$0xff]
  %v3435 = vld [vmem:[%s5 + $0x9c8] sm:$0xff]
  %v3436 = vld [vmem:[%s5 + $0x9d0] sm:$0xff]
  %v3437 = vld [vmem:[%s5 + $0x9d8] sm:$0xff]
  %v3438 = vld [vmem:[%s5 + $0x9e0] sm:$0xff]
  %v3439 = vld [vmem:[%s5 + $0x9e8] sm:$0xff]
  %v3440 = vld [vmem:[%s5 + $0x9f0] sm:$0xff]
  %v3441 = vld [vmem:[%s5 + $0x9f8] sm:$0xff]
  %v3442 = vld [vmem:[%s5 + $0xa00] sm:$0xff]
  %v3443 = vld [vmem:[%s5 + $0xa08] sm:$0xff]
  %v3444 = vld [vmem:[%s5 + $0xa10] sm:$0xff]
  %v3445 = vld [vmem:[%s5 + $0xa18] sm:$0xff]
  %v3446 = vld [vmem:[%s5 + $0xa20] sm:$0xff]
  %v3447 = vld [vmem:[%s5 + $0xa28] sm:$0xff]
  %v3448 = vld [vmem:[%s5 + $0xa30] sm:$0xff]
  %v3449 = vld [vmem:[%s5 + $0xa38] sm:$0xff]
  %v3450 = vld [vmem:[%s5 + $0xa40] sm:$0xff]
  %v3451 = vld [vmem:[%s5 + $0xa48] sm:$0xff]
  %v3452 = vld [vmem:[%s5 + $0xa50] sm:$0xff]
  %v3453 = vld [vmem:[%s5 + $0xa58] sm:$0xff]
  %v3454 = vld [vmem:[%s5 + $0xa60] sm:$0xff]
  %v3455 = vld [vmem:[%s5 + $0xa68] sm:$0xff]
  %v3456 = vld [vmem:[%s5 + $0xa70] sm:$0xff]
  %v3457 = vld [vmem:[%s5 + $0xa78] sm:$0xff]
  %v3458 = vld [vmem:[%s5 + $0xa80] sm:$0xff]
  %v3459 = vld [vmem:[%s5 + $0xa88] sm:$0xff]
  %v3460 = vld [vmem:[%s5 + $0xa90] sm:$0xff]
  %v3461 = vld [vmem:[%s5 + $0xa98] sm:$0xff]
  %v3462 = vld [vmem:[%s5 + $0xaa0] sm:$0xff]
  %v3463 = vld [vmem:[%s5 + $0xaa8] sm:$0xff]
  %v3464 = vld [vmem:[%s5 + $0xab0] sm:$0xff]
  %v3465 = vld [vmem:[%s5 + $0xab8] sm:$0xff]
  %v3466 = vld [vmem:[%s5 + $0xac0] sm:$0xff]
  %v3467 = vld [vmem:[%s5 + $0xac8] sm:$0xff]
  %v3468 = vld [vmem:[%s5 + $0xad0] sm:$0xff]
  %v3469 = vld [vmem:[%s5 + $0xad8] sm:$0xff]
  %v3470 = vld [vmem:[%s5 + $0xae0] sm:$0xff]
  %v3471 = vld [vmem:[%s5 + $0xae8] sm:$0xff]
  %v3472 = vld [vmem:[%s5 + $0xaf0] sm:$0xff]
  %v3473 = vld [vmem:[%s5 + $0xaf8] sm:$0xff]
  %v3474 = vld [vmem:[%s5 + $0xb00] sm:$0xff]
  %v3475 = vld [vmem:[%s5 + $0xb08] sm:$0xff]
  %v3476 = vld [vmem:[%s5 + $0xb10] sm:$0xff]
  %v3477 = vld [vmem:[%s5 + $0xb18] sm:$0xff]
  %v3478 = vld [vmem:[%s5 + $0xb20] sm:$0xff]
  %v3479 = vld [vmem:[%s5 + $0xb28] sm:$0xff]
  %v3480 = vld [vmem:[%s5 + $0xb30] sm:$0xff]
  %v3481 = vld [vmem:[%s5 + $0xb38] sm:$0xff]
  %v3482 = vld [vmem:[%s5 + $0xb40] sm:$0xff]
  %v3483 = vld [vmem:[%s5 + $0xb48] sm:$0xff]
  %v3484 = vld [vmem:[%s5 + $0xb50] sm:$0xff]
  %v3485 = vld [vmem:[%s5 + $0xb58] sm:$0xff]
  %v3486 = vld [vmem:[%s5 + $0xb60] sm:$0xff]
  %v3487 = vld [vmem:[%s5 + $0xb68] sm:$0xff]
  %v3488 = vld [vmem:[%s5 + $0xb70] sm:$0xff]
  %v3489 = vld [vmem:[%s5 + $0xb78] sm:$0xff]
  %v3490 = vld [vmem:[%s5 + $0xb80] sm:$0xff]
  %v3491 = vld [vmem:[%s5 + $0xb88] sm:$0xff]
  %v3492 = vld [vmem:[%s5 + $0xb90] sm:$0xff]
  %v3493 = vld [vmem:[%s5 + $0xb98] sm:$0xff]
  %v3494 = vld [vmem:[%s5 + $0xba0] sm:$0xff]
  %v3495 = vld [vmem:[%s5 + $0xba8] sm:$0xff]
  %v3496 = vld [vmem:[%s5 + $0xbb0] sm:$0xff]
  %v3497 = vld [vmem:[%s5 + $0xbb8] sm:$0xff]
  %v3498 = vld [vmem:[%s5 + $0xbc0] sm:$0xff]
  %v3499 = vld [vmem:[%s5 + $0xbc8] sm:$0xff]
  %v3500 = vld [vmem:[%s5 + $0xbd0] sm:$0xff]
  %v3501 = vld [vmem:[%s5 + $0xbd8] sm:$0xff]
  %v3502 = vld [vmem:[%s5 + $0xbe0] sm:$0xff]
  %v3503 = vld [vmem:[%s5 + $0xbe8] sm:$0xff]
  %v3504 = vld [vmem:[%s5 + $0xbf0] sm:$0xff]
  %v3505 = vld [vmem:[%s5 + $0xbf8] sm:$0xff]
  %v3506 = vld [vmem:[%s7] sm:$0xff]
  %v3507 = vld [vmem:[%s7 + $0x8] sm:$0xf]
  %v3510 = vlaneseq
  %v3511 = vshrl.u32 %v3510, 7
  %v3512 = vsub.s32 0, %v3511
  %v3513 = vrot.slane %v3506, %v3512
  %v3514 = vlaneseq
  %v3515 = vshrl.u32 %v3514, 7
  %v3516 = vsub.s32 1, %v3515
  %v3517 = vrot.slane %v3506, %v3516
  %v3518 = vlaneseq
  %v3519 = vshrl.u32 %v3518, 7
  %v3520 = vsub.s32 2, %v3519
  %v3521 = vrot.slane %v3506, %v3520
  %v3522 = vlaneseq
  %v3523 = vshrl.u32 %v3522, 7
  %v3524 = vsub.s32 3, %v3523
  %v3525 = vrot.slane %v3506, %v3524
  %v3526 = vlaneseq
  %v3527 = vshrl.u32 %v3526, 7
  %v3528 = vsub.s32 4, %v3527
  %v3529 = vrot.slane %v3506, %v3528
  %v3530 = vlaneseq
  %v3531 = vshrl.u32 %v3530, 7
  %v3532 = vsub.s32 5, %v3531
  %v3533 = vrot.slane %v3506, %v3532
  %v3534 = vlaneseq
  %v3535 = vshrl.u32 %v3534, 7
  %v3536 = vsub.s32 6, %v3535
  %v3537 = vrot.slane %v3506, %v3536
  %v3538 = vlaneseq
  %v3539 = vshrl.u32 %v3538, 7
  %v3540 = vsub.s32 7, %v3539
  %v3541 = vrot.slane %v3506, %v3540
  %v3542 = vlaneseq
  %v3543 = vshrl.u32 %v3542, 7
  %v3544 = vsub.s32 0, %v3543
  %v3545 = vrot.slane %v3507, %v3544
  %v3546 = vlaneseq
  %v3547 = vshrl.u32 %v3546, 7
  %v3548 = vsub.s32 1, %v3547
  %v3549 = vrot.slane %v3507, %v3548
  %v3550 = vlaneseq
  %v3551 = vshrl.u32 %v3550, 7
  %v3552 = vsub.s32 2, %v3551
  %v3553 = vrot.slane %v3507, %v3552
  %v3554 = vlaneseq
  %v3555 = vshrl.u32 %v3554, 7
  %v3556 = vsub.s32 3, %v3555
  %v3557 = vrot.slane %v3507, %v3556
  %v3954 = vunpack.c.l.b16 %v3122
  %v3955 = vunpack.c.h.b16 %v3122
  %v3956 = vunpack.c.l.b16 %v3123
  %v3957 = vunpack.c.h.b16 %v3123
  %v3958 = vunpack.c.l.b16 %v3124
  %v3959 = vunpack.c.h.b16 %v3124
  %v3960 = vunpack.c.l.b16 %v3125
  %v3961 = vunpack.c.h.b16 %v3125
  %v3962 = vunpack.c.l.b16 %v3126
  %v3963 = vunpack.c.h.b16 %v3126
  %v3964 = vunpack.c.l.b16 %v3127
  %v3965 = vunpack.c.h.b16 %v3127
  %v3966 = vunpack.c.l.b16 %v3128
  %v3967 = vunpack.c.h.b16 %v3128
  %v3968 = vunpack.c.l.b16 %v3129
  %v3969 = vunpack.c.h.b16 %v3129
  %v3970 = vunpack.c.l.b16 %v3130
  %v3971 = vunpack.c.h.b16 %v3130
  %v3972 = vunpack.c.l.b16 %v3131
  %v3973 = vunpack.c.h.b16 %v3131
  %v3974 = vunpack.c.l.b16 %v3132
  %v3975 = vunpack.c.h.b16 %v3132
  %v3976 = vunpack.c.l.b16 %v3133
  %v3977 = vunpack.c.h.b16 %v3133
  %v3978 = vunpack.c.l.b16 %v3134
  %v3979 = vunpack.c.h.b16 %v3134
  %v3980 = vunpack.c.l.b16 %v3135
  %v3981 = vunpack.c.h.b16 %v3135
  %v3982 = vunpack.c.l.b16 %v3136
  %v3983 = vunpack.c.h.b16 %v3136
  %v3984 = vunpack.c.l.b16 %v3137
  %v3985 = vunpack.c.h.b16 %v3137
  %v3986 = vunpack.c.l.b16 %v3138
  %v3987 = vunpack.c.h.b16 %v3138
  %v3988 = vunpack.c.l.b16 %v3139
  %v3989 = vunpack.c.h.b16 %v3139
  %v3990 = vunpack.c.l.b16 %v3140
  %v3991 = vunpack.c.h.b16 %v3140
  %v3992 = vunpack.c.l.b16 %v3141
  %v3993 = vunpack.c.h.b16 %v3141
  %v3994 = vunpack.c.l.b16 %v3142
  %v3995 = vunpack.c.h.b16 %v3142
  %v3996 = vunpack.c.l.b16 %v3143
  %v3997 = vunpack.c.h.b16 %v3143
  %v3998 = vunpack.c.l.b16 %v3144
  %v3999 = vunpack.c.h.b16 %v3144
  %v4000 = vunpack.c.l.b16 %v3145
  %v4001 = vunpack.c.h.b16 %v3145
  %v4002 = vunpack.c.l.b16 %v3146
  %v4003 = vunpack.c.h.b16 %v3146
  %v4004 = vunpack.c.l.b16 %v3147
  %v4005 = vunpack.c.h.b16 %v3147
  %v4006 = vunpack.c.l.b16 %v3148
  %v4007 = vunpack.c.h.b16 %v3148
  %v4008 = vunpack.c.l.b16 %v3149
  %v4009 = vunpack.c.h.b16 %v3149
  %v4010 = vunpack.c.l.b16 %v3150
  %v4011 = vunpack.c.h.b16 %v3150
  %v4012 = vunpack.c.l.b16 %v3151
  %v4013 = vunpack.c.h.b16 %v3151
  %v4014 = vunpack.c.l.b16 %v3152
  %v4015 = vunpack.c.h.b16 %v3152
  %v4016 = vunpack.c.l.b16 %v3153
  %v4017 = vunpack.c.h.b16 %v3153
  %v4018 = vunpack.c.l.b16 %v3154
  %v4019 = vunpack.c.h.b16 %v3154
  %v4020 = vunpack.c.l.b16 %v3155
  %v4021 = vunpack.c.h.b16 %v3155
  %v4022 = vunpack.c.l.b16 %v3156
  %v4023 = vunpack.c.h.b16 %v3156
  %v4024 = vunpack.c.l.b16 %v3157
  %v4025 = vunpack.c.h.b16 %v3157
  %v4026 = vunpack.c.l.b16 %v3158
  %v4027 = vunpack.c.h.b16 %v3158
  %v4028 = vunpack.c.l.b16 %v3159
  %v4029 = vunpack.c.h.b16 %v3159
  %v4030 = vunpack.c.l.b16 %v3160
  %v4031 = vunpack.c.h.b16 %v3160
  %v4032 = vunpack.c.l.b16 %v3161
  %v4033 = vunpack.c.h.b16 %v3161
  %v4034 = vunpack.c.l.b16 %v3162
  %v4035 = vunpack.c.h.b16 %v3162
  %v4036 = vunpack.c.l.b16 %v3163
  %v4037 = vunpack.c.h.b16 %v3163
  %v4038 = vunpack.c.l.b16 %v3164
  %v4039 = vunpack.c.h.b16 %v3164
  %v4040 = vunpack.c.l.b16 %v3165
  %v4041 = vunpack.c.h.b16 %v3165
  %v4042 = vunpack.c.l.b16 %v3166
  %v4043 = vunpack.c.h.b16 %v3166
  %v4044 = vunpack.c.l.b16 %v3167
  %v4045 = vunpack.c.h.b16 %v3167
  %v4046 = vunpack.c.l.b16 %v3168
  %v4047 = vunpack.c.h.b16 %v3168
  %v4048 = vunpack.c.l.b16 %v3169
  %v4049 = vunpack.c.h.b16 %v3169
  %v4050 = vunpack.c.l.b16 %v3170
  %v4051 = vunpack.c.h.b16 %v3170
  %v4052 = vunpack.c.l.b16 %v3171
  %v4053 = vunpack.c.h.b16 %v3171
  %v4054 = vunpack.c.l.b16 %v3172
  %v4055 = vunpack.c.h.b16 %v3172
  %v4056 = vunpack.c.l.b16 %v3173
  %v4057 = vunpack.c.h.b16 %v3173
  %v4058 = vunpack.c.l.b16 %v3174
  %v4059 = vunpack.c.h.b16 %v3174
  %v4060 = vunpack.c.l.b16 %v3175
  %v4061 = vunpack.c.h.b16 %v3175
  %v4062 = vunpack.c.l.b16 %v3176
  %v4063 = vunpack.c.h.b16 %v3176
  %v4064 = vunpack.c.l.b16 %v3177
  %v4065 = vunpack.c.h.b16 %v3177
  %v4066 = vunpack.c.l.b16 %v3178
  %v4067 = vunpack.c.h.b16 %v3178
  %v4068 = vunpack.c.l.b16 %v3179
  %v4069 = vunpack.c.h.b16 %v3179
  %v4070 = vunpack.c.l.b16 %v3180
  %v4071 = vunpack.c.h.b16 %v3180
  %v4072 = vunpack.c.l.b16 %v3181
  %v4073 = vunpack.c.h.b16 %v3181
  %v4074 = vunpack.c.l.b16 %v3182
  %v4075 = vunpack.c.h.b16 %v3182
  %v4076 = vunpack.c.l.b16 %v3183
  %v4077 = vunpack.c.h.b16 %v3183
  %v4078 = vunpack.c.l.b16 %v3184
  %v4079 = vunpack.c.h.b16 %v3184
  %v4080 = vunpack.c.l.b16 %v3185
  %v4081 = vunpack.c.h.b16 %v3185
  %v4082 = vunpack.c.l.b16 %v3186
  %v4083 = vunpack.c.h.b16 %v3186
  %v4084 = vunpack.c.l.b16 %v3187
  %v4085 = vunpack.c.h.b16 %v3187
  %v4086 = vunpack.c.l.b16 %v3188
  %v4087 = vunpack.c.h.b16 %v3188
  %v4088 = vunpack.c.l.b16 %v3189
  %v4089 = vunpack.c.h.b16 %v3189
  %v4090 = vunpack.c.l.b16 %v3190
  %v4091 = vunpack.c.h.b16 %v3190
  %v4092 = vunpack.c.l.b16 %v3191
  %v4093 = vunpack.c.h.b16 %v3191
  %v4094 = vunpack.c.l.b16 %v3192
  %v4095 = vunpack.c.h.b16 %v3192
  %v4096 = vunpack.c.l.b16 %v3193
  %v4097 = vunpack.c.h.b16 %v3193
  %v4098 = vunpack.c.l.b16 %v3194
  %v4099 = vunpack.c.h.b16 %v3194
  %v4100 = vunpack.c.l.b16 %v3195
  %v4101 = vunpack.c.h.b16 %v3195
  %v4102 = vunpack.c.l.b16 %v3196
  %v4103 = vunpack.c.h.b16 %v3196
  %v4104 = vunpack.c.l.b16 %v3197
  %v4105 = vunpack.c.h.b16 %v3197
  %v4106 = vunpack.c.l.b16 %v3198
  %v4107 = vunpack.c.h.b16 %v3198
  %v4108 = vunpack.c.l.b16 %v3199
  %v4109 = vunpack.c.h.b16 %v3199
  %v4110 = vunpack.c.l.b16 %v3200
  %v4111 = vunpack.c.h.b16 %v3200
  %v4112 = vunpack.c.l.b16 %v3201
  %v4113 = vunpack.c.h.b16 %v3201
  %v4114 = vunpack.c.l.b16 %v3202
  %v4115 = vunpack.c.h.b16 %v3202
  %v4116 = vunpack.c.l.b16 %v3203
  %v4117 = vunpack.c.h.b16 %v3203
  %v4118 = vunpack.c.l.b16 %v3204
  %v4119 = vunpack.c.h.b16 %v3204
  %v4120 = vunpack.c.l.b16 %v3205
  %v4121 = vunpack.c.h.b16 %v3205
  %v4122 = vunpack.c.l.b16 %v3206
  %v4123 = vunpack.c.h.b16 %v3206
  %v4124 = vunpack.c.l.b16 %v3207
  %v4125 = vunpack.c.h.b16 %v3207
  %v4126 = vunpack.c.l.b16 %v3208
  %v4127 = vunpack.c.h.b16 %v3208
  %v4128 = vunpack.c.l.b16 %v3209
  %v4129 = vunpack.c.h.b16 %v3209
  %v4130 = vunpack.c.l.b16 %v3210
  %v4131 = vunpack.c.h.b16 %v3210
  %v4132 = vunpack.c.l.b16 %v3211
  %v4133 = vunpack.c.h.b16 %v3211
  %v4134 = vunpack.c.l.b16 %v3212
  %v4135 = vunpack.c.h.b16 %v3212
  %v4136 = vunpack.c.l.b16 %v3213
  %v4137 = vunpack.c.h.b16 %v3213
  %v4138 = vunpack.c.l.b16 %v3214
  %v4139 = vunpack.c.h.b16 %v3214
  %v4140 = vunpack.c.l.b16 %v3215
  %v4141 = vunpack.c.h.b16 %v3215
  %v4142 = vunpack.c.l.b16 %v3216
  %v4143 = vunpack.c.h.b16 %v3216
  %v4144 = vunpack.c.l.b16 %v3217
  %v4145 = vunpack.c.h.b16 %v3217
  %v4146 = vunpack.c.l.b16 %v3218
  %v4147 = vunpack.c.h.b16 %v3218
  %v4148 = vunpack.c.l.b16 %v3219
  %v4149 = vunpack.c.h.b16 %v3219
  %v4150 = vunpack.c.l.b16 %v3220
  %v4151 = vunpack.c.h.b16 %v3220
  %v4152 = vunpack.c.l.b16 %v3221
  %v4153 = vunpack.c.h.b16 %v3221
  %v4154 = vunpack.c.l.b16 %v3222
  %v4155 = vunpack.c.h.b16 %v3222
  %v4156 = vunpack.c.l.b16 %v3223
  %v4157 = vunpack.c.h.b16 %v3223
  %v4158 = vunpack.c.l.b16 %v3224
  %v4159 = vunpack.c.h.b16 %v3224
  %v4160 = vunpack.c.l.b16 %v3225
  %v4161 = vunpack.c.h.b16 %v3225
  %v4162 = vunpack.c.l.b16 %v3226
  %v4163 = vunpack.c.h.b16 %v3226
  %v4164 = vunpack.c.l.b16 %v3227
  %v4165 = vunpack.c.h.b16 %v3227
  %v4166 = vunpack.c.l.b16 %v3228
  %v4167 = vunpack.c.h.b16 %v3228
  %v4168 = vunpack.c.l.b16 %v3229
  %v4169 = vunpack.c.h.b16 %v3229
  %v4170 = vunpack.c.l.b16 %v3230
  %v4171 = vunpack.c.h.b16 %v3230
  %v4172 = vunpack.c.l.b16 %v3231
  %v4173 = vunpack.c.h.b16 %v3231
  %v4174 = vunpack.c.l.b16 %v3232
  %v4175 = vunpack.c.h.b16 %v3232
  %v4176 = vunpack.c.l.b16 %v3233
  %v4177 = vunpack.c.h.b16 %v3233
  %v4178 = vunpack.c.l.b16 %v3234
  %v4179 = vunpack.c.h.b16 %v3234
  %v4180 = vunpack.c.l.b16 %v3235
  %v4181 = vunpack.c.h.b16 %v3235
  %v4182 = vunpack.c.l.b16 %v3236
  %v4183 = vunpack.c.h.b16 %v3236
  %v4184 = vunpack.c.l.b16 %v3237
  %v4185 = vunpack.c.h.b16 %v3237
  %v4186 = vunpack.c.l.b16 %v3238
  %v4187 = vunpack.c.h.b16 %v3238
  %v4188 = vunpack.c.l.b16 %v3239
  %v4189 = vunpack.c.h.b16 %v3239
  %v4190 = vunpack.c.l.b16 %v3240
  %v4191 = vunpack.c.h.b16 %v3240
  %v4192 = vunpack.c.l.b16 %v3241
  %v4193 = vunpack.c.h.b16 %v3241
  %v4194 = vunpack.c.l.b16 %v3242
  %v4195 = vunpack.c.h.b16 %v3242
  %v4196 = vunpack.c.l.b16 %v3243
  %v4197 = vunpack.c.h.b16 %v3243
  %v4198 = vunpack.c.l.b16 %v3244
  %v4199 = vunpack.c.h.b16 %v3244
  %v4200 = vunpack.c.l.b16 %v3245
  %v4201 = vunpack.c.h.b16 %v3245
  %v4202 = vunpack.c.l.b16 %v3246
  %v4203 = vunpack.c.h.b16 %v3246
  %v4204 = vunpack.c.l.b16 %v3247
  %v4205 = vunpack.c.h.b16 %v3247
  %v4206 = vunpack.c.l.b16 %v3248
  %v4207 = vunpack.c.h.b16 %v3248
  %v4208 = vunpack.c.l.b16 %v3249
  %v4209 = vunpack.c.h.b16 %v3249
  %v4210 = vunpack.c.l.b16 %v3250
  %v4211 = vunpack.c.h.b16 %v3250
  %v4212 = vunpack.c.l.b16 %v3251
  %v4213 = vunpack.c.h.b16 %v3251
  %v4214 = vunpack.c.l.b16 %v3252
  %v4215 = vunpack.c.h.b16 %v3252
  %v4216 = vunpack.c.l.b16 %v3253
  %v4217 = vunpack.c.h.b16 %v3253
  %v4218 = vunpack.c.l.b16 %v3254
  %v4219 = vunpack.c.h.b16 %v3254
  %v4220 = vunpack.c.l.b16 %v3255
  %v4221 = vunpack.c.h.b16 %v3255
  %v4222 = vunpack.c.l.b16 %v3256
  %v4223 = vunpack.c.h.b16 %v3256
  %v4224 = vunpack.c.l.b16 %v3257
  %v4225 = vunpack.c.h.b16 %v3257
  %v4226 = vunpack.c.l.b16 %v3258
  %v4227 = vunpack.c.h.b16 %v3258
  %v4228 = vunpack.c.l.b16 %v3259
  %v4229 = vunpack.c.h.b16 %v3259
  %v4230 = vunpack.c.l.b16 %v3260
  %v4231 = vunpack.c.h.b16 %v3260
  %v4232 = vunpack.c.l.b16 %v3261
  %v4233 = vunpack.c.h.b16 %v3261
  %v4234 = vunpack.c.l.b16 %v3262
  %v4235 = vunpack.c.h.b16 %v3262
  %v4236 = vunpack.c.l.b16 %v3263
  %v4237 = vunpack.c.h.b16 %v3263
  %v4238 = vunpack.c.l.b16 %v3264
  %v4239 = vunpack.c.h.b16 %v3264
  %v4240 = vunpack.c.l.b16 %v3265
  %v4241 = vunpack.c.h.b16 %v3265
  %v4242 = vunpack.c.l.b16 %v3266
  %v4243 = vunpack.c.h.b16 %v3266
  %v4244 = vunpack.c.l.b16 %v3267
  %v4245 = vunpack.c.h.b16 %v3267
  %v4246 = vunpack.c.l.b16 %v3268
  %v4247 = vunpack.c.h.b16 %v3268
  %v4248 = vunpack.c.l.b16 %v3269
  %v4249 = vunpack.c.h.b16 %v3269
  %v4250 = vunpack.c.l.b16 %v3270
  %v4251 = vunpack.c.h.b16 %v3270
  %v4252 = vunpack.c.l.b16 %v3271
  %v4253 = vunpack.c.h.b16 %v3271
  %v4254 = vunpack.c.l.b16 %v3272
  %v4255 = vunpack.c.h.b16 %v3272
  %v4256 = vunpack.c.l.b16 %v3273
  %v4257 = vunpack.c.h.b16 %v3273
  %v4258 = vunpack.c.l.b16 %v3274
  %v4259 = vunpack.c.h.b16 %v3274
  %v4260 = vunpack.c.l.b16 %v3275
  %v4261 = vunpack.c.h.b16 %v3275
  %v4262 = vunpack.c.l.b16 %v3276
  %v4263 = vunpack.c.h.b16 %v3276
  %v4264 = vunpack.c.l.b16 %v3277
  %v4265 = vunpack.c.h.b16 %v3277
  %v4266 = vunpack.c.l.b16 %v3278
  %v4267 = vunpack.c.h.b16 %v3278
  %v4268 = vunpack.c.l.b16 %v3279
  %v4269 = vunpack.c.h.b16 %v3279
  %v4270 = vunpack.c.l.b16 %v3280
  %v4271 = vunpack.c.h.b16 %v3280
  %v4272 = vunpack.c.l.b16 %v3281
  %v4273 = vunpack.c.h.b16 %v3281
  %v4274 = vunpack.c.l.b16 %v3282
  %v4275 = vunpack.c.h.b16 %v3282
  %v4276 = vunpack.c.l.b16 %v3283
  %v4277 = vunpack.c.h.b16 %v3283
  %v4278 = vunpack.c.l.b16 %v3284
  %v4279 = vunpack.c.h.b16 %v3284
  %v4280 = vunpack.c.l.b16 %v3285
  %v4281 = vunpack.c.h.b16 %v3285
  %v4282 = vunpack.c.l.b16 %v3286
  %v4283 = vunpack.c.h.b16 %v3286
  %v4284 = vunpack.c.l.b16 %v3287
  %v4285 = vunpack.c.h.b16 %v3287
  %v4286 = vunpack.c.l.b16 %v3288
  %v4287 = vunpack.c.h.b16 %v3288
  %v4288 = vunpack.c.l.b16 %v3289
  %v4289 = vunpack.c.h.b16 %v3289
  %v4290 = vunpack.c.l.b16 %v3290
  %v4291 = vunpack.c.h.b16 %v3290
  %v4292 = vunpack.c.l.b16 %v3291
  %v4293 = vunpack.c.h.b16 %v3291
  %v4294 = vunpack.c.l.b16 %v3292
  %v4295 = vunpack.c.h.b16 %v3292
  %v4296 = vunpack.c.l.b16 %v3293
  %v4297 = vunpack.c.h.b16 %v3293
  %v4298 = vunpack.c.l.b16 %v3294
  %v4299 = vunpack.c.h.b16 %v3294
  %v4300 = vunpack.c.l.b16 %v3295
  %v4301 = vunpack.c.h.b16 %v3295
  %v4302 = vunpack.c.l.b16 %v3296
  %v4303 = vunpack.c.h.b16 %v3296
  %v4304 = vunpack.c.l.b16 %v3297
  %v4305 = vunpack.c.h.b16 %v3297
  %v4306 = vunpack.c.l.b16 %v3298
  %v4307 = vunpack.c.h.b16 %v3298
  %v4308 = vunpack.c.l.b16 %v3299
  %v4309 = vunpack.c.h.b16 %v3299
  %v4310 = vunpack.c.l.b16 %v3300
  %v4311 = vunpack.c.h.b16 %v3300
  %v4312 = vunpack.c.l.b16 %v3301
  %v4313 = vunpack.c.h.b16 %v3301
  %v4314 = vunpack.c.l.b16 %v3302
  %v4315 = vunpack.c.h.b16 %v3302
  %v4316 = vunpack.c.l.b16 %v3303
  %v4317 = vunpack.c.h.b16 %v3303
  %v4318 = vunpack.c.l.b16 %v3304
  %v4319 = vunpack.c.h.b16 %v3304
  %v4320 = vunpack.c.l.b16 %v3305
  %v4321 = vunpack.c.h.b16 %v3305
  %v4322 = vunpack.c.l.b16 %v3306
  %v4323 = vunpack.c.h.b16 %v3306
  %v4324 = vunpack.c.l.b16 %v3307
  %v4325 = vunpack.c.h.b16 %v3307
  %v4326 = vunpack.c.l.b16 %v3308
  %v4327 = vunpack.c.h.b16 %v3308
  %v4328 = vunpack.c.l.b16 %v3309
  %v4329 = vunpack.c.h.b16 %v3309
  %v4330 = vunpack.c.l.b16 %v3310
  %v4331 = vunpack.c.h.b16 %v3310
  %v4332 = vunpack.c.l.b16 %v3311
  %v4333 = vunpack.c.h.b16 %v3311
  %v4334 = vunpack.c.l.b16 %v3312
  %v4335 = vunpack.c.h.b16 %v3312
  %v4336 = vunpack.c.l.b16 %v3313
  %v4337 = vunpack.c.h.b16 %v3313
  %v4338 = vunpack.c.l.b16 %v3314
  %v4339 = vunpack.c.h.b16 %v3314
  %v4340 = vunpack.c.l.b16 %v3315
  %v4341 = vunpack.c.h.b16 %v3315
  %v4342 = vunpack.c.l.b16 %v3316
  %v4343 = vunpack.c.h.b16 %v3316
  %v4344 = vunpack.c.l.b16 %v3317
  %v4345 = vunpack.c.h.b16 %v3317
  %v4346 = vunpack.c.l.b16 %v3318
  %v4347 = vunpack.c.h.b16 %v3318
  %v4348 = vunpack.c.l.b16 %v3319
  %v4349 = vunpack.c.h.b16 %v3319
  %v4350 = vunpack.c.l.b16 %v3320
  %v4351 = vunpack.c.h.b16 %v3320
  %v4352 = vunpack.c.l.b16 %v3321
  %v4353 = vunpack.c.h.b16 %v3321
  %v4354 = vunpack.c.l.b16 %v3322
  %v4355 = vunpack.c.h.b16 %v3322
  %v4356 = vunpack.c.l.b16 %v3323
  %v4357 = vunpack.c.h.b16 %v3323
  %v4358 = vunpack.c.l.b16 %v3324
  %v4359 = vunpack.c.h.b16 %v3324
  %v4360 = vunpack.c.l.b16 %v3325
  %v4361 = vunpack.c.h.b16 %v3325
  %v4362 = vunpack.c.l.b16 %v3326
  %v4363 = vunpack.c.h.b16 %v3326
  %v4364 = vunpack.c.l.b16 %v3327
  %v4365 = vunpack.c.h.b16 %v3327
  %v4366 = vunpack.c.l.b16 %v3328
  %v4367 = vunpack.c.h.b16 %v3328
  %v4368 = vunpack.c.l.b16 %v3329
  %v4369 = vunpack.c.h.b16 %v3329
  %v4370 = vunpack.c.l.b16 %v3330
  %v4371 = vunpack.c.h.b16 %v3330
  %v4372 = vunpack.c.l.b16 %v3331
  %v4373 = vunpack.c.h.b16 %v3331
  %v4374 = vunpack.c.l.b16 %v3332
  %v4375 = vunpack.c.h.b16 %v3332
  %v4376 = vunpack.c.l.b16 %v3333
  %v4377 = vunpack.c.h.b16 %v3333
  %v4378 = vunpack.c.l.b16 %v3334
  %v4379 = vunpack.c.h.b16 %v3334
  %v4380 = vunpack.c.l.b16 %v3335
  %v4381 = vunpack.c.h.b16 %v3335
  %v4382 = vunpack.c.l.b16 %v3336
  %v4383 = vunpack.c.h.b16 %v3336
  %v4384 = vunpack.c.l.b16 %v3337
  %v4385 = vunpack.c.h.b16 %v3337
  %v4386 = vunpack.c.l.b16 %v3338
  %v4387 = vunpack.c.h.b16 %v3338
  %v4388 = vunpack.c.l.b16 %v3339
  %v4389 = vunpack.c.h.b16 %v3339
  %v4390 = vunpack.c.l.b16 %v3340
  %v4391 = vunpack.c.h.b16 %v3340
  %v4392 = vunpack.c.l.b16 %v3341
  %v4393 = vunpack.c.h.b16 %v3341
  %v4394 = vunpack.c.l.b16 %v3342
  %v4395 = vunpack.c.h.b16 %v3342
  %v4396 = vunpack.c.l.b16 %v3343
  %v4397 = vunpack.c.h.b16 %v3343
  %v4398 = vunpack.c.l.b16 %v3344
  %v4399 = vunpack.c.h.b16 %v3344
  %v4400 = vunpack.c.l.b16 %v3345
  %v4401 = vunpack.c.h.b16 %v3345
  %v4402 = vunpack.c.l.b16 %v3346
  %v4403 = vunpack.c.h.b16 %v3346
  %v4404 = vunpack.c.l.b16 %v3347
  %v4405 = vunpack.c.h.b16 %v3347
  %v4406 = vunpack.c.l.b16 %v3348
  %v4407 = vunpack.c.h.b16 %v3348
  %v4408 = vunpack.c.l.b16 %v3349
  %v4409 = vunpack.c.h.b16 %v3349
  %v4410 = vunpack.c.l.b16 %v3350
  %v4411 = vunpack.c.h.b16 %v3350
  %v4412 = vunpack.c.l.b16 %v3351
  %v4413 = vunpack.c.h.b16 %v3351
  %v4414 = vunpack.c.l.b16 %v3352
  %v4415 = vunpack.c.h.b16 %v3352
  %v4416 = vunpack.c.l.b16 %v3353
  %v4417 = vunpack.c.h.b16 %v3353
  %v4418 = vunpack.c.l.b16 %v3354
  %v4419 = vunpack.c.h.b16 %v3354
  %v4420 = vunpack.c.l.b16 %v3355
  %v4421 = vunpack.c.h.b16 %v3355
  %v4422 = vunpack.c.l.b16 %v3356
  %v4423 = vunpack.c.h.b16 %v3356
  %v4424 = vunpack.c.l.b16 %v3357
  %v4425 = vunpack.c.h.b16 %v3357
  %v4426 = vunpack.c.l.b16 %v3358
  %v4427 = vunpack.c.h.b16 %v3358
  %v4428 = vunpack.c.l.b16 %v3359
  %v4429 = vunpack.c.h.b16 %v3359
  %v4430 = vunpack.c.l.b16 %v3360
  %v4431 = vunpack.c.h.b16 %v3360
  %v4432 = vunpack.c.l.b16 %v3361
  %v4433 = vunpack.c.h.b16 %v3361
  %v4434 = vunpack.c.l.b16 %v3362
  %v4435 = vunpack.c.h.b16 %v3362
  %v4436 = vunpack.c.l.b16 %v3363
  %v4437 = vunpack.c.h.b16 %v3363
  %v4438 = vunpack.c.l.b16 %v3364
  %v4439 = vunpack.c.h.b16 %v3364
  %v4440 = vunpack.c.l.b16 %v3365
  %v4441 = vunpack.c.h.b16 %v3365
  %v4442 = vunpack.c.l.b16 %v3366
  %v4443 = vunpack.c.h.b16 %v3366
  %v4444 = vunpack.c.l.b16 %v3367
  %v4445 = vunpack.c.h.b16 %v3367
  %v4446 = vunpack.c.l.b16 %v3368
  %v4447 = vunpack.c.h.b16 %v3368
  %v4448 = vunpack.c.l.b16 %v3369
  %v4449 = vunpack.c.h.b16 %v3369
  %v4450 = vunpack.c.l.b16 %v3370
  %v4451 = vunpack.c.h.b16 %v3370
  %v4452 = vunpack.c.l.b16 %v3371
  %v4453 = vunpack.c.h.b16 %v3371
  %v4454 = vunpack.c.l.b16 %v3372
  %v4455 = vunpack.c.h.b16 %v3372
  %v4456 = vunpack.c.l.b16 %v3373
  %v4457 = vunpack.c.h.b16 %v3373
  %v4458 = vunpack.c.l.b16 %v3374
  %v4459 = vunpack.c.h.b16 %v3374
  %v4460 = vunpack.c.l.b16 %v3375
  %v4461 = vunpack.c.h.b16 %v3375
  %v4462 = vunpack.c.l.b16 %v3376
  %v4463 = vunpack.c.h.b16 %v3376
  %v4464 = vunpack.c.l.b16 %v3377
  %v4465 = vunpack.c.h.b16 %v3377
  %v4466 = vunpack.c.l.b16 %v3378
  %v4467 = vunpack.c.h.b16 %v3378
  %v4468 = vunpack.c.l.b16 %v3379
  %v4469 = vunpack.c.h.b16 %v3379
  %v4470 = vunpack.c.l.b16 %v3380
  %v4471 = vunpack.c.h.b16 %v3380
  %v4472 = vunpack.c.l.b16 %v3381
  %v4473 = vunpack.c.h.b16 %v3381
  %v4474 = vunpack.c.l.b16 %v3382
  %v4475 = vunpack.c.h.b16 %v3382
  %v4476 = vunpack.c.l.b16 %v3383
  %v4477 = vunpack.c.h.b16 %v3383
  %v4478 = vunpack.c.l.b16 %v3384
  %v4479 = vunpack.c.h.b16 %v3384
  %v4480 = vunpack.c.l.b16 %v3385
  %v4481 = vunpack.c.h.b16 %v3385
  %v4482 = vunpack.c.l.b16 %v3386
  %v4483 = vunpack.c.h.b16 %v3386
  %v4484 = vunpack.c.l.b16 %v3387
  %v4485 = vunpack.c.h.b16 %v3387
  %v4486 = vunpack.c.l.b16 %v3388
  %v4487 = vunpack.c.h.b16 %v3388
  %v4488 = vunpack.c.l.b16 %v3389
  %v4489 = vunpack.c.h.b16 %v3389
  %v4490 = vunpack.c.l.b16 %v3390
  %v4491 = vunpack.c.h.b16 %v3390
  %v4492 = vunpack.c.l.b16 %v3391
  %v4493 = vunpack.c.h.b16 %v3391
  %v4494 = vunpack.c.l.b16 %v3392
  %v4495 = vunpack.c.h.b16 %v3392
  %v4496 = vunpack.c.l.b16 %v3393
  %v4497 = vunpack.c.h.b16 %v3393
  %v4498 = vunpack.c.l.b16 %v3394
  %v4499 = vunpack.c.h.b16 %v3394
  %v4500 = vunpack.c.l.b16 %v3395
  %v4501 = vunpack.c.h.b16 %v3395
  %v4502 = vunpack.c.l.b16 %v3396
  %v4503 = vunpack.c.h.b16 %v3396
  %v4504 = vunpack.c.l.b16 %v3397
  %v4505 = vunpack.c.h.b16 %v3397
  %v4506 = vunpack.c.l.b16 %v3398
  %v4507 = vunpack.c.h.b16 %v3398
  %v4508 = vunpack.c.l.b16 %v3399
  %v4509 = vunpack.c.h.b16 %v3399
  %v4510 = vunpack.c.l.b16 %v3400
  %v4511 = vunpack.c.h.b16 %v3400
  %v4512 = vunpack.c.l.b16 %v3401
  %v4513 = vunpack.c.h.b16 %v3401
  %v4514 = vunpack.c.l.b16 %v3402
  %v4515 = vunpack.c.h.b16 %v3402
  %v4516 = vunpack.c.l.b16 %v3403
  %v4517 = vunpack.c.h.b16 %v3403
  %v4518 = vunpack.c.l.b16 %v3404
  %v4519 = vunpack.c.h.b16 %v3404
  %v4520 = vunpack.c.l.b16 %v3405
  %v4521 = vunpack.c.h.b16 %v3405
  %v4522 = vunpack.c.l.b16 %v3406
  %v4523 = vunpack.c.h.b16 %v3406
  %v4524 = vunpack.c.l.b16 %v3407
  %v4525 = vunpack.c.h.b16 %v3407
  %v4526 = vunpack.c.l.b16 %v3408
  %v4527 = vunpack.c.h.b16 %v3408
  %v4528 = vunpack.c.l.b16 %v3409
  %v4529 = vunpack.c.h.b16 %v3409
  %v4530 = vunpack.c.l.b16 %v3410
  %v4531 = vunpack.c.h.b16 %v3410
  %v4532 = vunpack.c.l.b16 %v3411
  %v4533 = vunpack.c.h.b16 %v3411
  %v4534 = vunpack.c.l.b16 %v3412
  %v4535 = vunpack.c.h.b16 %v3412
  %v4536 = vunpack.c.l.b16 %v3413
  %v4537 = vunpack.c.h.b16 %v3413
  %v4538 = vunpack.c.l.b16 %v3414
  %v4539 = vunpack.c.h.b16 %v3414
  %v4540 = vunpack.c.l.b16 %v3415
  %v4541 = vunpack.c.h.b16 %v3415
  %v4542 = vunpack.c.l.b16 %v3416
  %v4543 = vunpack.c.h.b16 %v3416
  %v4544 = vunpack.c.l.b16 %v3417
  %v4545 = vunpack.c.h.b16 %v3417
  %v4546 = vunpack.c.l.b16 %v3418
  %v4547 = vunpack.c.h.b16 %v3418
  %v4548 = vunpack.c.l.b16 %v3419
  %v4549 = vunpack.c.h.b16 %v3419
  %v4550 = vunpack.c.l.b16 %v3420
  %v4551 = vunpack.c.h.b16 %v3420
  %v4552 = vunpack.c.l.b16 %v3421
  %v4553 = vunpack.c.h.b16 %v3421
  %v4554 = vunpack.c.l.b16 %v3422
  %v4555 = vunpack.c.h.b16 %v3422
  %v4556 = vunpack.c.l.b16 %v3423
  %v4557 = vunpack.c.h.b16 %v3423
  %v4558 = vunpack.c.l.b16 %v3424
  %v4559 = vunpack.c.h.b16 %v3424
  %v4560 = vunpack.c.l.b16 %v3425
  %v4561 = vunpack.c.h.b16 %v3425
  %v4562 = vunpack.c.l.b16 %v3426
  %v4563 = vunpack.c.h.b16 %v3426
  %v4564 = vunpack.c.l.b16 %v3427
  %v4565 = vunpack.c.h.b16 %v3427
  %v4566 = vunpack.c.l.b16 %v3428
  %v4567 = vunpack.c.h.b16 %v3428
  %v4568 = vunpack.c.l.b16 %v3429
  %v4569 = vunpack.c.h.b16 %v3429
  %v4570 = vunpack.c.l.b16 %v3430
  %v4571 = vunpack.c.h.b16 %v3430
  %v4572 = vunpack.c.l.b16 %v3431
  %v4573 = vunpack.c.h.b16 %v3431
  %v4574 = vunpack.c.l.b16 %v3432
  %v4575 = vunpack.c.h.b16 %v3432
  %v4576 = vunpack.c.l.b16 %v3433
  %v4577 = vunpack.c.h.b16 %v3433
  %v4578 = vunpack.c.l.b16 %v3434
  %v4579 = vunpack.c.h.b16 %v3434
  %v4580 = vunpack.c.l.b16 %v3435
  %v4581 = vunpack.c.h.b16 %v3435
  %v4582 = vunpack.c.l.b16 %v3436
  %v4583 = vunpack.c.h.b16 %v3436
  %v4584 = vunpack.c.l.b16 %v3437
  %v4585 = vunpack.c.h.b16 %v3437
  %v4586 = vunpack.c.l.b16 %v3438
  %v4587 = vunpack.c.h.b16 %v3438
  %v4588 = vunpack.c.l.b16 %v3439
  %v4589 = vunpack.c.h.b16 %v3439
  %v4590 = vunpack.c.l.b16 %v3440
  %v4591 = vunpack.c.h.b16 %v3440
  %v4592 = vunpack.c.l.b16 %v3441
  %v4593 = vunpack.c.h.b16 %v3441
  %v4594 = vunpack.c.l.b16 %v3442
  %v4595 = vunpack.c.h.b16 %v3442
  %v4596 = vunpack.c.l.b16 %v3443
  %v4597 = vunpack.c.h.b16 %v3443
  %v4598 = vunpack.c.l.b16 %v3444
  %v4599 = vunpack.c.h.b16 %v3444
  %v4600 = vunpack.c.l.b16 %v3445
  %v4601 = vunpack.c.h.b16 %v3445
  %v4602 = vunpack.c.l.b16 %v3446
  %v4603 = vunpack.c.h.b16 %v3446
  %v4604 = vunpack.c.l.b16 %v3447
  %v4605 = vunpack.c.h.b16 %v3447
  %v4606 = vunpack.c.l.b16 %v3448
  %v4607 = vunpack.c.h.b16 %v3448
  %v4608 = vunpack.c.l.b16 %v3449
  %v4609 = vunpack.c.h.b16 %v3449
  %v4610 = vunpack.c.l.b16 %v3450
  %v4611 = vunpack.c.h.b16 %v3450
  %v4612 = vunpack.c.l.b16 %v3451
  %v4613 = vunpack.c.h.b16 %v3451
  %v4614 = vunpack.c.l.b16 %v3452
  %v4615 = vunpack.c.h.b16 %v3452
  %v4616 = vunpack.c.l.b16 %v3453
  %v4617 = vunpack.c.h.b16 %v3453
  %v4618 = vunpack.c.l.b16 %v3454
  %v4619 = vunpack.c.h.b16 %v3454
  %v4620 = vunpack.c.l.b16 %v3455
  %v4621 = vunpack.c.h.b16 %v3455
  %v4622 = vunpack.c.l.b16 %v3456
  %v4623 = vunpack.c.h.b16 %v3456
  %v4624 = vunpack.c.l.b16 %v3457
  %v4625 = vunpack.c.h.b16 %v3457
  %v4626 = vunpack.c.l.b16 %v3458
  %v4627 = vunpack.c.h.b16 %v3458
  %v4628 = vunpack.c.l.b16 %v3459
  %v4629 = vunpack.c.h.b16 %v3459
  %v4630 = vunpack.c.l.b16 %v3460
  %v4631 = vunpack.c.h.b16 %v3460
  %v4632 = vunpack.c.l.b16 %v3461
  %v4633 = vunpack.c.h.b16 %v3461
  %v4634 = vunpack.c.l.b16 %v3462
  %v4635 = vunpack.c.h.b16 %v3462
  %v4636 = vunpack.c.l.b16 %v3463
  %v4637 = vunpack.c.h.b16 %v3463
  %v4638 = vunpack.c.l.b16 %v3464
  %v4639 = vunpack.c.h.b16 %v3464
  %v4640 = vunpack.c.l.b16 %v3465
  %v4641 = vunpack.c.h.b16 %v3465
  %v4642 = vunpack.c.l.b16 %v3466
  %v4643 = vunpack.c.h.b16 %v3466
  %v4644 = vunpack.c.l.b16 %v3467
  %v4645 = vunpack.c.h.b16 %v3467
  %v4646 = vunpack.c.l.b16 %v3468
  %v4647 = vunpack.c.h.b16 %v3468
  %v4648 = vunpack.c.l.b16 %v3469
  %v4649 = vunpack.c.h.b16 %v3469
  %v4650 = vunpack.c.l.b16 %v3470
  %v4651 = vunpack.c.h.b16 %v3470
  %v4652 = vunpack.c.l.b16 %v3471
  %v4653 = vunpack.c.h.b16 %v3471
  %v4654 = vunpack.c.l.b16 %v3472
  %v4655 = vunpack.c.h.b16 %v3472
  %v4656 = vunpack.c.l.b16 %v3473
  %v4657 = vunpack.c.h.b16 %v3473
  %v4658 = vunpack.c.l.b16 %v3474
  %v4659 = vunpack.c.h.b16 %v3474
  %v4660 = vunpack.c.l.b16 %v3475
  %v4661 = vunpack.c.h.b16 %v3475
  %v4662 = vunpack.c.l.b16 %v3476
  %v4663 = vunpack.c.h.b16 %v3476
  %v4664 = vunpack.c.l.b16 %v3477
  %v4665 = vunpack.c.h.b16 %v3477
  %v4666 = vunpack.c.l.b16 %v3478
  %v4667 = vunpack.c.h.b16 %v3478
  %v4668 = vunpack.c.l.b16 %v3479
  %v4669 = vunpack.c.h.b16 %v3479
  %v4670 = vunpack.c.l.b16 %v3480
  %v4671 = vunpack.c.h.b16 %v3480
  %v4672 = vunpack.c.l.b16 %v3481
  %v4673 = vunpack.c.h.b16 %v3481
  %v4674 = vunpack.c.l.b16 %v3482
  %v4675 = vunpack.c.h.b16 %v3482
  %v4676 = vunpack.c.l.b16 %v3483
  %v4677 = vunpack.c.h.b16 %v3483
  %v4678 = vunpack.c.l.b16 %v3484
  %v4679 = vunpack.c.h.b16 %v3484
  %v4680 = vunpack.c.l.b16 %v3485
  %v4681 = vunpack.c.h.b16 %v3485
  %v4682 = vunpack.c.l.b16 %v3486
  %v4683 = vunpack.c.h.b16 %v3486
  %v4684 = vunpack.c.l.b16 %v3487
  %v4685 = vunpack.c.h.b16 %v3487
  %v4686 = vunpack.c.l.b16 %v3488
  %v4687 = vunpack.c.h.b16 %v3488
  %v4688 = vunpack.c.l.b16 %v3489
  %v4689 = vunpack.c.h.b16 %v3489
  %v4690 = vunpack.c.l.b16 %v3490
  %v4691 = vunpack.c.h.b16 %v3490
  %v4692 = vunpack.c.l.b16 %v3491
  %v4693 = vunpack.c.h.b16 %v3491
  %v4694 = vunpack.c.l.b16 %v3492
  %v4695 = vunpack.c.h.b16 %v3492
  %v4696 = vunpack.c.l.b16 %v3493
  %v4697 = vunpack.c.h.b16 %v3493
  %v4698 = vunpack.c.l.b16 %v3494
  %v4699 = vunpack.c.h.b16 %v3494
  %v4700 = vunpack.c.l.b16 %v3495
  %v4701 = vunpack.c.h.b16 %v3495
  %v4702 = vunpack.c.l.b16 %v3496
  %v4703 = vunpack.c.h.b16 %v3496
  %v4704 = vunpack.c.l.b16 %v3497
  %v4705 = vunpack.c.h.b16 %v3497
  %v4706 = vunpack.c.l.b16 %v3498
  %v4707 = vunpack.c.h.b16 %v3498
  %v4708 = vunpack.c.l.b16 %v3499
  %v4709 = vunpack.c.h.b16 %v3499
  %v4710 = vunpack.c.l.b16 %v3500
  %v4711 = vunpack.c.h.b16 %v3500
  %v4712 = vunpack.c.l.b16 %v3501
  %v4713 = vunpack.c.h.b16 %v3501
  %v4714 = vunpack.c.l.b16 %v3502
  %v4715 = vunpack.c.h.b16 %v3502
  %v4716 = vunpack.c.l.b16 %v3503
  %v4717 = vunpack.c.h.b16 %v3503
  %v4718 = vunpack.c.l.b16 %v3504
  %v4719 = vunpack.c.h.b16 %v3504
  %v4720 = vunpack.c.l.b16 %v3505
  %v4721 = vunpack.c.h.b16 %v3505
  %v4722 = vpack.c.b16 %v3966, %v3954
  %v4723 = vpack.c.b16 %v3967, %v3955
  %v4724 = vpack.c.b16 %v3968, %v3956
  %v4725 = vpack.c.b16 %v3969, %v3957
  %v4726 = vpack.c.b16 %v3970, %v3958
  %v4727 = vpack.c.b16 %v3971, %v3959
  %v4728 = vpack.c.b16 %v3972, %v3960
  %v4729 = vpack.c.b16 %v3973, %v3961
  %v4730 = vpack.c.b16 %v3974, %v3962
  %v4731 = vpack.c.b16 %v3975, %v3963
  %v4732 = vpack.c.b16 %v3976, %v3964
  %v4733 = vpack.c.b16 %v3977, %v3965
  %v4734 = vpack.c.b16 %v3990, %v3978
  %v4735 = vpack.c.b16 %v3991, %v3979
  %v4736 = vpack.c.b16 %v3992, %v3980
  %v4737 = vpack.c.b16 %v3993, %v3981
  %v4738 = vpack.c.b16 %v3994, %v3982
  %v4739 = vpack.c.b16 %v3995, %v3983
  %v4740 = vpack.c.b16 %v3996, %v3984
  %v4741 = vpack.c.b16 %v3997, %v3985
  %v4742 = vpack.c.b16 %v3998, %v3986
  %v4743 = vpack.c.b16 %v3999, %v3987
  %v4744 = vpack.c.b16 %v4000, %v3988
  %v4745 = vpack.c.b16 %v4001, %v3989
  %v4746 = vpack.c.b16 %v4014, %v4002
  %v4747 = vpack.c.b16 %v4015, %v4003
  %v4748 = vpack.c.b16 %v4016, %v4004
  %v4749 = vpack.c.b16 %v4017, %v4005
  %v4750 = vpack.c.b16 %v4018, %v4006
  %v4751 = vpack.c.b16 %v4019, %v4007
  %v4752 = vpack.c.b16 %v4020, %v4008
  %v4753 = vpack.c.b16 %v4021, %v4009
  %v4754 = vpack.c.b16 %v4022, %v4010
  %v4755 = vpack.c.b16 %v4023, %v4011
  %v4756 = vpack.c.b16 %v4024, %v4012
  %v4757 = vpack.c.b16 %v4025, %v4013
  %v4758 = vpack.c.b16 %v4038, %v4026
  %v4759 = vpack.c.b16 %v4039, %v4027
  %v4760 = vpack.c.b16 %v4040, %v4028
  %v4761 = vpack.c.b16 %v4041, %v4029
  %v4762 = vpack.c.b16 %v4042, %v4030
  %v4763 = vpack.c.b16 %v4043, %v4031
  %v4764 = vpack.c.b16 %v4044, %v4032
  %v4765 = vpack.c.b16 %v4045, %v4033
  %v4766 = vpack.c.b16 %v4046, %v4034
  %v4767 = vpack.c.b16 %v4047, %v4035
  %v4768 = vpack.c.b16 %v4048, %v4036
  %v4769 = vpack.c.b16 %v4049, %v4037
  %v4770 = vpack.c.b16 %v4062, %v4050
  %v4771 = vpack.c.b16 %v4063, %v4051
  %v4772 = vpack.c.b16 %v4064, %v4052
  %v4773 = vpack.c.b16 %v4065, %v4053
  %v4774 = vpack.c.b16 %v4066, %v4054
  %v4775 = vpack.c.b16 %v4067, %v4055
  %v4776 = vpack.c.b16 %v4068, %v4056
  %v4777 = vpack.c.b16 %v4069, %v4057
  %v4778 = vpack.c.b16 %v4070, %v4058
  %v4779 = vpack.c.b16 %v4071, %v4059
  %v4780 = vpack.c.b16 %v4072, %v4060
  %v4781 = vpack.c.b16 %v4073, %v4061
  %v4782 = vpack.c.b16 %v4086, %v4074
  %v4783 = vpack.c.b16 %v4087, %v4075
  %v4784 = vpack.c.b16 %v4088, %v4076
  %v4785 = vpack.c.b16 %v4089, %v4077
  %v4786 = vpack.c.b16 %v4090, %v4078
  %v4787 = vpack.c.b16 %v4091, %v4079
  %v4788 = vpack.c.b16 %v4092, %v4080
  %v4789 = vpack.c.b16 %v4093, %v4081
  %v4790 = vpack.c.b16 %v4094, %v4082
  %v4791 = vpack.c.b16 %v4095, %v4083
  %v4792 = vpack.c.b16 %v4096, %v4084
  %v4793 = vpack.c.b16 %v4097, %v4085
  %v4794 = vpack.c.b16 %v4110, %v4098
  %v4795 = vpack.c.b16 %v4111, %v4099
  %v4796 = vpack.c.b16 %v4112, %v4100
  %v4797 = vpack.c.b16 %v4113, %v4101
  %v4798 = vpack.c.b16 %v4114, %v4102
  %v4799 = vpack.c.b16 %v4115, %v4103
  %v4800 = vpack.c.b16 %v4116, %v4104
  %v4801 = vpack.c.b16 %v4117, %v4105
  %v4802 = vpack.c.b16 %v4118, %v4106
  %v4803 = vpack.c.b16 %v4119, %v4107
  %v4804 = vpack.c.b16 %v4120, %v4108
  %v4805 = vpack.c.b16 %v4121, %v4109
  %v4806 = vpack.c.b16 %v4134, %v4122
  %v4807 = vpack.c.b16 %v4135, %v4123
  %v4808 = vpack.c.b16 %v4136, %v4124
  %v4809 = vpack.c.b16 %v4137, %v4125
  %v4810 = vpack.c.b16 %v4138, %v4126
  %v4811 = vpack.c.b16 %v4139, %v4127
  %v4812 = vpack.c.b16 %v4140, %v4128
  %v4813 = vpack.c.b16 %v4141, %v4129
  %v4814 = vpack.c.b16 %v4142, %v4130
  %v4815 = vpack.c.b16 %v4143, %v4131
  %v4816 = vpack.c.b16 %v4144, %v4132
  %v4817 = vpack.c.b16 %v4145, %v4133
  %v4818 = vpack.c.b16 %v4158, %v4146
  %v4819 = vpack.c.b16 %v4159, %v4147
  %v4820 = vpack.c.b16 %v4160, %v4148
  %v4821 = vpack.c.b16 %v4161, %v4149
  %v4822 = vpack.c.b16 %v4162, %v4150
  %v4823 = vpack.c.b16 %v4163, %v4151
  %v4824 = vpack.c.b16 %v4164, %v4152
  %v4825 = vpack.c.b16 %v4165, %v4153
  %v4826 = vpack.c.b16 %v4166, %v4154
  %v4827 = vpack.c.b16 %v4167, %v4155
  %v4828 = vpack.c.b16 %v4168, %v4156
  %v4829 = vpack.c.b16 %v4169, %v4157
  %v4830 = vpack.c.b16 %v4182, %v4170
  %v4831 = vpack.c.b16 %v4183, %v4171
  %v4832 = vpack.c.b16 %v4184, %v4172
  %v4833 = vpack.c.b16 %v4185, %v4173
  %v4834 = vpack.c.b16 %v4186, %v4174
  %v4835 = vpack.c.b16 %v4187, %v4175
  %v4836 = vpack.c.b16 %v4188, %v4176
  %v4837 = vpack.c.b16 %v4189, %v4177
  %v4838 = vpack.c.b16 %v4190, %v4178
  %v4839 = vpack.c.b16 %v4191, %v4179
  %v4840 = vpack.c.b16 %v4192, %v4180
  %v4841 = vpack.c.b16 %v4193, %v4181
  %v4842 = vpack.c.b16 %v4206, %v4194
  %v4843 = vpack.c.b16 %v4207, %v4195
  %v4844 = vpack.c.b16 %v4208, %v4196
  %v4845 = vpack.c.b16 %v4209, %v4197
  %v4846 = vpack.c.b16 %v4210, %v4198
  %v4847 = vpack.c.b16 %v4211, %v4199
  %v4848 = vpack.c.b16 %v4212, %v4200
  %v4849 = vpack.c.b16 %v4213, %v4201
  %v4850 = vpack.c.b16 %v4214, %v4202
  %v4851 = vpack.c.b16 %v4215, %v4203
  %v4852 = vpack.c.b16 %v4216, %v4204
  %v4853 = vpack.c.b16 %v4217, %v4205
  %v4854 = vpack.c.b16 %v4230, %v4218
  %v4855 = vpack.c.b16 %v4231, %v4219
  %v4856 = vpack.c.b16 %v4232, %v4220
  %v4857 = vpack.c.b16 %v4233, %v4221
  %v4858 = vpack.c.b16 %v4234, %v4222
  %v4859 = vpack.c.b16 %v4235, %v4223
  %v4860 = vpack.c.b16 %v4236, %v4224
  %v4861 = vpack.c.b16 %v4237, %v4225
  %v4862 = vpack.c.b16 %v4238, %v4226
  %v4863 = vpack.c.b16 %v4239, %v4227
  %v4864 = vpack.c.b16 %v4240, %v4228
  %v4865 = vpack.c.b16 %v4241, %v4229
  %v4866 = vpack.c.b16 %v4254, %v4242
  %v4867 = vpack.c.b16 %v4255, %v4243
  %v4868 = vpack.c.b16 %v4256, %v4244
  %v4869 = vpack.c.b16 %v4257, %v4245
  %v4870 = vpack.c.b16 %v4258, %v4246
  %v4871 = vpack.c.b16 %v4259, %v4247
  %v4872 = vpack.c.b16 %v4260, %v4248
  %v4873 = vpack.c.b16 %v4261, %v4249
  %v4874 = vpack.c.b16 %v4262, %v4250
  %v4875 = vpack.c.b16 %v4263, %v4251
  %v4876 = vpack.c.b16 %v4264, %v4252
  %v4877 = vpack.c.b16 %v4265, %v4253
  %v4878 = vpack.c.b16 %v4278, %v4266
  %v4879 = vpack.c.b16 %v4279, %v4267
  %v4880 = vpack.c.b16 %v4280, %v4268
  %v4881 = vpack.c.b16 %v4281, %v4269
  %v4882 = vpack.c.b16 %v4282, %v4270
  %v4883 = vpack.c.b16 %v4283, %v4271
  %v4884 = vpack.c.b16 %v4284, %v4272
  %v4885 = vpack.c.b16 %v4285, %v4273
  %v4886 = vpack.c.b16 %v4286, %v4274
  %v4887 = vpack.c.b16 %v4287, %v4275
  %v4888 = vpack.c.b16 %v4288, %v4276
  %v4889 = vpack.c.b16 %v4289, %v4277
  %v4890 = vpack.c.b16 %v4302, %v4290
  %v4891 = vpack.c.b16 %v4303, %v4291
  %v4892 = vpack.c.b16 %v4304, %v4292
  %v4893 = vpack.c.b16 %v4305, %v4293
  %v4894 = vpack.c.b16 %v4306, %v4294
  %v4895 = vpack.c.b16 %v4307, %v4295
  %v4896 = vpack.c.b16 %v4308, %v4296
  %v4897 = vpack.c.b16 %v4309, %v4297
  %v4898 = vpack.c.b16 %v4310, %v4298
  %v4899 = vpack.c.b16 %v4311, %v4299
  %v4900 = vpack.c.b16 %v4312, %v4300
  %v4901 = vpack.c.b16 %v4313, %v4301
  %v4902 = vpack.c.b16 %v4326, %v4314
  %v4903 = vpack.c.b16 %v4327, %v4315
  %v4904 = vpack.c.b16 %v4328, %v4316
  %v4905 = vpack.c.b16 %v4329, %v4317
  %v4906 = vpack.c.b16 %v4330, %v4318
  %v4907 = vpack.c.b16 %v4331, %v4319
  %v4908 = vpack.c.b16 %v4332, %v4320
  %v4909 = vpack.c.b16 %v4333, %v4321
  %v4910 = vpack.c.b16 %v4334, %v4322
  %v4911 = vpack.c.b16 %v4335, %v4323
  %v4912 = vpack.c.b16 %v4336, %v4324
  %v4913 = vpack.c.b16 %v4337, %v4325
  %v4914 = vpack.c.b16 %v4350, %v4338
  %v4915 = vpack.c.b16 %v4351, %v4339
  %v4916 = vpack.c.b16 %v4352, %v4340
  %v4917 = vpack.c.b16 %v4353, %v4341
  %v4918 = vpack.c.b16 %v4354, %v4342
  %v4919 = vpack.c.b16 %v4355, %v4343
  %v4920 = vpack.c.b16 %v4356, %v4344
  %v4921 = vpack.c.b16 %v4357, %v4345
  %v4922 = vpack.c.b16 %v4358, %v4346
  %v4923 = vpack.c.b16 %v4359, %v4347
  %v4924 = vpack.c.b16 %v4360, %v4348
  %v4925 = vpack.c.b16 %v4361, %v4349
  %v4926 = vpack.c.b16 %v4374, %v4362
  %v4927 = vpack.c.b16 %v4375, %v4363
  %v4928 = vpack.c.b16 %v4376, %v4364
  %v4929 = vpack.c.b16 %v4377, %v4365
  %v4930 = vpack.c.b16 %v4378, %v4366
  %v4931 = vpack.c.b16 %v4379, %v4367
  %v4932 = vpack.c.b16 %v4380, %v4368
  %v4933 = vpack.c.b16 %v4381, %v4369
  %v4934 = vpack.c.b16 %v4382, %v4370
  %v4935 = vpack.c.b16 %v4383, %v4371
  %v4936 = vpack.c.b16 %v4384, %v4372
  %v4937 = vpack.c.b16 %v4385, %v4373
  %v4938 = vpack.c.b16 %v4398, %v4386
  %v4939 = vpack.c.b16 %v4399, %v4387
  %v4940 = vpack.c.b16 %v4400, %v4388
  %v4941 = vpack.c.b16 %v4401, %v4389
  %v4942 = vpack.c.b16 %v4402, %v4390
  %v4943 = vpack.c.b16 %v4403, %v4391
  %v4944 = vpack.c.b16 %v4404, %v4392
  %v4945 = vpack.c.b16 %v4405, %v4393
  %v4946 = vpack.c.b16 %v4406, %v4394
  %v4947 = vpack.c.b16 %v4407, %v4395
  %v4948 = vpack.c.b16 %v4408, %v4396
  %v4949 = vpack.c.b16 %v4409, %v4397
  %v4950 = vpack.c.b16 %v4422, %v4410
  %v4951 = vpack.c.b16 %v4423, %v4411
  %v4952 = vpack.c.b16 %v4424, %v4412
  %v4953 = vpack.c.b16 %v4425, %v4413
  %v4954 = vpack.c.b16 %v4426, %v4414
  %v4955 = vpack.c.b16 %v4427, %v4415
  %v4956 = vpack.c.b16 %v4428, %v4416
  %v4957 = vpack.c.b16 %v4429, %v4417
  %v4958 = vpack.c.b16 %v4430, %v4418
  %v4959 = vpack.c.b16 %v4431, %v4419
  %v4960 = vpack.c.b16 %v4432, %v4420
  %v4961 = vpack.c.b16 %v4433, %v4421
  %v4962 = vpack.c.b16 %v4446, %v4434
  %v4963 = vpack.c.b16 %v4447, %v4435
  %v4964 = vpack.c.b16 %v4448, %v4436
  %v4965 = vpack.c.b16 %v4449, %v4437
  %v4966 = vpack.c.b16 %v4450, %v4438
  %v4967 = vpack.c.b16 %v4451, %v4439
  %v4968 = vpack.c.b16 %v4452, %v4440
  %v4969 = vpack.c.b16 %v4453, %v4441
  %v4970 = vpack.c.b16 %v4454, %v4442
  %v4971 = vpack.c.b16 %v4455, %v4443
  %v4972 = vpack.c.b16 %v4456, %v4444
  %v4973 = vpack.c.b16 %v4457, %v4445
  %v4974 = vpack.c.b16 %v4470, %v4458
  %v4975 = vpack.c.b16 %v4471, %v4459
  %v4976 = vpack.c.b16 %v4472, %v4460
  %v4977 = vpack.c.b16 %v4473, %v4461
  %v4978 = vpack.c.b16 %v4474, %v4462
  %v4979 = vpack.c.b16 %v4475, %v4463
  %v4980 = vpack.c.b16 %v4476, %v4464
  %v4981 = vpack.c.b16 %v4477, %v4465
  %v4982 = vpack.c.b16 %v4478, %v4466
  %v4983 = vpack.c.b16 %v4479, %v4467
  %v4984 = vpack.c.b16 %v4480, %v4468
  %v4985 = vpack.c.b16 %v4481, %v4469
  %v4986 = vpack.c.b16 %v4494, %v4482
  %v4987 = vpack.c.b16 %v4495, %v4483
  %v4988 = vpack.c.b16 %v4496, %v4484
  %v4989 = vpack.c.b16 %v4497, %v4485
  %v4990 = vpack.c.b16 %v4498, %v4486
  %v4991 = vpack.c.b16 %v4499, %v4487
  %v4992 = vpack.c.b16 %v4500, %v4488
  %v4993 = vpack.c.b16 %v4501, %v4489
  %v4994 = vpack.c.b16 %v4502, %v4490
  %v4995 = vpack.c.b16 %v4503, %v4491
  %v4996 = vpack.c.b16 %v4504, %v4492
  %v4997 = vpack.c.b16 %v4505, %v4493
  %v4998 = vpack.c.b16 %v4518, %v4506
  %v4999 = vpack.c.b16 %v4519, %v4507
  %v5000 = vpack.c.b16 %v4520, %v4508
  %v5001 = vpack.c.b16 %v4521, %v4509
  %v5002 = vpack.c.b16 %v4522, %v4510
  %v5003 = vpack.c.b16 %v4523, %v4511
  %v5004 = vpack.c.b16 %v4524, %v4512
  %v5005 = vpack.c.b16 %v4525, %v4513
  %v5006 = vpack.c.b16 %v4526, %v4514
  %v5007 = vpack.c.b16 %v4527, %v4515
  %v5008 = vpack.c.b16 %v4528, %v4516
  %v5009 = vpack.c.b16 %v4529, %v4517
  %v5010 = vpack.c.b16 %v4542, %v4530
  %v5011 = vpack.c.b16 %v4543, %v4531
  %v5012 = vpack.c.b16 %v4544, %v4532
  %v5013 = vpack.c.b16 %v4545, %v4533
  %v5014 = vpack.c.b16 %v4546, %v4534
  %v5015 = vpack.c.b16 %v4547, %v4535
  %v5016 = vpack.c.b16 %v4548, %v4536
  %v5017 = vpack.c.b16 %v4549, %v4537
  %v5018 = vpack.c.b16 %v4550, %v4538
  %v5019 = vpack.c.b16 %v4551, %v4539
  %v5020 = vpack.c.b16 %v4552, %v4540
  %v5021 = vpack.c.b16 %v4553, %v4541
  %v5022 = vpack.c.b16 %v4566, %v4554
  %v5023 = vpack.c.b16 %v4567, %v4555
  %v5024 = vpack.c.b16 %v4568, %v4556
  %v5025 = vpack.c.b16 %v4569, %v4557
  %v5026 = vpack.c.b16 %v4570, %v4558
  %v5027 = vpack.c.b16 %v4571, %v4559
  %v5028 = vpack.c.b16 %v4572, %v4560
  %v5029 = vpack.c.b16 %v4573, %v4561
  %v5030 = vpack.c.b16 %v4574, %v4562
  %v5031 = vpack.c.b16 %v4575, %v4563
  %v5032 = vpack.c.b16 %v4576, %v4564
  %v5033 = vpack.c.b16 %v4577, %v4565
  %v5034 = vpack.c.b16 %v4590, %v4578
  %v5035 = vpack.c.b16 %v4591, %v4579
  %v5036 = vpack.c.b16 %v4592, %v4580
  %v5037 = vpack.c.b16 %v4593, %v4581
  %v5038 = vpack.c.b16 %v4594, %v4582
  %v5039 = vpack.c.b16 %v4595, %v4583
  %v5040 = vpack.c.b16 %v4596, %v4584
  %v5041 = vpack.c.b16 %v4597, %v4585
  %v5042 = vpack.c.b16 %v4598, %v4586
  %v5043 = vpack.c.b16 %v4599, %v4587
  %v5044 = vpack.c.b16 %v4600, %v4588
  %v5045 = vpack.c.b16 %v4601, %v4589
  %v5046 = vpack.c.b16 %v4614, %v4602
  %v5047 = vpack.c.b16 %v4615, %v4603
  %v5048 = vpack.c.b16 %v4616, %v4604
  %v5049 = vpack.c.b16 %v4617, %v4605
  %v5050 = vpack.c.b16 %v4618, %v4606
  %v5051 = vpack.c.b16 %v4619, %v4607
  %v5052 = vpack.c.b16 %v4620, %v4608
  %v5053 = vpack.c.b16 %v4621, %v4609
  %v5054 = vpack.c.b16 %v4622, %v4610
  %v5055 = vpack.c.b16 %v4623, %v4611
  %v5056 = vpack.c.b16 %v4624, %v4612
  %v5057 = vpack.c.b16 %v4625, %v4613
  %v5058 = vpack.c.b16 %v4638, %v4626
  %v5059 = vpack.c.b16 %v4639, %v4627
  %v5060 = vpack.c.b16 %v4640, %v4628
  %v5061 = vpack.c.b16 %v4641, %v4629
  %v5062 = vpack.c.b16 %v4642, %v4630
  %v5063 = vpack.c.b16 %v4643, %v4631
  %v5064 = vpack.c.b16 %v4644, %v4632
  %v5065 = vpack.c.b16 %v4645, %v4633
  %v5066 = vpack.c.b16 %v4646, %v4634
  %v5067 = vpack.c.b16 %v4647, %v4635
  %v5068 = vpack.c.b16 %v4648, %v4636
  %v5069 = vpack.c.b16 %v4649, %v4637
  %v5070 = vpack.c.b16 %v4662, %v4650
  %v5071 = vpack.c.b16 %v4663, %v4651
  %v5072 = vpack.c.b16 %v4664, %v4652
  %v5073 = vpack.c.b16 %v4665, %v4653
  %v5074 = vpack.c.b16 %v4666, %v4654
  %v5075 = vpack.c.b16 %v4667, %v4655
  %v5076 = vpack.c.b16 %v4668, %v4656
  %v5077 = vpack.c.b16 %v4669, %v4657
  %v5078 = vpack.c.b16 %v4670, %v4658
  %v5079 = vpack.c.b16 %v4671, %v4659
  %v5080 = vpack.c.b16 %v4672, %v4660
  %v5081 = vpack.c.b16 %v4673, %v4661
  %v5082 = vpack.c.b16 %v4686, %v4674
  %v5083 = vpack.c.b16 %v4687, %v4675
  %v5084 = vpack.c.b16 %v4688, %v4676
  %v5085 = vpack.c.b16 %v4689, %v4677
  %v5086 = vpack.c.b16 %v4690, %v4678
  %v5087 = vpack.c.b16 %v4691, %v4679
  %v5088 = vpack.c.b16 %v4692, %v4680
  %v5089 = vpack.c.b16 %v4693, %v4681
  %v5090 = vpack.c.b16 %v4694, %v4682
  %v5091 = vpack.c.b16 %v4695, %v4683
  %v5092 = vpack.c.b16 %v4696, %v4684
  %v5093 = vpack.c.b16 %v4697, %v4685
  %v5094 = vpack.c.b16 %v4710, %v4698
  %v5095 = vpack.c.b16 %v4711, %v4699
  %v5096 = vpack.c.b16 %v4712, %v4700
  %v5097 = vpack.c.b16 %v4713, %v4701
  %v5098 = vpack.c.b16 %v4714, %v4702
  %v5099 = vpack.c.b16 %v4715, %v4703
  %v5100 = vpack.c.b16 %v4716, %v4704
  %v5101 = vpack.c.b16 %v4717, %v4705
  %v5102 = vpack.c.b16 %v4718, %v4706
  %v5103 = vpack.c.b16 %v4719, %v4707
  %v5104 = vpack.c.b16 %v4720, %v4708
  %v5105 = vpack.c.b16 %v4721, %v4709
  %5490 = vmatprep.subr.bf16.mxu0 %v4723
  %5491 = vmatpush1.bf16.msra.mxu0 %v4722
  %5492 = vmatprep.subr.bf16.mxu0 %v4735
  %5493 = vmatpush1.bf16.msra.mxu0 %v4734
  %5494 = vmatprep.subr.bf16.mxu0 %v4747
  %5495 = vmatpush1.bf16.msra.mxu0 %v4746
  %5496 = vmatprep.subr.bf16.mxu0 %v4759
  %5497 = vmatpush1.bf16.msra.mxu0 %v4758
  %5498 = vmatprep.subr.bf16.mxu0 %v4771
  %5499 = vmatpush1.bf16.msra.mxu0 %v4770
  %5500 = vmatprep.subr.bf16.mxu0 %v4783
  %5501 = vmatpush1.bf16.msra.mxu0 %v4782
  %5502 = vmatprep.subr.bf16.mxu0 %v4795
  %5503 = vmatpush1.bf16.msra.mxu0 %v4794
  %5504 = vmatprep.subr.bf16.mxu0 %v4807
  %5505 = vmatpush1.bf16.msra.mxu0 %v4806
  %5506 = vmatprep.subr.bf16.mxu0 %v4819
  %5507 = vmatpush1.bf16.msra.mxu0 %v4818
  %5508 = vmatprep.subr.bf16.mxu0 %v4831
  %5509 = vmatpush1.bf16.msra.mxu0 %v4830
  %5510 = vmatprep.subr.bf16.mxu0 %v4843
  %5511 = vmatpush1.bf16.msra.mxu0 %v4842
  %5512 = vmatprep.subr.bf16.mxu0 %v4855
  %5513 = vmatpush1.bf16.msra.mxu0 %v4854
  %5514 = vmatprep.subr.bf16.mxu0 %v4867
  %5515 = vmatpush1.bf16.msra.mxu0 %v4866
  %5516 = vmatprep.subr.bf16.mxu0 %v4879
  %5517 = vmatpush1.bf16.msra.mxu0 %v4878
  %5518 = vmatprep.subr.bf16.mxu0 %v4891
  %5519 = vmatpush1.bf16.msra.mxu0 %v4890
  %5520 = vmatprep.subr.bf16.mxu0 %v4903
  %5521 = vmatpush1.bf16.msra.mxu0 %v4902
  %5522 = vmatprep.mubr.bf16.mxu0 %v3119
  %5523 = vmatmul.mubr.bf16.gmra.mrb[0].mxu0 %v3118
  %v5524 = vpop.f32.mrb[0].mxu0
  %v5525 = vadd.f32 %v3513, %v5524
  %v5526 = vpop.f32.mrb[0].mxu0
  %v5527 = vadd.f32 %v3517, %v5526
  %v5528 = vpop.f32.mrb[0].mxu0
  %v5529 = vpop.f32.mrb[0].mxu0
  %5530 = vdwg.mxu0
  %5531 = vmatprep.subr.bf16.mxu0 %v4915
  %5532 = vmatpush1.bf16.msra.mxu0 %v4914
  %5533 = vmatprep.subr.bf16.mxu0 %v4927
  %5534 = vmatpush1.bf16.msra.mxu0 %v4926
  %5535 = vmatprep.subr.bf16.mxu0 %v4939
  %5536 = vmatpush1.bf16.msra.mxu0 %v4938
  %5537 = vmatprep.subr.bf16.mxu0 %v4951
  %5538 = vmatpush1.bf16.msra.mxu0 %v4950
  %5539 = vmatprep.subr.bf16.mxu0 %v4963
  %5540 = vmatpush1.bf16.msra.mxu0 %v4962
  %5541 = vmatprep.subr.bf16.mxu0 %v4975
  %5542 = vmatpush1.bf16.msra.mxu0 %v4974
  %5543 = vmatprep.subr.bf16.mxu0 %v4987
  %5544 = vmatpush1.bf16.msra.mxu0 %v4986
  %5545 = vmatprep.subr.bf16.mxu0 %v4999
  %5546 = vmatpush1.bf16.msra.mxu0 %v4998
  %5547 = vmatprep.subr.bf16.mxu0 %v5011
  %5548 = vmatpush1.bf16.msra.mxu0 %v5010
  %5549 = vmatprep.subr.bf16.mxu0 %v5023
  %5550 = vmatpush1.bf16.msra.mxu0 %v5022
  %5551 = vmatprep.subr.bf16.mxu0 %v5035
  %5552 = vmatpush1.bf16.msra.mxu0 %v5034
  %5553 = vmatprep.subr.bf16.mxu0 %v5047
  %5554 = vmatpush1.bf16.msra.mxu0 %v5046
  %5555 = vmatprep.subr.bf16.mxu0 %v5059
  %5556 = vmatpush1.bf16.msra.mxu0 %v5058
  %5557 = vmatprep.subr.bf16.mxu0 %v5071
  %5558 = vmatpush1.bf16.msra.mxu0 %v5070
  %5559 = vmatprep.subr.bf16.mxu0 %v5083
  %5560 = vmatpush1.bf16.msra.mxu0 %v5082
  %5561 = vmatprep.subr.bf16.mxu0 %v5095
  %5562 = vmatpush1.bf16.msra.mxu0 %v5094
  %5563 = vmatprep.mubr.bf16.mxu0 %v3121
  %5564 = vmatmul.mubr.bf16.gmra.mrb[0].mxu0 %v3120
  %v5565 = vpop.f32.mrb[0].mxu0
  %v5566 = vadd.f32 %v5525, %v5565
  %v5567 = vpop.f32.mrb[0].mxu0
  %v5568 = vadd.f32 %v5527, %v5567
  %v5569 = vpop.f32.mrb[0].mxu0
  %v5570 = vpop.f32.mrb[0].mxu0
  %5571 = vdwg.mxu0
  %5572 = vmatprep.subr.bf16.mxu0 %v4725
  %5573 = vmatpush1.bf16.msra.mxu0 %v4724
  %5574 = vmatprep.subr.bf16.mxu0 %v4737
  %5575 = vmatpush1.bf16.msra.mxu0 %v4736
  %5576 = vmatprep.subr.bf16.mxu0 %v4749
  %5577 = vmatpush1.bf16.msra.mxu0 %v4748
  %5578 = vmatprep.subr.bf16.mxu0 %v4761
  %5579 = vmatpush1.bf16.msra.mxu0 %v4760
  %5580 = vmatprep.subr.bf16.mxu0 %v4773
  %5581 = vmatpush1.bf16.msra.mxu0 %v4772
  %5582 = vmatprep.subr.bf16.mxu0 %v4785
  %5583 = vmatpush1.bf16.msra.mxu0 %v4784
  %5584 = vmatprep.subr.bf16.mxu0 %v4797
  %5585 = vmatpush1.bf16.msra.mxu0 %v4796
  %5586 = vmatprep.subr.bf16.mxu0 %v4809
  %5587 = vmatpush1.bf16.msra.mxu0 %v4808
  %5588 = vmatprep.subr.bf16.mxu0 %v4821
  %5589 = vmatpush1.bf16.msra.mxu0 %v4820
  %5590 = vmatprep.subr.bf16.mxu0 %v4833
  %5591 = vmatpush1.bf16.msra.mxu0 %v4832
  %5592 = vmatprep.subr.bf16.mxu0 %v4845
  %5593 = vmatpush1.bf16.msra.mxu0 %v4844
  %5594 = vmatprep.subr.bf16.mxu0 %v4857
  %5595 = vmatpush1.bf16.msra.mxu0 %v4856
  %5596 = vmatprep.subr.bf16.mxu0 %v4869
  %5597 = vmatpush1.bf16.msra.mxu0 %v4868
  %5598 = vmatprep.subr.bf16.mxu0 %v4881
  %5599 = vmatpush1.bf16.msra.mxu0 %v4880
  %5600 = vmatprep.subr.bf16.mxu0 %v4893
  %5601 = vmatpush1.bf16.msra.mxu0 %v4892
  %5602 = vmatprep.subr.bf16.mxu0 %v4905
  %5603 = vmatpush1.bf16.msra.mxu0 %v4904
  %5604 = vmatprep.mubr.bf16.mxu0 %v3119
  %5605 = vmatmul.mubr.bf16.gmra.mrb[0].mxu0 %v3118
  %v5606 = vpop.f32.mrb[0].mxu0
  %v5607 = vadd.f32 %v3521, %v5606
  %v5608 = vpop.f32.mrb[0].mxu0
  %v5609 = vadd.f32 %v3525, %v5608
  %v5610 = vpop.f32.mrb[0].mxu0
  %v5611 = vpop.f32.mrb[0].mxu0
  %5612 = vdwg.mxu0
  %5613 = vmatprep.subr.bf16.mxu0 %v4917
  %5614 = vmatpush1.bf16.msra.mxu0 %v4916
  %5615 = vmatprep.subr.bf16.mxu0 %v4929
  %5616 = vmatpush1.bf16.msra.mxu0 %v4928
  %5617 = vmatprep.subr.bf16.mxu0 %v4941
  %5618 = vmatpush1.bf16.msra.mxu0 %v4940
  %5619 = vmatprep.subr.bf16.mxu0 %v4953
  %5620 = vmatpush1.bf16.msra.mxu0 %v4952
  %5621 = vmatprep.subr.bf16.mxu0 %v4965
  %5622 = vmatpush1.bf16.msra.mxu0 %v4964
  %5623 = vmatprep.subr.bf16.mxu0 %v4977
  %5624 = vmatpush1.bf16.msra.mxu0 %v4976
  %5625 = vmatprep.subr.bf16.mxu0 %v4989
  %5626 = vmatpush1.bf16.msra.mxu0 %v4988
  %5627 = vmatprep.subr.bf16.mxu0 %v5001
  %5628 = vmatpush1.bf16.msra.mxu0 %v5000
  %5629 = vmatprep.subr.bf16.mxu0 %v5013
  %5630 = vmatpush1.bf16.msra.mxu0 %v5012
  %5631 = vmatprep.subr.bf16.mxu0 %v5025
  %5632 = vmatpush1.bf16.msra.mxu0 %v5024
  %5633 = vmatprep.subr.bf16.mxu0 %v5037
  %5634 = vmatpush1.bf16.msra.mxu0 %v5036
  %5635 = vmatprep.subr.bf16.mxu0 %v5049
  %5636 = vmatpush1.bf16.msra.mxu0 %v5048
  %5637 = vmatprep.subr.bf16.mxu0 %v5061
  %5638 = vmatpush1.bf16.msra.mxu0 %v5060
  %5639 = vmatprep.subr.bf16.mxu0 %v5073
  %5640 = vmatpush1.bf16.msra.mxu0 %v5072
  %5641 = vmatprep.subr.bf16.mxu0 %v5085
  %5642 = vmatpush1.bf16.msra.mxu0 %v5084
  %5643 = vmatprep.subr.bf16.mxu0 %v5097
  %5644 = vmatpush1.bf16.msra.mxu0 %v5096
  %5645 = vmatprep.mubr.bf16.mxu0 %v3121
  %5646 = vmatmul.mubr.bf16.gmra.mrb[0].mxu0 %v3120
  %v5647 = vpop.f32.mrb[0].mxu0
  %v5648 = vadd.f32 %v5607, %v5647
  %v5649 = vpop.f32.mrb[0].mxu0
  %v5650 = vadd.f32 %v5609, %v5649
  %v5651 = vpop.f32.mrb[0].mxu0
  %v5652 = vpop.f32.mrb[0].mxu0
  %5653 = vdwg.mxu0
  %5654 = vmatprep.subr.bf16.mxu0 %v4727
  %5655 = vmatpush1.bf16.msra.mxu0 %v4726
  %5656 = vmatprep.subr.bf16.mxu0 %v4739
  %5657 = vmatpush1.bf16.msra.mxu0 %v4738
  %5658 = vmatprep.subr.bf16.mxu0 %v4751
  %5659 = vmatpush1.bf16.msra.mxu0 %v4750
  %5660 = vmatprep.subr.bf16.mxu0 %v4763
  %5661 = vmatpush1.bf16.msra.mxu0 %v4762
  %5662 = vmatprep.subr.bf16.mxu0 %v4775
  %5663 = vmatpush1.bf16.msra.mxu0 %v4774
  %5664 = vmatprep.subr.bf16.mxu0 %v4787
  %5665 = vmatpush1.bf16.msra.mxu0 %v4786
  %5666 = vmatprep.subr.bf16.mxu0 %v4799
  %5667 = vmatpush1.bf16.msra.mxu0 %v4798
  %5668 = vmatprep.subr.bf16.mxu0 %v4811
  %5669 = vmatpush1.bf16.msra.mxu0 %v4810
  %5670 = vmatprep.subr.bf16.mxu0 %v4823
  %5671 = vmatpush1.bf16.msra.mxu0 %v4822
  %5672 = vmatprep.subr.bf16.mxu0 %v4835
  %5673 = vmatpush1.bf16.msra.mxu0 %v4834
  %5674 = vmatprep.subr.bf16.mxu0 %v4847
  %5675 = vmatpush1.bf16.msra.mxu0 %v4846
  %5676 = vmatprep.subr.bf16.mxu0 %v4859
  %5677 = vmatpush1.bf16.msra.mxu0 %v4858
  %5678 = vmatprep.subr.bf16.mxu0 %v4871
  %5679 = vmatpush1.bf16.msra.mxu0 %v4870
  %5680 = vmatprep.subr.bf16.mxu0 %v4883
  %5681 = vmatpush1.bf16.msra.mxu0 %v4882
  %5682 = vmatprep.subr.bf16.mxu0 %v4895
  %5683 = vmatpush1.bf16.msra.mxu0 %v4894
  %5684 = vmatprep.subr.bf16.mxu0 %v4907
  %5685 = vmatpush1.bf16.msra.mxu0 %v4906
  %5686 = vmatprep.mubr.bf16.mxu0 %v3119
  %5687 = vmatmul.mubr.bf16.gmra.mrb[0].mxu0 %v3118
  %v5688 = vpop.f32.mrb[0].mxu0
  %v5689 = vadd.f32 %v3529, %v5688
  %v5690 = vpop.f32.mrb[0].mxu0
  %v5691 = vadd.f32 %v3533, %v5690
  %v5692 = vpop.f32.mrb[0].mxu0
  %v5693 = vpop.f32.mrb[0].mxu0
  %5694 = vdwg.mxu0
  %5695 = vmatprep.subr.bf16.mxu0 %v4919
  %5696 = vmatpush1.bf16.msra.mxu0 %v4918
  %5697 = vmatprep.subr.bf16.mxu0 %v4931
  %5698 = vmatpush1.bf16.msra.mxu0 %v4930
  %5699 = vmatprep.subr.bf16.mxu0 %v4943
  %5700 = vmatpush1.bf16.msra.mxu0 %v4942
  %5701 = vmatprep.subr.bf16.mxu0 %v4955
  %5702 = vmatpush1.bf16.msra.mxu0 %v4954
  %5703 = vmatprep.subr.bf16.mxu0 %v4967
  %5704 = vmatpush1.bf16.msra.mxu0 %v4966
  %5705 = vmatprep.subr.bf16.mxu0 %v4979
  %5706 = vmatpush1.bf16.msra.mxu0 %v4978
  %5707 = vmatprep.subr.bf16.mxu0 %v4991
  %5708 = vmatpush1.bf16.msra.mxu0 %v4990
  %5709 = vmatprep.subr.bf16.mxu0 %v5003
  %5710 = vmatpush1.bf16.msra.mxu0 %v5002
  %5711 = vmatprep.subr.bf16.mxu0 %v5015
  %5712 = vmatpush1.bf16.msra.mxu0 %v5014
  %5713 = vmatprep.subr.bf16.mxu0 %v5027
  %5714 = vmatpush1.bf16.msra.mxu0 %v5026
  %5715 = vmatprep.subr.bf16.mxu0 %v5039
  %5716 = vmatpush1.bf16.msra.mxu0 %v5038
  %5717 = vmatprep.subr.bf16.mxu0 %v5051
  %5718 = vmatpush1.bf16.msra.mxu0 %v5050
  %5719 = vmatprep.subr.bf16.mxu0 %v5063
  %5720 = vmatpush1.bf16.msra.mxu0 %v5062
  %5721 = vmatprep.subr.bf16.mxu0 %v5075
  %5722 = vmatpush1.bf16.msra.mxu0 %v5074
  %5723 = vmatprep.subr.bf16.mxu0 %v5087
  %5724 = vmatpush1.bf16.msra.mxu0 %v5086
  %5725 = vmatprep.subr.bf16.mxu0 %v5099
  %5726 = vmatpush1.bf16.msra.mxu0 %v5098
  %5727 = vmatprep.mubr.bf16.mxu0 %v3121
  %5728 = vmatmul.mubr.bf16.gmra.mrb[0].mxu0 %v3120
  %v5729 = vpop.f32.mrb[0].mxu0
  %v5730 = vadd.f32 %v5689, %v5729
  %v5731 = vpop.f32.mrb[0].mxu0
  %v5732 = vadd.f32 %v5691, %v5731
  %v5733 = vpop.f32.mrb[0].mxu0
  %v5734 = vpop.f32.mrb[0].mxu0
  %5735 = vdwg.mxu0
  %5736 = vmatprep.subr.bf16.mxu0 %v4729
  %5737 = vmatpush1.bf16.msra.mxu0 %v4728
  %5738 = vmatprep.subr.bf16.mxu0 %v4741
  %5739 = vmatpush1.bf16.msra.mxu0 %v4740
  %5740 = vmatprep.subr.bf16.mxu0 %v4753
  %5741 = vmatpush1.bf16.msra.mxu0 %v4752
  %5742 = vmatprep.subr.bf16.mxu0 %v4765
  %5743 = vmatpush1.bf16.msra.mxu0 %v4764
  %5744 = vmatprep.subr.bf16.mxu0 %v4777
  %5745 = vmatpush1.bf16.msra.mxu0 %v4776
  %5746 = vmatprep.subr.bf16.mxu0 %v4789
  %5747 = vmatpush1.bf16.msra.mxu0 %v4788
  %5748 = vmatprep.subr.bf16.mxu0 %v4801
  %5749 = vmatpush1.bf16.msra.mxu0 %v4800
  %5750 = vmatprep.subr.bf16.mxu0 %v4813
  %5751 = vmatpush1.bf16.msra.mxu0 %v4812
  %5752 = vmatprep.subr.bf16.mxu0 %v4825
  %5753 = vmatpush1.bf16.msra.mxu0 %v4824
  %5754 = vmatprep.subr.bf16.mxu0 %v4837
  %5755 = vmatpush1.bf16.msra.mxu0 %v4836
  %5756 = vmatprep.subr.bf16.mxu0 %v4849
  %5757 = vmatpush1.bf16.msra.mxu0 %v4848
  %5758 = vmatprep.subr.bf16.mxu0 %v4861
  %5759 = vmatpush1.bf16.msra.mxu0 %v4860
  %5760 = vmatprep.subr.bf16.mxu0 %v4873
  %5761 = vmatpush1.bf16.msra.mxu0 %v4872
  %5762 = vmatprep.subr.bf16.mxu0 %v4885
  %5763 = vmatpush1.bf16.msra.mxu0 %v4884
  %5764 = vmatprep.subr.bf16.mxu0 %v4897
  %5765 = vmatpush1.bf16.msra.mxu0 %v4896
  %5766 = vmatprep.subr.bf16.mxu0 %v4909
  %5767 = vmatpush1.bf16.msra.mxu0 %v4908
  %5768 = vmatprep.mubr.bf16.mxu0 %v3119
  %5769 = vmatmul.mubr.bf16.gmra.mrb[0].mxu0 %v3118
  %v5770 = vpop.f32.mrb[0].mxu0
  %v5771 = vadd.f32 %v3537, %v5770
  %v5772 = vpop.f32.mrb[0].mxu0
  %v5773 = vadd.f32 %v3541, %v5772
  %v5774 = vpop.f32.mrb[0].mxu0
  %v5775 = vpop.f32.mrb[0].mxu0
  %5776 = vdwg.mxu0
  %5777 = vmatprep.subr.bf16.mxu0 %v4921
  %5778 = vmatpush1.bf16.msra.mxu0 %v4920
  %5779 = vmatprep.subr.bf16.mxu0 %v4933
  %5780 = vmatpush1.bf16.msra.mxu0 %v4932
  %5781 = vmatprep.subr.bf16.mxu0 %v4945
  %5782 = vmatpush1.bf16.msra.mxu0 %v4944
  %5783 = vmatprep.subr.bf16.mxu0 %v4957
  %5784 = vmatpush1.bf16.msra.mxu0 %v4956
  %5785 = vmatprep.subr.bf16.mxu0 %v4969
  %5786 = vmatpush1.bf16.msra.mxu0 %v4968
  %5787 = vmatprep.subr.bf16.mxu0 %v4981
  %5788 = vmatpush1.bf16.msra.mxu0 %v4980
  %5789 = vmatprep.subr.bf16.mxu0 %v4993
  %5790 = vmatpush1.bf16.msra.mxu0 %v4992
  %5791 = vmatprep.subr.bf16.mxu0 %v5005
  %5792 = vmatpush1.bf16.msra.mxu0 %v5004
  %5793 = vmatprep.subr.bf16.mxu0 %v5017
  %5794 = vmatpush1.bf16.msra.mxu0 %v5016
  %5795 = vmatprep.subr.bf16.mxu0 %v5029
  %5796 = vmatpush1.bf16.msra.mxu0 %v5028
  %5797 = vmatprep.subr.bf16.mxu0 %v5041
  %5798 = vmatpush1.bf16.msra.mxu0 %v5040
  %5799 = vmatprep.subr.bf16.mxu0 %v5053
  %5800 = vmatpush1.bf16.msra.mxu0 %v5052
  %5801 = vmatprep.subr.bf16.mxu0 %v5065
  %5802 = vmatpush1.bf16.msra.mxu0 %v5064
  %5803 = vmatprep.subr.bf16.mxu0 %v5077
  %5804 = vmatpush1.bf16.msra.mxu0 %v5076
  %5805 = vmatprep.subr.bf16.mxu0 %v5089
  %5806 = vmatpush1.bf16.msra.mxu0 %v5088
  %5807 = vmatprep.subr.bf16.mxu0 %v5101
  %5808 = vmatpush1.bf16.msra.mxu0 %v5100
  %5809 = vmatprep.mubr.bf16.mxu0 %v3121
  %5810 = vmatmul.mubr.bf16.gmra.mrb[0].mxu0 %v3120
  %v5811 = vpop.f32.mrb[0].mxu0
  %v5812 = vadd.f32 %v5771, %v5811
  %v5813 = vpop.f32.mrb[0].mxu0
  %v5814 = vadd.f32 %v5773, %v5813
  %v5815 = vpop.f32.mrb[0].mxu0
  %v5816 = vpop.f32.mrb[0].mxu0
  %5817 = vdwg.mxu0
  %5818 = vmatprep.subr.bf16.mxu0 %v4731
  %5819 = vmatpush1.bf16.msra.mxu0 %v4730
  %5820 = vmatprep.subr.bf16.mxu0 %v4743
  %5821 = vmatpush1.bf16.msra.mxu0 %v4742
  %5822 = vmatprep.subr.bf16.mxu0 %v4755
  %5823 = vmatpush1.bf16.msra.mxu0 %v4754
  %5824 = vmatprep.subr.bf16.mxu0 %v4767
  %5825 = vmatpush1.bf16.msra.mxu0 %v4766
  %5826 = vmatprep.subr.bf16.mxu0 %v4779
  %5827 = vmatpush1.bf16.msra.mxu0 %v4778
  %5828 = vmatprep.subr.bf16.mxu0 %v4791
  %5829 = vmatpush1.bf16.msra.mxu0 %v4790
  %5830 = vmatprep.subr.bf16.mxu0 %v4803
  %5831 = vmatpush1.bf16.msra.mxu0 %v4802
  %5832 = vmatprep.subr.bf16.mxu0 %v4815
  %5833 = vmatpush1.bf16.msra.mxu0 %v4814
  %5834 = vmatprep.subr.bf16.mxu0 %v4827
  %5835 = vmatpush1.bf16.msra.mxu0 %v4826
  %5836 = vmatprep.subr.bf16.mxu0 %v4839
  %5837 = vmatpush1.bf16.msra.mxu0 %v4838
  %5838 = vmatprep.subr.bf16.mxu0 %v4851
  %5839 = vmatpush1.bf16.msra.mxu0 %v4850
  %5840 = vmatprep.subr.bf16.mxu0 %v4863
  %5841 = vmatpush1.bf16.msra.mxu0 %v4862
  %5842 = vmatprep.subr.bf16.mxu0 %v4875
  %5843 = vmatpush1.bf16.msra.mxu0 %v4874
  %5844 = vmatprep.subr.bf16.mxu0 %v4887
  %5845 = vmatpush1.bf16.msra.mxu0 %v4886
  %5846 = vmatprep.subr.bf16.mxu0 %v4899
  %5847 = vmatpush1.bf16.msra.mxu0 %v4898
  %5848 = vmatprep.subr.bf16.mxu0 %v4911
  %5849 = vmatpush1.bf16.msra.mxu0 %v4910
  %5850 = vmatprep.mubr.bf16.mxu0 %v3119
  %5851 = vmatmul.mubr.bf16.gmra.mrb[0].mxu0 %v3118
  %v5852 = vpop.f32.mrb[0].mxu0
  %v5853 = vadd.f32 %v3545, %v5852
  %v5854 = vpop.f32.mrb[0].mxu0
  %v5855 = vadd.f32 %v3549, %v5854
  %v5856 = vpop.f32.mrb[0].mxu0
  %v5857 = vpop.f32.mrb[0].mxu0
  %5858 = vdwg.mxu0
  %5859 = vmatprep.subr.bf16.mxu0 %v4923
  %5860 = vmatpush1.bf16.msra.mxu0 %v4922
  %5861 = vmatprep.subr.bf16.mxu0 %v4935
  %5862 = vmatpush1.bf16.msra.mxu0 %v4934
  %5863 = vmatprep.subr.bf16.mxu0 %v4947
  %5864 = vmatpush1.bf16.msra.mxu0 %v4946
  %5865 = vmatprep.subr.bf16.mxu0 %v4959
  %5866 = vmatpush1.bf16.msra.mxu0 %v4958
  %5867 = vmatprep.subr.bf16.mxu0 %v4971
  %5868 = vmatpush1.bf16.msra.mxu0 %v4970
  %5869 = vmatprep.subr.bf16.mxu0 %v4983
  %5870 = vmatpush1.bf16.msra.mxu0 %v4982
  %5871 = vmatprep.subr.bf16.mxu0 %v4995
  %5872 = vmatpush1.bf16.msra.mxu0 %v4994
  %5873 = vmatprep.subr.bf16.mxu0 %v5007
  %5874 = vmatpush1.bf16.msra.mxu0 %v5006
  %5875 = vmatprep.subr.bf16.mxu0 %v5019
  %5876 = vmatpush1.bf16.msra.mxu0 %v5018
  %5877 = vmatprep.subr.bf16.mxu0 %v5031
  %5878 = vmatpush1.bf16.msra.mxu0 %v5030
  %5879 = vmatprep.subr.bf16.mxu0 %v5043
  %5880 = vmatpush1.bf16.msra.mxu0 %v5042
  %5881 = vmatprep.subr.bf16.mxu0 %v5055
  %5882 = vmatpush1.bf16.msra.mxu0 %v5054
  %5883 = vmatprep.subr.bf16.mxu0 %v5067
  %5884 = vmatpush1.bf16.msra.mxu0 %v5066
  %5885 = vmatprep.subr.bf16.mxu0 %v5079
  %5886 = vmatpush1.bf16.msra.mxu0 %v5078
  %5887 = vmatprep.subr.bf16.mxu0 %v5091
  %5888 = vmatpush1.bf16.msra.mxu0 %v5090
  %5889 = vmatprep.subr.bf16.mxu0 %v5103
  %5890 = vmatpush1.bf16.msra.mxu0 %v5102
  %5891 = vmatprep.mubr.bf16.mxu0 %v3121
  %5892 = vmatmul.mubr.bf16.gmra.mrb[0].mxu0 %v3120
  %v5893 = vpop.f32.mrb[0].mxu0
  %v5894 = vadd.f32 %v5853, %v5893
  %v5895 = vpop.f32.mrb[0].mxu0
  %v5896 = vadd.f32 %v5855, %v5895
  %v5897 = vpop.f32.mrb[0].mxu0
  %v5898 = vpop.f32.mrb[0].mxu0
  %5899 = vdwg.mxu0
  %5900 = vmatprep.subr.bf16.mxu0 %v4733
  %5901 = vmatpush1.bf16.msra.mxu0 %v4732
  %5902 = vmatprep.subr.bf16.mxu0 %v4745
  %5903 = vmatpush1.bf16.msra.mxu0 %v4744
  %5904 = vmatprep.subr.bf16.mxu0 %v4757
  %5905 = vmatpush1.bf16.msra.mxu0 %v4756
  %5906 = vmatprep.subr.bf16.mxu0 %v4769
  %5907 = vmatpush1.bf16.msra.mxu0 %v4768
  %5908 = vmatprep.subr.bf16.mxu0 %v4781
  %5909 = vmatpush1.bf16.msra.mxu0 %v4780
  %5910 = vmatprep.subr.bf16.mxu0 %v4793
  %5911 = vmatpush1.bf16.msra.mxu0 %v4792
  %5912 = vmatprep.subr.bf16.mxu0 %v4805
  %5913 = vmatpush1.bf16.msra.mxu0 %v4804
  %5914 = vmatprep.subr.bf16.mxu0 %v4817
  %5915 = vmatpush1.bf16.msra.mxu0 %v4816
  %5916 = vmatprep.subr.bf16.mxu0 %v4829
  %5917 = vmatpush1.bf16.msra.mxu0 %v4828
  %5918 = vmatprep.subr.bf16.mxu0 %v4841
  %5919 = vmatpush1.bf16.msra.mxu0 %v4840
  %5920 = vmatprep.subr.bf16.mxu0 %v4853
  %5921 = vmatpush1.bf16.msra.mxu0 %v4852
  %5922 = vmatprep.subr.bf16.mxu0 %v4865
  %5923 = vmatpush1.bf16.msra.mxu0 %v4864
  %5924 = vmatprep.subr.bf16.mxu0 %v4877
  %5925 = vmatpush1.bf16.msra.mxu0 %v4876
  %5926 = vmatprep.subr.bf16.mxu0 %v4889
  %5927 = vmatpush1.bf16.msra.mxu0 %v4888
  %5928 = vmatprep.subr.bf16.mxu0 %v4901
  %5929 = vmatpush1.bf16.msra.mxu0 %v4900
  %5930 = vmatprep.subr.bf16.mxu0 %v4913
  %5931 = vmatpush1.bf16.msra.mxu0 %v4912
  %5932 = vmatprep.mubr.bf16.mxu0 %v3119
  %5933 = vmatmul.mubr.bf16.gmra.mrb[0].mxu0 %v3118
  %v5934 = vpop.f32.mrb[0].mxu0
  %v5935 = vadd.f32 %v3553, %v5934
  %v5936 = vpop.f32.mrb[0].mxu0
  %v5937 = vadd.f32 %v3557, %v5936
  %v5938 = vpop.f32.mrb[0].mxu0
  %v5939 = vpop.f32.mrb[0].mxu0
  %5940 = vdwg.mxu0
  %5941 = vmatprep.subr.bf16.mxu0 %v4925
  %5942 = vmatpush1.bf16.msra.mxu0 %v4924
  %5943 = vmatprep.subr.bf16.mxu0 %v4937
  %5944 = vmatpush1.bf16.msra.mxu0 %v4936
  %5945 = vmatprep.subr.bf16.mxu0 %v4949
  %5946 = vmatpush1.bf16.msra.mxu0 %v4948
  %5947 = vmatprep.subr.bf16.mxu0 %v4961
  %5948 = vmatpush1.bf16.msra.mxu0 %v4960
  %5949 = vmatprep.subr.bf16.mxu0 %v4973
  %5950 = vmatpush1.bf16.msra.mxu0 %v4972
  %5951 = vmatprep.subr.bf16.mxu0 %v4985
  %5952 = vmatpush1.bf16.msra.mxu0 %v4984
  %5953 = vmatprep.subr.bf16.mxu0 %v4997
  %5954 = vmatpush1.bf16.msra.mxu0 %v4996
  %5955 = vmatprep.subr.bf16.mxu0 %v5009
  %5956 = vmatpush1.bf16.msra.mxu0 %v5008
  %5957 = vmatprep.subr.bf16.mxu0 %v5021
  %5958 = vmatpush1.bf16.msra.mxu0 %v5020
  %5959 = vmatprep.subr.bf16.mxu0 %v5033
  %5960 = vmatpush1.bf16.msra.mxu0 %v5032
  %5961 = vmatprep.subr.bf16.mxu0 %v5045
  %5962 = vmatpush1.bf16.msra.mxu0 %v5044
  %5963 = vmatprep.subr.bf16.mxu0 %v5057
  %5964 = vmatpush1.bf16.msra.mxu0 %v5056
  %5965 = vmatprep.subr.bf16.mxu0 %v5069
  %5966 = vmatpush1.bf16.msra.mxu0 %v5068
  %5967 = vmatprep.subr.bf16.mxu0 %v5081
  %5968 = vmatpush1.bf16.msra.mxu0 %v5080
  %5969 = vmatprep.subr.bf16.mxu0 %v5093
  %5970 = vmatpush1.bf16.msra.mxu0 %v5092
  %5971 = vmatprep.subr.bf16.mxu0 %v5105
  %5972 = vmatpush1.bf16.msra.mxu0 %v5104
  %5973 = vmatprep.mubr.bf16.mxu0 %v3121
  %5974 = vmatmul.mubr.bf16.gmra.mrb[0].mxu0 %v3120
  %v5975 = vpop.f32.mrb[0].mxu0
  %v5976 = vadd.f32 %v5935, %v5975
  %v5977 = vpop.f32.mrb[0].mxu0
  %v5978 = vadd.f32 %v5937, %v5977
  %v5979 = vpop.f32.mrb[0].mxu0
  %v5980 = vpop.f32.mrb[0].mxu0
  %5981 = vdwg.mxu0
  %v5983 = vcombine.high %v3117, %v3117
  %v5985 = vunpack.c.l.s4 1983009808
  %v5986 = vunpack.c.0.s8 %v5985
  %v5987 = vlaneseq
  %v5988 = vshrl.u32 %v5987, 7
  %v5989 = vsub.s32 %v5986, %v5988
  %v5990 = vrot.slane %v3117, %v5989
  %v5992 = vunpack.c.l.s4 1983009808
  %v5993 = vunpack.c.0.s8 %v5992
  %v5994 = vlaneseq
  %v5995 = vshrl.u32 %v5994, 7
  %v5996 = vsub.s32 %v5993, %v5995
  %v5997 = vrot.slane %v5983, %v5996
  %v5998 = vcombine.high %v5990, %v5990
  %v5999 = vcombine.high %v5997, %v5997
  %v6004 = vpack.c.bf16 %v5990, %v5990
  %v6005 = vpack.c.bf16 %v5998, %v5998
  %v6006 = vpack.c.bf16 %v5997, %v5997
  %v6007 = vpack.c.bf16 %v5999, %v5999
  %v6008 = vld [vmem:[%s6] sm:$0xff]
  %v6009 = vld [vmem:[%s6 + $0x8] sm:$0xff]
  %v6010 = vld [vmem:[%s6 + $0x10] sm:$0xff]
  %v6011 = vld [vmem:[%s6 + $0x18] sm:$0xff]
  %v6012 = vld [vmem:[%s6 + $0x20] sm:$0xff]
  %v6013 = vld [vmem:[%s6 + $0x28] sm:$0xff]
  %v6014 = vld [vmem:[%s6 + $0x30] sm:$0xff]
  %v6015 = vld [vmem:[%s6 + $0x38] sm:$0xff]
  %v6016 = vld [vmem:[%s6 + $0x40] sm:$0xff]
  %v6017 = vld [vmem:[%s6 + $0x48] sm:$0xff]
  %v6018 = vld [vmem:[%s6 + $0x50] sm:$0xff]
  %v6019 = vld [vmem:[%s6 + $0x58] sm:$0xff]
  %v6020 = vld [vmem:[%s6 + $0x60] sm:$0xff]
  %v6021 = vld [vmem:[%s6 + $0x68] sm:$0xff]
  %v6022 = vld [vmem:[%s6 + $0x70] sm:$0xff]
  %v6023 = vld [vmem:[%s6 + $0x78] sm:$0xff]
  %v6024 = vld [vmem:[%s6 + $0x80] sm:$0xff]
  %v6025 = vld [vmem:[%s6 + $0x88] sm:$0xff]
  %v6026 = vld [vmem:[%s6 + $0x90] sm:$0xff]
  %v6027 = vld [vmem:[%s6 + $0x98] sm:$0xff]
  %v6028 = vld [vmem:[%s6 + $0xa0] sm:$0xff]
  %v6029 = vld [vmem:[%s6 + $0xa8] sm:$0xff]
  %v6030 = vld [vmem:[%s6 + $0xb0] sm:$0xff]
  %v6031 = vld [vmem:[%s6 + $0xb8] sm:$0xff]
  %v6032 = vld [vmem:[%s6 + $0xc0] sm:$0xff]
  %v6033 = vld [vmem:[%s6 + $0xc8] sm:$0xff]
  %v6034 = vld [vmem:[%s6 + $0xd0] sm:$0xff]
  %v6035 = vld [vmem:[%s6 + $0xd8] sm:$0xff]
  %v6036 = vld [vmem:[%s6 + $0xe0] sm:$0xff]
  %v6037 = vld [vmem:[%s6 + $0xe8] sm:$0xff]
  %v6038 = vld [vmem:[%s6 + $0xf0] sm:$0xff]
  %v6039 = vld [vmem:[%s6 + $0xf8] sm:$0xff]
  %v6040 = vld [vmem:[%s6 + $0x100] sm:$0xff]
  %v6041 = vld [vmem:[%s6 + $0x108] sm:$0xff]
  %v6042 = vld [vmem:[%s6 + $0x110] sm:$0xff]
  %v6043 = vld [vmem:[%s6 + $0x118] sm:$0xff]
  %v6044 = vld [vmem:[%s6 + $0x120] sm:$0xff]
  %v6045 = vld [vmem:[%s6 + $0x128] sm:$0xff]
  %v6046 = vld [vmem:[%s6 + $0x130] sm:$0xff]
  %v6047 = vld [vmem:[%s6 + $0x138] sm:$0xff]
  %v6048 = vld [vmem:[%s6 + $0x140] sm:$0xff]
  %v6049 = vld [vmem:[%s6 + $0x148] sm:$0xff]
  %v6050 = vld [vmem:[%s6 + $0x150] sm:$0xff]
  %v6051 = vld [vmem:[%s6 + $0x158] sm:$0xff]
  %v6052 = vld [vmem:[%s6 + $0x160] sm:$0xff]
  %v6053 = vld [vmem:[%s6 + $0x168] sm:$0xff]
  %v6054 = vld [vmem:[%s6 + $0x170] sm:$0xff]
  %v6055 = vld [vmem:[%s6 + $0x178] sm:$0xff]
  %v6056 = vld [vmem:[%s6 + $0x180] sm:$0xff]
  %v6057 = vld [vmem:[%s6 + $0x188] sm:$0xff]
  %v6058 = vld [vmem:[%s6 + $0x190] sm:$0xff]
  %v6059 = vld [vmem:[%s6 + $0x198] sm:$0xff]
  %v6060 = vld [vmem:[%s6 + $0x1a0] sm:$0xff]
  %v6061 = vld [vmem:[%s6 + $0x1a8] sm:$0xff]
  %v6062 = vld [vmem:[%s6 + $0x1b0] sm:$0xff]
  %v6063 = vld [vmem:[%s6 + $0x1b8] sm:$0xff]
  %v6064 = vld [vmem:[%s6 + $0x1c0] sm:$0xff]
  %v6065 = vld [vmem:[%s6 + $0x1c8] sm:$0xff]
  %v6066 = vld [vmem:[%s6 + $0x1d0] sm:$0xff]
  %v6067 = vld [vmem:[%s6 + $0x1d8] sm:$0xff]
  %v6068 = vld [vmem:[%s6 + $0x1e0] sm:$0xff]
  %v6069 = vld [vmem:[%s6 + $0x1e8] sm:$0xff]
  %v6070 = vld [vmem:[%s6 + $0x1f0] sm:$0xff]
  %v6071 = vld [vmem:[%s6 + $0x1f8] sm:$0xff]
  %v6072 = vld [vmem:[%s6 + $0x200] sm:$0xff]
  %v6073 = vld [vmem:[%s6 + $0x208] sm:$0xff]
  %v6074 = vld [vmem:[%s6 + $0x210] sm:$0xff]
  %v6075 = vld [vmem:[%s6 + $0x218] sm:$0xff]
  %v6076 = vld [vmem:[%s6 + $0x220] sm:$0xff]
  %v6077 = vld [vmem:[%s6 + $0x228] sm:$0xff]
  %v6078 = vld [vmem:[%s6 + $0x230] sm:$0xff]
  %v6079 = vld [vmem:[%s6 + $0x238] sm:$0xff]
  %v6080 = vld [vmem:[%s6 + $0x240] sm:$0xff]
  %v6081 = vld [vmem:[%s6 + $0x248] sm:$0xff]
  %v6082 = vld [vmem:[%s6 + $0x250] sm:$0xff]
  %v6083 = vld [vmem:[%s6 + $0x258] sm:$0xff]
  %v6084 = vld [vmem:[%s6 + $0x260] sm:$0xff]
  %v6085 = vld [vmem:[%s6 + $0x268] sm:$0xff]
  %v6086 = vld [vmem:[%s6 + $0x270] sm:$0xff]
  %v6087 = vld [vmem:[%s6 + $0x278] sm:$0xff]
  %v6088 = vld [vmem:[%s6 + $0x280] sm:$0xff]
  %v6089 = vld [vmem:[%s6 + $0x288] sm:$0xff]
  %v6090 = vld [vmem:[%s6 + $0x290] sm:$0xff]
  %v6091 = vld [vmem:[%s6 + $0x298] sm:$0xff]
  %v6092 = vld [vmem:[%s6 + $0x2a0] sm:$0xff]
  %v6093 = vld [vmem:[%s6 + $0x2a8] sm:$0xff]
  %v6094 = vld [vmem:[%s6 + $0x2b0] sm:$0xff]
  %v6095 = vld [vmem:[%s6 + $0x2b8] sm:$0xff]
  %v6096 = vld [vmem:[%s6 + $0x2c0] sm:$0xff]
  %v6097 = vld [vmem:[%s6 + $0x2c8] sm:$0xff]
  %v6098 = vld [vmem:[%s6 + $0x2d0] sm:$0xff]
  %v6099 = vld [vmem:[%s6 + $0x2d8] sm:$0xff]
  %v6100 = vld [vmem:[%s6 + $0x2e0] sm:$0xff]
  %v6101 = vld [vmem:[%s6 + $0x2e8] sm:$0xff]
  %v6102 = vld [vmem:[%s6 + $0x2f0] sm:$0xff]
  %v6103 = vld [vmem:[%s6 + $0x2f8] sm:$0xff]
  %v6104 = vld [vmem:[%s6 + $0x300] sm:$0xff]
  %v6105 = vld [vmem:[%s6 + $0x308] sm:$0xff]
  %v6106 = vld [vmem:[%s6 + $0x310] sm:$0xff]
  %v6107 = vld [vmem:[%s6 + $0x318] sm:$0xff]
  %v6108 = vld [vmem:[%s6 + $0x320] sm:$0xff]
  %v6109 = vld [vmem:[%s6 + $0x328] sm:$0xff]
  %v6110 = vld [vmem:[%s6 + $0x330] sm:$0xff]
  %v6111 = vld [vmem:[%s6 + $0x338] sm:$0xff]
  %v6112 = vld [vmem:[%s6 + $0x340] sm:$0xff]
  %v6113 = vld [vmem:[%s6 + $0x348] sm:$0xff]
  %v6114 = vld [vmem:[%s6 + $0x350] sm:$0xff]
  %v6115 = vld [vmem:[%s6 + $0x358] sm:$0xff]
  %v6116 = vld [vmem:[%s6 + $0x360] sm:$0xff]
  %v6117 = vld [vmem:[%s6 + $0x368] sm:$0xff]
  %v6118 = vld [vmem:[%s6 + $0x370] sm:$0xff]
  %v6119 = vld [vmem:[%s6 + $0x378] sm:$0xff]
  %v6120 = vld [vmem:[%s6 + $0x380] sm:$0xff]
  %v6121 = vld [vmem:[%s6 + $0x388] sm:$0xff]
  %v6122 = vld [vmem:[%s6 + $0x390] sm:$0xff]
  %v6123 = vld [vmem:[%s6 + $0x398] sm:$0xff]
  %v6124 = vld [vmem:[%s6 + $0x3a0] sm:$0xff]
  %v6125 = vld [vmem:[%s6 + $0x3a8] sm:$0xff]
  %v6126 = vld [vmem:[%s6 + $0x3b0] sm:$0xff]
  %v6127 = vld [vmem:[%s6 + $0x3b8] sm:$0xff]
  %v6128 = vld [vmem:[%s6 + $0x3c0] sm:$0xff]
  %v6129 = vld [vmem:[%s6 + $0x3c8] sm:$0xff]
  %v6130 = vld [vmem:[%s6 + $0x3d0] sm:$0xff]
  %v6131 = vld [vmem:[%s6 + $0x3d8] sm:$0xff]
  %v6132 = vld [vmem:[%s6 + $0x3e0] sm:$0xff]
  %v6133 = vld [vmem:[%s6 + $0x3e8] sm:$0xff]
  %v6134 = vld [vmem:[%s6 + $0x3f0] sm:$0xff]
  %v6135 = vld [vmem:[%s6 + $0x3f8] sm:$0xff]
  %v6136 = vld [vmem:[%s6 + $0x400] sm:$0xff]
  %v6137 = vld [vmem:[%s6 + $0x408] sm:$0xff]
  %v6138 = vld [vmem:[%s6 + $0x410] sm:$0xff]
  %v6139 = vld [vmem:[%s6 + $0x418] sm:$0xff]
  %v6140 = vld [vmem:[%s6 + $0x420] sm:$0xff]
  %v6141 = vld [vmem:[%s6 + $0x428] sm:$0xff]
  %v6142 = vld [vmem:[%s6 + $0x430] sm:$0xff]
  %v6143 = vld [vmem:[%s6 + $0x438] sm:$0xff]
  %v6144 = vld [vmem:[%s6 + $0x440] sm:$0xff]
  %v6145 = vld [vmem:[%s6 + $0x448] sm:$0xff]
  %v6146 = vld [vmem:[%s6 + $0x450] sm:$0xff]
  %v6147 = vld [vmem:[%s6 + $0x458] sm:$0xff]
  %v6148 = vld [vmem:[%s6 + $0x460] sm:$0xff]
  %v6149 = vld [vmem:[%s6 + $0x468] sm:$0xff]
  %v6150 = vld [vmem:[%s6 + $0x470] sm:$0xff]
  %v6151 = vld [vmem:[%s6 + $0x478] sm:$0xff]
  %v6152 = vld [vmem:[%s6 + $0x480] sm:$0xff]
  %v6153 = vld [vmem:[%s6 + $0x488] sm:$0xff]
  %v6154 = vld [vmem:[%s6 + $0x490] sm:$0xff]
  %v6155 = vld [vmem:[%s6 + $0x498] sm:$0xff]
  %v6156 = vld [vmem:[%s6 + $0x4a0] sm:$0xff]
  %v6157 = vld [vmem:[%s6 + $0x4a8] sm:$0xff]
  %v6158 = vld [vmem:[%s6 + $0x4b0] sm:$0xff]
  %v6159 = vld [vmem:[%s6 + $0x4b8] sm:$0xff]
  %v6160 = vld [vmem:[%s6 + $0x4c0] sm:$0xff]
  %v6161 = vld [vmem:[%s6 + $0x4c8] sm:$0xff]
  %v6162 = vld [vmem:[%s6 + $0x4d0] sm:$0xff]
  %v6163 = vld [vmem:[%s6 + $0x4d8] sm:$0xff]
  %v6164 = vld [vmem:[%s6 + $0x4e0] sm:$0xff]
  %v6165 = vld [vmem:[%s6 + $0x4e8] sm:$0xff]
  %v6166 = vld [vmem:[%s6 + $0x4f0] sm:$0xff]
  %v6167 = vld [vmem:[%s6 + $0x4f8] sm:$0xff]
  %v6168 = vld [vmem:[%s6 + $0x500] sm:$0xff]
  %v6169 = vld [vmem:[%s6 + $0x508] sm:$0xff]
  %v6170 = vld [vmem:[%s6 + $0x510] sm:$0xff]
  %v6171 = vld [vmem:[%s6 + $0x518] sm:$0xff]
  %v6172 = vld [vmem:[%s6 + $0x520] sm:$0xff]
  %v6173 = vld [vmem:[%s6 + $0x528] sm:$0xff]
  %v6174 = vld [vmem:[%s6 + $0x530] sm:$0xff]
  %v6175 = vld [vmem:[%s6 + $0x538] sm:$0xff]
  %v6176 = vld [vmem:[%s6 + $0x540] sm:$0xff]
  %v6177 = vld [vmem:[%s6 + $0x548] sm:$0xff]
  %v6178 = vld [vmem:[%s6 + $0x550] sm:$0xff]
  %v6179 = vld [vmem:[%s6 + $0x558] sm:$0xff]
  %v6180 = vld [vmem:[%s6 + $0x560] sm:$0xff]
  %v6181 = vld [vmem:[%s6 + $0x568] sm:$0xff]
  %v6182 = vld [vmem:[%s6 + $0x570] sm:$0xff]
  %v6183 = vld [vmem:[%s6 + $0x578] sm:$0xff]
  %v6184 = vld [vmem:[%s6 + $0x580] sm:$0xff]
  %v6185 = vld [vmem:[%s6 + $0x588] sm:$0xff]
  %v6186 = vld [vmem:[%s6 + $0x590] sm:$0xff]
  %v6187 = vld [vmem:[%s6 + $0x598] sm:$0xff]
  %v6188 = vld [vmem:[%s6 + $0x5a0] sm:$0xff]
  %v6189 = vld [vmem:[%s6 + $0x5a8] sm:$0xff]
  %v6190 = vld [vmem:[%s6 + $0x5b0] sm:$0xff]
  %v6191 = vld [vmem:[%s6 + $0x5b8] sm:$0xff]
  %v6192 = vld [vmem:[%s6 + $0x5c0] sm:$0xff]
  %v6193 = vld [vmem:[%s6 + $0x5c8] sm:$0xff]
  %v6194 = vld [vmem:[%s6 + $0x5d0] sm:$0xff]
  %v6195 = vld [vmem:[%s6 + $0x5d8] sm:$0xff]
  %v6196 = vld [vmem:[%s6 + $0x5e0] sm:$0xff]
  %v6197 = vld [vmem:[%s6 + $0x5e8] sm:$0xff]
  %v6198 = vld [vmem:[%s6 + $0x5f0] sm:$0xff]
  %v6199 = vld [vmem:[%s6 + $0x5f8] sm:$0xff]
  %v6200 = vld [vmem:[%s6 + $0x600] sm:$0xff]
  %v6201 = vld [vmem:[%s6 + $0x608] sm:$0xff]
  %v6202 = vld [vmem:[%s6 + $0x610] sm:$0xff]
  %v6203 = vld [vmem:[%s6 + $0x618] sm:$0xff]
  %v6204 = vld [vmem:[%s6 + $0x620] sm:$0xff]
  %v6205 = vld [vmem:[%s6 + $0x628] sm:$0xff]
  %v6206 = vld [vmem:[%s6 + $0x630] sm:$0xff]
  %v6207 = vld [vmem:[%s6 + $0x638] sm:$0xff]
  %v6208 = vld [vmem:[%s6 + $0x640] sm:$0xff]
  %v6209 = vld [vmem:[%s6 + $0x648] sm:$0xff]
  %v6210 = vld [vmem:[%s6 + $0x650] sm:$0xff]
  %v6211 = vld [vmem:[%s6 + $0x658] sm:$0xff]
  %v6212 = vld [vmem:[%s6 + $0x660] sm:$0xff]
  %v6213 = vld [vmem:[%s6 + $0x668] sm:$0xff]
  %v6214 = vld [vmem:[%s6 + $0x670] sm:$0xff]
  %v6215 = vld [vmem:[%s6 + $0x678] sm:$0xff]
  %v6216 = vld [vmem:[%s6 + $0x680] sm:$0xff]
  %v6217 = vld [vmem:[%s6 + $0x688] sm:$0xff]
  %v6218 = vld [vmem:[%s6 + $0x690] sm:$0xff]
  %v6219 = vld [vmem:[%s6 + $0x698] sm:$0xff]
  %v6220 = vld [vmem:[%s6 + $0x6a0] sm:$0xff]
  %v6221 = vld [vmem:[%s6 + $0x6a8] sm:$0xff]
  %v6222 = vld [vmem:[%s6 + $0x6b0] sm:$0xff]
  %v6223 = vld [vmem:[%s6 + $0x6b8] sm:$0xff]
  %v6224 = vld [vmem:[%s6 + $0x6c0] sm:$0xff]
  %v6225 = vld [vmem:[%s6 + $0x6c8] sm:$0xff]
  %v6226 = vld [vmem:[%s6 + $0x6d0] sm:$0xff]
  %v6227 = vld [vmem:[%s6 + $0x6d8] sm:$0xff]
  %v6228 = vld [vmem:[%s6 + $0x6e0] sm:$0xff]
  %v6229 = vld [vmem:[%s6 + $0x6e8] sm:$0xff]
  %v6230 = vld [vmem:[%s6 + $0x6f0] sm:$0xff]
  %v6231 = vld [vmem:[%s6 + $0x6f8] sm:$0xff]
  %v6232 = vld [vmem:[%s6 + $0x700] sm:$0xff]
  %v6233 = vld [vmem:[%s6 + $0x708] sm:$0xff]
  %v6234 = vld [vmem:[%s6 + $0x710] sm:$0xff]
  %v6235 = vld [vmem:[%s6 + $0x718] sm:$0xff]
  %v6236 = vld [vmem:[%s6 + $0x720] sm:$0xff]
  %v6237 = vld [vmem:[%s6 + $0x728] sm:$0xff]
  %v6238 = vld [vmem:[%s6 + $0x730] sm:$0xff]
  %v6239 = vld [vmem:[%s6 + $0x738] sm:$0xff]
  %v6240 = vld [vmem:[%s6 + $0x740] sm:$0xff]
  %v6241 = vld [vmem:[%s6 + $0x748] sm:$0xff]
  %v6242 = vld [vmem:[%s6 + $0x750] sm:$0xff]
  %v6243 = vld [vmem:[%s6 + $0x758] sm:$0xff]
  %v6244 = vld [vmem:[%s6 + $0x760] sm:$0xff]
  %v6245 = vld [vmem:[%s6 + $0x768] sm:$0xff]
  %v6246 = vld [vmem:[%s6 + $0x770] sm:$0xff]
  %v6247 = vld [vmem:[%s6 + $0x778] sm:$0xff]
  %v6248 = vld [vmem:[%s6 + $0x780] sm:$0xff]
  %v6249 = vld [vmem:[%s6 + $0x788] sm:$0xff]
  %v6250 = vld [vmem:[%s6 + $0x790] sm:$0xff]
  %v6251 = vld [vmem:[%s6 + $0x798] sm:$0xff]
  %v6252 = vld [vmem:[%s6 + $0x7a0] sm:$0xff]
  %v6253 = vld [vmem:[%s6 + $0x7a8] sm:$0xff]
  %v6254 = vld [vmem:[%s6 + $0x7b0] sm:$0xff]
  %v6255 = vld [vmem:[%s6 + $0x7b8] sm:$0xff]
  %v6256 = vld [vmem:[%s6 + $0x7c0] sm:$0xff]
  %v6257 = vld [vmem:[%s6 + $0x7c8] sm:$0xff]
  %v6258 = vld [vmem:[%s6 + $0x7d0] sm:$0xff]
  %v6259 = vld [vmem:[%s6 + $0x7d8] sm:$0xff]
  %v6260 = vld [vmem:[%s6 + $0x7e0] sm:$0xff]
  %v6261 = vld [vmem:[%s6 + $0x7e8] sm:$0xff]
  %v6262 = vld [vmem:[%s6 + $0x7f0] sm:$0xff]
  %v6263 = vld [vmem:[%s6 + $0x7f8] sm:$0xff]
  %v6264 = vld [vmem:[%s6 + $0x800] sm:$0xff]
  %v6265 = vld [vmem:[%s6 + $0x808] sm:$0xff]
  %v6266 = vld [vmem:[%s6 + $0x810] sm:$0xff]
  %v6267 = vld [vmem:[%s6 + $0x818] sm:$0xff]
  %v6268 = vld [vmem:[%s6 + $0x820] sm:$0xff]
  %v6269 = vld [vmem:[%s6 + $0x828] sm:$0xff]
  %v6270 = vld [vmem:[%s6 + $0x830] sm:$0xff]
  %v6271 = vld [vmem:[%s6 + $0x838] sm:$0xff]
  %v6272 = vld [vmem:[%s6 + $0x840] sm:$0xff]
  %v6273 = vld [vmem:[%s6 + $0x848] sm:$0xff]
  %v6274 = vld [vmem:[%s6 + $0x850] sm:$0xff]
  %v6275 = vld [vmem:[%s6 + $0x858] sm:$0xff]
  %v6276 = vld [vmem:[%s6 + $0x860] sm:$0xff]
  %v6277 = vld [vmem:[%s6 + $0x868] sm:$0xff]
  %v6278 = vld [vmem:[%s6 + $0x870] sm:$0xff]
  %v6279 = vld [vmem:[%s6 + $0x878] sm:$0xff]
  %v6280 = vld [vmem:[%s6 + $0x880] sm:$0xff]
  %v6281 = vld [vmem:[%s6 + $0x888] sm:$0xff]
  %v6282 = vld [vmem:[%s6 + $0x890] sm:$0xff]
  %v6283 = vld [vmem:[%s6 + $0x898] sm:$0xff]
  %v6284 = vld [vmem:[%s6 + $0x8a0] sm:$0xff]
  %v6285 = vld [vmem:[%s6 + $0x8a8] sm:$0xff]
  %v6286 = vld [vmem:[%s6 + $0x8b0] sm:$0xff]
  %v6287 = vld [vmem:[%s6 + $0x8b8] sm:$0xff]
  %v6288 = vld [vmem:[%s6 + $0x8c0] sm:$0xff]
  %v6289 = vld [vmem:[%s6 + $0x8c8] sm:$0xff]
  %v6290 = vld [vmem:[%s6 + $0x8d0] sm:$0xff]
  %v6291 = vld [vmem:[%s6 + $0x8d8] sm:$0xff]
  %v6292 = vld [vmem:[%s6 + $0x8e0] sm:$0xff]
  %v6293 = vld [vmem:[%s6 + $0x8e8] sm:$0xff]
  %v6294 = vld [vmem:[%s6 + $0x8f0] sm:$0xff]
  %v6295 = vld [vmem:[%s6 + $0x8f8] sm:$0xff]
  %v6296 = vld [vmem:[%s6 + $0x900] sm:$0xff]
  %v6297 = vld [vmem:[%s6 + $0x908] sm:$0xff]
  %v6298 = vld [vmem:[%s6 + $0x910] sm:$0xff]
  %v6299 = vld [vmem:[%s6 + $0x918] sm:$0xff]
  %v6300 = vld [vmem:[%s6 + $0x920] sm:$0xff]
  %v6301 = vld [vmem:[%s6 + $0x928] sm:$0xff]
  %v6302 = vld [vmem:[%s6 + $0x930] sm:$0xff]
  %v6303 = vld [vmem:[%s6 + $0x938] sm:$0xff]
  %v6304 = vld [vmem:[%s6 + $0x940] sm:$0xff]
  %v6305 = vld [vmem:[%s6 + $0x948] sm:$0xff]
  %v6306 = vld [vmem:[%s6 + $0x950] sm:$0xff]
  %v6307 = vld [vmem:[%s6 + $0x958] sm:$0xff]
  %v6308 = vld [vmem:[%s6 + $0x960] sm:$0xff]
  %v6309 = vld [vmem:[%s6 + $0x968] sm:$0xff]
  %v6310 = vld [vmem:[%s6 + $0x970] sm:$0xff]
  %v6311 = vld [vmem:[%s6 + $0x978] sm:$0xff]
  %v6312 = vld [vmem:[%s6 + $0x980] sm:$0xff]
  %v6313 = vld [vmem:[%s6 + $0x988] sm:$0xff]
  %v6314 = vld [vmem:[%s6 + $0x990] sm:$0xff]
  %v6315 = vld [vmem:[%s6 + $0x998] sm:$0xff]
  %v6316 = vld [vmem:[%s6 + $0x9a0] sm:$0xff]
  %v6317 = vld [vmem:[%s6 + $0x9a8] sm:$0xff]
  %v6318 = vld [vmem:[%s6 + $0x9b0] sm:$0xff]
  %v6319 = vld [vmem:[%s6 + $0x9b8] sm:$0xff]
  %v6320 = vld [vmem:[%s6 + $0x9c0] sm:$0xff]
  %v6321 = vld [vmem:[%s6 + $0x9c8] sm:$0xff]
  %v6322 = vld [vmem:[%s6 + $0x9d0] sm:$0xff]
  %v6323 = vld [vmem:[%s6 + $0x9d8] sm:$0xff]
  %v6324 = vld [vmem:[%s6 + $0x9e0] sm:$0xff]
  %v6325 = vld [vmem:[%s6 + $0x9e8] sm:$0xff]
  %v6326 = vld [vmem:[%s6 + $0x9f0] sm:$0xff]
  %v6327 = vld [vmem:[%s6 + $0x9f8] sm:$0xff]
  %v6328 = vld [vmem:[%s6 + $0xa00] sm:$0xff]
  %v6329 = vld [vmem:[%s6 + $0xa08] sm:$0xff]
  %v6330 = vld [vmem:[%s6 + $0xa10] sm:$0xff]
  %v6331 = vld [vmem:[%s6 + $0xa18] sm:$0xff]
  %v6332 = vld [vmem:[%s6 + $0xa20] sm:$0xff]
  %v6333 = vld [vmem:[%s6 + $0xa28] sm:$0xff]
  %v6334 = vld [vmem:[%s6 + $0xa30] sm:$0xff]
  %v6335 = vld [vmem:[%s6 + $0xa38] sm:$0xff]
  %v6336 = vld [vmem:[%s6 + $0xa40] sm:$0xff]
  %v6337 = vld [vmem:[%s6 + $0xa48] sm:$0xff]
  %v6338 = vld [vmem:[%s6 + $0xa50] sm:$0xff]
  %v6339 = vld [vmem:[%s6 + $0xa58] sm:$0xff]
  %v6340 = vld [vmem:[%s6 + $0xa60] sm:$0xff]
  %v6341 = vld [vmem:[%s6 + $0xa68] sm:$0xff]
  %v6342 = vld [vmem:[%s6 + $0xa70] sm:$0xff]
  %v6343 = vld [vmem:[%s6 + $0xa78] sm:$0xff]
  %v6344 = vld [vmem:[%s6 + $0xa80] sm:$0xff]
  %v6345 = vld [vmem:[%s6 + $0xa88] sm:$0xff]
  %v6346 = vld [vmem:[%s6 + $0xa90] sm:$0xff]
  %v6347 = vld [vmem:[%s6 + $0xa98] sm:$0xff]
  %v6348 = vld [vmem:[%s6 + $0xaa0] sm:$0xff]
  %v6349 = vld [vmem:[%s6 + $0xaa8] sm:$0xff]
  %v6350 = vld [vmem:[%s6 + $0xab0] sm:$0xff]
  %v6351 = vld [vmem:[%s6 + $0xab8] sm:$0xff]
  %v6352 = vld [vmem:[%s6 + $0xac0] sm:$0xff]
  %v6353 = vld [vmem:[%s6 + $0xac8] sm:$0xff]
  %v6354 = vld [vmem:[%s6 + $0xad0] sm:$0xff]
  %v6355 = vld [vmem:[%s6 + $0xad8] sm:$0xff]
  %v6356 = vld [vmem:[%s6 + $0xae0] sm:$0xff]
  %v6357 = vld [vmem:[%s6 + $0xae8] sm:$0xff]
  %v6358 = vld [vmem:[%s6 + $0xaf0] sm:$0xff]
  %v6359 = vld [vmem:[%s6 + $0xaf8] sm:$0xff]
  %v6360 = vld [vmem:[%s6 + $0xb00] sm:$0xff]
  %v6361 = vld [vmem:[%s6 + $0xb08] sm:$0xff]
  %v6362 = vld [vmem:[%s6 + $0xb10] sm:$0xff]
  %v6363 = vld [vmem:[%s6 + $0xb18] sm:$0xff]
  %v6364 = vld [vmem:[%s6 + $0xb20] sm:$0xff]
  %v6365 = vld [vmem:[%s6 + $0xb28] sm:$0xff]
  %v6366 = vld [vmem:[%s6 + $0xb30] sm:$0xff]
  %v6367 = vld [vmem:[%s6 + $0xb38] sm:$0xff]
  %v6368 = vld [vmem:[%s6 + $0xb40] sm:$0xff]
  %v6369 = vld [vmem:[%s6 + $0xb48] sm:$0xff]
  %v6370 = vld [vmem:[%s6 + $0xb50] sm:$0xff]
  %v6371 = vld [vmem:[%s6 + $0xb58] sm:$0xff]
  %v6372 = vld [vmem:[%s6 + $0xb60] sm:$0xff]
  %v6373 = vld [vmem:[%s6 + $0xb68] sm:$0xff]
  %v6374 = vld [vmem:[%s6 + $0xb70] sm:$0xff]
  %v6375 = vld [vmem:[%s6 + $0xb78] sm:$0xff]
  %v6376 = vld [vmem:[%s6 + $0xb80] sm:$0xff]
  %v6377 = vld [vmem:[%s6 + $0xb88] sm:$0xff]
  %v6378 = vld [vmem:[%s6 + $0xb90] sm:$0xff]
  %v6379 = vld [vmem:[%s6 + $0xb98] sm:$0xff]
  %v6380 = vld [vmem:[%s6 + $0xba0] sm:$0xff]
  %v6381 = vld [vmem:[%s6 + $0xba8] sm:$0xff]
  %v6382 = vld [vmem:[%s6 + $0xbb0] sm:$0xff]
  %v6383 = vld [vmem:[%s6 + $0xbb8] sm:$0xff]
  %v6384 = vld [vmem:[%s6 + $0xbc0] sm:$0xff]
  %v6385 = vld [vmem:[%s6 + $0xbc8] sm:$0xff]
  %v6386 = vld [vmem:[%s6 + $0xbd0] sm:$0xff]
  %v6387 = vld [vmem:[%s6 + $0xbd8] sm:$0xff]
  %v6388 = vld [vmem:[%s6 + $0xbe0] sm:$0xff]
  %v6389 = vld [vmem:[%s6 + $0xbe8] sm:$0xff]
  %v6390 = vld [vmem:[%s6 + $0xbf0] sm:$0xff]
  %v6391 = vld [vmem:[%s6 + $0xbf8] sm:$0xff]
  %v6392 = vld [vmem:[%s8] sm:$0xff]
  %v6393 = vld [vmem:[%s8 + $0x8] sm:$0xf]
  %v6396 = vlaneseq
  %v6397 = vshrl.u32 %v6396, 7
  %v6398 = vsub.s32 0, %v6397
  %v6399 = vrot.slane %v6392, %v6398
  %v6400 = vlaneseq
  %v6401 = vshrl.u32 %v6400, 7
  %v6402 = vsub.s32 1, %v6401
  %v6403 = vrot.slane %v6392, %v6402
  %v6404 = vlaneseq
  %v6405 = vshrl.u32 %v6404, 7
  %v6406 = vsub.s32 2, %v6405
  %v6407 = vrot.slane %v6392, %v6406
  %v6408 = vlaneseq
  %v6409 = vshrl.u32 %v6408, 7
  %v6410 = vsub.s32 3, %v6409
  %v6411 = vrot.slane %v6392, %v6410
  %v6412 = vlaneseq
  %v6413 = vshrl.u32 %v6412, 7
  %v6414 = vsub.s32 4, %v6413
  %v6415 = vrot.slane %v6392, %v6414
  %v6416 = vlaneseq
  %v6417 = vshrl.u32 %v6416, 7
  %v6418 = vsub.s32 5, %v6417
  %v6419 = vrot.slane %v6392, %v6418
  %v6420 = vlaneseq
  %v6421 = vshrl.u32 %v6420, 7
  %v6422 = vsub.s32 6, %v6421
  %v6423 = vrot.slane %v6392, %v6422
  %v6424 = vlaneseq
  %v6425 = vshrl.u32 %v6424, 7
  %v6426 = vsub.s32 7, %v6425
  %v6427 = vrot.slane %v6392, %v6426
  %v6428 = vlaneseq
  %v6429 = vshrl.u32 %v6428, 7
  %v6430 = vsub.s32 0, %v6429
  %v6431 = vrot.slane %v6393, %v6430
  %v6432 = vlaneseq
  %v6433 = vshrl.u32 %v6432, 7
  %v6434 = vsub.s32 1, %v6433
  %v6435 = vrot.slane %v6393, %v6434
  %v6436 = vlaneseq
  %v6437 = vshrl.u32 %v6436, 7
  %v6438 = vsub.s32 2, %v6437
  %v6439 = vrot.slane %v6393, %v6438
  %v6440 = vlaneseq
  %v6441 = vshrl.u32 %v6440, 7
  %v6442 = vsub.s32 3, %v6441
  %v6443 = vrot.slane %v6393, %v6442
  %v6840 = vunpack.c.l.b16 %v6008
  %v6841 = vunpack.c.h.b16 %v6008
  %v6842 = vunpack.c.l.b16 %v6009
  %v6843 = vunpack.c.h.b16 %v6009
  %v6844 = vunpack.c.l.b16 %v6010
  %v6845 = vunpack.c.h.b16 %v6010
  %v6846 = vunpack.c.l.b16 %v6011
  %v6847 = vunpack.c.h.b16 %v6011
  %v6848 = vunpack.c.l.b16 %v6012
  %v6849 = vunpack.c.h.b16 %v6012
  %v6850 = vunpack.c.l.b16 %v6013
  %v6851 = vunpack.c.h.b16 %v6013
  %v6852 = vunpack.c.l.b16 %v6014
  %v6853 = vunpack.c.h.b16 %v6014
  %v6854 = vunpack.c.l.b16 %v6015
  %v6855 = vunpack.c.h.b16 %v6015
  %v6856 = vunpack.c.l.b16 %v6016
  %v6857 = vunpack.c.h.b16 %v6016
  %v6858 = vunpack.c.l.b16 %v6017
  %v6859 = vunpack.c.h.b16 %v6017
  %v6860 = vunpack.c.l.b16 %v6018
  %v6861 = vunpack.c.h.b16 %v6018
  %v6862 = vunpack.c.l.b16 %v6019
  %v6863 = vunpack.c.h.b16 %v6019
  %v6864 = vunpack.c.l.b16 %v6020
  %v6865 = vunpack.c.h.b16 %v6020
  %v6866 = vunpack.c.l.b16 %v6021
  %v6867 = vunpack.c.h.b16 %v6021
  %v6868 = vunpack.c.l.b16 %v6022
  %v6869 = vunpack.c.h.b16 %v6022
  %v6870 = vunpack.c.l.b16 %v6023
  %v6871 = vunpack.c.h.b16 %v6023
  %v6872 = vunpack.c.l.b16 %v6024
  %v6873 = vunpack.c.h.b16 %v6024
  %v6874 = vunpack.c.l.b16 %v6025
  %v6875 = vunpack.c.h.b16 %v6025
  %v6876 = vunpack.c.l.b16 %v6026
  %v6877 = vunpack.c.h.b16 %v6026
  %v6878 = vunpack.c.l.b16 %v6027
  %v6879 = vunpack.c.h.b16 %v6027
  %v6880 = vunpack.c.l.b16 %v6028
  %v6881 = vunpack.c.h.b16 %v6028
  %v6882 = vunpack.c.l.b16 %v6029
  %v6883 = vunpack.c.h.b16 %v6029
  %v6884 = vunpack.c.l.b16 %v6030
  %v6885 = vunpack.c.h.b16 %v6030
  %v6886 = vunpack.c.l.b16 %v6031
  %v6887 = vunpack.c.h.b16 %v6031
  %v6888 = vunpack.c.l.b16 %v6032
  %v6889 = vunpack.c.h.b16 %v6032
  %v6890 = vunpack.c.l.b16 %v6033
  %v6891 = vunpack.c.h.b16 %v6033
  %v6892 = vunpack.c.l.b16 %v6034
  %v6893 = vunpack.c.h.b16 %v6034
  %v6894 = vunpack.c.l.b16 %v6035
  %v6895 = vunpack.c.h.b16 %v6035
  %v6896 = vunpack.c.l.b16 %v6036
  %v6897 = vunpack.c.h.b16 %v6036
  %v6898 = vunpack.c.l.b16 %v6037
  %v6899 = vunpack.c.h.b16 %v6037
  %v6900 = vunpack.c.l.b16 %v6038
  %v6901 = vunpack.c.h.b16 %v6038
  %v6902 = vunpack.c.l.b16 %v6039
  %v6903 = vunpack.c.h.b16 %v6039
  %v6904 = vunpack.c.l.b16 %v6040
  %v6905 = vunpack.c.h.b16 %v6040
  %v6906 = vunpack.c.l.b16 %v6041
  %v6907 = vunpack.c.h.b16 %v6041
  %v6908 = vunpack.c.l.b16 %v6042
  %v6909 = vunpack.c.h.b16 %v6042
  %v6910 = vunpack.c.l.b16 %v6043
  %v6911 = vunpack.c.h.b16 %v6043
  %v6912 = vunpack.c.l.b16 %v6044
  %v6913 = vunpack.c.h.b16 %v6044
  %v6914 = vunpack.c.l.b16 %v6045
  %v6915 = vunpack.c.h.b16 %v6045
  %v6916 = vunpack.c.l.b16 %v6046
  %v6917 = vunpack.c.h.b16 %v6046
  %v6918 = vunpack.c.l.b16 %v6047
  %v6919 = vunpack.c.h.b16 %v6047
  %v6920 = vunpack.c.l.b16 %v6048
  %v6921 = vunpack.c.h.b16 %v6048
  %v6922 = vunpack.c.l.b16 %v6049
  %v6923 = vunpack.c.h.b16 %v6049
  %v6924 = vunpack.c.l.b16 %v6050
  %v6925 = vunpack.c.h.b16 %v6050
  %v6926 = vunpack.c.l.b16 %v6051
  %v6927 = vunpack.c.h.b16 %v6051
  %v6928 = vunpack.c.l.b16 %v6052
  %v6929 = vunpack.c.h.b16 %v6052
  %v6930 = vunpack.c.l.b16 %v6053
  %v6931 = vunpack.c.h.b16 %v6053
  %v6932 = vunpack.c.l.b16 %v6054
  %v6933 = vunpack.c.h.b16 %v6054
  %v6934 = vunpack.c.l.b16 %v6055
  %v6935 = vunpack.c.h.b16 %v6055
  %v6936 = vunpack.c.l.b16 %v6056
  %v6937 = vunpack.c.h.b16 %v6056
  %v6938 = vunpack.c.l.b16 %v6057
  %v6939 = vunpack.c.h.b16 %v6057
  %v6940 = vunpack.c.l.b16 %v6058
  %v6941 = vunpack.c.h.b16 %v6058
  %v6942 = vunpack.c.l.b16 %v6059
  %v6943 = vunpack.c.h.b16 %v6059
  %v6944 = vunpack.c.l.b16 %v6060
  %v6945 = vunpack.c.h.b16 %v6060
  %v6946 = vunpack.c.l.b16 %v6061
  %v6947 = vunpack.c.h.b16 %v6061
  %v6948 = vunpack.c.l.b16 %v6062
  %v6949 = vunpack.c.h.b16 %v6062
  %v6950 = vunpack.c.l.b16 %v6063
  %v6951 = vunpack.c.h.b16 %v6063
  %v6952 = vunpack.c.l.b16 %v6064
  %v6953 = vunpack.c.h.b16 %v6064
  %v6954 = vunpack.c.l.b16 %v6065
  %v6955 = vunpack.c.h.b16 %v6065
  %v6956 = vunpack.c.l.b16 %v6066
  %v6957 = vunpack.c.h.b16 %v6066
  %v6958 = vunpack.c.l.b16 %v6067
  %v6959 = vunpack.c.h.b16 %v6067
  %v6960 = vunpack.c.l.b16 %v6068
  %v6961 = vunpack.c.h.b16 %v6068
  %v6962 = vunpack.c.l.b16 %v6069
  %v6963 = vunpack.c.h.b16 %v6069
  %v6964 = vunpack.c.l.b16 %v6070
  %v6965 = vunpack.c.h.b16 %v6070
  %v6966 = vunpack.c.l.b16 %v6071
  %v6967 = vunpack.c.h.b16 %v6071
  %v6968 = vunpack.c.l.b16 %v6072
  %v6969 = vunpack.c.h.b16 %v6072
  %v6970 = vunpack.c.l.b16 %v6073
  %v6971 = vunpack.c.h.b16 %v6073
  %v6972 = vunpack.c.l.b16 %v6074
  %v6973 = vunpack.c.h.b16 %v6074
  %v6974 = vunpack.c.l.b16 %v6075
  %v6975 = vunpack.c.h.b16 %v6075
  %v6976 = vunpack.c.l.b16 %v6076
  %v6977 = vunpack.c.h.b16 %v6076
  %v6978 = vunpack.c.l.b16 %v6077
  %v6979 = vunpack.c.h.b16 %v6077
  %v6980 = vunpack.c.l.b16 %v6078
  %v6981 = vunpack.c.h.b16 %v6078
  %v6982 = vunpack.c.l.b16 %v6079
  %v6983 = vunpack.c.h.b16 %v6079
  %v6984 = vunpack.c.l.b16 %v6080
  %v6985 = vunpack.c.h.b16 %v6080
  %v6986 = vunpack.c.l.b16 %v6081
  %v6987 = vunpack.c.h.b16 %v6081
  %v6988 = vunpack.c.l.b16 %v6082
  %v6989 = vunpack.c.h.b16 %v6082
  %v6990 = vunpack.c.l.b16 %v6083
  %v6991 = vunpack.c.h.b16 %v6083
  %v6992 = vunpack.c.l.b16 %v6084
  %v6993 = vunpack.c.h.b16 %v6084
  %v6994 = vunpack.c.l.b16 %v6085
  %v6995 = vunpack.c.h.b16 %v6085
  %v6996 = vunpack.c.l.b16 %v6086
  %v6997 = vunpack.c.h.b16 %v6086
  %v6998 = vunpack.c.l.b16 %v6087
  %v6999 = vunpack.c.h.b16 %v6087
  %v7000 = vunpack.c.l.b16 %v6088
  %v7001 = vunpack.c.h.b16 %v6088
  %v7002 = vunpack.c.l.b16 %v6089
  %v7003 = vunpack.c.h.b16 %v6089
  %v7004 = vunpack.c.l.b16 %v6090
  %v7005 = vunpack.c.h.b16 %v6090
  %v7006 = vunpack.c.l.b16 %v6091
  %v7007 = vunpack.c.h.b16 %v6091
  %v7008 = vunpack.c.l.b16 %v6092
  %v7009 = vunpack.c.h.b16 %v6092
  %v7010 = vunpack.c.l.b16 %v6093
  %v7011 = vunpack.c.h.b16 %v6093
  %v7012 = vunpack.c.l.b16 %v6094
  %v7013 = vunpack.c.h.b16 %v6094
  %v7014 = vunpack.c.l.b16 %v6095
  %v7015 = vunpack.c.h.b16 %v6095
  %v7016 = vunpack.c.l.b16 %v6096
  %v7017 = vunpack.c.h.b16 %v6096
  %v7018 = vunpack.c.l.b16 %v6097
  %v7019 = vunpack.c.h.b16 %v6097
  %v7020 = vunpack.c.l.b16 %v6098
  %v7021 = vunpack.c.h.b16 %v6098
  %v7022 = vunpack.c.l.b16 %v6099
  %v7023 = vunpack.c.h.b16 %v6099
  %v7024 = vunpack.c.l.b16 %v6100
  %v7025 = vunpack.c.h.b16 %v6100
  %v7026 = vunpack.c.l.b16 %v6101
  %v7027 = vunpack.c.h.b16 %v6101
  %v7028 = vunpack.c.l.b16 %v6102
  %v7029 = vunpack.c.h.b16 %v6102
  %v7030 = vunpack.c.l.b16 %v6103
  %v7031 = vunpack.c.h.b16 %v6103
  %v7032 = vunpack.c.l.b16 %v6104
  %v7033 = vunpack.c.h.b16 %v6104
  %v7034 = vunpack.c.l.b16 %v6105
  %v7035 = vunpack.c.h.b16 %v6105
  %v7036 = vunpack.c.l.b16 %v6106
  %v7037 = vunpack.c.h.b16 %v6106
  %v7038 = vunpack.c.l.b16 %v6107
  %v7039 = vunpack.c.h.b16 %v6107
  %v7040 = vunpack.c.l.b16 %v6108
  %v7041 = vunpack.c.h.b16 %v6108
  %v7042 = vunpack.c.l.b16 %v6109
  %v7043 = vunpack.c.h.b16 %v6109
  %v7044 = vunpack.c.l.b16 %v6110
  %v7045 = vunpack.c.h.b16 %v6110
  %v7046 = vunpack.c.l.b16 %v6111
  %v7047 = vunpack.c.h.b16 %v6111
  %v7048 = vunpack.c.l.b16 %v6112
  %v7049 = vunpack.c.h.b16 %v6112
  %v7050 = vunpack.c.l.b16 %v6113
  %v7051 = vunpack.c.h.b16 %v6113
  %v7052 = vunpack.c.l.b16 %v6114
  %v7053 = vunpack.c.h.b16 %v6114
  %v7054 = vunpack.c.l.b16 %v6115
  %v7055 = vunpack.c.h.b16 %v6115
  %v7056 = vunpack.c.l.b16 %v6116
  %v7057 = vunpack.c.h.b16 %v6116
  %v7058 = vunpack.c.l.b16 %v6117
  %v7059 = vunpack.c.h.b16 %v6117
  %v7060 = vunpack.c.l.b16 %v6118
  %v7061 = vunpack.c.h.b16 %v6118
  %v7062 = vunpack.c.l.b16 %v6119
  %v7063 = vunpack.c.h.b16 %v6119
  %v7064 = vunpack.c.l.b16 %v6120
  %v7065 = vunpack.c.h.b16 %v6120
  %v7066 = vunpack.c.l.b16 %v6121
  %v7067 = vunpack.c.h.b16 %v6121
  %v7068 = vunpack.c.l.b16 %v6122
  %v7069 = vunpack.c.h.b16 %v6122
  %v7070 = vunpack.c.l.b16 %v6123
  %v7071 = vunpack.c.h.b16 %v6123
  %v7072 = vunpack.c.l.b16 %v6124
  %v7073 = vunpack.c.h.b16 %v6124
  %v7074 = vunpack.c.l.b16 %v6125
  %v7075 = vunpack.c.h.b16 %v6125
  %v7076 = vunpack.c.l.b16 %v6126
  %v7077 = vunpack.c.h.b16 %v6126
  %v7078 = vunpack.c.l.b16 %v6127
  %v7079 = vunpack.c.h.b16 %v6127
  %v7080 = vunpack.c.l.b16 %v6128
  %v7081 = vunpack.c.h.b16 %v6128
  %v7082 = vunpack.c.l.b16 %v6129
  %v7083 = vunpack.c.h.b16 %v6129
  %v7084 = vunpack.c.l.b16 %v6130
  %v7085 = vunpack.c.h.b16 %v6130
  %v7086 = vunpack.c.l.b16 %v6131
  %v7087 = vunpack.c.h.b16 %v6131
  %v7088 = vunpack.c.l.b16 %v6132
  %v7089 = vunpack.c.h.b16 %v6132
  %v7090 = vunpack.c.l.b16 %v6133
  %v7091 = vunpack.c.h.b16 %v6133
  %v7092 = vunpack.c.l.b16 %v6134
  %v7093 = vunpack.c.h.b16 %v6134
  %v7094 = vunpack.c.l.b16 %v6135
  %v7095 = vunpack.c.h.b16 %v6135
  %v7096 = vunpack.c.l.b16 %v6136
  %v7097 = vunpack.c.h.b16 %v6136
  %v7098 = vunpack.c.l.b16 %v6137
  %v7099 = vunpack.c.h.b16 %v6137
  %v7100 = vunpack.c.l.b16 %v6138
  %v7101 = vunpack.c.h.b16 %v6138
  %v7102 = vunpack.c.l.b16 %v6139
  %v7103 = vunpack.c.h.b16 %v6139
  %v7104 = vunpack.c.l.b16 %v6140
  %v7105 = vunpack.c.h.b16 %v6140
  %v7106 = vunpack.c.l.b16 %v6141
  %v7107 = vunpack.c.h.b16 %v6141
  %v7108 = vunpack.c.l.b16 %v6142
  %v7109 = vunpack.c.h.b16 %v6142
  %v7110 = vunpack.c.l.b16 %v6143
  %v7111 = vunpack.c.h.b16 %v6143
  %v7112 = vunpack.c.l.b16 %v6144
  %v7113 = vunpack.c.h.b16 %v6144
  %v7114 = vunpack.c.l.b16 %v6145
  %v7115 = vunpack.c.h.b16 %v6145
  %v7116 = vunpack.c.l.b16 %v6146
  %v7117 = vunpack.c.h.b16 %v6146
  %v7118 = vunpack.c.l.b16 %v6147
  %v7119 = vunpack.c.h.b16 %v6147
  %v7120 = vunpack.c.l.b16 %v6148
  %v7121 = vunpack.c.h.b16 %v6148
  %v7122 = vunpack.c.l.b16 %v6149
  %v7123 = vunpack.c.h.b16 %v6149
  %v7124 = vunpack.c.l.b16 %v6150
  %v7125 = vunpack.c.h.b16 %v6150
  %v7126 = vunpack.c.l.b16 %v6151
  %v7127 = vunpack.c.h.b16 %v6151
  %v7128 = vunpack.c.l.b16 %v6152
  %v7129 = vunpack.c.h.b16 %v6152
  %v7130 = vunpack.c.l.b16 %v6153
  %v7131 = vunpack.c.h.b16 %v6153
  %v7132 = vunpack.c.l.b16 %v6154
  %v7133 = vunpack.c.h.b16 %v6154
  %v7134 = vunpack.c.l.b16 %v6155
  %v7135 = vunpack.c.h.b16 %v6155
  %v7136 = vunpack.c.l.b16 %v6156
  %v7137 = vunpack.c.h.b16 %v6156
  %v7138 = vunpack.c.l.b16 %v6157
  %v7139 = vunpack.c.h.b16 %v6157
  %v7140 = vunpack.c.l.b16 %v6158
  %v7141 = vunpack.c.h.b16 %v6158
  %v7142 = vunpack.c.l.b16 %v6159
  %v7143 = vunpack.c.h.b16 %v6159
  %v7144 = vunpack.c.l.b16 %v6160
  %v7145 = vunpack.c.h.b16 %v6160
  %v7146 = vunpack.c.l.b16 %v6161
  %v7147 = vunpack.c.h.b16 %v6161
  %v7148 = vunpack.c.l.b16 %v6162
  %v7149 = vunpack.c.h.b16 %v6162
  %v7150 = vunpack.c.l.b16 %v6163
  %v7151 = vunpack.c.h.b16 %v6163
  %v7152 = vunpack.c.l.b16 %v6164
  %v7153 = vunpack.c.h.b16 %v6164
  %v7154 = vunpack.c.l.b16 %v6165
  %v7155 = vunpack.c.h.b16 %v6165
  %v7156 = vunpack.c.l.b16 %v6166
  %v7157 = vunpack.c.h.b16 %v6166
  %v7158 = vunpack.c.l.b16 %v6167
  %v7159 = vunpack.c.h.b16 %v6167
  %v7160 = vunpack.c.l.b16 %v6168
  %v7161 = vunpack.c.h.b16 %v6168
  %v7162 = vunpack.c.l.b16 %v6169
  %v7163 = vunpack.c.h.b16 %v6169
  %v7164 = vunpack.c.l.b16 %v6170
  %v7165 = vunpack.c.h.b16 %v6170
  %v7166 = vunpack.c.l.b16 %v6171
  %v7167 = vunpack.c.h.b16 %v6171
  %v7168 = vunpack.c.l.b16 %v6172
  %v7169 = vunpack.c.h.b16 %v6172
  %v7170 = vunpack.c.l.b16 %v6173
  %v7171 = vunpack.c.h.b16 %v6173
  %v7172 = vunpack.c.l.b16 %v6174
  %v7173 = vunpack.c.h.b16 %v6174
  %v7174 = vunpack.c.l.b16 %v6175
  %v7175 = vunpack.c.h.b16 %v6175
  %v7176 = vunpack.c.l.b16 %v6176
  %v7177 = vunpack.c.h.b16 %v6176
  %v7178 = vunpack.c.l.b16 %v6177
  %v7179 = vunpack.c.h.b16 %v6177
  %v7180 = vunpack.c.l.b16 %v6178
  %v7181 = vunpack.c.h.b16 %v6178
  %v7182 = vunpack.c.l.b16 %v6179
  %v7183 = vunpack.c.h.b16 %v6179
  %v7184 = vunpack.c.l.b16 %v6180
  %v7185 = vunpack.c.h.b16 %v6180
  %v7186 = vunpack.c.l.b16 %v6181
  %v7187 = vunpack.c.h.b16 %v6181
  %v7188 = vunpack.c.l.b16 %v6182
  %v7189 = vunpack.c.h.b16 %v6182
  %v7190 = vunpack.c.l.b16 %v6183
  %v7191 = vunpack.c.h.b16 %v6183
  %v7192 = vunpack.c.l.b16 %v6184
  %v7193 = vunpack.c.h.b16 %v6184
  %v7194 = vunpack.c.l.b16 %v6185
  %v7195 = vunpack.c.h.b16 %v6185
  %v7196 = vunpack.c.l.b16 %v6186
  %v7197 = vunpack.c.h.b16 %v6186
  %v7198 = vunpack.c.l.b16 %v6187
  %v7199 = vunpack.c.h.b16 %v6187
  %v7200 = vunpack.c.l.b16 %v6188
  %v7201 = vunpack.c.h.b16 %v6188
  %v7202 = vunpack.c.l.b16 %v6189
  %v7203 = vunpack.c.h.b16 %v6189
  %v7204 = vunpack.c.l.b16 %v6190
  %v7205 = vunpack.c.h.b16 %v6190
  %v7206 = vunpack.c.l.b16 %v6191
  %v7207 = vunpack.c.h.b16 %v6191
  %v7208 = vunpack.c.l.b16 %v6192
  %v7209 = vunpack.c.h.b16 %v6192
  %v7210 = vunpack.c.l.b16 %v6193
  %v7211 = vunpack.c.h.b16 %v6193
  %v7212 = vunpack.c.l.b16 %v6194
  %v7213 = vunpack.c.h.b16 %v6194
  %v7214 = vunpack.c.l.b16 %v6195
  %v7215 = vunpack.c.h.b16 %v6195
  %v7216 = vunpack.c.l.b16 %v6196
  %v7217 = vunpack.c.h.b16 %v6196
  %v7218 = vunpack.c.l.b16 %v6197
  %v7219 = vunpack.c.h.b16 %v6197
  %v7220 = vunpack.c.l.b16 %v6198
  %v7221 = vunpack.c.h.b16 %v6198
  %v7222 = vunpack.c.l.b16 %v6199
  %v7223 = vunpack.c.h.b16 %v6199
  %v7224 = vunpack.c.l.b16 %v6200
  %v7225 = vunpack.c.h.b16 %v6200
  %v7226 = vunpack.c.l.b16 %v6201
  %v7227 = vunpack.c.h.b16 %v6201
  %v7228 = vunpack.c.l.b16 %v6202
  %v7229 = vunpack.c.h.b16 %v6202
  %v7230 = vunpack.c.l.b16 %v6203
  %v7231 = vunpack.c.h.b16 %v6203
  %v7232 = vunpack.c.l.b16 %v6204
  %v7233 = vunpack.c.h.b16 %v6204
  %v7234 = vunpack.c.l.b16 %v6205
  %v7235 = vunpack.c.h.b16 %v6205
  %v7236 = vunpack.c.l.b16 %v6206
  %v7237 = vunpack.c.h.b16 %v6206
  %v7238 = vunpack.c.l.b16 %v6207
  %v7239 = vunpack.c.h.b16 %v6207
  %v7240 = vunpack.c.l.b16 %v6208
  %v7241 = vunpack.c.h.b16 %v6208
  %v7242 = vunpack.c.l.b16 %v6209
  %v7243 = vunpack.c.h.b16 %v6209
  %v7244 = vunpack.c.l.b16 %v6210
  %v7245 = vunpack.c.h.b16 %v6210
  %v7246 = vunpack.c.l.b16 %v6211
  %v7247 = vunpack.c.h.b16 %v6211
  %v7248 = vunpack.c.l.b16 %v6212
  %v7249 = vunpack.c.h.b16 %v6212
  %v7250 = vunpack.c.l.b16 %v6213
  %v7251 = vunpack.c.h.b16 %v6213
  %v7252 = vunpack.c.l.b16 %v6214
  %v7253 = vunpack.c.h.b16 %v6214
  %v7254 = vunpack.c.l.b16 %v6215
  %v7255 = vunpack.c.h.b16 %v6215
  %v7256 = vunpack.c.l.b16 %v6216
  %v7257 = vunpack.c.h.b16 %v6216
  %v7258 = vunpack.c.l.b16 %v6217
  %v7259 = vunpack.c.h.b16 %v6217
  %v7260 = vunpack.c.l.b16 %v6218
  %v7261 = vunpack.c.h.b16 %v6218
  %v7262 = vunpack.c.l.b16 %v6219
  %v7263 = vunpack.c.h.b16 %v6219
  %v7264 = vunpack.c.l.b16 %v6220
  %v7265 = vunpack.c.h.b16 %v6220
  %v7266 = vunpack.c.l.b16 %v6221
  %v7267 = vunpack.c.h.b16 %v6221
  %v7268 = vunpack.c.l.b16 %v6222
  %v7269 = vunpack.c.h.b16 %v6222
  %v7270 = vunpack.c.l.b16 %v6223
  %v7271 = vunpack.c.h.b16 %v6223
  %v7272 = vunpack.c.l.b16 %v6224
  %v7273 = vunpack.c.h.b16 %v6224
  %v7274 = vunpack.c.l.b16 %v6225
  %v7275 = vunpack.c.h.b16 %v6225
  %v7276 = vunpack.c.l.b16 %v6226
  %v7277 = vunpack.c.h.b16 %v6226
  %v7278 = vunpack.c.l.b16 %v6227
  %v7279 = vunpack.c.h.b16 %v6227
  %v7280 = vunpack.c.l.b16 %v6228
  %v7281 = vunpack.c.h.b16 %v6228
  %v7282 = vunpack.c.l.b16 %v6229
  %v7283 = vunpack.c.h.b16 %v6229
  %v7284 = vunpack.c.l.b16 %v6230
  %v7285 = vunpack.c.h.b16 %v6230
  %v7286 = vunpack.c.l.b16 %v6231
  %v7287 = vunpack.c.h.b16 %v6231
  %v7288 = vunpack.c.l.b16 %v6232
  %v7289 = vunpack.c.h.b16 %v6232
  %v7290 = vunpack.c.l.b16 %v6233
  %v7291 = vunpack.c.h.b16 %v6233
  %v7292 = vunpack.c.l.b16 %v6234
  %v7293 = vunpack.c.h.b16 %v6234
  %v7294 = vunpack.c.l.b16 %v6235
  %v7295 = vunpack.c.h.b16 %v6235
  %v7296 = vunpack.c.l.b16 %v6236
  %v7297 = vunpack.c.h.b16 %v6236
  %v7298 = vunpack.c.l.b16 %v6237
  %v7299 = vunpack.c.h.b16 %v6237
  %v7300 = vunpack.c.l.b16 %v6238
  %v7301 = vunpack.c.h.b16 %v6238
  %v7302 = vunpack.c.l.b16 %v6239
  %v7303 = vunpack.c.h.b16 %v6239
  %v7304 = vunpack.c.l.b16 %v6240
  %v7305 = vunpack.c.h.b16 %v6240
  %v7306 = vunpack.c.l.b16 %v6241
  %v7307 = vunpack.c.h.b16 %v6241
  %v7308 = vunpack.c.l.b16 %v6242
  %v7309 = vunpack.c.h.b16 %v6242
  %v7310 = vunpack.c.l.b16 %v6243
  %v7311 = vunpack.c.h.b16 %v6243
  %v7312 = vunpack.c.l.b16 %v6244
  %v7313 = vunpack.c.h.b16 %v6244
  %v7314 = vunpack.c.l.b16 %v6245
  %v7315 = vunpack.c.h.b16 %v6245
  %v7316 = vunpack.c.l.b16 %v6246
  %v7317 = vunpack.c.h.b16 %v6246
  %v7318 = vunpack.c.l.b16 %v6247
  %v7319 = vunpack.c.h.b16 %v6247
  %v7320 = vunpack.c.l.b16 %v6248
  %v7321 = vunpack.c.h.b16 %v6248
  %v7322 = vunpack.c.l.b16 %v6249
  %v7323 = vunpack.c.h.b16 %v6249
  %v7324 = vunpack.c.l.b16 %v6250
  %v7325 = vunpack.c.h.b16 %v6250
  %v7326 = vunpack.c.l.b16 %v6251
  %v7327 = vunpack.c.h.b16 %v6251
  %v7328 = vunpack.c.l.b16 %v6252
  %v7329 = vunpack.c.h.b16 %v6252
  %v7330 = vunpack.c.l.b16 %v6253
  %v7331 = vunpack.c.h.b16 %v6253
  %v7332 = vunpack.c.l.b16 %v6254
  %v7333 = vunpack.c.h.b16 %v6254
  %v7334 = vunpack.c.l.b16 %v6255
  %v7335 = vunpack.c.h.b16 %v6255
  %v7336 = vunpack.c.l.b16 %v6256
  %v7337 = vunpack.c.h.b16 %v6256
  %v7338 = vunpack.c.l.b16 %v6257
  %v7339 = vunpack.c.h.b16 %v6257
  %v7340 = vunpack.c.l.b16 %v6258
  %v7341 = vunpack.c.h.b16 %v6258
  %v7342 = vunpack.c.l.b16 %v6259
  %v7343 = vunpack.c.h.b16 %v6259
  %v7344 = vunpack.c.l.b16 %v6260
  %v7345 = vunpack.c.h.b16 %v6260
  %v7346 = vunpack.c.l.b16 %v6261
  %v7347 = vunpack.c.h.b16 %v6261
  %v7348 = vunpack.c.l.b16 %v6262
  %v7349 = vunpack.c.h.b16 %v6262
  %v7350 = vunpack.c.l.b16 %v6263
  %v7351 = vunpack.c.h.b16 %v6263
  %v7352 = vunpack.c.l.b16 %v6264
  %v7353 = vunpack.c.h.b16 %v6264
  %v7354 = vunpack.c.l.b16 %v6265
  %v7355 = vunpack.c.h.b16 %v6265
  %v7356 = vunpack.c.l.b16 %v6266
  %v7357 = vunpack.c.h.b16 %v6266
  %v7358 = vunpack.c.l.b16 %v6267
  %v7359 = vunpack.c.h.b16 %v6267
  %v7360 = vunpack.c.l.b16 %v6268
  %v7361 = vunpack.c.h.b16 %v6268
  %v7362 = vunpack.c.l.b16 %v6269
  %v7363 = vunpack.c.h.b16 %v6269
  %v7364 = vunpack.c.l.b16 %v6270
  %v7365 = vunpack.c.h.b16 %v6270
  %v7366 = vunpack.c.l.b16 %v6271
  %v7367 = vunpack.c.h.b16 %v6271
  %v7368 = vunpack.c.l.b16 %v6272
  %v7369 = vunpack.c.h.b16 %v6272
  %v7370 = vunpack.c.l.b16 %v6273
  %v7371 = vunpack.c.h.b16 %v6273
  %v7372 = vunpack.c.l.b16 %v6274
  %v7373 = vunpack.c.h.b16 %v6274
  %v7374 = vunpack.c.l.b16 %v6275
  %v7375 = vunpack.c.h.b16 %v6275
  %v7376 = vunpack.c.l.b16 %v6276
  %v7377 = vunpack.c.h.b16 %v6276
  %v7378 = vunpack.c.l.b16 %v6277
  %v7379 = vunpack.c.h.b16 %v6277
  %v7380 = vunpack.c.l.b16 %v6278
  %v7381 = vunpack.c.h.b16 %v6278
  %v7382 = vunpack.c.l.b16 %v6279
  %v7383 = vunpack.c.h.b16 %v6279
  %v7384 = vunpack.c.l.b16 %v6280
  %v7385 = vunpack.c.h.b16 %v6280
  %v7386 = vunpack.c.l.b16 %v6281
  %v7387 = vunpack.c.h.b16 %v6281
  %v7388 = vunpack.c.l.b16 %v6282
  %v7389 = vunpack.c.h.b16 %v6282
  %v7390 = vunpack.c.l.b16 %v6283
  %v7391 = vunpack.c.h.b16 %v6283
  %v7392 = vunpack.c.l.b16 %v6284
  %v7393 = vunpack.c.h.b16 %v6284
  %v7394 = vunpack.c.l.b16 %v6285
  %v7395 = vunpack.c.h.b16 %v6285
  %v7396 = vunpack.c.l.b16 %v6286
  %v7397 = vunpack.c.h.b16 %v6286
  %v7398 = vunpack.c.l.b16 %v6287
  %v7399 = vunpack.c.h.b16 %v6287
  %v7400 = vunpack.c.l.b16 %v6288
  %v7401 = vunpack.c.h.b16 %v6288
  %v7402 = vunpack.c.l.b16 %v6289
  %v7403 = vunpack.c.h.b16 %v6289
  %v7404 = vunpack.c.l.b16 %v6290
  %v7405 = vunpack.c.h.b16 %v6290
  %v7406 = vunpack.c.l.b16 %v6291
  %v7407 = vunpack.c.h.b16 %v6291
  %v7408 = vunpack.c.l.b16 %v6292
  %v7409 = vunpack.c.h.b16 %v6292
  %v7410 = vunpack.c.l.b16 %v6293
  %v7411 = vunpack.c.h.b16 %v6293
  %v7412 = vunpack.c.l.b16 %v6294
  %v7413 = vunpack.c.h.b16 %v6294
  %v7414 = vunpack.c.l.b16 %v6295
  %v7415 = vunpack.c.h.b16 %v6295
  %v7416 = vunpack.c.l.b16 %v6296
  %v7417 = vunpack.c.h.b16 %v6296
  %v7418 = vunpack.c.l.b16 %v6297
  %v7419 = vunpack.c.h.b16 %v6297
  %v7420 = vunpack.c.l.b16 %v6298
  %v7421 = vunpack.c.h.b16 %v6298
  %v7422 = vunpack.c.l.b16 %v6299
  %v7423 = vunpack.c.h.b16 %v6299
  %v7424 = vunpack.c.l.b16 %v6300
  %v7425 = vunpack.c.h.b16 %v6300
  %v7426 = vunpack.c.l.b16 %v6301
  %v7427 = vunpack.c.h.b16 %v6301
  %v7428 = vunpack.c.l.b16 %v6302
  %v7429 = vunpack.c.h.b16 %v6302
  %v7430 = vunpack.c.l.b16 %v6303
  %v7431 = vunpack.c.h.b16 %v6303
  %v7432 = vunpack.c.l.b16 %v6304
  %v7433 = vunpack.c.h.b16 %v6304
  %v7434 = vunpack.c.l.b16 %v6305
  %v7435 = vunpack.c.h.b16 %v6305
  %v7436 = vunpack.c.l.b16 %v6306
  %v7437 = vunpack.c.h.b16 %v6306
  %v7438 = vunpack.c.l.b16 %v6307
  %v7439 = vunpack.c.h.b16 %v6307
  %v7440 = vunpack.c.l.b16 %v6308
  %v7441 = vunpack.c.h.b16 %v6308
  %v7442 = vunpack.c.l.b16 %v6309
  %v7443 = vunpack.c.h.b16 %v6309
  %v7444 = vunpack.c.l.b16 %v6310
  %v7445 = vunpack.c.h.b16 %v6310
  %v7446 = vunpack.c.l.b16 %v6311
  %v7447 = vunpack.c.h.b16 %v6311
  %v7448 = vunpack.c.l.b16 %v6312
  %v7449 = vunpack.c.h.b16 %v6312
  %v7450 = vunpack.c.l.b16 %v6313
  %v7451 = vunpack.c.h.b16 %v6313
  %v7452 = vunpack.c.l.b16 %v6314
  %v7453 = vunpack.c.h.b16 %v6314
  %v7454 = vunpack.c.l.b16 %v6315
  %v7455 = vunpack.c.h.b16 %v6315
  %v7456 = vunpack.c.l.b16 %v6316
  %v7457 = vunpack.c.h.b16 %v6316
  %v7458 = vunpack.c.l.b16 %v6317
  %v7459 = vunpack.c.h.b16 %v6317
  %v7460 = vunpack.c.l.b16 %v6318
  %v7461 = vunpack.c.h.b16 %v6318
  %v7462 = vunpack.c.l.b16 %v6319
  %v7463 = vunpack.c.h.b16 %v6319
  %v7464 = vunpack.c.l.b16 %v6320
  %v7465 = vunpack.c.h.b16 %v6320
  %v7466 = vunpack.c.l.b16 %v6321
  %v7467 = vunpack.c.h.b16 %v6321
  %v7468 = vunpack.c.l.b16 %v6322
  %v7469 = vunpack.c.h.b16 %v6322
  %v7470 = vunpack.c.l.b16 %v6323
  %v7471 = vunpack.c.h.b16 %v6323
  %v7472 = vunpack.c.l.b16 %v6324
  %v7473 = vunpack.c.h.b16 %v6324
  %v7474 = vunpack.c.l.b16 %v6325
  %v7475 = vunpack.c.h.b16 %v6325
  %v7476 = vunpack.c.l.b16 %v6326
  %v7477 = vunpack.c.h.b16 %v6326
  %v7478 = vunpack.c.l.b16 %v6327
  %v7479 = vunpack.c.h.b16 %v6327
  %v7480 = vunpack.c.l.b16 %v6328
  %v7481 = vunpack.c.h.b16 %v6328
  %v7482 = vunpack.c.l.b16 %v6329
  %v7483 = vunpack.c.h.b16 %v6329
  %v7484 = vunpack.c.l.b16 %v6330
  %v7485 = vunpack.c.h.b16 %v6330
  %v7486 = vunpack.c.l.b16 %v6331
  %v7487 = vunpack.c.h.b16 %v6331
  %v7488 = vunpack.c.l.b16 %v6332
  %v7489 = vunpack.c.h.b16 %v6332
  %v7490 = vunpack.c.l.b16 %v6333
  %v7491 = vunpack.c.h.b16 %v6333
  %v7492 = vunpack.c.l.b16 %v6334
  %v7493 = vunpack.c.h.b16 %v6334
  %v7494 = vunpack.c.l.b16 %v6335
  %v7495 = vunpack.c.h.b16 %v6335
  %v7496 = vunpack.c.l.b16 %v6336
  %v7497 = vunpack.c.h.b16 %v6336
  %v7498 = vunpack.c.l.b16 %v6337
  %v7499 = vunpack.c.h.b16 %v6337
  %v7500 = vunpack.c.l.b16 %v6338
  %v7501 = vunpack.c.h.b16 %v6338
  %v7502 = vunpack.c.l.b16 %v6339
  %v7503 = vunpack.c.h.b16 %v6339
  %v7504 = vunpack.c.l.b16 %v6340
  %v7505 = vunpack.c.h.b16 %v6340
  %v7506 = vunpack.c.l.b16 %v6341
  %v7507 = vunpack.c.h.b16 %v6341
  %v7508 = vunpack.c.l.b16 %v6342
  %v7509 = vunpack.c.h.b16 %v6342
  %v7510 = vunpack.c.l.b16 %v6343
  %v7511 = vunpack.c.h.b16 %v6343
  %v7512 = vunpack.c.l.b16 %v6344
  %v7513 = vunpack.c.h.b16 %v6344
  %v7514 = vunpack.c.l.b16 %v6345
  %v7515 = vunpack.c.h.b16 %v6345
  %v7516 = vunpack.c.l.b16 %v6346
  %v7517 = vunpack.c.h.b16 %v6346
  %v7518 = vunpack.c.l.b16 %v6347
  %v7519 = vunpack.c.h.b16 %v6347
  %v7520 = vunpack.c.l.b16 %v6348
  %v7521 = vunpack.c.h.b16 %v6348
  %v7522 = vunpack.c.l.b16 %v6349
  %v7523 = vunpack.c.h.b16 %v6349
  %v7524 = vunpack.c.l.b16 %v6350
  %v7525 = vunpack.c.h.b16 %v6350
  %v7526 = vunpack.c.l.b16 %v6351
  %v7527 = vunpack.c.h.b16 %v6351
  %v7528 = vunpack.c.l.b16 %v6352
  %v7529 = vunpack.c.h.b16 %v6352
  %v7530 = vunpack.c.l.b16 %v6353
  %v7531 = vunpack.c.h.b16 %v6353
  %v7532 = vunpack.c.l.b16 %v6354
  %v7533 = vunpack.c.h.b16 %v6354
  %v7534 = vunpack.c.l.b16 %v6355
  %v7535 = vunpack.c.h.b16 %v6355
  %v7536 = vunpack.c.l.b16 %v6356
  %v7537 = vunpack.c.h.b16 %v6356
  %v7538 = vunpack.c.l.b16 %v6357
  %v7539 = vunpack.c.h.b16 %v6357
  %v7540 = vunpack.c.l.b16 %v6358
  %v7541 = vunpack.c.h.b16 %v6358
  %v7542 = vunpack.c.l.b16 %v6359
  %v7543 = vunpack.c.h.b16 %v6359
  %v7544 = vunpack.c.l.b16 %v6360
  %v7545 = vunpack.c.h.b16 %v6360
  %v7546 = vunpack.c.l.b16 %v6361
  %v7547 = vunpack.c.h.b16 %v6361
  %v7548 = vunpack.c.l.b16 %v6362
  %v7549 = vunpack.c.h.b16 %v6362
  %v7550 = vunpack.c.l.b16 %v6363
  %v7551 = vunpack.c.h.b16 %v6363
  %v7552 = vunpack.c.l.b16 %v6364
  %v7553 = vunpack.c.h.b16 %v6364
  %v7554 = vunpack.c.l.b16 %v6365
  %v7555 = vunpack.c.h.b16 %v6365
  %v7556 = vunpack.c.l.b16 %v6366
  %v7557 = vunpack.c.h.b16 %v6366
  %v7558 = vunpack.c.l.b16 %v6367
  %v7559 = vunpack.c.h.b16 %v6367
  %v7560 = vunpack.c.l.b16 %v6368
  %v7561 = vunpack.c.h.b16 %v6368
  %v7562 = vunpack.c.l.b16 %v6369
  %v7563 = vunpack.c.h.b16 %v6369
  %v7564 = vunpack.c.l.b16 %v6370
  %v7565 = vunpack.c.h.b16 %v6370
  %v7566 = vunpack.c.l.b16 %v6371
  %v7567 = vunpack.c.h.b16 %v6371
  %v7568 = vunpack.c.l.b16 %v6372
  %v7569 = vunpack.c.h.b16 %v6372
  %v7570 = vunpack.c.l.b16 %v6373
  %v7571 = vunpack.c.h.b16 %v6373
  %v7572 = vunpack.c.l.b16 %v6374
  %v7573 = vunpack.c.h.b16 %v6374
  %v7574 = vunpack.c.l.b16 %v6375
  %v7575 = vunpack.c.h.b16 %v6375
  %v7576 = vunpack.c.l.b16 %v6376
  %v7577 = vunpack.c.h.b16 %v6376
  %v7578 = vunpack.c.l.b16 %v6377
  %v7579 = vunpack.c.h.b16 %v6377
  %v7580 = vunpack.c.l.b16 %v6378
  %v7581 = vunpack.c.h.b16 %v6378
  %v7582 = vunpack.c.l.b16 %v6379
  %v7583 = vunpack.c.h.b16 %v6379
  %v7584 = vunpack.c.l.b16 %v6380
  %v7585 = vunpack.c.h.b16 %v6380
  %v7586 = vunpack.c.l.b16 %v6381
  %v7587 = vunpack.c.h.b16 %v6381
  %v7588 = vunpack.c.l.b16 %v6382
  %v7589 = vunpack.c.h.b16 %v6382
  %v7590 = vunpack.c.l.b16 %v6383
  %v7591 = vunpack.c.h.b16 %v6383
  %v7592 = vunpack.c.l.b16 %v6384
  %v7593 = vunpack.c.h.b16 %v6384
  %v7594 = vunpack.c.l.b16 %v6385
  %v7595 = vunpack.c.h.b16 %v6385
  %v7596 = vunpack.c.l.b16 %v6386
  %v7597 = vunpack.c.h.b16 %v6386
  %v7598 = vunpack.c.l.b16 %v6387
  %v7599 = vunpack.c.h.b16 %v6387
  %v7600 = vunpack.c.l.b16 %v6388
  %v7601 = vunpack.c.h.b16 %v6388
  %v7602 = vunpack.c.l.b16 %v6389
  %v7603 = vunpack.c.h.b16 %v6389
  %v7604 = vunpack.c.l.b16 %v6390
  %v7605 = vunpack.c.h.b16 %v6390
  %v7606 = vunpack.c.l.b16 %v6391
  %v7607 = vunpack.c.h.b16 %v6391
  %v7608 = vpack.c.b16 %v6852, %v6840
  %v7609 = vpack.c.b16 %v6853, %v6841
  %v7610 = vpack.c.b16 %v6854, %v6842
  %v7611 = vpack.c.b16 %v6855, %v6843
  %v7612 = vpack.c.b16 %v6856, %v6844
  %v7613 = vpack.c.b16 %v6857, %v6845
  %v7614 = vpack.c.b16 %v6858, %v6846
  %v7615 = vpack.c.b16 %v6859, %v6847
  %v7616 = vpack.c.b16 %v6860, %v6848
  %v7617 = vpack.c.b16 %v6861, %v6849
  %v7618 = vpack.c.b16 %v6862, %v6850
  %v7619 = vpack.c.b16 %v6863, %v6851
  %v7620 = vpack.c.b16 %v6876, %v6864
  %v7621 = vpack.c.b16 %v6877, %v6865
  %v7622 = vpack.c.b16 %v6878, %v6866
  %v7623 = vpack.c.b16 %v6879, %v6867
  %v7624 = vpack.c.b16 %v6880, %v6868
  %v7625 = vpack.c.b16 %v6881, %v6869
  %v7626 = vpack.c.b16 %v6882, %v6870
  %v7627 = vpack.c.b16 %v6883, %v6871
  %v7628 = vpack.c.b16 %v6884, %v6872
  %v7629 = vpack.c.b16 %v6885, %v6873
  %v7630 = vpack.c.b16 %v6886, %v6874
  %v7631 = vpack.c.b16 %v6887, %v6875
  %v7632 = vpack.c.b16 %v6900, %v6888
  %v7633 = vpack.c.b16 %v6901, %v6889
  %v7634 = vpack.c.b16 %v6902, %v6890
  %v7635 = vpack.c.b16 %v6903, %v6891
  %v7636 = vpack.c.b16 %v6904, %v6892
  %v7637 = vpack.c.b16 %v6905, %v6893
  %v7638 = vpack.c.b16 %v6906, %v6894
  %v7639 = vpack.c.b16 %v6907, %v6895
  %v7640 = vpack.c.b16 %v6908, %v6896
  %v7641 = vpack.c.b16 %v6909, %v6897
  %v7642 = vpack.c.b16 %v6910, %v6898
  %v7643 = vpack.c.b16 %v6911, %v6899
  %v7644 = vpack.c.b16 %v6924, %v6912
  %v7645 = vpack.c.b16 %v6925, %v6913
  %v7646 = vpack.c.b16 %v6926, %v6914
  %v7647 = vpack.c.b16 %v6927, %v6915
  %v7648 = vpack.c.b16 %v6928, %v6916
  %v7649 = vpack.c.b16 %v6929, %v6917
  %v7650 = vpack.c.b16 %v6930, %v6918
  %v7651 = vpack.c.b16 %v6931, %v6919
  %v7652 = vpack.c.b16 %v6932, %v6920
  %v7653 = vpack.c.b16 %v6933, %v6921
  %v7654 = vpack.c.b16 %v6934, %v6922
  %v7655 = vpack.c.b16 %v6935, %v6923
  %v7656 = vpack.c.b16 %v6948, %v6936
  %v7657 = vpack.c.b16 %v6949, %v6937
  %v7658 = vpack.c.b16 %v6950, %v6938
  %v7659 = vpack.c.b16 %v6951, %v6939
  %v7660 = vpack.c.b16 %v6952, %v6940
  %v7661 = vpack.c.b16 %v6953, %v6941
  %v7662 = vpack.c.b16 %v6954, %v6942
  %v7663 = vpack.c.b16 %v6955, %v6943
  %v7664 = vpack.c.b16 %v6956, %v6944
  %v7665 = vpack.c.b16 %v6957, %v6945
  %v7666 = vpack.c.b16 %v6958, %v6946
  %v7667 = vpack.c.b16 %v6959, %v6947
  %v7668 = vpack.c.b16 %v6972, %v6960
  %v7669 = vpack.c.b16 %v6973, %v6961
  %v7670 = vpack.c.b16 %v6974, %v6962
  %v7671 = vpack.c.b16 %v6975, %v6963
  %v7672 = vpack.c.b16 %v6976, %v6964
  %v7673 = vpack.c.b16 %v6977, %v6965
  %v7674 = vpack.c.b16 %v6978, %v6966
  %v7675 = vpack.c.b16 %v6979, %v6967
  %v7676 = vpack.c.b16 %v6980, %v6968
  %v7677 = vpack.c.b16 %v6981, %v6969
  %v7678 = vpack.c.b16 %v6982, %v6970
  %v7679 = vpack.c.b16 %v6983, %v6971
  %v7680 = vpack.c.b16 %v6996, %v6984
  %v7681 = vpack.c.b16 %v6997, %v6985
  %v7682 = vpack.c.b16 %v6998, %v6986
  %v7683 = vpack.c.b16 %v6999, %v6987
  %v7684 = vpack.c.b16 %v7000, %v6988
  %v7685 = vpack.c.b16 %v7001, %v6989
  %v7686 = vpack.c.b16 %v7002, %v6990
  %v7687 = vpack.c.b16 %v7003, %v6991
  %v7688 = vpack.c.b16 %v7004, %v6992
  %v7689 = vpack.c.b16 %v7005, %v6993
  %v7690 = vpack.c.b16 %v7006, %v6994
  %v7691 = vpack.c.b16 %v7007, %v6995
  %v7692 = vpack.c.b16 %v7020, %v7008
  %v7693 = vpack.c.b16 %v7021, %v7009
  %v7694 = vpack.c.b16 %v7022, %v7010
  %v7695 = vpack.c.b16 %v7023, %v7011
  %v7696 = vpack.c.b16 %v7024, %v7012
  %v7697 = vpack.c.b16 %v7025, %v7013
  %v7698 = vpack.c.b16 %v7026, %v7014
  %v7699 = vpack.c.b16 %v7027, %v7015
  %v7700 = vpack.c.b16 %v7028, %v7016
  %v7701 = vpack.c.b16 %v7029, %v7017
  %v7702 = vpack.c.b16 %v7030, %v7018
  %v7703 = vpack.c.b16 %v7031, %v7019
  %v7704 = vpack.c.b16 %v7044, %v7032
  %v7705 = vpack.c.b16 %v7045, %v7033
  %v7706 = vpack.c.b16 %v7046, %v7034
  %v7707 = vpack.c.b16 %v7047, %v7035
  %v7708 = vpack.c.b16 %v7048, %v7036
  %v7709 = vpack.c.b16 %v7049, %v7037
  %v7710 = vpack.c.b16 %v7050, %v7038
  %v7711 = vpack.c.b16 %v7051, %v7039
  %v7712 = vpack.c.b16 %v7052, %v7040
  %v7713 = vpack.c.b16 %v7053, %v7041
  %v7714 = vpack.c.b16 %v7054, %v7042
  %v7715 = vpack.c.b16 %v7055, %v7043
  %v7716 = vpack.c.b16 %v7068, %v7056
  %v7717 = vpack.c.b16 %v7069, %v7057
  %v7718 = vpack.c.b16 %v7070, %v7058
  %v7719 = vpack.c.b16 %v7071, %v7059
  %v7720 = vpack.c.b16 %v7072, %v7060
  %v7721 = vpack.c.b16 %v7073, %v7061
  %v7722 = vpack.c.b16 %v7074, %v7062
  %v7723 = vpack.c.b16 %v7075, %v7063
  %v7724 = vpack.c.b16 %v7076, %v7064
  %v7725 = vpack.c.b16 %v7077, %v7065
  %v7726 = vpack.c.b16 %v7078, %v7066
  %v7727 = vpack.c.b16 %v7079, %v7067
  %v7728 = vpack.c.b16 %v7092, %v7080
  %v7729 = vpack.c.b16 %v7093, %v7081
  %v7730 = vpack.c.b16 %v7094, %v7082
  %v7731 = vpack.c.b16 %v7095, %v7083
  %v7732 = vpack.c.b16 %v7096, %v7084
  %v7733 = vpack.c.b16 %v7097, %v7085
  %v7734 = vpack.c.b16 %v7098, %v7086
  %v7735 = vpack.c.b16 %v7099, %v7087
  %v7736 = vpack.c.b16 %v7100, %v7088
  %v7737 = vpack.c.b16 %v7101, %v7089
  %v7738 = vpack.c.b16 %v7102, %v7090
  %v7739 = vpack.c.b16 %v7103, %v7091
  %v7740 = vpack.c.b16 %v7116, %v7104
  %v7741 = vpack.c.b16 %v7117, %v7105
  %v7742 = vpack.c.b16 %v7118, %v7106
  %v7743 = vpack.c.b16 %v7119, %v7107
  %v7744 = vpack.c.b16 %v7120, %v7108
  %v7745 = vpack.c.b16 %v7121, %v7109
  %v7746 = vpack.c.b16 %v7122, %v7110
  %v7747 = vpack.c.b16 %v7123, %v7111
  %v7748 = vpack.c.b16 %v7124, %v7112
  %v7749 = vpack.c.b16 %v7125, %v7113
  %v7750 = vpack.c.b16 %v7126, %v7114
  %v7751 = vpack.c.b16 %v7127, %v7115
  %v7752 = vpack.c.b16 %v7140, %v7128
  %v7753 = vpack.c.b16 %v7141, %v7129
  %v7754 = vpack.c.b16 %v7142, %v7130
  %v7755 = vpack.c.b16 %v7143, %v7131
  %v7756 = vpack.c.b16 %v7144, %v7132
  %v7757 = vpack.c.b16 %v7145, %v7133
  %v7758 = vpack.c.b16 %v7146, %v7134
  %v7759 = vpack.c.b16 %v7147, %v7135
  %v7760 = vpack.c.b16 %v7148, %v7136
  %v7761 = vpack.c.b16 %v7149, %v7137
  %v7762 = vpack.c.b16 %v7150, %v7138
  %v7763 = vpack.c.b16 %v7151, %v7139
  %v7764 = vpack.c.b16 %v7164, %v7152
  %v7765 = vpack.c.b16 %v7165, %v7153
  %v7766 = vpack.c.b16 %v7166, %v7154
  %v7767 = vpack.c.b16 %v7167, %v7155
  %v7768 = vpack.c.b16 %v7168, %v7156
  %v7769 = vpack.c.b16 %v7169, %v7157
  %v7770 = vpack.c.b16 %v7170, %v7158
  %v7771 = vpack.c.b16 %v7171, %v7159
  %v7772 = vpack.c.b16 %v7172, %v7160
  %v7773 = vpack.c.b16 %v7173, %v7161
  %v7774 = vpack.c.b16 %v7174, %v7162
  %v7775 = vpack.c.b16 %v7175, %v7163
  %v7776 = vpack.c.b16 %v7188, %v7176
  %v7777 = vpack.c.b16 %v7189, %v7177
  %v7778 = vpack.c.b16 %v7190, %v7178
  %v7779 = vpack.c.b16 %v7191, %v7179
  %v7780 = vpack.c.b16 %v7192, %v7180
  %v7781 = vpack.c.b16 %v7193, %v7181
  %v7782 = vpack.c.b16 %v7194, %v7182
  %v7783 = vpack.c.b16 %v7195, %v7183
  %v7784 = vpack.c.b16 %v7196, %v7184
  %v7785 = vpack.c.b16 %v7197, %v7185
  %v7786 = vpack.c.b16 %v7198, %v7186
  %v7787 = vpack.c.b16 %v7199, %v7187
  %v7788 = vpack.c.b16 %v7212, %v7200
  %v7789 = vpack.c.b16 %v7213, %v7201
  %v7790 = vpack.c.b16 %v7214, %v7202
  %v7791 = vpack.c.b16 %v7215, %v7203
  %v7792 = vpack.c.b16 %v7216, %v7204
  %v7793 = vpack.c.b16 %v7217, %v7205
  %v7794 = vpack.c.b16 %v7218, %v7206
  %v7795 = vpack.c.b16 %v7219, %v7207
  %v7796 = vpack.c.b16 %v7220, %v7208
  %v7797 = vpack.c.b16 %v7221, %v7209
  %v7798 = vpack.c.b16 %v7222, %v7210
  %v7799 = vpack.c.b16 %v7223, %v7211
  %v7800 = vpack.c.b16 %v7236, %v7224
  %v7801 = vpack.c.b16 %v7237, %v7225
  %v7802 = vpack.c.b16 %v7238, %v7226
  %v7803 = vpack.c.b16 %v7239, %v7227
  %v7804 = vpack.c.b16 %v7240, %v7228
  %v7805 = vpack.c.b16 %v7241, %v7229
  %v7806 = vpack.c.b16 %v7242, %v7230
  %v7807 = vpack.c.b16 %v7243, %v7231
  %v7808 = vpack.c.b16 %v7244, %v7232
  %v7809 = vpack.c.b16 %v7245, %v7233
  %v7810 = vpack.c.b16 %v7246, %v7234
  %v7811 = vpack.c.b16 %v7247, %v7235
  %v7812 = vpack.c.b16 %v7260, %v7248
  %v7813 = vpack.c.b16 %v7261, %v7249
  %v7814 = vpack.c.b16 %v7262, %v7250
  %v7815 = vpack.c.b16 %v7263, %v7251
  %v7816 = vpack.c.b16 %v7264, %v7252
  %v7817 = vpack.c.b16 %v7265, %v7253
  %v7818 = vpack.c.b16 %v7266, %v7254
  %v7819 = vpack.c.b16 %v7267, %v7255
  %v7820 = vpack.c.b16 %v7268, %v7256
  %v7821 = vpack.c.b16 %v7269, %v7257
  %v7822 = vpack.c.b16 %v7270, %v7258
  %v7823 = vpack.c.b16 %v7271, %v7259
  %v7824 = vpack.c.b16 %v7284, %v7272
  %v7825 = vpack.c.b16 %v7285, %v7273
  %v7826 = vpack.c.b16 %v7286, %v7274
  %v7827 = vpack.c.b16 %v7287, %v7275
  %v7828 = vpack.c.b16 %v7288, %v7276
  %v7829 = vpack.c.b16 %v7289, %v7277
  %v7830 = vpack.c.b16 %v7290, %v7278
  %v7831 = vpack.c.b16 %v7291, %v7279
  %v7832 = vpack.c.b16 %v7292, %v7280
  %v7833 = vpack.c.b16 %v7293, %v7281
  %v7834 = vpack.c.b16 %v7294, %v7282
  %v7835 = vpack.c.b16 %v7295, %v7283
  %v7836 = vpack.c.b16 %v7308, %v7296
  %v7837 = vpack.c.b16 %v7309, %v7297
  %v7838 = vpack.c.b16 %v7310, %v7298
  %v7839 = vpack.c.b16 %v7311, %v7299
  %v7840 = vpack.c.b16 %v7312, %v7300
  %v7841 = vpack.c.b16 %v7313, %v7301
  %v7842 = vpack.c.b16 %v7314, %v7302
  %v7843 = vpack.c.b16 %v7315, %v7303
  %v7844 = vpack.c.b16 %v7316, %v7304
  %v7845 = vpack.c.b16 %v7317, %v7305
  %v7846 = vpack.c.b16 %v7318, %v7306
  %v7847 = vpack.c.b16 %v7319, %v7307
  %v7848 = vpack.c.b16 %v7332, %v7320
  %v7849 = vpack.c.b16 %v7333, %v7321
  %v7850 = vpack.c.b16 %v7334, %v7322
  %v7851 = vpack.c.b16 %v7335, %v7323
  %v7852 = vpack.c.b16 %v7336, %v7324
  %v7853 = vpack.c.b16 %v7337, %v7325
  %v7854 = vpack.c.b16 %v7338, %v7326
  %v7855 = vpack.c.b16 %v7339, %v7327
  %v7856 = vpack.c.b16 %v7340, %v7328
  %v7857 = vpack.c.b16 %v7341, %v7329
  %v7858 = vpack.c.b16 %v7342, %v7330
  %v7859 = vpack.c.b16 %v7343, %v7331
  %v7860 = vpack.c.b16 %v7356, %v7344
  %v7861 = vpack.c.b16 %v7357, %v7345
  %v7862 = vpack.c.b16 %v7358, %v7346
  %v7863 = vpack.c.b16 %v7359, %v7347
  %v7864 = vpack.c.b16 %v7360, %v7348
  %v7865 = vpack.c.b16 %v7361, %v7349
  %v7866 = vpack.c.b16 %v7362, %v7350
  %v7867 = vpack.c.b16 %v7363, %v7351
  %v7868 = vpack.c.b16 %v7364, %v7352
  %v7869 = vpack.c.b16 %v7365, %v7353
  %v7870 = vpack.c.b16 %v7366, %v7354
  %v7871 = vpack.c.b16 %v7367, %v7355
  %v7872 = vpack.c.b16 %v7380, %v7368
  %v7873 = vpack.c.b16 %v7381, %v7369
  %v7874 = vpack.c.b16 %v7382, %v7370
  %v7875 = vpack.c.b16 %v7383, %v7371
  %v7876 = vpack.c.b16 %v7384, %v7372
  %v7877 = vpack.c.b16 %v7385, %v7373
  %v7878 = vpack.c.b16 %v7386, %v7374
  %v7879 = vpack.c.b16 %v7387, %v7375
  %v7880 = vpack.c.b16 %v7388, %v7376
  %v7881 = vpack.c.b16 %v7389, %v7377
  %v7882 = vpack.c.b16 %v7390, %v7378
  %v7883 = vpack.c.b16 %v7391, %v7379
  %v7884 = vpack.c.b16 %v7404, %v7392
  %v7885 = vpack.c.b16 %v7405, %v7393
  %v7886 = vpack.c.b16 %v7406, %v7394
  %v7887 = vpack.c.b16 %v7407, %v7395
  %v7888 = vpack.c.b16 %v7408, %v7396
  %v7889 = vpack.c.b16 %v7409, %v7397
  %v7890 = vpack.c.b16 %v7410, %v7398
  %v7891 = vpack.c.b16 %v7411, %v7399
  %v7892 = vpack.c.b16 %v7412, %v7400
  %v7893 = vpack.c.b16 %v7413, %v7401
  %v7894 = vpack.c.b16 %v7414, %v7402
  %v7895 = vpack.c.b16 %v7415, %v7403
  %v7896 = vpack.c.b16 %v7428, %v7416
  %v7897 = vpack.c.b16 %v7429, %v7417
  %v7898 = vpack.c.b16 %v7430, %v7418
  %v7899 = vpack.c.b16 %v7431, %v7419
  %v7900 = vpack.c.b16 %v7432, %v7420
  %v7901 = vpack.c.b16 %v7433, %v7421
  %v7902 = vpack.c.b16 %v7434, %v7422
  %v7903 = vpack.c.b16 %v7435, %v7423
  %v7904 = vpack.c.b16 %v7436, %v7424
  %v7905 = vpack.c.b16 %v7437, %v7425
  %v7906 = vpack.c.b16 %v7438, %v7426
  %v7907 = vpack.c.b16 %v7439, %v7427
  %v7908 = vpack.c.b16 %v7452, %v7440
  %v7909 = vpack.c.b16 %v7453, %v7441
  %v7910 = vpack.c.b16 %v7454, %v7442
  %v7911 = vpack.c.b16 %v7455, %v7443
  %v7912 = vpack.c.b16 %v7456, %v7444
  %v7913 = vpack.c.b16 %v7457, %v7445
  %v7914 = vpack.c.b16 %v7458, %v7446
  %v7915 = vpack.c.b16 %v7459, %v7447
  %v7916 = vpack.c.b16 %v7460, %v7448
  %v7917 = vpack.c.b16 %v7461, %v7449
  %v7918 = vpack.c.b16 %v7462, %v7450
  %v7919 = vpack.c.b16 %v7463, %v7451
  %v7920 = vpack.c.b16 %v7476, %v7464
  %v7921 = vpack.c.b16 %v7477, %v7465
  %v7922 = vpack.c.b16 %v7478, %v7466
  %v7923 = vpack.c.b16 %v7479, %v7467
  %v7924 = vpack.c.b16 %v7480, %v7468
  %v7925 = vpack.c.b16 %v7481, %v7469
  %v7926 = vpack.c.b16 %v7482, %v7470
  %v7927 = vpack.c.b16 %v7483, %v7471
  %v7928 = vpack.c.b16 %v7484, %v7472
  %v7929 = vpack.c.b16 %v7485, %v7473
  %v7930 = vpack.c.b16 %v7486, %v7474
  %v7931 = vpack.c.b16 %v7487, %v7475
  %v7932 = vpack.c.b16 %v7500, %v7488
  %v7933 = vpack.c.b16 %v7501, %v7489
  %v7934 = vpack.c.b16 %v7502, %v7490
  %v7935 = vpack.c.b16 %v7503, %v7491
  %v7936 = vpack.c.b16 %v7504, %v7492
  %v7937 = vpack.c.b16 %v7505, %v7493
  %v7938 = vpack.c.b16 %v7506, %v7494
  %v7939 = vpack.c.b16 %v7507, %v7495
  %v7940 = vpack.c.b16 %v7508, %v7496
  %v7941 = vpack.c.b16 %v7509, %v7497
  %v7942 = vpack.c.b16 %v7510, %v7498
  %v7943 = vpack.c.b16 %v7511, %v7499
  %v7944 = vpack.c.b16 %v7524, %v7512
  %v7945 = vpack.c.b16 %v7525, %v7513
  %v7946 = vpack.c.b16 %v7526, %v7514
  %v7947 = vpack.c.b16 %v7527, %v7515
  %v7948 = vpack.c.b16 %v7528, %v7516
  %v7949 = vpack.c.b16 %v7529, %v7517
  %v7950 = vpack.c.b16 %v7530, %v7518
  %v7951 = vpack.c.b16 %v7531, %v7519
  %v7952 = vpack.c.b16 %v7532, %v7520
  %v7953 = vpack.c.b16 %v7533, %v7521
  %v7954 = vpack.c.b16 %v7534, %v7522
  %v7955 = vpack.c.b16 %v7535, %v7523
  %v7956 = vpack.c.b16 %v7548, %v7536
  %v7957 = vpack.c.b16 %v7549, %v7537
  %v7958 = vpack.c.b16 %v7550, %v7538
  %v7959 = vpack.c.b16 %v7551, %v7539
  %v7960 = vpack.c.b16 %v7552, %v7540
  %v7961 = vpack.c.b16 %v7553, %v7541
  %v7962 = vpack.c.b16 %v7554, %v7542
  %v7963 = vpack.c.b16 %v7555, %v7543
  %v7964 = vpack.c.b16 %v7556, %v7544
  %v7965 = vpack.c.b16 %v7557, %v7545
  %v7966 = vpack.c.b16 %v7558, %v7546
  %v7967 = vpack.c.b16 %v7559, %v7547
  %v7968 = vpack.c.b16 %v7572, %v7560
  %v7969 = vpack.c.b16 %v7573, %v7561
  %v7970 = vpack.c.b16 %v7574, %v7562
  %v7971 = vpack.c.b16 %v7575, %v7563
  %v7972 = vpack.c.b16 %v7576, %v7564
  %v7973 = vpack.c.b16 %v7577, %v7565
  %v7974 = vpack.c.b16 %v7578, %v7566
  %v7975 = vpack.c.b16 %v7579, %v7567
  %v7976 = vpack.c.b16 %v7580, %v7568
  %v7977 = vpack.c.b16 %v7581, %v7569
  %v7978 = vpack.c.b16 %v7582, %v7570
  %v7979 = vpack.c.b16 %v7583, %v7571
  %v7980 = vpack.c.b16 %v7596, %v7584
  %v7981 = vpack.c.b16 %v7597, %v7585
  %v7982 = vpack.c.b16 %v7598, %v7586
  %v7983 = vpack.c.b16 %v7599, %v7587
  %v7984 = vpack.c.b16 %v7600, %v7588
  %v7985 = vpack.c.b16 %v7601, %v7589
  %v7986 = vpack.c.b16 %v7602, %v7590
  %v7987 = vpack.c.b16 %v7603, %v7591
  %v7988 = vpack.c.b16 %v7604, %v7592
  %v7989 = vpack.c.b16 %v7605, %v7593
  %v7990 = vpack.c.b16 %v7606, %v7594
  %v7991 = vpack.c.b16 %v7607, %v7595
  %8376 = vmatprep.subr.bf16.mxu0 %v7609
  %8377 = vmatpush1.bf16.msra.mxu0 %v7608
  %8378 = vmatprep.subr.bf16.mxu0 %v7621
  %8379 = vmatpush1.bf16.msra.mxu0 %v7620
  %8380 = vmatprep.subr.bf16.mxu0 %v7633
  %8381 = vmatpush1.bf16.msra.mxu0 %v7632
  %8382 = vmatprep.subr.bf16.mxu0 %v7645
  %8383 = vmatpush1.bf16.msra.mxu0 %v7644
  %8384 = vmatprep.subr.bf16.mxu0 %v7657
  %8385 = vmatpush1.bf16.msra.mxu0 %v7656
  %8386 = vmatprep.subr.bf16.mxu0 %v7669
  %8387 = vmatpush1.bf16.msra.mxu0 %v7668
  %8388 = vmatprep.subr.bf16.mxu0 %v7681
  %8389 = vmatpush1.bf16.msra.mxu0 %v7680
  %8390 = vmatprep.subr.bf16.mxu0 %v7693
  %8391 = vmatpush1.bf16.msra.mxu0 %v7692
  %8392 = vmatprep.subr.bf16.mxu0 %v7705
  %8393 = vmatpush1.bf16.msra.mxu0 %v7704
  %8394 = vmatprep.subr.bf16.mxu0 %v7717
  %8395 = vmatpush1.bf16.msra.mxu0 %v7716
  %8396 = vmatprep.subr.bf16.mxu0 %v7729
  %8397 = vmatpush1.bf16.msra.mxu0 %v7728
  %8398 = vmatprep.subr.bf16.mxu0 %v7741
  %8399 = vmatpush1.bf16.msra.mxu0 %v7740
  %8400 = vmatprep.subr.bf16.mxu0 %v7753
  %8401 = vmatpush1.bf16.msra.mxu0 %v7752
  %8402 = vmatprep.subr.bf16.mxu0 %v7765
  %8403 = vmatpush1.bf16.msra.mxu0 %v7764
  %8404 = vmatprep.subr.bf16.mxu0 %v7777
  %8405 = vmatpush1.bf16.msra.mxu0 %v7776
  %8406 = vmatprep.subr.bf16.mxu0 %v7789
  %8407 = vmatpush1.bf16.msra.mxu0 %v7788
  %8408 = vmatprep.mubr.bf16.mxu0 %v6005
  %8409 = vmatmul.mubr.bf16.gmra.mrb[0].mxu0 %v6004
  %v8410 = vpop.f32.mrb[0].mxu0
  %v8411 = vadd.f32 %v6399, %v8410
  %v8412 = vpop.f32.mrb[0].mxu0
  %v8413 = vadd.f32 %v6403, %v8412
  %v8414 = vpop.f32.mrb[0].mxu0
  %v8415 = vpop.f32.mrb[0].mxu0
  %8416 = vdwg.mxu0
  %8417 = vmatprep.subr.bf16.mxu0 %v7801
  %8418 = vmatpush1.bf16.msra.mxu0 %v7800
  %8419 = vmatprep.subr.bf16.mxu0 %v7813
  %8420 = vmatpush1.bf16.msra.mxu0 %v7812
  %8421 = vmatprep.subr.bf16.mxu0 %v7825
  %8422 = vmatpush1.bf16.msra.mxu0 %v7824
  %8423 = vmatprep.subr.bf16.mxu0 %v7837
  %8424 = vmatpush1.bf16.msra.mxu0 %v7836
  %8425 = vmatprep.subr.bf16.mxu0 %v7849
  %8426 = vmatpush1.bf16.msra.mxu0 %v7848
  %8427 = vmatprep.subr.bf16.mxu0 %v7861
  %8428 = vmatpush1.bf16.msra.mxu0 %v7860
  %8429 = vmatprep.subr.bf16.mxu0 %v7873
  %8430 = vmatpush1.bf16.msra.mxu0 %v7872
  %8431 = vmatprep.subr.bf16.mxu0 %v7885
  %8432 = vmatpush1.bf16.msra.mxu0 %v7884
  %8433 = vmatprep.subr.bf16.mxu0 %v7897
  %8434 = vmatpush1.bf16.msra.mxu0 %v7896
  %8435 = vmatprep.subr.bf16.mxu0 %v7909
  %8436 = vmatpush1.bf16.msra.mxu0 %v7908
  %8437 = vmatprep.subr.bf16.mxu0 %v7921
  %8438 = vmatpush1.bf16.msra.mxu0 %v7920
  %8439 = vmatprep.subr.bf16.mxu0 %v7933
  %8440 = vmatpush1.bf16.msra.mxu0 %v7932
  %8441 = vmatprep.subr.bf16.mxu0 %v7945
  %8442 = vmatpush1.bf16.msra.mxu0 %v7944
  %8443 = vmatprep.subr.bf16.mxu0 %v7957
  %8444 = vmatpush1.bf16.msra.mxu0 %v7956
  %8445 = vmatprep.subr.bf16.mxu0 %v7969
  %8446 = vmatpush1.bf16.msra.mxu0 %v7968
  %8447 = vmatprep.subr.bf16.mxu0 %v7981
  %8448 = vmatpush1.bf16.msra.mxu0 %v7980
  %8449 = vmatprep.mubr.bf16.mxu0 %v6007
  %8450 = vmatmul.mubr.bf16.gmra.mrb[0].mxu0 %v6006
  %v8451 = vpop.f32.mrb[0].mxu0
  %v8452 = vadd.f32 %v8411, %v8451
  %v8453 = vpop.f32.mrb[0].mxu0
  %v8454 = vadd.f32 %v8413, %v8453
  %v8455 = vpop.f32.mrb[0].mxu0
  %v8456 = vpop.f32.mrb[0].mxu0
  %8457 = vdwg.mxu0
  %8458 = vmatprep.subr.bf16.mxu0 %v7611
  %8459 = vmatpush1.bf16.msra.mxu0 %v7610
  %8460 = vmatprep.subr.bf16.mxu0 %v7623
  %8461 = vmatpush1.bf16.msra.mxu0 %v7622
  %8462 = vmatprep.subr.bf16.mxu0 %v7635
  %8463 = vmatpush1.bf16.msra.mxu0 %v7634
  %8464 = vmatprep.subr.bf16.mxu0 %v7647
  %8465 = vmatpush1.bf16.msra.mxu0 %v7646
  %8466 = vmatprep.subr.bf16.mxu0 %v7659
  %8467 = vmatpush1.bf16.msra.mxu0 %v7658
  %8468 = vmatprep.subr.bf16.mxu0 %v7671
  %8469 = vmatpush1.bf16.msra.mxu0 %v7670
  %8470 = vmatprep.subr.bf16.mxu0 %v7683
  %8471 = vmatpush1.bf16.msra.mxu0 %v7682
  %8472 = vmatprep.subr.bf16.mxu0 %v7695
  %8473 = vmatpush1.bf16.msra.mxu0 %v7694
  %8474 = vmatprep.subr.bf16.mxu0 %v7707
  %8475 = vmatpush1.bf16.msra.mxu0 %v7706
  %8476 = vmatprep.subr.bf16.mxu0 %v7719
  %8477 = vmatpush1.bf16.msra.mxu0 %v7718
  %8478 = vmatprep.subr.bf16.mxu0 %v7731
  %8479 = vmatpush1.bf16.msra.mxu0 %v7730
  %8480 = vmatprep.subr.bf16.mxu0 %v7743
  %8481 = vmatpush1.bf16.msra.mxu0 %v7742
  %8482 = vmatprep.subr.bf16.mxu0 %v7755
  %8483 = vmatpush1.bf16.msra.mxu0 %v7754
  %8484 = vmatprep.subr.bf16.mxu0 %v7767
  %8485 = vmatpush1.bf16.msra.mxu0 %v7766
  %8486 = vmatprep.subr.bf16.mxu0 %v7779
  %8487 = vmatpush1.bf16.msra.mxu0 %v7778
  %8488 = vmatprep.subr.bf16.mxu0 %v7791
  %8489 = vmatpush1.bf16.msra.mxu0 %v7790
  %8490 = vmatprep.mubr.bf16.mxu0 %v6005
  %8491 = vmatmul.mubr.bf16.gmra.mrb[0].mxu0 %v6004
  %v8492 = vpop.f32.mrb[0].mxu0
  %v8493 = vadd.f32 %v6407, %v8492
  %v8494 = vpop.f32.mrb[0].mxu0
  %v8495 = vadd.f32 %v6411, %v8494
  %v8496 = vpop.f32.mrb[0].mxu0
  %v8497 = vpop.f32.mrb[0].mxu0
  %8498 = vdwg.mxu0
  %8499 = vmatprep.subr.bf16.mxu0 %v7803
  %8500 = vmatpush1.bf16.msra.mxu0 %v7802
  %8501 = vmatprep.subr.bf16.mxu0 %v7815
  %8502 = vmatpush1.bf16.msra.mxu0 %v7814
  %8503 = vmatprep.subr.bf16.mxu0 %v7827
  %8504 = vmatpush1.bf16.msra.mxu0 %v7826
  %8505 = vmatprep.subr.bf16.mxu0 %v7839
  %8506 = vmatpush1.bf16.msra.mxu0 %v7838
  %8507 = vmatprep.subr.bf16.mxu0 %v7851
  %8508 = vmatpush1.bf16.msra.mxu0 %v7850
  %8509 = vmatprep.subr.bf16.mxu0 %v7863
  %8510 = vmatpush1.bf16.msra.mxu0 %v7862
  %8511 = vmatprep.subr.bf16.mxu0 %v7875
  %8512 = vmatpush1.bf16.msra.mxu0 %v7874
  %8513 = vmatprep.subr.bf16.mxu0 %v7887
  %8514 = vmatpush1.bf16.msra.mxu0 %v7886
  %8515 = vmatprep.subr.bf16.mxu0 %v7899
  %8516 = vmatpush1.bf16.msra.mxu0 %v7898
  %8517 = vmatprep.subr.bf16.mxu0 %v7911
  %8518 = vmatpush1.bf16.msra.mxu0 %v7910
  %8519 = vmatprep.subr.bf16.mxu0 %v7923
  %8520 = vmatpush1.bf16.msra.mxu0 %v7922
  %8521 = vmatprep.subr.bf16.mxu0 %v7935
  %8522 = vmatpush1.bf16.msra.mxu0 %v7934
  %8523 = vmatprep.subr.bf16.mxu0 %v7947
  %8524 = vmatpush1.bf16.msra.mxu0 %v7946
  %8525 = vmatprep.subr.bf16.mxu0 %v7959
  %8526 = vmatpush1.bf16.msra.mxu0 %v7958
  %8527 = vmatprep.subr.bf16.mxu0 %v7971
  %8528 = vmatpush1.bf16.msra.mxu0 %v7970
  %8529 = vmatprep.subr.bf16.mxu0 %v7983
  %8530 = vmatpush1.bf16.msra.mxu0 %v7982
  %8531 = vmatprep.mubr.bf16.mxu0 %v6007
  %8532 = vmatmul.mubr.bf16.gmra.mrb[0].mxu0 %v6006
  %v8533 = vpop.f32.mrb[0].mxu0
  %v8534 = vadd.f32 %v8493, %v8533
  %v8535 = vpop.f32.mrb[0].mxu0
  %v8536 = vadd.f32 %v8495, %v8535
  %v8537 = vpop.f32.mrb[0].mxu0
  %v8538 = vpop.f32.mrb[0].mxu0
  %8539 = vdwg.mxu0
  %8540 = vmatprep.subr.bf16.mxu0 %v7613
  %8541 = vmatpush1.bf16.msra.mxu0 %v7612
  %8542 = vmatprep.subr.bf16.mxu0 %v7625
  %8543 = vmatpush1.bf16.msra.mxu0 %v7624
  %8544 = vmatprep.subr.bf16.mxu0 %v7637
  %8545 = vmatpush1.bf16.msra.mxu0 %v7636
  %8546 = vmatprep.subr.bf16.mxu0 %v7649
  %8547 = vmatpush1.bf16.msra.mxu0 %v7648
  %8548 = vmatprep.subr.bf16.mxu0 %v7661
  %8549 = vmatpush1.bf16.msra.mxu0 %v7660
  %8550 = vmatprep.subr.bf16.mxu0 %v7673
  %8551 = vmatpush1.bf16.msra.mxu0 %v7672
  %8552 = vmatprep.subr.bf16.mxu0 %v7685
  %8553 = vmatpush1.bf16.msra.mxu0 %v7684
  %8554 = vmatprep.subr.bf16.mxu0 %v7697
  %8555 = vmatpush1.bf16.msra.mxu0 %v7696
  %8556 = vmatprep.subr.bf16.mxu0 %v7709
  %8557 = vmatpush1.bf16.msra.mxu0 %v7708
  %8558 = vmatprep.subr.bf16.mxu0 %v7721
  %8559 = vmatpush1.bf16.msra.mxu0 %v7720
  %8560 = vmatprep.subr.bf16.mxu0 %v7733
  %8561 = vmatpush1.bf16.msra.mxu0 %v7732
  %8562 = vmatprep.subr.bf16.mxu0 %v7745
  %8563 = vmatpush1.bf16.msra.mxu0 %v7744
  %8564 = vmatprep.subr.bf16.mxu0 %v7757
  %8565 = vmatpush1.bf16.msra.mxu0 %v7756
  %8566 = vmatprep.subr.bf16.mxu0 %v7769
  %8567 = vmatpush1.bf16.msra.mxu0 %v7768
  %8568 = vmatprep.subr.bf16.mxu0 %v7781
  %8569 = vmatpush1.bf16.msra.mxu0 %v7780
  %8570 = vmatprep.subr.bf16.mxu0 %v7793
  %8571 = vmatpush1.bf16.msra.mxu0 %v7792
  %8572 = vmatprep.mubr.bf16.mxu0 %v6005
  %8573 = vmatmul.mubr.bf16.gmra.mrb[0].mxu0 %v6004
  %v8574 = vpop.f32.mrb[0].mxu0
  %v8575 = vadd.f32 %v6415, %v8574
  %v8576 = vpop.f32.mrb[0].mxu0
  %v8577 = vadd.f32 %v6419, %v8576
  %v8578 = vpop.f32.mrb[0].mxu0
  %v8579 = vpop.f32.mrb[0].mxu0
  %8580 = vdwg.mxu0
  %8581 = vmatprep.subr.bf16.mxu0 %v7805
  %8582 = vmatpush1.bf16.msra.mxu0 %v7804
  %8583 = vmatprep.subr.bf16.mxu0 %v7817
  %8584 = vmatpush1.bf16.msra.mxu0 %v7816
  %8585 = vmatprep.subr.bf16.mxu0 %v7829
  %8586 = vmatpush1.bf16.msra.mxu0 %v7828
  %8587 = vmatprep.subr.bf16.mxu0 %v7841
  %8588 = vmatpush1.bf16.msra.mxu0 %v7840
  %8589 = vmatprep.subr.bf16.mxu0 %v7853
  %8590 = vmatpush1.bf16.msra.mxu0 %v7852
  %8591 = vmatprep.subr.bf16.mxu0 %v7865
  %8592 = vmatpush1.bf16.msra.mxu0 %v7864
  %8593 = vmatprep.subr.bf16.mxu0 %v7877
  %8594 = vmatpush1.bf16.msra.mxu0 %v7876
  %8595 = vmatprep.subr.bf16.mxu0 %v7889
  %8596 = vmatpush1.bf16.msra.mxu0 %v7888
  %8597 = vmatprep.subr.bf16.mxu0 %v7901
  %8598 = vmatpush1.bf16.msra.mxu0 %v7900
  %8599 = vmatprep.subr.bf16.mxu0 %v7913
  %8600 = vmatpush1.bf16.msra.mxu0 %v7912
  %8601 = vmatprep.subr.bf16.mxu0 %v7925
  %8602 = vmatpush1.bf16.msra.mxu0 %v7924
  %8603 = vmatprep.subr.bf16.mxu0 %v7937
  %8604 = vmatpush1.bf16.msra.mxu0 %v7936
  %8605 = vmatprep.subr.bf16.mxu0 %v7949
  %8606 = vmatpush1.bf16.msra.mxu0 %v7948
  %8607 = vmatprep.subr.bf16.mxu0 %v7961
  %8608 = vmatpush1.bf16.msra.mxu0 %v7960
  %8609 = vmatprep.subr.bf16.mxu0 %v7973
  %8610 = vmatpush1.bf16.msra.mxu0 %v7972
  %8611 = vmatprep.subr.bf16.mxu0 %v7985
  %8612 = vmatpush1.bf16.msra.mxu0 %v7984
  %8613 = vmatprep.mubr.bf16.mxu0 %v6007
  %8614 = vmatmul.mubr.bf16.gmra.mrb[0].mxu0 %v6006
  %v8615 = vpop.f32.mrb[0].mxu0
  %v8616 = vadd.f32 %v8575, %v8615
  %v8617 = vpop.f32.mrb[0].mxu0
  %v8618 = vadd.f32 %v8577, %v8617
  %v8619 = vpop.f32.mrb[0].mxu0
  %v8620 = vpop.f32.mrb[0].mxu0
  %8621 = vdwg.mxu0
  %8622 = vmatprep.subr.bf16.mxu0 %v7615
  %8623 = vmatpush1.bf16.msra.mxu0 %v7614
  %8624 = vmatprep.subr.bf16.mxu0 %v7627
  %8625 = vmatpush1.bf16.msra.mxu0 %v7626
  %8626 = vmatprep.subr.bf16.mxu0 %v7639
  %8627 = vmatpush1.bf16.msra.mxu0 %v7638
  %8628 = vmatprep.subr.bf16.mxu0 %v7651
  %8629 = vmatpush1.bf16.msra.mxu0 %v7650
  %8630 = vmatprep.subr.bf16.mxu0 %v7663
  %8631 = vmatpush1.bf16.msra.mxu0 %v7662
  %8632 = vmatprep.subr.bf16.mxu0 %v7675
  %8633 = vmatpush1.bf16.msra.mxu0 %v7674
  %8634 = vmatprep.subr.bf16.mxu0 %v7687
  %8635 = vmatpush1.bf16.msra.mxu0 %v7686
  %8636 = vmatprep.subr.bf16.mxu0 %v7699
  %8637 = vmatpush1.bf16.msra.mxu0 %v7698
  %8638 = vmatprep.subr.bf16.mxu0 %v7711
  %8639 = vmatpush1.bf16.msra.mxu0 %v7710
  %8640 = vmatprep.subr.bf16.mxu0 %v7723
  %8641 = vmatpush1.bf16.msra.mxu0 %v7722
  %8642 = vmatprep.subr.bf16.mxu0 %v7735
  %8643 = vmatpush1.bf16.msra.mxu0 %v7734
  %8644 = vmatprep.subr.bf16.mxu0 %v7747
  %8645 = vmatpush1.bf16.msra.mxu0 %v7746
  %8646 = vmatprep.subr.bf16.mxu0 %v7759
  %8647 = vmatpush1.bf16.msra.mxu0 %v7758
  %8648 = vmatprep.subr.bf16.mxu0 %v7771
  %8649 = vmatpush1.bf16.msra.mxu0 %v7770
  %8650 = vmatprep.subr.bf16.mxu0 %v7783
  %8651 = vmatpush1.bf16.msra.mxu0 %v7782
  %8652 = vmatprep.subr.bf16.mxu0 %v7795
  %8653 = vmatpush1.bf16.msra.mxu0 %v7794
  %8654 = vmatprep.mubr.bf16.mxu0 %v6005
  %8655 = vmatmul.mubr.bf16.gmra.mrb[0].mxu0 %v6004
  %v8656 = vpop.f32.mrb[0].mxu0
  %v8657 = vadd.f32 %v6423, %v8656
  %v8658 = vpop.f32.mrb[0].mxu0
  %v8659 = vadd.f32 %v6427, %v8658
  %v8660 = vpop.f32.mrb[0].mxu0
  %v8661 = vpop.f32.mrb[0].mxu0
  %8662 = vdwg.mxu0
  %8663 = vmatprep.subr.bf16.mxu0 %v7807
  %8664 = vmatpush1.bf16.msra.mxu0 %v7806
  %8665 = vmatprep.subr.bf16.mxu0 %v7819
  %8666 = vmatpush1.bf16.msra.mxu0 %v7818
  %8667 = vmatprep.subr.bf16.mxu0 %v7831
  %8668 = vmatpush1.bf16.msra.mxu0 %v7830
  %8669 = vmatprep.subr.bf16.mxu0 %v7843
  %8670 = vmatpush1.bf16.msra.mxu0 %v7842
  %8671 = vmatprep.subr.bf16.mxu0 %v7855
  %8672 = vmatpush1.bf16.msra.mxu0 %v7854
  %8673 = vmatprep.subr.bf16.mxu0 %v7867
  %8674 = vmatpush1.bf16.msra.mxu0 %v7866
  %8675 = vmatprep.subr.bf16.mxu0 %v7879
  %8676 = vmatpush1.bf16.msra.mxu0 %v7878
  %8677 = vmatprep.subr.bf16.mxu0 %v7891
  %8678 = vmatpush1.bf16.msra.mxu0 %v7890
  %8679 = vmatprep.subr.bf16.mxu0 %v7903
  %8680 = vmatpush1.bf16.msra.mxu0 %v7902
  %8681 = vmatprep.subr.bf16.mxu0 %v7915
  %8682 = vmatpush1.bf16.msra.mxu0 %v7914
  %8683 = vmatprep.subr.bf16.mxu0 %v7927
  %8684 = vmatpush1.bf16.msra.mxu0 %v7926
  %8685 = vmatprep.subr.bf16.mxu0 %v7939
  %8686 = vmatpush1.bf16.msra.mxu0 %v7938
  %8687 = vmatprep.subr.bf16.mxu0 %v7951
  %8688 = vmatpush1.bf16.msra.mxu0 %v7950
  %8689 = vmatprep.subr.bf16.mxu0 %v7963
  %8690 = vmatpush1.bf16.msra.mxu0 %v7962
  %8691 = vmatprep.subr.bf16.mxu0 %v7975
  %8692 = vmatpush1.bf16.msra.mxu0 %v7974
  %8693 = vmatprep.subr.bf16.mxu0 %v7987
  %8694 = vmatpush1.bf16.msra.mxu0 %v7986
  %8695 = vmatprep.mubr.bf16.mxu0 %v6007
  %8696 = vmatmul.mubr.bf16.gmra.mrb[0].mxu0 %v6006
  %v8697 = vpop.f32.mrb[0].mxu0
  %v8698 = vadd.f32 %v8657, %v8697
  %v8699 = vpop.f32.mrb[0].mxu0
  %v8700 = vadd.f32 %v8659, %v8699
  %v8701 = vpop.f32.mrb[0].mxu0
  %v8702 = vpop.f32.mrb[0].mxu0
  %8703 = vdwg.mxu0
  %8704 = vmatprep.subr.bf16.mxu0 %v7617
  %8705 = vmatpush1.bf16.msra.mxu0 %v7616
  %8706 = vmatprep.subr.bf16.mxu0 %v7629
  %8707 = vmatpush1.bf16.msra.mxu0 %v7628
  %8708 = vmatprep.subr.bf16.mxu0 %v7641
  %8709 = vmatpush1.bf16.msra.mxu0 %v7640
  %8710 = vmatprep.subr.bf16.mxu0 %v7653
  %8711 = vmatpush1.bf16.msra.mxu0 %v7652
  %8712 = vmatprep.subr.bf16.mxu0 %v7665
  %8713 = vmatpush1.bf16.msra.mxu0 %v7664
  %8714 = vmatprep.subr.bf16.mxu0 %v7677
  %8715 = vmatpush1.bf16.msra.mxu0 %v7676
  %8716 = vmatprep.subr.bf16.mxu0 %v7689
  %8717 = vmatpush1.bf16.msra.mxu0 %v7688
  %8718 = vmatprep.subr.bf16.mxu0 %v7701
  %8719 = vmatpush1.bf16.msra.mxu0 %v7700
  %8720 = vmatprep.subr.bf16.mxu0 %v7713
  %8721 = vmatpush1.bf16.msra.mxu0 %v7712
  %8722 = vmatprep.subr.bf16.mxu0 %v7725
  %8723 = vmatpush1.bf16.msra.mxu0 %v7724
  %8724 = vmatprep.subr.bf16.mxu0 %v7737
  %8725 = vmatpush1.bf16.msra.mxu0 %v7736
  %8726 = vmatprep.subr.bf16.mxu0 %v7749
  %8727 = vmatpush1.bf16.msra.mxu0 %v7748
  %8728 = vmatprep.subr.bf16.mxu0 %v7761
  %8729 = vmatpush1.bf16.msra.mxu0 %v7760
  %8730 = vmatprep.subr.bf16.mxu0 %v7773
  %8731 = vmatpush1.bf16.msra.mxu0 %v7772
  %8732 = vmatprep.subr.bf16.mxu0 %v7785
  %8733 = vmatpush1.bf16.msra.mxu0 %v7784
  %8734 = vmatprep.subr.bf16.mxu0 %v7797
  %8735 = vmatpush1.bf16.msra.mxu0 %v7796
  %8736 = vmatprep.mubr.bf16.mxu0 %v6005
  %8737 = vmatmul.mubr.bf16.gmra.mrb[0].mxu0 %v6004
  %v8738 = vpop.f32.mrb[0].mxu0
  %v8739 = vadd.f32 %v6431, %v8738
  %v8740 = vpop.f32.mrb[0].mxu0
  %v8741 = vadd.f32 %v6435, %v8740
  %v8742 = vpop.f32.mrb[0].mxu0
  %v8743 = vpop.f32.mrb[0].mxu0
  %8744 = vdwg.mxu0
  %8745 = vmatprep.subr.bf16.mxu0 %v7809
  %8746 = vmatpush1.bf16.msra.mxu0 %v7808
  %8747 = vmatprep.subr.bf16.mxu0 %v7821
  %8748 = vmatpush1.bf16.msra.mxu0 %v7820
  %8749 = vmatprep.subr.bf16.mxu0 %v7833
  %8750 = vmatpush1.bf16.msra.mxu0 %v7832
  %8751 = vmatprep.subr.bf16.mxu0 %v7845
  %8752 = vmatpush1.bf16.msra.mxu0 %v7844
  %8753 = vmatprep.subr.bf16.mxu0 %v7857
  %8754 = vmatpush1.bf16.msra.mxu0 %v7856
  %8755 = vmatprep.subr.bf16.mxu0 %v7869
  %8756 = vmatpush1.bf16.msra.mxu0 %v7868
  %8757 = vmatprep.subr.bf16.mxu0 %v7881
  %8758 = vmatpush1.bf16.msra.mxu0 %v7880
  %8759 = vmatprep.subr.bf16.mxu0 %v7893
  %8760 = vmatpush1.bf16.msra.mxu0 %v7892
  %8761 = vmatprep.subr.bf16.mxu0 %v7905
  %8762 = vmatpush1.bf16.msra.mxu0 %v7904
  %8763 = vmatprep.subr.bf16.mxu0 %v7917
  %8764 = vmatpush1.bf16.msra.mxu0 %v7916
  %8765 = vmatprep.subr.bf16.mxu0 %v7929
  %8766 = vmatpush1.bf16.msra.mxu0 %v7928
  %8767 = vmatprep.subr.bf16.mxu0 %v7941
  %8768 = vmatpush1.bf16.msra.mxu0 %v7940
  %8769 = vmatprep.subr.bf16.mxu0 %v7953
  %8770 = vmatpush1.bf16.msra.mxu0 %v7952
  %8771 = vmatprep.subr.bf16.mxu0 %v7965
  %8772 = vmatpush1.bf16.msra.mxu0 %v7964
  %8773 = vmatprep.subr.bf16.mxu0 %v7977
  %8774 = vmatpush1.bf16.msra.mxu0 %v7976
  %8775 = vmatprep.subr.bf16.mxu0 %v7989
  %8776 = vmatpush1.bf16.msra.mxu0 %v7988
  %8777 = vmatprep.mubr.bf16.mxu0 %v6007
  %8778 = vmatmul.mubr.bf16.gmra.mrb[0].mxu0 %v6006
  %v8779 = vpop.f32.mrb[0].mxu0
  %v8780 = vadd.f32 %v8739, %v8779
  %v8781 = vpop.f32.mrb[0].mxu0
  %v8782 = vadd.f32 %v8741, %v8781
  %v8783 = vpop.f32.mrb[0].mxu0
  %v8784 = vpop.f32.mrb[0].mxu0
  %8785 = vdwg.mxu0
  %8786 = vmatprep.subr.bf16.mxu0 %v7619
  %8787 = vmatpush1.bf16.msra.mxu0 %v7618
  %8788 = vmatprep.subr.bf16.mxu0 %v7631
  %8789 = vmatpush1.bf16.msra.mxu0 %v7630
  %8790 = vmatprep.subr.bf16.mxu0 %v7643
  %8791 = vmatpush1.bf16.msra.mxu0 %v7642
  %8792 = vmatprep.subr.bf16.mxu0 %v7655
  %8793 = vmatpush1.bf16.msra.mxu0 %v7654
  %8794 = vmatprep.subr.bf16.mxu0 %v7667
  %8795 = vmatpush1.bf16.msra.mxu0 %v7666
  %8796 = vmatprep.subr.bf16.mxu0 %v7679
  %8797 = vmatpush1.bf16.msra.mxu0 %v7678
  %8798 = vmatprep.subr.bf16.mxu0 %v7691
  %8799 = vmatpush1.bf16.msra.mxu0 %v7690
  %8800 = vmatprep.subr.bf16.mxu0 %v7703
  %8801 = vmatpush1.bf16.msra.mxu0 %v7702
  %8802 = vmatprep.subr.bf16.mxu0 %v7715
  %8803 = vmatpush1.bf16.msra.mxu0 %v7714
  %8804 = vmatprep.subr.bf16.mxu0 %v7727
  %8805 = vmatpush1.bf16.msra.mxu0 %v7726
  %8806 = vmatprep.subr.bf16.mxu0 %v7739
  %8807 = vmatpush1.bf16.msra.mxu0 %v7738
  %8808 = vmatprep.subr.bf16.mxu0 %v7751
  %8809 = vmatpush1.bf16.msra.mxu0 %v7750
  %8810 = vmatprep.subr.bf16.mxu0 %v7763
  %8811 = vmatpush1.bf16.msra.mxu0 %v7762
  %8812 = vmatprep.subr.bf16.mxu0 %v7775
  %8813 = vmatpush1.bf16.msra.mxu0 %v7774
  %8814 = vmatprep.subr.bf16.mxu0 %v7787
  %8815 = vmatpush1.bf16.msra.mxu0 %v7786
  %8816 = vmatprep.subr.bf16.mxu0 %v7799
  %8817 = vmatpush1.bf16.msra.mxu0 %v7798
  %8818 = vmatprep.mubr.bf16.mxu0 %v6005
  %8819 = vmatmul.mubr.bf16.gmra.mrb[0].mxu0 %v6004
  %v8820 = vpop.f32.mrb[0].mxu0
  %v8821 = vadd.f32 %v6439, %v8820
  %v8822 = vpop.f32.mrb[0].mxu0
  %v8823 = vadd.f32 %v6443, %v8822
  %v8824 = vpop.f32.mrb[0].mxu0
  %v8825 = vpop.f32.mrb[0].mxu0
  %8826 = vdwg.mxu0
  %8827 = vmatprep.subr.bf16.mxu0 %v7811
  %8828 = vmatpush1.bf16.msra.mxu0 %v7810
  %8829 = vmatprep.subr.bf16.mxu0 %v7823
  %8830 = vmatpush1.bf16.msra.mxu0 %v7822
  %8831 = vmatprep.subr.bf16.mxu0 %v7835
  %8832 = vmatpush1.bf16.msra.mxu0 %v7834
  %8833 = vmatprep.subr.bf16.mxu0 %v7847
  %8834 = vmatpush1.bf16.msra.mxu0 %v7846
  %8835 = vmatprep.subr.bf16.mxu0 %v7859
  %8836 = vmatpush1.bf16.msra.mxu0 %v7858
  %8837 = vmatprep.subr.bf16.mxu0 %v7871
  %8838 = vmatpush1.bf16.msra.mxu0 %v7870
  %8839 = vmatprep.subr.bf16.mxu0 %v7883
  %8840 = vmatpush1.bf16.msra.mxu0 %v7882
  %8841 = vmatprep.subr.bf16.mxu0 %v7895
  %8842 = vmatpush1.bf16.msra.mxu0 %v7894
  %8843 = vmatprep.subr.bf16.mxu0 %v7907
  %8844 = vmatpush1.bf16.msra.mxu0 %v7906
  %8845 = vmatprep.subr.bf16.mxu0 %v7919
  %8846 = vmatpush1.bf16.msra.mxu0 %v7918
  %8847 = vmatprep.subr.bf16.mxu0 %v7931
  %8848 = vmatpush1.bf16.msra.mxu0 %v7930
  %8849 = vmatprep.subr.bf16.mxu0 %v7943
  %8850 = vmatpush1.bf16.msra.mxu0 %v7942
  %8851 = vmatprep.subr.bf16.mxu0 %v7955
  %8852 = vmatpush1.bf16.msra.mxu0 %v7954
  %8853 = vmatprep.subr.bf16.mxu0 %v7967
  %8854 = vmatpush1.bf16.msra.mxu0 %v7966
  %8855 = vmatprep.subr.bf16.mxu0 %v7979
  %8856 = vmatpush1.bf16.msra.mxu0 %v7978
  %8857 = vmatprep.subr.bf16.mxu0 %v7991
  %8858 = vmatpush1.bf16.msra.mxu0 %v7990
  %8859 = vmatprep.mubr.bf16.mxu0 %v6007
  %8860 = vmatmul.mubr.bf16.gmra.mrb[0].mxu0 %v6006
  %v8861 = vpop.f32.mrb[0].mxu0
  %v8862 = vadd.f32 %v8821, %v8861
  %v8863 = vpop.f32.mrb[0].mxu0
  %v8864 = vadd.f32 %v8823, %v8863
  %v8865 = vpop.f32.mrb[0].mxu0
  %v8866 = vpop.f32.mrb[0].mxu0
  %8867 = vdwg.mxu0
  %v8868 = vadd.f32 %v5566, %v8452
  %v8869 = vadd.f32 %v5568, %v8454
  %v8870 = vadd.f32 %v5648, %v8534
  %v8871 = vadd.f32 %v5650, %v8536
  %v8872 = vxor.u32 %v8868, 2147483648
  %v8873 = vxor.u32 %v8869, 2147483648
  %v8874 = vxor.u32 %v8870, 2147483648
  %v8875 = vxor.u32 %v8871, 2147483648
  %v8876 = vmul.f32 %v8872, 1.442695
  %v8877 = vpow.pop %v8876
  %v8878 = vmul.f32 %v8873, 1.442695
  %v8879 = vpow.pop %v8878
  %v8880 = vmul.f32 %v8874, 1.442695
  %v8881 = vpow.pop %v8880
  %v8882 = vmul.f32 %v8875, 1.442695
  %v8883 = vpow.pop %v8882
  %v8884 = vadd.f32 %v8877, 1.0
  %v8885 = vadd.f32 %v8879, 1.0
  %v8886 = vadd.f32 %v8881, 1.0
  %v8887 = vadd.f32 %v8883, 1.0
  %v8888 = vrcp.pop %v8884
  %v8889 = vmul.f32 1.0, %v8888
  %v8890 = vrcp.pop %v8885
  %v8891 = vmul.f32 1.0, %v8890
  %v8892 = vrcp.pop %v8886
  %v8893 = vmul.f32 1.0, %v8892
  %v8894 = vrcp.pop %v8887
  %v8895 = vmul.f32 1.0, %v8894
  %v8896 = vadd.f32 %v5730, %v8616
  %v8897 = vadd.f32 %v5732, %v8618
  %v8898 = vadd.f32 %v5812, %v8698
  %v8899 = vadd.f32 %v5814, %v8700
  %v8900 = vxor.u32 %v8896, 2147483648
  %v8901 = vxor.u32 %v8897, 2147483648
  %v8902 = vxor.u32 %v8898, 2147483648
  %v8903 = vxor.u32 %v8899, 2147483648
  %v8904 = vmul.f32 %v8900, 1.442695
  %v8905 = vpow.pop %v8904
  %v8906 = vmul.f32 %v8901, 1.442695
  %v8907 = vpow.pop %v8906
  %v8908 = vmul.f32 %v8902, 1.442695
  %v8909 = vpow.pop %v8908
  %v8910 = vmul.f32 %v8903, 1.442695
  %v8911 = vpow.pop %v8910
  %v8912 = vadd.f32 %v8905, 1.0
  %v8913 = vadd.f32 %v8907, 1.0
  %v8914 = vadd.f32 %v8909, 1.0
  %v8915 = vadd.f32 %v8911, 1.0
  %v8916 = vrcp.pop %v8912
  %v8917 = vmul.f32 1.0, %v8916
  %v8918 = vrcp.pop %v8913
  %v8919 = vmul.f32 1.0, %v8918
  %v8920 = vrcp.pop %v8914
  %v8921 = vmul.f32 1.0, %v8920
  %v8922 = vrcp.pop %v8915
  %v8923 = vmul.f32 1.0, %v8922
  %v8924 = vmul.f32 %v8889, %v8780
  %v8925 = vmul.f32 %v8891, %v8782
  %v8926 = vmul.f32 %v8893, %v8862
  %v8927 = vmul.f32 %v8895, %v8864
  %v8928 = vadd.f32 %v5894, %v8924
  %v8929 = vadd.f32 %v5896, %v8925
  %v8930 = vadd.f32 %v5976, %v8926
  %v8931 = vadd.f32 %v5978, %v8927
  %v8932 = vtanh.pop %v8928
  %v8933 = vtanh.pop %v8929
  %v8934 = vtanh.pop %v8930
  %v8935 = vtanh.pop %v8931
  %v8936 = vsub.f32 1.0, %v8917
  %v8937 = vsub.f32 1.0, %v8919
  %v8938 = vsub.f32 1.0, %v8921
  %v8939 = vsub.f32 1.0, %v8923
  %v8940 = vmul.f32 %v8936, %v8932
  %v8941 = vmul.f32 %v8937, %v8933
  %v8942 = vmul.f32 %v8938, %v8934
  %v8943 = vmul.f32 %v8939, %v8935
  %v8944 = vmul.f32 %v8917, %v5990
  %v8945 = vmul.f32 %v8919, %v5998
  %v8946 = vmul.f32 %v8921, %v5997
  %v8947 = vmul.f32 %v8923, %v5999
  %v8948 = vadd.f32 %v8940, %v8944
  %v8949 = vadd.f32 %v8941, %v8945
  %v8950 = vadd.f32 %v8942, %v8946
  %v8951 = vadd.f32 %v8943, %v8947
  %v8956 = vcombine.low %v8948, %v8949
  %v8957 = vcombine.low %v8950, %v8951
  %v8959 = vunpack.c.l.s4 1983009808
  %v8960 = vunpack.c.0.s8 %v8959
  %v8961 = vlaneseq
  %v8962 = vshrl.u32 %v8961, 7
  %v8963 = vsub.s32 %v8960, %v8962
  %v8964 = vrot.slane %v8956, %v8963
  %v8966 = vunpack.c.l.s4 1983009808
  %v8967 = vunpack.c.0.s8 %v8966
  %v8968 = vlaneseq
  %v8969 = vshrl.u32 %v8968, 7
  %v8970 = vsub.s32 %v8967, %v8969
  %v8971 = vrot.slane %v8957, %v8970
  %v8972 = vcombine.low %v8964, %v8971
  %8974 = vst [vmem:[%s11] sm:$0xff] %v8972
  %v8975 = vld [vmem:[%s9] sm:$0xf]
  %v8977 = vlaneseq
  %v8978 = vshrl.u32 %v8977, 7
  %v8979 = vsub.s32 0, %v8978
  %v8980 = vrot.slane %v8975, %v8979
  %v8981 = vlaneseq
  %v8982 = vshrl.u32 %v8981, 7
  %v8983 = vsub.s32 1, %v8982
  %v8984 = vrot.slane %v8975, %v8983
  %v8985 = vlaneseq
  %v8986 = vshrl.u32 %v8985, 7
  %v8987 = vsub.s32 2, %v8986
  %v8988 = vrot.slane %v8975, %v8987
  %v8989 = vlaneseq
  %v8990 = vshrl.u32 %v8989, 7
  %v8991 = vsub.s32 3, %v8990
  %v8992 = vrot.slane %v8975, %v8991
  %v8997 = vmul.f32 %v8948, %v8980
  %v8998 = vmul.f32 %v8949, %v8984
  %v8999 = vmul.f32 %v8950, %v8988
  %v9000 = vmul.f32 %v8951, %v8992
  %vm9001 = vcmask 1041408
  %v9002 = vsel %vm9001, %v8997, 0.0
  %v9003 = vsel %vm9001, %v8998, 0.0
  %v9004 = vadd.f32 %v9002, %v9003
  %v9005 = vsel %vm9001, %v8999, 0.0
  %v9006 = vadd.f32 %v9004, %v9005
  %v9007 = vsel %vm9001, %v9000, 0.0
  %v9008 = vadd.f32 %v9006, %v9007
  %9009 = vadd.xlane.f32.xlu0 %v9008
  %v9010 = vpop.xlane.xlu0 %9009
  %v9011 = vld [vmem:[#allocation2] sm:$0x1]
  %v9013 = vlaneseq
  %v9014 = vshrl.u32 %v9013, 7
  %v9015 = vsub.s32 0, %v9014
  %v9016 = vrot.slane %v9011, %v9015
  %v9018 = vadd.f32 %v9010, %v9016
  %vm9019 = vcmask 1024
  %9020 = vst.msk [vmem:[%s12] sm:$0x3] %vm9019, %v9018
  // Predicated region
  $region46: #{cnn_policy_forward.7} parent=0 // pred_check
    _
  $region47: #{cnn_policy_forward.7} parent=0 // pred_check_branch
    %9022 = sbr.rel (0) target = $region49
  $region48: #{cnn_policy_forward.7} parent=0 // pred_region
    _
  $region49: #{cnn_policy_forward.7} parent=0 // pred_fallthru
    _
  // Predicated region
  $region50: #{cnn_policy_forward.7} parent=0 // pred_check
    _
  $region51: #{cnn_policy_forward.7} parent=0 // pred_check_branch
    %9024 = sbr.rel (0) target = $region53
  $region52: #{cnn_policy_forward.7} parent=0 // pred_region
    _
  $region53: #{cnn_policy_forward.7} parent=0 // pred_fallthru
    _
  // Predicated region
  $region54: #{cnn_policy_forward.7} parent=0 // pred_check
    _
  $region55: #{cnn_policy_forward.7} parent=0 // pred_check_branch
    %9026 = sbr.rel (0) target = $region57
  $region56: #{cnn_policy_forward.7} parent=0 // pred_region
    _
  $region57: #{cnn_policy_forward.7} parent=0 // pred_fallthru
    _
  // Predicated region
  $region58: #{cnn_policy_forward.7} parent=0 // pred_check
    _
  $region59: #{cnn_policy_forward.7} parent=0 // pred_check_branch
    %9028 = sbr.rel (0) target = $region61
  $region60: #{cnn_policy_forward.7} parent=0 // pred_region
    _
  $region61: #{cnn_policy_forward.7} parent=0 // pred_fallthru
    _

</llo_original>
